<compile_context>
chip_gen: v6e
topology: v6e:2x2x1
jax: 0.10.0
libtpu: 0.0.40
codegen_flags: <defaults>
</compile_context>

<pallas_src>
import functools
import math

import jax
import jax.numpy as jnp
from jax import lax
from jax.experimental import pallas as pl
from jax.experimental.pallas import tpu as pltpu


# ----------------------------------------------------------------------------
# In-kernel helpers (operate on f32 values + weight refs).
# ----------------------------------------------------------------------------
def _layer_norm(y, w_ref, b_ref, eps=1e-5):
    w = w_ref[...].astype(jnp.float32)          # (1, D)
    b = b_ref[...].astype(jnp.float32)          # (1, D)
    mu = jnp.mean(y, axis=-1, keepdims=True)
    var = jnp.mean((y - mu) * (y - mu), axis=-1, keepdims=True)
    return (y - mu) * lax.rsqrt(var + eps) * w + b


def _encoder_layer(x, refs, nhead):
    """One post-norm nn.TransformerEncoderLayer (ReLU FFN, eps=1e-5) on (S, D)."""
    (in_w_ref, in_b_ref, out_w_ref, out_b_ref,
     ln1_w_ref, ln1_b_ref, ln2_w_ref, ln2_b_ref,
     ff1_w_ref, ff1_b_ref, ff2_w_ref, ff2_b_ref) = refs

    S, D = x.shape
    hd = D // nhead
    scale = 1.0 / math.sqrt(hd)

    # ---- QKV projection (one tall matmul) --------------------------------
    in_w = in_w_ref[...].astype(jnp.float32)    # (3D, D)
    in_b = in_b_ref[...].astype(jnp.float32)    # (1, 3D)
    qkv = lax.dot_general(x, in_w, (((1,), (1,)), ((), ())),
                          preferred_element_type=jnp.float32) + in_b   # (S, 3D)

    q = qkv[:, 0 * D:1 * D] * scale             # pre-scale q once
    k = qkv[:, 1 * D:2 * D]
    v = qkv[:, 2 * D:3 * D]

    out_w = out_w_ref[...].astype(jnp.float32)  # (D, D)
    out_b = out_b_ref[...].astype(jnp.float32)  # (1, D)

    # ---- per-head attention; output projection folded into per-head sum ---
    attn_out = jnp.zeros((S, D), jnp.float32)
    for h in range(nhead):
        sl = slice(h * hd, (h + 1) * hd)
        s = lax.dot_general(q[:, sl], k[:, sl], (((1,), (1,)), ((), ())),
                            preferred_element_type=jnp.float32)        # (S, S)
        s = s - jnp.max(s, axis=-1, keepdims=True)
        p = jnp.exp(s)
        p = p * pl.reciprocal(jnp.sum(p, axis=-1, keepdims=True))
        head = jnp.dot(p, v[:, sl], preferred_element_type=jnp.float32)  # (S, hd)
        # head @ out_w[:, sl].T contributes to all D output columns.
        attn_out = attn_out + lax.dot_general(
            head, out_w[:, sl], (((1,), (1,)), ((), ())),
            preferred_element_type=jnp.float32)
    attn_out = attn_out + out_b

    # ---- residual + LayerNorm 1 -------------------------------------------
    x1 = _layer_norm(x + attn_out, ln1_w_ref, ln1_b_ref)

    # ---- Feed-forward block -------------------------------------------------
    ff1_w = ff1_w_ref[...].astype(jnp.float32)  # (F, D)
    ff1_b = ff1_b_ref[...].astype(jnp.float32)  # (1, F)
    ff2_w = ff2_w_ref[...].astype(jnp.float32)  # (D, F)
    ff2_b = ff2_b_ref[...].astype(jnp.float32)  # (1, D)

    h1 = jnp.maximum(
        lax.dot_general(x1, ff1_w, (((1,), (1,)), ((), ())),
                        preferred_element_type=jnp.float32) + ff1_b, 0.0)
    ff_out = lax.dot_general(h1, ff2_w, (((1,), (1,)), ((), ())),
                             preferred_element_type=jnp.float32) + ff2_b

    # ---- residual + LayerNorm 2 ---------------------------------------------
    return _layer_norm(x1 + ff_out, ln2_w_ref, ln2_b_ref)


# ----------------------------------------------------------------------------
# Fused kernel: full MultiFusionLayer forward for one batch element.
# ----------------------------------------------------------------------------
def multi_fusion_kernel(xt_ref, xv_ref, bt_ref, *rest, nhead, t_len, v_len):
    tb_refs = rest[0:12]
    vb_refs = rest[12:24]
    ot_ref, ov_ref, ob_ref = rest[24], rest[25], rest[26]

    xt = xt_ref[0].astype(jnp.float32)          # (T,  D)
    xv = xv_ref[0].astype(jnp.float32)          # (V,  D)
    bt = bt_ref[0].astype(jnp.float32)          # (Bn, D)

    # text + bottleneck through encoder layer "tb"
    y = _encoder_layer(jnp.concatenate([xt, bt], axis=0), tb_refs, nhead)
    xt_new = y[:t_len]
    bt_new = y[t_len:]

    # vision + updated bottleneck through encoder layer "vb"
    z = _encoder_layer(jnp.concatenate([xv, bt_new], axis=0), vb_refs, nhead)

    ot_ref[0] = xt_new.astype(ot_ref.dtype)
    ov_ref[0] = z[:v_len].astype(ov_ref.dtype)
    ob_ref[0] = z[v_len:].astype(ob_ref.dtype)


def _flatten_params(p):
    return [
        p["in_w"], p["in_b"].reshape(1, -1),
        p["out_w"], p["out_b"].reshape(1, -1),
        p["ln1_w"].reshape(1, -1), p["ln1_b"].reshape(1, -1),
        p["ln2_w"].reshape(1, -1), p["ln2_b"].reshape(1, -1),
        p["ff1_w"], p["ff1_b"].reshape(1, -1),
        p["ff2_w"], p["ff2_b"].reshape(1, -1),
    ]


def multi_fusion_layer_forward(src_text, src_vision, bottleneck,
                               params_tb, params_vb, nhead):
    """Pallas implementation of MultiFusionLayer.forward (returns a 3-tuple)."""
    B, T, D = src_text.shape
    V = src_vision.shape[1]
    Bn = bottleneck.shape[1]

    weights = _flatten_params(params_tb) + _flatten_params(params_vb)

    in_specs = [
        pl.BlockSpec((1, T, D), lambda b: (b, 0, 0)),
        pl.BlockSpec((1, V, D), lambda b: (b, 0, 0)),
        pl.BlockSpec((1, Bn, D), lambda b: (b, 0, 0)),
    ]
    for w in weights:
        # Constant block index -> weight fetched once, VMEM-resident over the grid.
        in_specs.append(pl.BlockSpec(w.shape, lambda b, n=w.ndim: (0,) * n))

    out_shapes = (
        jax.ShapeDtypeStruct((B, T, D), src_text.dtype),
        jax.ShapeDtypeStruct((B, V, D), src_vision.dtype),
        jax.ShapeDtypeStruct((B, Bn, D), bottleneck.dtype),
    )
    out_specs = (
        pl.BlockSpec((1, T, D), lambda b: (b, 0, 0)),
        pl.BlockSpec((1, V, D), lambda b: (b, 0, 0)),
        pl.BlockSpec((1, Bn, D), lambda b: (b, 0, 0)),
    )

    return pl.pallas_call(
        functools.partial(multi_fusion_kernel, nhead=nhead, t_len=T, v_len=V),
        out_shape=out_shapes,
        grid=(B,),
        in_specs=in_specs,
        out_specs=out_specs,
        compiler_params=pltpu.CompilerParams(
            dimension_semantics=("parallel",)),
    )(src_text, src_vision, bottleneck, *weights)


# ----------------------------------------------------------------------------
# Pure-JAX reference (mirrors PyTorch nn.TransformerEncoderLayer, eval mode).
# ----------------------------------------------------------------------------
def _ref_layer_norm(y, w, b, eps=1e-5):
    mu = jnp.mean(y, axis=-1, keepdims=True)
    var = jnp.mean((y - mu) ** 2, axis=-1, keepdims=True)
    return (y - mu) / jnp.sqrt(var + eps) * w + b


def reference_encoder_layer(x, p, nhead):
    B, S, D = x.shape
    hd = D // nhead
    hi = jax.lax.Precision.HIGHEST

    qkv = jnp.einsum("bsd,ed->bse", x, p["in_w"], precision=hi) + p["in_b"]
    q, k, v = jnp.split(qkv, 3, axis=-1)

    def heads(t):
        return t.reshape(B, S, nhead, hd).transpose(0, 2, 1, 3)  # (B,H,S,hd)

    qh, kh, vh = heads(q), heads(k), heads(v)
    s = jnp.einsum("bhqd,bhkd->bhqk", qh, kh, precision=hi) / math.sqrt(hd)
    a = jax.nn.softmax(s, axis=-1)
    o = jnp.einsum("bhqk,bhkd->bhqd", a, vh, precision=hi)
    o = o.transpose(0, 2, 1, 3).reshape(B, S, D)
    attn_out = jnp.einsum("bsd,ed->bse", o, p["out_w"], precision=hi) + p["out_b"]

    x1 = _ref_layer_norm(x + attn_out, p["ln1_w"], p["ln1_b"])
    h1 = jnp.maximum(
        jnp.einsum("bsd,fd->bsf", x1, p["ff1_w"], precision=hi) + p["ff1_b"], 0.0)
    ff = jnp.einsum("bsf,df->bsd", h1, p["ff2_w"], precision=hi) + p["ff2_b"]
    return _ref_layer_norm(x1 + ff, p["ln2_w"], p["ln2_b"])


def reference_forward(src_text, src_vision, bottleneck, params_tb, params_vb, nhead):
    t_len = src_text.shape[1]
    v_len = src_vision.shape[1]
    y = reference_encoder_layer(
        jnp.concatenate([src_text, bottleneck], axis=1), params_tb, nhead)
    src_text, bottleneck = y[:, :t_len, :], y[:, t_len:, :]
    z = reference_encoder_layer(
        jnp.concatenate([src_vision, bottleneck], axis=1), params_vb, nhead)
    src_vision, bottleneck = z[:, :v_len, :], z[:, v_len:, :]
    return src_text, src_vision, bottleneck


# ----------------------------------------------------------------------------
# Deterministic parameter init (stand-in for nn.TransformerEncoderLayer params).
# ----------------------------------------------------------------------------
def init_layer_params(key, d_model, dim_ff):
    ks = jax.random.split(key, 6)
    s = 0.05
    return dict(
        in_w=jax.random.normal(ks[0], (3 * d_model, d_model), jnp.float32) * s,
        in_b=jnp.zeros((3 * d_model,), jnp.float32),
        out_w=jax.random.normal(ks[1], (d_model, d_model), jnp.float32) * s,
        out_b=jnp.zeros((d_model,), jnp.float32),
        ln1_w=jnp.ones((d_model,), jnp.float32),
        ln1_b=jnp.zeros((d_model,), jnp.float32),
        ln2_w=jnp.ones((d_model,), jnp.float32),
        ln2_b=jnp.zeros((d_model,), jnp.float32),
        ff1_w=jax.random.normal(ks[2], (dim_ff, d_model), jnp.float32) * s,
        ff1_b=jax.random.normal(ks[3], (dim_ff,), jnp.float32) * s,
        ff2_w=jax.random.normal(ks[4], (d_model, dim_ff), jnp.float32) * s,
        ff2_b=jax.random.normal(ks[5], (d_model,), jnp.float32) * s,
    )


if __name__ == "__main__":
    B = 2            # batch
    D = 128          # hidden_size (lane-aligned)
    NHEAD = 4        # nhead (head_dim = 32)
    FF = 2048        # nn.TransformerEncoderLayer default dim_feedforward
    S_TXT, S_VIS, S_BTL = 8, 6, 4

    key = jax.random.PRNGKey(0)
    k1, k2, k3, k4, k5 = jax.random.split(key, 5)
    src_text = jax.random.normal(k1, (B, S_TXT, D), jnp.float32)
    src_vision = jax.random.normal(k2, (B, S_VIS, D), jnp.float32)
    bottleneck = jax.random.normal(k3, (B, S_BTL, D), jnp.float32)
    params_tb = init_layer_params(k4, D, FF)
    params_vb = init_layer_params(k5, D, FF)

    out = multi_fusion_layer_forward(
        src_text, src_vision, bottleneck, params_tb, params_vb, NHEAD)
    out = jax.block_until_ready(out)

    ref = reference_forward(
        src_text, src_vision, bottleneck, params_tb, params_vb, NHEAD)
    ref = jax.block_until_ready(ref)

    names = ("text_embeddings", "image_embeddings", "bottleneck")
    for name, a, b in zip(names, out, ref):
        assert a.shape == b.shape, (name, a.shape, b.shape)
        assert jnp.allclose(a, b, rtol=2e-3, atol=2e-3), (
            name, float(jnp.max(jnp.abs(a - b))))

    print("KERNEL_OK")
</pallas_src>

<mosaic_0001>
module attributes {stable_mosaic.version = 11 : i64} {
  func.func @multi_fusion_kernel(%arg0: i32, %arg1: memref<1x8x128xf32, #tpu.memory_space<vmem>>, %arg2: memref<1x6x128xf32, #tpu.memory_space<vmem>>, %arg3: memref<1x4x128xf32, #tpu.memory_space<vmem>>, %arg4: memref<384x128xf32, #tpu.memory_space<vmem>>, %arg5: memref<1x384xf32, #tpu.memory_space<vmem>>, %arg6: memref<128x128xf32, #tpu.memory_space<vmem>>, %arg7: memref<1x128xf32, #tpu.memory_space<vmem>>, %arg8: memref<1x128xf32, #tpu.memory_space<vmem>>, %arg9: memref<1x128xf32, #tpu.memory_space<vmem>>, %arg10: memref<1x128xf32, #tpu.memory_space<vmem>>, %arg11: memref<1x128xf32, #tpu.memory_space<vmem>>, %arg12: memref<2048x128xf32, #tpu.memory_space<vmem>>, %arg13: memref<1x2048xf32, #tpu.memory_space<vmem>>, %arg14: memref<128x2048xf32, #tpu.memory_space<vmem>>, %arg15: memref<1x128xf32, #tpu.memory_space<vmem>>, %arg16: memref<384x128xf32, #tpu.memory_space<vmem>>, %arg17: memref<1x384xf32, #tpu.memory_space<vmem>>, %arg18: memref<128x128xf32, #tpu.memory_space<vmem>>, %arg19: memref<1x128xf32, #tpu.memory_space<vmem>>, %arg20: memref<1x128xf32, #tpu.memory_space<vmem>>, %arg21: memref<1x128xf32, #tpu.memory_space<vmem>>, %arg22: memref<1x128xf32, #tpu.memory_space<vmem>>, %arg23: memref<1x128xf32, #tpu.memory_space<vmem>>, %arg24: memref<2048x128xf32, #tpu.memory_space<vmem>>, %arg25: memref<1x2048xf32, #tpu.memory_space<vmem>>, %arg26: memref<128x2048xf32, #tpu.memory_space<vmem>>, %arg27: memref<1x128xf32, #tpu.memory_space<vmem>>, %arg28: memref<1x8x128xf32, #tpu.memory_space<vmem>>, %arg29: memref<1x6x128xf32, #tpu.memory_space<vmem>>, %arg30: memref<1x4x128xf32, #tpu.memory_space<vmem>>) attributes {dimension_semantics = [#tpu.dimension_semantics<parallel>], iteration_bounds = array<i64: 2>, scalar_prefetch = 0 : i64, scratch_operands = 0 : i64, tpu.core_type = #tpu.core_type<tc>, window_params = [{transform_indices = @transform_0, window_bounds = array<i64: 1, 8, 128>}, {transform_indices = @transform_1, window_bounds = array<i64: 1, 6, 128>}, {transform_indices = @transform_2, window_bounds = array<i64: 1, 4, 128>}, {pipeline_mode = #tpu.pipeline_mode<synchronous>, transform_indices = @transform_3, window_bounds = array<i64: 384, 128>}, {pipeline_mode = #tpu.pipeline_mode<synchronous>, transform_indices = @transform_4, window_bounds = array<i64: 1, 384>}, {pipeline_mode = #tpu.pipeline_mode<synchronous>, transform_indices = @transform_5, window_bounds = array<i64: 128, 128>}, {pipeline_mode = #tpu.pipeline_mode<synchronous>, transform_indices = @transform_6, window_bounds = array<i64: 1, 128>}, {pipeline_mode = #tpu.pipeline_mode<synchronous>, transform_indices = @transform_7, window_bounds = array<i64: 1, 128>}, {pipeline_mode = #tpu.pipeline_mode<synchronous>, transform_indices = @transform_8, window_bounds = array<i64: 1, 128>}, {pipeline_mode = #tpu.pipeline_mode<synchronous>, transform_indices = @transform_9, window_bounds = array<i64: 1, 128>}, {pipeline_mode = #tpu.pipeline_mode<synchronous>, transform_indices = @transform_10, window_bounds = array<i64: 1, 128>}, {pipeline_mode = #tpu.pipeline_mode<synchronous>, transform_indices = @transform_11, window_bounds = array<i64: 2048, 128>}, {pipeline_mode = #tpu.pipeline_mode<synchronous>, transform_indices = @transform_12, window_bounds = array<i64: 1, 2048>}, {pipeline_mode = #tpu.pipeline_mode<synchronous>, transform_indices = @transform_13, window_bounds = array<i64: 128, 2048>}, {pipeline_mode = #tpu.pipeline_mode<synchronous>, transform_indices = @transform_14, window_bounds = array<i64: 1, 128>}, {pipeline_mode = #tpu.pipeline_mode<synchronous>, transform_indices = @transform_15, window_bounds = array<i64: 384, 128>}, {pipeline_mode = #tpu.pipeline_mode<synchronous>, transform_indices = @transform_16, window_bounds = array<i64: 1, 384>}, {pipeline_mode = #tpu.pipeline_mode<synchronous>, transform_indices = @transform_17, window_bounds = array<i64: 128, 128>}, {pipeline_mode = #tpu.pipeline_mode<synchronous>, transform_indices = @transform_18, window_bounds = array<i64: 1, 128>}, {pipeline_mode = #tpu.pipeline_mode<synchronous>, transform_indices = @transform_19, window_bounds = array<i64: 1, 128>}, {pipeline_mode = #tpu.pipeline_mode<synchronous>, transform_indices = @transform_20, window_bounds = array<i64: 1, 128>}, {pipeline_mode = #tpu.pipeline_mode<synchronous>, transform_indices = @transform_21, window_bounds = array<i64: 1, 128>}, {pipeline_mode = #tpu.pipeline_mode<synchronous>, transform_indices = @transform_22, window_bounds = array<i64: 1, 128>}, {pipeline_mode = #tpu.pipeline_mode<synchronous>, transform_indices = @transform_23, window_bounds = array<i64: 2048, 128>}, {pipeline_mode = #tpu.pipeline_mode<synchronous>, transform_indices = @transform_24, window_bounds = array<i64: 1, 2048>}, {pipeline_mode = #tpu.pipeline_mode<synchronous>, transform_indices = @transform_25, window_bounds = array<i64: 128, 2048>}, {pipeline_mode = #tpu.pipeline_mode<synchronous>, transform_indices = @transform_26, window_bounds = array<i64: 1, 128>}, {transform_indices = @transform_27, window_bounds = array<i64: 1, 8, 128>}, {transform_indices = @transform_28, window_bounds = array<i64: 1, 6, 128>}, {transform_indices = @transform_29, window_bounds = array<i64: 1, 4, 128>}]} {
    %c0 = arith.constant 0 : index
    %c0_0 = arith.constant 0 : index
    %c0_1 = arith.constant 0 : index
    %0 = vector.load %arg1[%c0, %c0_0, %c0_1] : memref<1x8x128xf32, #tpu.memory_space<vmem>>, vector<1x8x128xf32>
    %1 = vector.shape_cast %0 : vector<1x8x128xf32> to vector<8x128xf32>
    %c0_2 = arith.constant 0 : index
    %c0_3 = arith.constant 0 : index
    %c0_4 = arith.constant 0 : index
    %2 = vector.load %arg2[%c0_2, %c0_3, %c0_4] : memref<1x6x128xf32, #tpu.memory_space<vmem>>, vector<1x6x128xf32>
    %3 = vector.shape_cast %2 : vector<1x6x128xf32> to vector<6x128xf32>
    %c0_5 = arith.constant 0 : index
    %c0_6 = arith.constant 0 : index
    %c0_7 = arith.constant 0 : index
    %4 = vector.load %arg3[%c0_5, %c0_6, %c0_7] : memref<1x4x128xf32, #tpu.memory_space<vmem>>, vector<1x4x128xf32>
    %5 = vector.shape_cast %4 : vector<1x4x128xf32> to vector<4x128xf32>
    %6 = tpu.concatenate %1, %5 in 0 : vector<8x128xf32>, vector<4x128xf32> -> vector<12x128xf32>
    %c0_8 = arith.constant 0 : index
    %c0_9 = arith.constant 0 : index
    %7 = vector.load %arg4[%c0_8, %c0_9] : memref<384x128xf32, #tpu.memory_space<vmem>>, vector<384x128xf32>
    %c0_10 = arith.constant 0 : index
    %c0_11 = arith.constant 0 : index
    %8 = vector.load %arg5[%c0_10, %c0_11] : memref<1x384xf32, #tpu.memory_space<vmem>>, vector<1x384xf32>
    %cst = arith.constant dense<0.000000e+00> : vector<12x384xf32>
    %9 = tpu.matmul %6, %7, %cst {dimension_numbers = #tpu.dot_dimension_numbers<[1], [1], [0], [0], [0, 0, 1, 0], [], []>} : vector<12x128xf32>, vector<384x128xf32>, vector<12x384xf32> -> vector<12x384xf32>
    %10 = vector.broadcast %8 : vector<1x384xf32> to vector<12x384xf32>
    %11 = arith.addf %9, %10 : vector<12x384xf32>
    %12 = vector.extract_strided_slice %11 {offsets = [0, 0], sizes = [12, 128], strides = [1, 1]} : vector<12x384xf32> to vector<12x128xf32>
    %cst_12 = arith.constant 0.176776692 : f32
    %13 = vector.broadcast %cst_12 : f32 to vector<12x128xf32>
    %14 = arith.mulf %12, %13 : vector<12x128xf32>
    %15 = vector.extract_strided_slice %11 {offsets = [0, 128], sizes = [12, 128], strides = [1, 1]} : vector<12x384xf32> to vector<12x128xf32>
    %16 = vector.extract_strided_slice %11 {offsets = [0, 256], sizes = [12, 128], strides = [1, 1]} : vector<12x384xf32> to vector<12x128xf32>
    %c0_13 = arith.constant 0 : index
    %c0_14 = arith.constant 0 : index
    %17 = vector.load %arg6[%c0_13, %c0_14] : memref<128x128xf32, #tpu.memory_space<vmem>>, vector<128x128xf32>
    %c0_15 = arith.constant 0 : index
    %c0_16 = arith.constant 0 : index
    %18 = vector.load %arg7[%c0_15, %c0_16] : memref<1x128xf32, #tpu.memory_space<vmem>>, vector<1x128xf32>
    %cst_17 = arith.constant 0.000000e+00 : f32
    %19 = vector.broadcast %cst_17 : f32 to vector<12x128xf32>
    %20 = vector.extract_strided_slice %14 {offsets = [0, 0], sizes = [12, 32], strides = [1, 1]} : vector<12x128xf32> to vector<12x32xf32>
    %21 = vector.extract_strided_slice %15 {offsets = [0, 0], sizes = [12, 32], strides = [1, 1]} : vector<12x128xf32> to vector<12x32xf32>
    %cst_18 = arith.constant dense<0.000000e+00> : vector<12x12xf32>
    %22 = tpu.matmul %20, %21, %cst_18 {dimension_numbers = #tpu.dot_dimension_numbers<[1], [1], [0], [0], [0, 0, 1, 0], [], []>} : vector<12x32xf32>, vector<12x32xf32>, vector<12x12xf32> -> vector<12x12xf32>
    %cst_19 = arith.constant dense<0xFF800000> : vector<12xf32>
    %23 = vector.multi_reduction <maximumf>, %22, %cst_19 [1] : vector<12x12xf32> to vector<12xf32>
    %24 = vector.shape_cast %23 : vector<12xf32> to vector<12x1xf32>
    %25 = vector.broadcast %24 : vector<12x1xf32> to vector<12x12xf32>
    %26 = arith.subf %22, %25 : vector<12x12xf32>
    %27 = math.exp %26 : vector<12x12xf32>
    %cst_20 = arith.constant dense<0.000000e+00> : vector<12xf32>
    %28 = vector.multi_reduction <add>, %27, %cst_20 [1] : vector<12x12xf32> to vector<12xf32>
    %29 = vector.shape_cast %28 : vector<12xf32> to vector<12x1xf32>
    %30 = tpu.reciprocal %29 : vector<12x1xf32> -> vector<12x1xf32>
    %31 = vector.broadcast %30 : vector<12x1xf32> to vector<12x12xf32>
    %32 = arith.mulf %27, %31 : vector<12x12xf32>
    %33 = vector.extract_strided_slice %16 {offsets = [0, 0], sizes = [12, 32], strides = [1, 1]} : vector<12x128xf32> to vector<12x32xf32>
    %cst_21 = arith.constant dense<0.000000e+00> : vector<12x32xf32>
    %34 = tpu.matmul %32, %33, %cst_21 {dimension_numbers = #tpu.dot_dimension_numbers<[1], [0], [0], [1], [0, 0, 1, 1], [], []>} : vector<12x12xf32>, vector<12x32xf32>, vector<12x32xf32> -> vector<12x32xf32>
    %35 = vector.extract_strided_slice %17 {offsets = [0, 0], sizes = [128, 32], strides = [1, 1]} : vector<128x128xf32> to vector<128x32xf32>
    %cst_22 = arith.constant dense<0.000000e+00> : vector<12x128xf32>
    %36 = tpu.matmul %34, %35, %cst_22 {dimension_numbers = #tpu.dot_dimension_numbers<[1], [1], [0], [0], [0, 0, 1, 0], [], []>} : vector<12x32xf32>, vector<128x32xf32>, vector<12x128xf32> -> vector<12x128xf32>
    %37 = arith.addf %19, %36 : vector<12x128xf32>
    %38 = vector.extract_strided_slice %14 {offsets = [0, 32], sizes = [12, 32], strides = [1, 1]} : vector<12x128xf32> to vector<12x32xf32>
    %39 = vector.extract_strided_slice %15 {offsets = [0, 32], sizes = [12, 32], strides = [1, 1]} : vector<12x128xf32> to vector<12x32xf32>
    %cst_23 = arith.constant dense<0.000000e+00> : vector<12x12xf32>
    %40 = tpu.matmul %38, %39, %cst_23 {dimension_numbers = #tpu.dot_dimension_numbers<[1], [1], [0], [0], [0, 0, 1, 0], [], []>} : vector<12x32xf32>, vector<12x32xf32>, vector<12x12xf32> -> vector<12x12xf32>
    %cst_24 = arith.constant dense<0xFF800000> : vector<12xf32>
    %41 = vector.multi_reduction <maximumf>, %40, %cst_24 [1] : vector<12x12xf32> to vector<12xf32>
    %42 = vector.shape_cast %41 : vector<12xf32> to vector<12x1xf32>
    %43 = vector.broadcast %42 : vector<12x1xf32> to vector<12x12xf32>
    %44 = arith.subf %40, %43 : vector<12x12xf32>
    %45 = math.exp %44 : vector<12x12xf32>
    %cst_25 = arith.constant dense<0.000000e+00> : vector<12xf32>
    %46 = vector.multi_reduction <add>, %45, %cst_25 [1] : vector<12x12xf32> to vector<12xf32>
    %47 = vector.shape_cast %46 : vector<12xf32> to vector<12x1xf32>
    %48 = tpu.reciprocal %47 : vector<12x1xf32> -> vector<12x1xf32>
    %49 = vector.broadcast %48 : vector<12x1xf32> to vector<12x12xf32>
    %50 = arith.mulf %45, %49 : vector<12x12xf32>
    %51 = vector.extract_strided_slice %16 {offsets = [0, 32], sizes = [12, 32], strides = [1, 1]} : vector<12x128xf32> to vector<12x32xf32>
    %cst_26 = arith.constant dense<0.000000e+00> : vector<12x32xf32>
    %52 = tpu.matmul %50, %51, %cst_26 {dimension_numbers = #tpu.dot_dimension_numbers<[1], [0], [0], [1], [0, 0, 1, 1], [], []>} : vector<12x12xf32>, vector<12x32xf32>, vector<12x32xf32> -> vector<12x32xf32>
    %53 = vector.extract_strided_slice %17 {offsets = [0, 32], sizes = [128, 32], strides = [1, 1]} : vector<128x128xf32> to vector<128x32xf32>
    %cst_27 = arith.constant dense<0.000000e+00> : vector<12x128xf32>
    %54 = tpu.matmul %52, %53, %cst_27 {dimension_numbers = #tpu.dot_dimension_numbers<[1], [1], [0], [0], [0, 0, 1, 0], [], []>} : vector<12x32xf32>, vector<128x32xf32>, vector<12x128xf32> -> vector<12x128xf32>
    %55 = arith.addf %37, %54 : vector<12x128xf32>
    %56 = vector.extract_strided_slice %14 {offsets = [0, 64], sizes = [12, 32], strides = [1, 1]} : vector<12x128xf32> to vector<12x32xf32>
    %57 = vector.extract_strided_slice %15 {offsets = [0, 64], sizes = [12, 32], strides = [1, 1]} : vector<12x128xf32> to vector<12x32xf32>
    %cst_28 = arith.constant dense<0.000000e+00> : vector<12x12xf32>
    %58 = tpu.matmul %56, %57, %cst_28 {dimension_numbers = #tpu.dot_dimension_numbers<[1], [1], [0], [0], [0, 0, 1, 0], [], []>} : vector<12x32xf32>, vector<12x32xf32>, vector<12x12xf32> -> vector<12x12xf32>
    %cst_29 = arith.constant dense<0xFF800000> : vector<12xf32>
    %59 = vector.multi_reduction <maximumf>, %58, %cst_29 [1] : vector<12x12xf32> to vector<12xf32>
    %60 = vector.shape_cast %59 : vector<12xf32> to vector<12x1xf32>
    %61 = vector.broadcast %60 : vector<12x1xf32> to vector<12x12xf32>
    %62 = arith.subf %58, %61 : vector<12x12xf32>
    %63 = math.exp %62 : vector<12x12xf32>
    %cst_30 = arith.constant dense<0.000000e+00> : vector<12xf32>
    %64 = vector.multi_reduction <add>, %63, %cst_30 [1] : vector<12x12xf32> to vector<12xf32>
    %65 = vector.shape_cast %64 : vector<12xf32> to vector<12x1xf32>
    %66 = tpu.reciprocal %65 : vector<12x1xf32> -> vector<12x1xf32>
    %67 = vector.broadcast %66 : vector<12x1xf32> to vector<12x12xf32>
    %68 = arith.mulf %63, %67 : vector<12x12xf32>
    %69 = vector.extract_strided_slice %16 {offsets = [0, 64], sizes = [12, 32], strides = [1, 1]} : vector<12x128xf32> to vector<12x32xf32>
    %cst_31 = arith.constant dense<0.000000e+00> : vector<12x32xf32>
    %70 = tpu.matmul %68, %69, %cst_31 {dimension_numbers = #tpu.dot_dimension_numbers<[1], [0], [0], [1], [0, 0, 1, 1], [], []>} : vector<12x12xf32>, vector<12x32xf32>, vector<12x32xf32> -> vector<12x32xf32>
    %71 = vector.extract_strided_slice %17 {offsets = [0, 64], sizes = [128, 32], strides = [1, 1]} : vector<128x128xf32> to vector<128x32xf32>
    %cst_32 = arith.constant dense<0.000000e+00> : vector<12x128xf32>
    %72 = tpu.matmul %70, %71, %cst_32 {dimension_numbers = #tpu.dot_dimension_numbers<[1], [1], [0], [0], [0, 0, 1, 0], [], []>} : vector<12x32xf32>, vector<128x32xf32>, vector<12x128xf32> -> vector<12x128xf32>
    %73 = arith.addf %55, %72 : vector<12x128xf32>
    %74 = vector.extract_strided_slice %14 {offsets = [0, 96], sizes = [12, 32], strides = [1, 1]} : vector<12x128xf32> to vector<12x32xf32>
    %75 = vector.extract_strided_slice %15 {offsets = [0, 96], sizes = [12, 32], strides = [1, 1]} : vector<12x128xf32> to vector<12x32xf32>
    %cst_33 = arith.constant dense<0.000000e+00> : vector<12x12xf32>
    %76 = tpu.matmul %74, %75, %cst_33 {dimension_numbers = #tpu.dot_dimension_numbers<[1], [1], [0], [0], [0, 0, 1, 0], [], []>} : vector<12x32xf32>, vector<12x32xf32>, vector<12x12xf32> -> vector<12x12xf32>
    %cst_34 = arith.constant dense<0xFF800000> : vector<12xf32>
    %77 = vector.multi_reduction <maximumf>, %76, %cst_34 [1] : vector<12x12xf32> to vector<12xf32>
    %78 = vector.shape_cast %77 : vector<12xf32> to vector<12x1xf32>
    %79 = vector.broadcast %78 : vector<12x1xf32> to vector<12x12xf32>
    %80 = arith.subf %76, %79 : vector<12x12xf32>
    %81 = math.exp %80 : vector<12x12xf32>
    %cst_35 = arith.constant dense<0.000000e+00> : vector<12xf32>
    %82 = vector.multi_reduction <add>, %81, %cst_35 [1] : vector<12x12xf32> to vector<12xf32>
    %83 = vector.shape_cast %82 : vector<12xf32> to vector<12x1xf32>
    %84 = tpu.reciprocal %83 : vector<12x1xf32> -> vector<12x1xf32>
    %85 = vector.broadcast %84 : vector<12x1xf32> to vector<12x12xf32>
    %86 = arith.mulf %81, %85 : vector<12x12xf32>
    %87 = vector.extract_strided_slice %16 {offsets = [0, 96], sizes = [12, 32], strides = [1, 1]} : vector<12x128xf32> to vector<12x32xf32>
    %cst_36 = arith.constant dense<0.000000e+00> : vector<12x32xf32>
    %88 = tpu.matmul %86, %87, %cst_36 {dimension_numbers = #tpu.dot_dimension_numbers<[1], [0], [0], [1], [0, 0, 1, 1], [], []>} : vector<12x12xf32>, vector<12x32xf32>, vector<12x32xf32> -> vector<12x32xf32>
    %89 = vector.extract_strided_slice %17 {offsets = [0, 96], sizes = [128, 32], strides = [1, 1]} : vector<128x128xf32> to vector<128x32xf32>
    %cst_37 = arith.constant dense<0.000000e+00> : vector<12x128xf32>
    %90 = tpu.matmul %88, %89, %cst_37 {dimension_numbers = #tpu.dot_dimension_numbers<[1], [1], [0], [0], [0, 0, 1, 0], [], []>} : vector<12x32xf32>, vector<128x32xf32>, vector<12x128xf32> -> vector<12x128xf32>
    %91 = arith.addf %73, %90 : vector<12x128xf32>
    %92 = vector.broadcast %18 : vector<1x128xf32> to vector<12x128xf32>
    %93 = arith.addf %91, %92 : vector<12x128xf32>
    %94 = arith.addf %6, %93 : vector<12x128xf32>
    %c0_38 = arith.constant 0 : index
    %c0_39 = arith.constant 0 : index
    %95 = vector.load %arg8[%c0_38, %c0_39] : memref<1x128xf32, #tpu.memory_space<vmem>>, vector<1x128xf32>
    %c0_40 = arith.constant 0 : index
    %c0_41 = arith.constant 0 : index
    %96 = vector.load %arg9[%c0_40, %c0_41] : memref<1x128xf32, #tpu.memory_space<vmem>>, vector<1x128xf32>
    %cst_42 = arith.constant dense<0.000000e+00> : vector<12xf32>
    %97 = vector.multi_reduction <add>, %94, %cst_42 [1] : vector<12x128xf32> to vector<12xf32>
    %98 = vector.shape_cast %97 : vector<12xf32> to vector<12x1xf32>
    %cst_43 = arith.constant 1.280000e+02 : f32
    %99 = vector.broadcast %cst_43 : f32 to vector<12x1xf32>
    %100 = arith.divf %98, %99 : vector<12x1xf32>
    %101 = vector.broadcast %100 : vector<12x1xf32> to vector<12x128xf32>
    %102 = arith.subf %94, %101 : vector<12x128xf32>
    %103 = vector.broadcast %100 : vector<12x1xf32> to vector<12x128xf32>
    %104 = arith.subf %94, %103 : vector<12x128xf32>
    %105 = arith.mulf %102, %104 : vector<12x128xf32>
    %cst_44 = arith.constant dense<0.000000e+00> : vector<12xf32>
    %106 = vector.multi_reduction <add>, %105, %cst_44 [1] : vector<12x128xf32> to vector<12xf32>
    %107 = vector.shape_cast %106 : vector<12xf32> to vector<12x1xf32>
    %cst_45 = arith.constant 1.280000e+02 : f32
    %108 = vector.broadcast %cst_45 : f32 to vector<12x1xf32>
    %109 = arith.divf %107, %108 : vector<12x1xf32>
    %110 = vector.broadcast %100 : vector<12x1xf32> to vector<12x128xf32>
    %111 = arith.subf %94, %110 : vector<12x128xf32>
    %cst_46 = arith.constant 9.99999974E-6 : f32
    %112 = vector.broadcast %cst_46 : f32 to vector<12x1xf32>
    %113 = arith.addf %109, %112 : vector<12x1xf32>
    %114 = math.rsqrt %113 : vector<12x1xf32>
    %115 = vector.broadcast %114 : vector<12x1xf32> to vector<12x128xf32>
    %116 = arith.mulf %111, %115 : vector<12x128xf32>
    %117 = vector.broadcast %95 : vector<1x128xf32> to vector<12x128xf32>
    %118 = arith.mulf %116, %117 : vector<12x128xf32>
    %119 = vector.broadcast %96 : vector<1x128xf32> to vector<12x128xf32>
    %120 = arith.addf %118, %119 : vector<12x128xf32>
    %c0_47 = arith.constant 0 : index
    %c0_48 = arith.constant 0 : index
    %121 = vector.load %arg12[%c0_47, %c0_48] : memref<2048x128xf32, #tpu.memory_space<vmem>>, vector<2048x128xf32>
    %c0_49 = arith.constant 0 : index
    %c0_50 = arith.constant 0 : index
    %122 = vector.load %arg13[%c0_49, %c0_50] : memref<1x2048xf32, #tpu.memory_space<vmem>>, vector<1x2048xf32>
    %c0_51 = arith.constant 0 : index
    %c0_52 = arith.constant 0 : index
    %123 = vector.load %arg14[%c0_51, %c0_52] : memref<128x2048xf32, #tpu.memory_space<vmem>>, vector<128x2048xf32>
    %c0_53 = arith.constant 0 : index
    %c0_54 = arith.constant 0 : index
    %124 = vector.load %arg15[%c0_53, %c0_54] : memref<1x128xf32, #tpu.memory_space<vmem>>, vector<1x128xf32>
    %cst_55 = arith.constant dense<0.000000e+00> : vector<12x2048xf32>
    %125 = tpu.matmul %120, %121, %cst_55 {dimension_numbers = #tpu.dot_dimension_numbers<[1], [1], [0], [0], [0, 0, 1, 0], [], []>} : vector<12x128xf32>, vector<2048x128xf32>, vector<12x2048xf32> -> vector<12x2048xf32>
    %126 = vector.broadcast %122 : vector<1x2048xf32> to vector<12x2048xf32>
    %127 = arith.addf %125, %126 : vector<12x2048xf32>
    %cst_56 = arith.constant 0.000000e+00 : f32
    %128 = vector.broadcast %cst_56 : f32 to vector<12x2048xf32>
    %129 = arith.maximumf %127, %128 : vector<12x2048xf32>
    %cst_57 = arith.constant dense<0.000000e+00> : vector<12x128xf32>
    %130 = tpu.matmul %129, %123, %cst_57 {dimension_numbers = #tpu.dot_dimension_numbers<[1], [1], [0], [0], [0, 0, 1, 0], [], []>} : vector<12x2048xf32>, vector<128x2048xf32>, vector<12x128xf32> -> vector<12x128xf32>
    %131 = vector.broadcast %124 : vector<1x128xf32> to vector<12x128xf32>
    %132 = arith.addf %130, %131 : vector<12x128xf32>
    %133 = arith.addf %120, %132 : vector<12x128xf32>
    %c0_58 = arith.constant 0 : index
    %c0_59 = arith.constant 0 : index
    %134 = vector.load %arg10[%c0_58, %c0_59] : memref<1x128xf32, #tpu.memory_space<vmem>>, vector<1x128xf32>
    %c0_60 = arith.constant 0 : index
    %c0_61 = arith.constant 0 : index
    %135 = vector.load %arg11[%c0_60, %c0_61] : memref<1x128xf32, #tpu.memory_space<vmem>>, vector<1x128xf32>
    %cst_62 = arith.constant dense<0.000000e+00> : vector<12xf32>
    %136 = vector.multi_reduction <add>, %133, %cst_62 [1] : vector<12x128xf32> to vector<12xf32>
    %137 = vector.shape_cast %136 : vector<12xf32> to vector<12x1xf32>
    %cst_63 = arith.constant 1.280000e+02 : f32
    %138 = vector.broadcast %cst_63 : f32 to vector<12x1xf32>
    %139 = arith.divf %137, %138 : vector<12x1xf32>
    %140 = vector.broadcast %139 : vector<12x1xf32> to vector<12x128xf32>
    %141 = arith.subf %133, %140 : vector<12x128xf32>
    %142 = vector.broadcast %139 : vector<12x1xf32> to vector<12x128xf32>
    %143 = arith.subf %133, %142 : vector<12x128xf32>
    %144 = arith.mulf %141, %143 : vector<12x128xf32>
    %cst_64 = arith.constant dense<0.000000e+00> : vector<12xf32>
    %145 = vector.multi_reduction <add>, %144, %cst_64 [1] : vector<12x128xf32> to vector<12xf32>
    %146 = vector.shape_cast %145 : vector<12xf32> to vector<12x1xf32>
    %cst_65 = arith.constant 1.280000e+02 : f32
    %147 = vector.broadcast %cst_65 : f32 to vector<12x1xf32>
    %148 = arith.divf %146, %147 : vector<12x1xf32>
    %149 = vector.broadcast %139 : vector<12x1xf32> to vector<12x128xf32>
    %150 = arith.subf %133, %149 : vector<12x128xf32>
    %cst_66 = arith.constant 9.99999974E-6 : f32
    %151 = vector.broadcast %cst_66 : f32 to vector<12x1xf32>
    %152 = arith.addf %148, %151 : vector<12x1xf32>
    %153 = math.rsqrt %152 : vector<12x1xf32>
    %154 = vector.broadcast %153 : vector<12x1xf32> to vector<12x128xf32>
    %155 = arith.mulf %150, %154 : vector<12x128xf32>
    %156 = vector.broadcast %134 : vector<1x128xf32> to vector<12x128xf32>
    %157 = arith.mulf %155, %156 : vector<12x128xf32>
    %158 = vector.broadcast %135 : vector<1x128xf32> to vector<12x128xf32>
    %159 = arith.addf %157, %158 : vector<12x128xf32>
    %160 = vector.extract_strided_slice %159 {offsets = [0, 0], sizes = [8, 128], strides = [1, 1]} : vector<12x128xf32> to vector<8x128xf32>
    %161 = vector.extract_strided_slice %159 {offsets = [8, 0], sizes = [4, 128], strides = [1, 1]} : vector<12x128xf32> to vector<4x128xf32>
    %162 = tpu.concatenate %3, %161 in 0 : vector<6x128xf32>, vector<4x128xf32> -> vector<10x128xf32>
    %c0_67 = arith.constant 0 : index
    %c0_68 = arith.constant 0 : index
    %163 = vector.load %arg16[%c0_67, %c0_68] : memref<384x128xf32, #tpu.memory_space<vmem>>, vector<384x128xf32>
    %c0_69 = arith.constant 0 : index
    %c0_70 = arith.constant 0 : index
    %164 = vector.load %arg17[%c0_69, %c0_70] : memref<1x384xf32, #tpu.memory_space<vmem>>, vector<1x384xf32>
    %cst_71 = arith.constant dense<0.000000e+00> : vector<10x384xf32>
    %165 = tpu.matmul %162, %163, %cst_71 {dimension_numbers = #tpu.dot_dimension_numbers<[1], [1], [0], [0], [0, 0, 1, 0], [], []>} : vector<10x128xf32>, vector<384x128xf32>, vector<10x384xf32> -> vector<10x384xf32>
    %166 = vector.broadcast %164 : vector<1x384xf32> to vector<10x384xf32>
    %167 = arith.addf %165, %166 : vector<10x384xf32>
    %168 = vector.extract_strided_slice %167 {offsets = [0, 0], sizes = [10, 128], strides = [1, 1]} : vector<10x384xf32> to vector<10x128xf32>
    %cst_72 = arith.constant 0.176776692 : f32
    %169 = vector.broadcast %cst_72 : f32 to vector<10x128xf32>
    %170 = arith.mulf %168, %169 : vector<10x128xf32>
    %171 = vector.extract_strided_slice %167 {offsets = [0, 128], sizes = [10, 128], strides = [1, 1]} : vector<10x384xf32> to vector<10x128xf32>
    %172 = vector.extract_strided_slice %167 {offsets = [0, 256], sizes = [10, 128], strides = [1, 1]} : vector<10x384xf32> to vector<10x128xf32>
    %c0_73 = arith.constant 0 : index
    %c0_74 = arith.constant 0 : index
    %173 = vector.load %arg18[%c0_73, %c0_74] : memref<128x128xf32, #tpu.memory_space<vmem>>, vector<128x128xf32>
    %c0_75 = arith.constant 0 : index
    %c0_76 = arith.constant 0 : index
    %174 = vector.load %arg19[%c0_75, %c0_76] : memref<1x128xf32, #tpu.memory_space<vmem>>, vector<1x128xf32>
    %cst_77 = arith.constant 0.000000e+00 : f32
    %175 = vector.broadcast %cst_77 : f32 to vector<10x128xf32>
    %176 = vector.extract_strided_slice %170 {offsets = [0, 0], sizes = [10, 32], strides = [1, 1]} : vector<10x128xf32> to vector<10x32xf32>
    %177 = vector.extract_strided_slice %171 {offsets = [0, 0], sizes = [10, 32], strides = [1, 1]} : vector<10x128xf32> to vector<10x32xf32>
    %cst_78 = arith.constant dense<0.000000e+00> : vector<10x10xf32>
    %178 = tpu.matmul %176, %177, %cst_78 {dimension_numbers = #tpu.dot_dimension_numbers<[1], [1], [0], [0], [0, 0, 1, 0], [], []>} : vector<10x32xf32>, vector<10x32xf32>, vector<10x10xf32> -> vector<10x10xf32>
    %cst_79 = arith.constant dense<0xFF800000> : vector<10xf32>
    %179 = vector.multi_reduction <maximumf>, %178, %cst_79 [1] : vector<10x10xf32> to vector<10xf32>
    %180 = vector.shape_cast %179 : vector<10xf32> to vector<10x1xf32>
    %181 = vector.broadcast %180 : vector<10x1xf32> to vector<10x10xf32>
    %182 = arith.subf %178, %181 : vector<10x10xf32>
    %183 = math.exp %182 : vector<10x10xf32>
    %cst_80 = arith.constant dense<0.000000e+00> : vector<10xf32>
    %184 = vector.multi_reduction <add>, %183, %cst_80 [1] : vector<10x10xf32> to vector<10xf32>
    %185 = vector.shape_cast %184 : vector<10xf32> to vector<10x1xf32>
    %186 = tpu.reciprocal %185 : vector<10x1xf32> -> vector<10x1xf32>
    %187 = vector.broadcast %186 : vector<10x1xf32> to vector<10x10xf32>
    %188 = arith.mulf %183, %187 : vector<10x10xf32>
    %189 = vector.extract_strided_slice %172 {offsets = [0, 0], sizes = [10, 32], strides = [1, 1]} : vector<10x128xf32> to vector<10x32xf32>
    %cst_81 = arith.constant dense<0.000000e+00> : vector<10x32xf32>
    %190 = tpu.matmul %188, %189, %cst_81 {dimension_numbers = #tpu.dot_dimension_numbers<[1], [0], [0], [1], [0, 0, 1, 1], [], []>} : vector<10x10xf32>, vector<10x32xf32>, vector<10x32xf32> -> vector<10x32xf32>
    %191 = vector.extract_strided_slice %173 {offsets = [0, 0], sizes = [128, 32], strides = [1, 1]} : vector<128x128xf32> to vector<128x32xf32>
    %cst_82 = arith.constant dense<0.000000e+00> : vector<10x128xf32>
    %192 = tpu.matmul %190, %191, %cst_82 {dimension_numbers = #tpu.dot_dimension_numbers<[1], [1], [0], [0], [0, 0, 1, 0], [], []>} : vector<10x32xf32>, vector<128x32xf32>, vector<10x128xf32> -> vector<10x128xf32>
    %193 = arith.addf %175, %192 : vector<10x128xf32>
    %194 = vector.extract_strided_slice %170 {offsets = [0, 32], sizes = [10, 32], strides = [1, 1]} : vector<10x128xf32> to vector<10x32xf32>
    %195 = vector.extract_strided_slice %171 {offsets = [0, 32], sizes = [10, 32], strides = [1, 1]} : vector<10x128xf32> to vector<10x32xf32>
    %cst_83 = arith.constant dense<0.000000e+00> : vector<10x10xf32>
    %196 = tpu.matmul %194, %195, %cst_83 {dimension_numbers = #tpu.dot_dimension_numbers<[1], [1], [0], [0], [0, 0, 1, 0], [], []>} : vector<10x32xf32>, vector<10x32xf32>, vector<10x10xf32> -> vector<10x10xf32>
    %cst_84 = arith.constant dense<0xFF800000> : vector<10xf32>
    %197 = vector.multi_reduction <maximumf>, %196, %cst_84 [1] : vector<10x10xf32> to vector<10xf32>
    %198 = vector.shape_cast %197 : vector<10xf32> to vector<10x1xf32>
    %199 = vector.broadcast %198 : vector<10x1xf32> to vector<10x10xf32>
    %200 = arith.subf %196, %199 : vector<10x10xf32>
    %201 = math.exp %200 : vector<10x10xf32>
    %cst_85 = arith.constant dense<0.000000e+00> : vector<10xf32>
    %202 = vector.multi_reduction <add>, %201, %cst_85 [1] : vector<10x10xf32> to vector<10xf32>
    %203 = vector.shape_cast %202 : vector<10xf32> to vector<10x1xf32>
    %204 = tpu.reciprocal %203 : vector<10x1xf32> -> vector<10x1xf32>
    %205 = vector.broadcast %204 : vector<10x1xf32> to vector<10x10xf32>
    %206 = arith.mulf %201, %205 : vector<10x10xf32>
    %207 = vector.extract_strided_slice %172 {offsets = [0, 32], sizes = [10, 32], strides = [1, 1]} : vector<10x128xf32> to vector<10x32xf32>
    %cst_86 = arith.constant dense<0.000000e+00> : vector<10x32xf32>
    %208 = tpu.matmul %206, %207, %cst_86 {dimension_numbers = #tpu.dot_dimension_numbers<[1], [0], [0], [1], [0, 0, 1, 1], [], []>} : vector<10x10xf32>, vector<10x32xf32>, vector<10x32xf32> -> vector<10x32xf32>
    %209 = vector.extract_strided_slice %173 {offsets = [0, 32], sizes = [128, 32], strides = [1, 1]} : vector<128x128xf32> to vector<128x32xf32>
    %cst_87 = arith.constant dense<0.000000e+00> : vector<10x128xf32>
    %210 = tpu.matmul %208, %209, %cst_87 {dimension_numbers = #tpu.dot_dimension_numbers<[1], [1], [0], [0], [0, 0, 1, 0], [], []>} : vector<10x32xf32>, vector<128x32xf32>, vector<10x128xf32> -> vector<10x128xf32>
    %211 = arith.addf %193, %210 : vector<10x128xf32>
    %212 = vector.extract_strided_slice %170 {offsets = [0, 64], sizes = [10, 32], strides = [1, 1]} : vector<10x128xf32> to vector<10x32xf32>
    %213 = vector.extract_strided_slice %171 {offsets = [0, 64], sizes = [10, 32], strides = [1, 1]} : vector<10x128xf32> to vector<10x32xf32>
    %cst_88 = arith.constant dense<0.000000e+00> : vector<10x10xf32>
    %214 = tpu.matmul %212, %213, %cst_88 {dimension_numbers = #tpu.dot_dimension_numbers<[1], [1], [0], [0], [0, 0, 1, 0], [], []>} : vector<10x32xf32>, vector<10x32xf32>, vector<10x10xf32> -> vector<10x10xf32>
    %cst_89 = arith.constant dense<0xFF800000> : vector<10xf32>
    %215 = vector.multi_reduction <maximumf>, %214, %cst_89 [1] : vector<10x10xf32> to vector<10xf32>
    %216 = vector.shape_cast %215 : vector<10xf32> to vector<10x1xf32>
    %217 = vector.broadcast %216 : vector<10x1xf32> to vector<10x10xf32>
    %218 = arith.subf %214, %217 : vector<10x10xf32>
    %219 = math.exp %218 : vector<10x10xf32>
    %cst_90 = arith.constant dense<0.000000e+00> : vector<10xf32>
    %220 = vector.multi_reduction <add>, %219, %cst_90 [1] : vector<10x10xf32> to vector<10xf32>
    %221 = vector.shape_cast %220 : vector<10xf32> to vector<10x1xf32>
    %222 = tpu.reciprocal %221 : vector<10x1xf32> -> vector<10x1xf32>
    %223 = vector.broadcast %222 : vector<10x1xf32> to vector<10x10xf32>
    %224 = arith.mulf %219, %223 : vector<10x10xf32>
    %225 = vector.extract_strided_slice %172 {offsets = [0, 64], sizes = [10, 32], strides = [1, 1]} : vector<10x128xf32> to vector<10x32xf32>
    %cst_91 = arith.constant dense<0.000000e+00> : vector<10x32xf32>
    %226 = tpu.matmul %224, %225, %cst_91 {dimension_numbers = #tpu.dot_dimension_numbers<[1], [0], [0], [1], [0, 0, 1, 1], [], []>} : vector<10x10xf32>, vector<10x32xf32>, vector<10x32xf32> -> vector<10x32xf32>
    %227 = vector.extract_strided_slice %173 {offsets = [0, 64], sizes = [128, 32], strides = [1, 1]} : vector<128x128xf32> to vector<128x32xf32>
    %cst_92 = arith.constant dense<0.000000e+00> : vector<10x128xf32>
    %228 = tpu.matmul %226, %227, %cst_92 {dimension_numbers = #tpu.dot_dimension_numbers<[1], [1], [0], [0], [0, 0, 1, 0], [], []>} : vector<10x32xf32>, vector<128x32xf32>, vector<10x128xf32> -> vector<10x128xf32>
    %229 = arith.addf %211, %228 : vector<10x128xf32>
    %230 = vector.extract_strided_slice %170 {offsets = [0, 96], sizes = [10, 32], strides = [1, 1]} : vector<10x128xf32> to vector<10x32xf32>
    %231 = vector.extract_strided_slice %171 {offsets = [0, 96], sizes = [10, 32], strides = [1, 1]} : vector<10x128xf32> to vector<10x32xf32>
    %cst_93 = arith.constant dense<0.000000e+00> : vector<10x10xf32>
    %232 = tpu.matmul %230, %231, %cst_93 {dimension_numbers = #tpu.dot_dimension_numbers<[1], [1], [0], [0], [0, 0, 1, 0], [], []>} : vector<10x32xf32>, vector<10x32xf32>, vector<10x10xf32> -> vector<10x10xf32>
    %cst_94 = arith.constant dense<0xFF800000> : vector<10xf32>
    %233 = vector.multi_reduction <maximumf>, %232, %cst_94 [1] : vector<10x10xf32> to vector<10xf32>
    %234 = vector.shape_cast %233 : vector<10xf32> to vector<10x1xf32>
    %235 = vector.broadcast %234 : vector<10x1xf32> to vector<10x10xf32>
    %236 = arith.subf %232, %235 : vector<10x10xf32>
    %237 = math.exp %236 : vector<10x10xf32>
    %cst_95 = arith.constant dense<0.000000e+00> : vector<10xf32>
    %238 = vector.multi_reduction <add>, %237, %cst_95 [1] : vector<10x10xf32> to vector<10xf32>
    %239 = vector.shape_cast %238 : vector<10xf32> to vector<10x1xf32>
    %240 = tpu.reciprocal %239 : vector<10x1xf32> -> vector<10x1xf32>
    %241 = vector.broadcast %240 : vector<10x1xf32> to vector<10x10xf32>
    %242 = arith.mulf %237, %241 : vector<10x10xf32>
    %243 = vector.extract_strided_slice %172 {offsets = [0, 96], sizes = [10, 32], strides = [1, 1]} : vector<10x128xf32> to vector<10x32xf32>
    %cst_96 = arith.constant dense<0.000000e+00> : vector<10x32xf32>
    %244 = tpu.matmul %242, %243, %cst_96 {dimension_numbers = #tpu.dot_dimension_numbers<[1], [0], [0], [1], [0, 0, 1, 1], [], []>} : vector<10x10xf32>, vector<10x32xf32>, vector<10x32xf32> -> vector<10x32xf32>
    %245 = vector.extract_strided_slice %173 {offsets = [0, 96], sizes = [128, 32], strides = [1, 1]} : vector<128x128xf32> to vector<128x32xf32>
    %cst_97 = arith.constant dense<0.000000e+00> : vector<10x128xf32>
    %246 = tpu.matmul %244, %245, %cst_97 {dimension_numbers = #tpu.dot_dimension_numbers<[1], [1], [0], [0], [0, 0, 1, 0], [], []>} : vector<10x32xf32>, vector<128x32xf32>, vector<10x128xf32> -> vector<10x128xf32>
    %247 = arith.addf %229, %246 : vector<10x128xf32>
    %248 = vector.broadcast %174 : vector<1x128xf32> to vector<10x128xf32>
    %249 = arith.addf %247, %248 : vector<10x128xf32>
    %250 = arith.addf %162, %249 : vector<10x128xf32>
    %c0_98 = arith.constant 0 : index
    %c0_99 = arith.constant 0 : index
    %251 = vector.load %arg20[%c0_98, %c0_99] : memref<1x128xf32, #tpu.memory_space<vmem>>, vector<1x128xf32>
    %c0_100 = arith.constant 0 : index
    %c0_101 = arith.constant 0 : index
    %252 = vector.load %arg21[%c0_100, %c0_101] : memref<1x128xf32, #tpu.memory_space<vmem>>, vector<1x128xf32>
    %cst_102 = arith.constant dense<0.000000e+00> : vector<10xf32>
    %253 = vector.multi_reduction <add>, %250, %cst_102 [1] : vector<10x128xf32> to vector<10xf32>
    %254 = vector.shape_cast %253 : vector<10xf32> to vector<10x1xf32>
    %cst_103 = arith.constant 1.280000e+02 : f32
    %255 = vector.broadcast %cst_103 : f32 to vector<10x1xf32>
    %256 = arith.divf %254, %255 : vector<10x1xf32>
    %257 = vector.broadcast %256 : vector<10x1xf32> to vector<10x128xf32>
    %258 = arith.subf %250, %257 : vector<10x128xf32>
    %259 = vector.broadcast %256 : vector<10x1xf32> to vector<10x128xf32>
    %260 = arith.subf %250, %259 : vector<10x128xf32>
    %261 = arith.mulf %258, %260 : vector<10x128xf32>
    %cst_104 = arith.constant dense<0.000000e+00> : vector<10xf32>
    %262 = vector.multi_reduction <add>, %261, %cst_104 [1] : vector<10x128xf32> to vector<10xf32>
    %263 = vector.shape_cast %262 : vector<10xf32> to vector<10x1xf32>
    %cst_105 = arith.constant 1.280000e+02 : f32
    %264 = vector.broadcast %cst_105 : f32 to vector<10x1xf32>
    %265 = arith.divf %263, %264 : vector<10x1xf32>
    %266 = vector.broadcast %256 : vector<10x1xf32> to vector<10x128xf32>
    %267 = arith.subf %250, %266 : vector<10x128xf32>
    %cst_106 = arith.constant 9.99999974E-6 : f32
    %268 = vector.broadcast %cst_106 : f32 to vector<10x1xf32>
    %269 = arith.addf %265, %268 : vector<10x1xf32>
    %270 = math.rsqrt %269 : vector<10x1xf32>
    %271 = vector.broadcast %270 : vector<10x1xf32> to vector<10x128xf32>
    %272 = arith.mulf %267, %271 : vector<10x128xf32>
    %273 = vector.broadcast %251 : vector<1x128xf32> to vector<10x128xf32>
    %274 = arith.mulf %272, %273 : vector<10x128xf32>
    %275 = vector.broadcast %252 : vector<1x128xf32> to vector<10x128xf32>
    %276 = arith.addf %274, %275 : vector<10x128xf32>
    %c0_107 = arith.constant 0 : index
    %c0_108 = arith.constant 0 : index
    %277 = vector.load %arg24[%c0_107, %c0_108] : memref<2048x128xf32, #tpu.memory_space<vmem>>, vector<2048x128xf32>
    %c0_109 = arith.constant 0 : index
    %c0_110 = arith.constant 0 : index
    %278 = vector.load %arg25[%c0_109, %c0_110] : memref<1x2048xf32, #tpu.memory_space<vmem>>, vector<1x2048xf32>
    %c0_111 = arith.constant 0 : index
    %c0_112 = arith.constant 0 : index
    %279 = vector.load %arg26[%c0_111, %c0_112] : memref<128x2048xf32, #tpu.memory_space<vmem>>, vector<128x2048xf32>
    %c0_113 = arith.constant 0 : index
    %c0_114 = arith.constant 0 : index
    %280 = vector.load %arg27[%c0_113, %c0_114] : memref<1x128xf32, #tpu.memory_space<vmem>>, vector<1x128xf32>
    %cst_115 = arith.constant dense<0.000000e+00> : vector<10x2048xf32>
    %281 = tpu.matmul %276, %277, %cst_115 {dimension_numbers = #tpu.dot_dimension_numbers<[1], [1], [0], [0], [0, 0, 1, 0], [], []>} : vector<10x128xf32>, vector<2048x128xf32>, vector<10x2048xf32> -> vector<10x2048xf32>
    %282 = vector.broadcast %278 : vector<1x2048xf32> to vector<10x2048xf32>
    %283 = arith.addf %281, %282 : vector<10x2048xf32>
    %cst_116 = arith.constant 0.000000e+00 : f32
    %284 = vector.broadcast %cst_116 : f32 to vector<10x2048xf32>
    %285 = arith.maximumf %283, %284 : vector<10x2048xf32>
    %cst_117 = arith.constant dense<0.000000e+00> : vector<10x128xf32>
    %286 = tpu.matmul %285, %279, %cst_117 {dimension_numbers = #tpu.dot_dimension_numbers<[1], [1], [0], [0], [0, 0, 1, 0], [], []>} : vector<10x2048xf32>, vector<128x2048xf32>, vector<10x128xf32> -> vector<10x128xf32>
    %287 = vector.broadcast %280 : vector<1x128xf32> to vector<10x128xf32>
    %288 = arith.addf %286, %287 : vector<10x128xf32>
    %289 = arith.addf %276, %288 : vector<10x128xf32>
    %c0_118 = arith.constant 0 : index
    %c0_119 = arith.constant 0 : index
    %290 = vector.load %arg22[%c0_118, %c0_119] : memref<1x128xf32, #tpu.memory_space<vmem>>, vector<1x128xf32>
    %c0_120 = arith.constant 0 : index
    %c0_121 = arith.constant 0 : index
    %291 = vector.load %arg23[%c0_120, %c0_121] : memref<1x128xf32, #tpu.memory_space<vmem>>, vector<1x128xf32>
    %cst_122 = arith.constant dense<0.000000e+00> : vector<10xf32>
    %292 = vector.multi_reduction <add>, %289, %cst_122 [1] : vector<10x128xf32> to vector<10xf32>
    %293 = vector.shape_cast %292 : vector<10xf32> to vector<10x1xf32>
    %cst_123 = arith.constant 1.280000e+02 : f32
    %294 = vector.broadcast %cst_123 : f32 to vector<10x1xf32>
    %295 = arith.divf %293, %294 : vector<10x1xf32>
    %296 = vector.broadcast %295 : vector<10x1xf32> to vector<10x128xf32>
    %297 = arith.subf %289, %296 : vector<10x128xf32>
    %298 = vector.broadcast %295 : vector<10x1xf32> to vector<10x128xf32>
    %299 = arith.subf %289, %298 : vector<10x128xf32>
    %300 = arith.mulf %297, %299 : vector<10x128xf32>
    %cst_124 = arith.constant dense<0.000000e+00> : vector<10xf32>
    %301 = vector.multi_reduction <add>, %300, %cst_124 [1] : vector<10x128xf32> to vector<10xf32>
    %302 = vector.shape_cast %301 : vector<10xf32> to vector<10x1xf32>
    %cst_125 = arith.constant 1.280000e+02 : f32
    %303 = vector.broadcast %cst_125 : f32 to vector<10x1xf32>
    %304 = arith.divf %302, %303 : vector<10x1xf32>
    %305 = vector.broadcast %295 : vector<10x1xf32> to vector<10x128xf32>
    %306 = arith.subf %289, %305 : vector<10x128xf32>
    %cst_126 = arith.constant 9.99999974E-6 : f32
    %307 = vector.broadcast %cst_126 : f32 to vector<10x1xf32>
    %308 = arith.addf %304, %307 : vector<10x1xf32>
    %309 = math.rsqrt %308 : vector<10x1xf32>
    %310 = vector.broadcast %309 : vector<10x1xf32> to vector<10x128xf32>
    %311 = arith.mulf %306, %310 : vector<10x128xf32>
    %312 = vector.broadcast %290 : vector<1x128xf32> to vector<10x128xf32>
    %313 = arith.mulf %311, %312 : vector<10x128xf32>
    %314 = vector.broadcast %291 : vector<1x128xf32> to vector<10x128xf32>
    %315 = arith.addf %313, %314 : vector<10x128xf32>
    %c0_127 = arith.constant 0 : index
    %c0_128 = arith.constant 0 : index
    %c0_129 = arith.constant 0 : index
    %316 = vector.load %arg28[%c0_127, %c0_128, %c0_129] : memref<1x8x128xf32, #tpu.memory_space<vmem>>, vector<1x8x128xf32>
    %317 = vector.shape_cast %316 : vector<1x8x128xf32> to vector<8x128xf32>
    %318 = vector.shape_cast %160 : vector<8x128xf32> to vector<1x8x128xf32>
    tpu.vector_store %arg28[%c0_127, %c0_128, %c0_129], %318 {strides = array<i32>} : memref<1x8x128xf32, #tpu.memory_space<vmem>>, vector<1x8x128xf32>,
    %319 = vector.extract_strided_slice %315 {offsets = [0, 0], sizes = [6, 128], strides = [1, 1]} : vector<10x128xf32> to vector<6x128xf32>
    %c0_130 = arith.constant 0 : index
    %c0_131 = arith.constant 0 : index
    %c0_132 = arith.constant 0 : index
    %320 = vector.load %arg29[%c0_130, %c0_131, %c0_132] : memref<1x6x128xf32, #tpu.memory_space<vmem>>, vector<1x6x128xf32>
    %321 = vector.shape_cast %320 : vector<1x6x128xf32> to vector<6x128xf32>
    %322 = vector.shape_cast %319 : vector<6x128xf32> to vector<1x6x128xf32>
    tpu.vector_store %arg29[%c0_130, %c0_131, %c0_132], %322 {strides = array<i32>} : memref<1x6x128xf32, #tpu.memory_space<vmem>>, vector<1x6x128xf32>,
    %323 = vector.extract_strided_slice %315 {offsets = [6, 0], sizes = [4, 128], strides = [1, 1]} : vector<10x128xf32> to vector<4x128xf32>
    %c0_133 = arith.constant 0 : index
    %c0_134 = arith.constant 0 : index
    %c0_135 = arith.constant 0 : index
    %324 = vector.load %arg30[%c0_133, %c0_134, %c0_135] : memref<1x4x128xf32, #tpu.memory_space<vmem>>, vector<1x4x128xf32>
    %325 = vector.shape_cast %324 : vector<1x4x128xf32> to vector<4x128xf32>
    %326 = vector.shape_cast %323 : vector<4x128xf32> to vector<1x4x128xf32>
    tpu.vector_store %arg30[%c0_133, %c0_134, %c0_135], %326 {strides = array<i32>} : memref<1x4x128xf32, #tpu.memory_space<vmem>>, vector<1x4x128xf32>,
    return
  }
  func.func @transform_0(%arg0: i32) -> (i32, i32, i32) {
    %c0_i32 = arith.constant 0 : i32
    %c0_i32_0 = arith.constant 0 : i32
    %c0_i32_1 = arith.constant 0 : i32
    return %arg0, %c0_i32, %c0_i32_0 : i32, i32, i32
  }
  func.func @transform_1(%arg0: i32) -> (i32, i32, i32) {
    %c0_i32 = arith.constant 0 : i32
    %c0_i32_0 = arith.constant 0 : i32
    %c0_i32_1 = arith.constant 0 : i32
    return %arg0, %c0_i32, %c0_i32_0 : i32, i32, i32
  }
  func.func @transform_2(%arg0: i32) -> (i32, i32, i32) {
    %c0_i32 = arith.constant 0 : i32
    %c0_i32_0 = arith.constant 0 : i32
    %c0_i32_1 = arith.constant 0 : i32
    return %arg0, %c0_i32, %c0_i32_0 : i32, i32, i32
  }
  func.func @transform_3(%arg0: i32) -> (i32, i32) {
    %c0_i32 = arith.constant 0 : i32
    %c0_i32_0 = arith.constant 0 : i32
    %c0_i32_1 = arith.constant 0 : i32
    return %c0_i32, %c0_i32_0 : i32, i32
  }
  func.func @transform_4(%arg0: i32) -> (i32, i32) {
    %c0_i32 = arith.constant 0 : i32
    %c0_i32_0 = arith.constant 0 : i32
    %c0_i32_1 = arith.constant 0 : i32
    return %c0_i32, %c0_i32_0 : i32, i32
  }
  func.func @transform_5(%arg0: i32) -> (i32, i32) {
    %c0_i32 = arith.constant 0 : i32
    %c0_i32_0 = arith.constant 0 : i32
    %c0_i32_1 = arith.constant 0 : i32
    return %c0_i32, %c0_i32_0 : i32, i32
  }
  func.func @transform_6(%arg0: i32) -> (i32, i32) {
    %c0_i32 = arith.constant 0 : i32
    %c0_i32_0 = arith.constant 0 : i32
    %c0_i32_1 = arith.constant 0 : i32
    return %c0_i32, %c0_i32_0 : i32, i32
  }
  func.func @transform_7(%arg0: i32) -> (i32, i32) {
    %c0_i32 = arith.constant 0 : i32
    %c0_i32_0 = arith.constant 0 : i32
    %c0_i32_1 = arith.constant 0 : i32
    return %c0_i32, %c0_i32_0 : i32, i32
  }
  func.func @transform_8(%arg0: i32) -> (i32, i32) {
    %c0_i32 = arith.constant 0 : i32
    %c0_i32_0 = arith.constant 0 : i32
    %c0_i32_1 = arith.constant 0 : i32
    return %c0_i32, %c0_i32_0 : i32, i32
  }
  func.func @transform_9(%arg0: i32) -> (i32, i32) {
    %c0_i32 = arith.constant 0 : i32
    %c0_i32_0 = arith.constant 0 : i32
    %c0_i32_1 = arith.constant 0 : i32
    return %c0_i32, %c0_i32_0 : i32, i32
  }
  func.func @transform_10(%arg0: i32) -> (i32, i32) {
    %c0_i32 = arith.constant 0 : i32
    %c0_i32_0 = arith.constant 0 : i32
    %c0_i32_1 = arith.constant 0 : i32
    return %c0_i32, %c0_i32_0 : i32, i32
  }
  func.func @transform_11(%arg0: i32) -> (i32, i32) {
    %c0_i32 = arith.constant 0 : i32
    %c0_i32_0 = arith.constant 0 : i32
    %c0_i32_1 = arith.constant 0 : i32
    return %c0_i32, %c0_i32_0 : i32, i32
  }
  func.func @transform_12(%arg0: i32) -> (i32, i32) {
    %c0_i32 = arith.constant 0 : i32
    %c0_i32_0 = arith.constant 0 : i32
    %c0_i32_1 = arith.constant 0 : i32
    return %c0_i32, %c0_i32_0 : i32, i32
  }
  func.func @transform_13(%arg0: i32) -> (i32, i32) {
    %c0_i32 = arith.constant 0 : i32
    %c0_i32_0 = arith.constant 0 : i32
    %c0_i32_1 = arith.constant 0 : i32
    return %c0_i32, %c0_i32_0 : i32, i32
  }
  func.func @transform_14(%arg0: i32) -> (i32, i32) {
    %c0_i32 = arith.constant 0 : i32
    %c0_i32_0 = arith.constant 0 : i32
    %c0_i32_1 = arith.constant 0 : i32
    return %c0_i32, %c0_i32_0 : i32, i32
  }
  func.func @transform_15(%arg0: i32) -> (i32, i32) {
    %c0_i32 = arith.constant 0 : i32
    %c0_i32_0 = arith.constant 0 : i32
    %c0_i32_1 = arith.constant 0 : i32
    return %c0_i32, %c0_i32_0 : i32, i32
  }
  func.func @transform_16(%arg0: i32) -> (i32, i32) {
    %c0_i32 = arith.constant 0 : i32
    %c0_i32_0 = arith.constant 0 : i32
    %c0_i32_1 = arith.constant 0 : i32
    return %c0_i32, %c0_i32_0 : i32, i32
  }
  func.func @transform_17(%arg0: i32) -> (i32, i32) {
    %c0_i32 = arith.constant 0 : i32
    %c0_i32_0 = arith.constant 0 : i32
    %c0_i32_1 = arith.constant 0 : i32
    return %c0_i32, %c0_i32_0 : i32, i32
  }
  func.func @transform_18(%arg0: i32) -> (i32, i32) {
    %c0_i32 = arith.constant 0 : i32
    %c0_i32_0 = arith.constant 0 : i32
    %c0_i32_1 = arith.constant 0 : i32
    return %c0_i32, %c0_i32_0 : i32, i32
  }
  func.func @transform_19(%arg0: i32) -> (i32, i32) {
    %c0_i32 = arith.constant 0 : i32
    %c0_i32_0 = arith.constant 0 : i32
    %c0_i32_1 = arith.constant 0 : i32
    return %c0_i32, %c0_i32_0 : i32, i32
  }
  func.func @transform_20(%arg0: i32) -> (i32, i32) {
    %c0_i32 = arith.constant 0 : i32
    %c0_i32_0 = arith.constant 0 : i32
    %c0_i32_1 = arith.constant 0 : i32
    return %c0_i32, %c0_i32_0 : i32, i32
  }
  func.func @transform_21(%arg0: i32) -> (i32, i32) {
    %c0_i32 = arith.constant 0 : i32
    %c0_i32_0 = arith.constant 0 : i32
    %c0_i32_1 = arith.constant 0 : i32
    return %c0_i32, %c0_i32_0 : i32, i32
  }
  func.func @transform_22(%arg0: i32) -> (i32, i32) {
    %c0_i32 = arith.constant 0 : i32
    %c0_i32_0 = arith.constant 0 : i32
    %c0_i32_1 = arith.constant 0 : i32
    return %c0_i32, %c0_i32_0 : i32, i32
  }
  func.func @transform_23(%arg0: i32) -> (i32, i32) {
    %c0_i32 = arith.constant 0 : i32
    %c0_i32_0 = arith.constant 0 : i32
    %c0_i32_1 = arith.constant 0 : i32
    return %c0_i32, %c0_i32_0 : i32, i32
  }
  func.func @transform_24(%arg0: i32) -> (i32, i32) {
    %c0_i32 = arith.constant 0 : i32
    %c0_i32_0 = arith.constant 0 : i32
    %c0_i32_1 = arith.constant 0 : i32
    return %c0_i32, %c0_i32_0 : i32, i32
  }
  func.func @transform_25(%arg0: i32) -> (i32, i32) {
    %c0_i32 = arith.constant 0 : i32
    %c0_i32_0 = arith.constant 0 : i32
    %c0_i32_1 = arith.constant 0 : i32
    return %c0_i32, %c0_i32_0 : i32, i32
  }
  func.func @transform_26(%arg0: i32) -> (i32, i32) {
    %c0_i32 = arith.constant 0 : i32
    %c0_i32_0 = arith.constant 0 : i32
    %c0_i32_1 = arith.constant 0 : i32
    return %c0_i32, %c0_i32_0 : i32, i32
  }
  func.func @transform_27(%arg0: i32) -> (i32, i32, i32) {
    %c0_i32 = arith.constant 0 : i32
    %c0_i32_0 = arith.constant 0 : i32
    %c0_i32_1 = arith.constant 0 : i32
    return %arg0, %c0_i32, %c0_i32_0 : i32, i32, i32
  }
  func.func @transform_28(%arg0: i32) -> (i32, i32, i32) {
    %c0_i32 = arith.constant 0 : i32
    %c0_i32_0 = arith.constant 0 : i32
    %c0_i32_1 = arith.constant 0 : i32
    return %arg0, %c0_i32, %c0_i32_0 : i32, i32, i32
  }
  func.func @transform_29(%arg0: i32) -> (i32, i32, i32) {
    %c0_i32 = arith.constant 0 : i32
    %c0_i32_0 = arith.constant 0 : i32
    %c0_i32_1 = arith.constant 0 : i32
    return %arg0, %c0_i32, %c0_i32_0 : i32, i32, i32
  }
}

</mosaic_0001>

<llo_original>
// kernel: tpu_custom_call.1
$region0: #{tpu_custom_call.1}
  #allocation0 [shape = 'u32[]', space=smem, size = 0x4, offset = 0x4, fixed_abs, tag = 'smem constant byte address 0x4 - core index']
  #allocation1 [shape = 'u32[144,128]{1,0:T(1,128)}', space=vmem, size = 0x12000, scoped, tag = 'internal scratch']
  %s0 = inlined_call_operand.smem [shape: u32[30], index: -1, kind: input, shape index: {}]
  %s1 = sld [smem:[%s0]]
  %s2 = scalar_lea.smem %s0, 1
  %s3 = sld [smem:[%s2]]
  %s4 = scalar_lea.smem %s0, 2
  %s5 = sld [smem:[%s4]]
  %s6 = scalar_lea.smem %s0, 3
  %s7 = sld [smem:[%s6]]
  %s8 = scalar_lea.smem %s0, 4
  %s9 = sld [smem:[%s8]]
  %s10 = scalar_lea.smem %s0, 5
  %s11 = sld [smem:[%s10]]
  %s12 = scalar_lea.smem %s0, 6
  %s13 = sld [smem:[%s12]]
  %s14 = scalar_lea.smem %s0, 7
  %s15 = sld [smem:[%s14]]
  %s16 = scalar_lea.smem %s0, 8
  %s17 = sld [smem:[%s16]]
  %s18 = scalar_lea.smem %s0, 9
  %s19 = sld [smem:[%s18]]
  %s20 = scalar_lea.smem %s0, 10
  %s21 = sld [smem:[%s20]]
  %s22 = scalar_lea.smem %s0, 11
  %s23 = sld [smem:[%s22]]
  %s24 = scalar_lea.smem %s0, 12
  %s25 = sld [smem:[%s24]]
  %s26 = scalar_lea.smem %s0, 13
  %s27 = sld [smem:[%s26]]
  %s28 = scalar_lea.smem %s0, 14
  %s29 = sld [smem:[%s28]]
  %s30 = scalar_lea.smem %s0, 15
  %s31 = sld [smem:[%s30]]
  %s32 = scalar_lea.smem %s0, 16
  %s33 = sld [smem:[%s32]]
  %s34 = scalar_lea.smem %s0, 17
  %s35 = sld [smem:[%s34]]
  %s36 = scalar_lea.smem %s0, 18
  %s37 = sld [smem:[%s36]]
  %s38 = scalar_lea.smem %s0, 19
  %s39 = sld [smem:[%s38]]
  %s40 = scalar_lea.smem %s0, 20
  %s41 = sld [smem:[%s40]]
  %s42 = scalar_lea.smem %s0, 21
  %s43 = sld [smem:[%s42]]
  %s44 = scalar_lea.smem %s0, 22
  %s45 = sld [smem:[%s44]]
  %s46 = scalar_lea.smem %s0, 23
  %s47 = sld [smem:[%s46]]
  %s48 = scalar_lea.smem %s0, 24
  %s49 = sld [smem:[%s48]]
  %s50 = scalar_lea.smem %s0, 25
  %s51 = sld [smem:[%s50]]
  %s52 = scalar_lea.smem %s0, 26
  %s53 = sld [smem:[%s52]]
  %s54 = scalar_lea.smem %s0, 27
  %s55 = sld [smem:[%s54]]
  %s56 = scalar_lea.smem %s0, 28
  %s57 = sld [smem:[%s56]]
  %s58 = scalar_lea.smem %s0, 29
  %s59 = sld [smem:[%s58]]
  %60 = xla_tuple %s55, %s57, %s59
  %s61 = sld [smem:[#allocation0]]
  $region217: #{tpu_custom_call.1} parent=0
    _
  %s63 = ssub.s32 1, %s61
  %s64 = scalar_select 0, %s63, %s61
  $region1: #{tpu_custom_call.1} parent=0
    #allocation2 [shape = 'u8[4096]{0}', space=vmem, size = 0x1000, scoped, tag = 'input window, operand 2']
    #allocation3 [shape = 's32[2]{0}', space=sflag, size = 0x8, scoped, tag = 'scoped memory for tpu_custom_call.1']
    #allocation4 [shape = 's32[2]{0}', space=sflag, size = 0x8, scoped, tag = 'scoped memory for tpu_custom_call.1']
    #allocation5 [shape = 'u8[196608]{0}', space=vmem, size = 0x30000, scoped, tag = 'input window, operand 3, single buffered']
    #allocation6 [shape = 's32[1]{0}', space=sflag, size = 0x4, scoped, tag = 'scoped memory for tpu_custom_call.1']
    #allocation7 [shape = 'u8[1536]{0}', space=vmem, size = 0x800, scoped, tag = 'input window, operand 4, single buffered']
    #allocation8 [shape = 'u8[65536]{0}', space=vmem, size = 0x10000, scoped, tag = 'input window, operand 5, single buffered']
    #allocation9 [shape = 's32[1]{0}', space=sflag, size = 0x4, scoped, tag = 'scoped memory for tpu_custom_call.1']
    #allocation10 [shape = 'u8[512]{0}', space=vmem, size = 0x400, scoped, tag = 'input window, operand 6, single buffered']
    #allocation11 [shape = 'u8[512]{0}', space=vmem, size = 0x400, scoped, tag = 'input window, operand 7, single buffered']
    #allocation12 [shape = 's32[1]{0}', space=sflag, size = 0x4, scoped, tag = 'scoped memory for tpu_custom_call.1']
    #allocation13 [shape = 'u8[512]{0}', space=vmem, size = 0x400, scoped, tag = 'input window, operand 8, single buffered']
    #allocation14 [shape = 'u8[512]{0}', space=vmem, size = 0x400, scoped, tag = 'input window, operand 9, single buffered']
    #allocation15 [shape = 's32[1]{0}', space=sflag, size = 0x4, scoped, tag = 'scoped memory for tpu_custom_call.1']
    #allocation16 [shape = 'u8[512]{0}', space=vmem, size = 0x400, scoped, tag = 'input window, operand 10, single buffered']
    #allocation17 [shape = 'u8[1048576]{0}', space=vmem, size = 0x100000, scoped, tag = 'input window, operand 11, single buffered']
    #allocation18 [shape = 's32[1]{0}', space=sflag, size = 0x4, scoped, tag = 'scoped memory for tpu_custom_call.1']
    #allocation19 [shape = 'u8[1048576]{0}', space=vmem, size = 0x100000, scoped, tag = 'input window, operand 13, single buffered']
    #allocation20 [shape = 'u8[196608]{0}', space=vmem, size = 0x30000, scoped, tag = 'input window, operand 15, single buffered']
    #allocation21 [shape = 's32[1]{0}', space=sflag, size = 0x4, scoped, tag = 'scoped memory for tpu_custom_call.1']
    #allocation22 [shape = 'u8[65536]{0}', space=vmem, size = 0x10000, scoped, tag = 'input window, operand 17, single buffered']
    #allocation23 [shape = 'u8[1048576]{0}', space=vmem, size = 0x100000, scoped, tag = 'input window, operand 23, single buffered']
    #allocation24 [shape = 's32[1]{0}', space=sflag, size = 0x4, scoped, tag = 'scoped memory for tpu_custom_call.1']
    #allocation25 [shape = 'u8[1048576]{0}', space=vmem, size = 0x100000, scoped, tag = 'input window, operand 25, single buffered']
    #allocation26 [shape = 'u8[8192]{0}', space=vmem, size = 0x2000, scoped, tag = 'output window, operand 0']
    #allocation27 [shape = 'u8[4096]{0}', space=vmem, size = 0x1000, scoped, tag = 'output window, operand 2']
    #allocation28 [shape = 's32[2]{0}', space=sflag, size = 0x8, scoped, tag = 'scoped memory for tpu_custom_call.1']
    %65 = vsyncpa [#allocation3], 0
    %s66 = scalar_lea.sflag [#allocation3], 1
    %67 = vsyncpa %s66, 0
    %68 = vsyncpa [#allocation6], 0
    %69 = vsyncpa [#allocation9], 0
    %70 = vsyncpa [#allocation12], 0
    %71 = vsyncpa [#allocation15], 0
    %72 = vsyncpa [#allocation18], 0
    %73 = vsyncpa [#allocation21], 0
    %74 = vsyncpa [#allocation24], 0
    %75 = vsyncpa [#allocation4], 0
    %s76 = scalar_lea.sflag [#allocation4], 1
    %77 = vsyncpa %s76, 0
    %78 = vsyncpa [#allocation28], 0
    %s79 = scalar_lea.sflag [#allocation28], 1
    %80 = vsyncpa %s79, 0
    loop: start=0, step=1, limit=4
    $region2: #{tpu_custom_call.1} parent=1 // loop_pre_header
      _
    $region3: #{tpu_custom_call.1} parent=1 // loop_header
      %s82 = sphi 0, %s86
      %p83 = scmp.ge.s32.totalorder %s82, 4
      %s92 = sphi 0, %s94
      %s95 = sphi 0, %s92
      %s96 = sphi 0, %s95
      %s112 = sphi 0, %s96
      %s118 = sphi 0, %s120
      %s121 = sphi 0, %s118
      %s122 = sphi 0, %s121
      %s138 = sphi 0, %s122
      %s144 = sphi 0, %s146
      %s147 = sphi 0, %s144
      %s148 = sphi 0, %s147
      %s164 = sphi 0, %s148
      %s168 = sphi 0, %s168
      %s170 = sphi 0, %s168
      %s171 = sphi 0, %s170
      %s185 = sphi 0, %s171
      %s189 = sphi 0, %s189
      %s191 = sphi 0, %s189
      %s192 = sphi 0, %s191
      %s206 = sphi 0, %s192
      %s210 = sphi 0, %s210
      %s212 = sphi 0, %s210
      %s213 = sphi 0, %s212
      %s227 = sphi 0, %s213
      %s231 = sphi 0, %s231
      %s233 = sphi 0, %s231
      %s234 = sphi 0, %s233
      %s248 = sphi 0, %s234
      %s252 = sphi 0, %s252
      %s254 = sphi 0, %s252
      %s255 = sphi 0, %s254
      %s269 = sphi 0, %s255
      %s273 = sphi 0, %s273
      %s275 = sphi 0, %s273
      %s276 = sphi 0, %s275
      %s290 = sphi 0, %s276
      %s294 = sphi 0, %s294
      %s296 = sphi 0, %s294
      %s297 = sphi 0, %s296
      %s311 = sphi 0, %s297
      %s315 = sphi 0, %s315
      %s317 = sphi 0, %s315
      %s318 = sphi 0, %s317
      %s332 = sphi 0, %s318
      %s336 = sphi 0, %s336
      %s338 = sphi 0, %s336
      %s339 = sphi 0, %s338
      %s353 = sphi 0, %s339
      %s357 = sphi 0, %s357
      %s359 = sphi 0, %s357
      %s360 = sphi 0, %s359
      %s374 = sphi 0, %s360
      %s378 = sphi 0, %s378
      %s380 = sphi 0, %s378
      %s381 = sphi 0, %s380
      %s395 = sphi 0, %s381
      %s399 = sphi 0, %s399
      %s401 = sphi 0, %s399
      %s402 = sphi 0, %s401
      %s416 = sphi 0, %s402
      %s420 = sphi 0, %s420
      %s422 = sphi 0, %s420
      %s423 = sphi 0, %s422
      %s437 = sphi 0, %s423
      %s441 = sphi 0, %s441
      %s443 = sphi 0, %s441
      %s444 = sphi 0, %s443
      %s458 = sphi 0, %s444
      %s462 = sphi 0, %s462
      %s464 = sphi 0, %s462
      %s465 = sphi 0, %s464
      %s479 = sphi 0, %s465
      %s483 = sphi 0, %s483
      %s485 = sphi 0, %s483
      %s486 = sphi 0, %s485
      %s500 = sphi 0, %s486
      %s504 = sphi 0, %s504
      %s506 = sphi 0, %s504
      %s507 = sphi 0, %s506
      %s521 = sphi 0, %s507
      %s525 = sphi 0, %s525
      %s527 = sphi 0, %s525
      %s528 = sphi 0, %s527
      %s542 = sphi 0, %s528
      %s546 = sphi 0, %s546
      %s548 = sphi 0, %s546
      %s549 = sphi 0, %s548
      %s563 = sphi 0, %s549
      %s567 = sphi 0, %s567
      %s569 = sphi 0, %s567
      %s570 = sphi 0, %s569
      %s584 = sphi 0, %s570
      %s588 = sphi 0, %s588
      %s590 = sphi 0, %s588
      %s591 = sphi 0, %s590
      %s605 = sphi 0, %s591
      %s609 = sphi 0, %s609
      %s611 = sphi 0, %s609
      %s612 = sphi 0, %s611
      %s626 = sphi 0, %s612
      %s630 = sphi 0, %s630
      %s632 = sphi 0, %s630
      %s633 = sphi 0, %s632
      %s647 = sphi 0, %s633
      %s651 = sphi 0, %s651
      %s653 = sphi 0, %s651
      %s654 = sphi 0, %s653
      %s668 = sphi 0, %s654
      %s674 = sphi 0, %s676
      %s677 = sphi 0, %s674
      %s678 = sphi 0, %s677
      %s694 = sphi 0, %s678
      %s700 = sphi 0, %s702
      %s703 = sphi 0, %s700
      %s704 = sphi 0, %s703
      %s720 = sphi 0, %s704
      %s726 = sphi 0, %s728
      %s729 = sphi 0, %s726
      %s730 = sphi 0, %s729
      %s746 = sphi 0, %s730
    $region4: #{tpu_custom_call.1} parent=1 // loop_header_branch
      %85 = sbr.rel (%p83) target = $region8
    $region5: #{tpu_custom_call.1} parent=1 // loop_body
      %s87 = ssub.s32 %s82, 1
      %s88 = ssub.s32 %s82, 2
      %s89 = sadd.s32 %s82, 1
      %s90 = ssub.s32 %s82, %s89
      %p91 = scmp.eq.s32.totalorder %s90, 0
      %s93 = sadd.s32 %s92, 1
      %s94 = scalar_select %p91, %s92, %s93
      %p97 = pneg %p91
      %p98 = scmp.eq.s32.totalorder %s82, 1
      %p99 = por %p97, %p98
      %p100 = scmp.ne.s32.totalorder %s92, %s95
      %p101 = scmp.eq.s32.totalorder %s82, 0
      %p102 = por %p100, %p101
      %p103 = scmp.ne.s32.totalorder %s92, %s95
      %p104 = scmp.eq.s32.totalorder %s87, 1
      %p105 = por %p103, %p104
      %p106 = scmp.ne.s32.totalorder %s95, %s96
      %p107 = scmp.eq.s32.totalorder %s87, 0
      %p108 = por %p106, %p107
      %p109 = scmp.ne.s32.totalorder %s95, %s96
      %p110 = scmp.eq.s32.totalorder %s88, 1
      %p111 = por %p109, %p110
      %p113 = scmp.ne.s32.totalorder %s96, %s112
      %p114 = scmp.eq.s32.totalorder %s88, 0
      %p115 = por %p113, %p114
      %s116 = ssub.s32 %s82, %s89
      %p117 = scmp.eq.s32.totalorder %s116, 0
      %s119 = sadd.s32 %s118, 1
      %s120 = scalar_select %p117, %s118, %s119
      %p123 = pneg %p117
      %p124 = scmp.eq.s32.totalorder %s82, 1
      %p125 = por %p123, %p124
      %p126 = scmp.ne.s32.totalorder %s118, %s121
      %p127 = scmp.eq.s32.totalorder %s82, 0
      %p128 = por %p126, %p127
      %p129 = scmp.ne.s32.totalorder %s118, %s121
      %p130 = scmp.eq.s32.totalorder %s87, 1
      %p131 = por %p129, %p130
      %p132 = scmp.ne.s32.totalorder %s121, %s122
      %p133 = scmp.eq.s32.totalorder %s87, 0
      %p134 = por %p132, %p133
      %p135 = scmp.ne.s32.totalorder %s121, %s122
      %p136 = scmp.eq.s32.totalorder %s88, 1
      %p137 = por %p135, %p136
      %p139 = scmp.ne.s32.totalorder %s122, %s138
      %p140 = scmp.eq.s32.totalorder %s88, 0
      %p141 = por %p139, %p140
      %s142 = ssub.s32 %s82, %s89
      %p143 = scmp.eq.s32.totalorder %s142, 0
      %s145 = sadd.s32 %s144, 1
      %s146 = scalar_select %p143, %s144, %s145
      %p149 = pneg %p143
      %p150 = scmp.eq.s32.totalorder %s82, 1
      %p151 = por %p149, %p150
      %p152 = scmp.ne.s32.totalorder %s144, %s147
      %p153 = scmp.eq.s32.totalorder %s82, 0
      %p154 = por %p152, %p153
      %p155 = scmp.ne.s32.totalorder %s144, %s147
      %p156 = scmp.eq.s32.totalorder %s87, 1
      %p157 = por %p155, %p156
      %p158 = scmp.ne.s32.totalorder %s147, %s148
      %p159 = scmp.eq.s32.totalorder %s87, 0
      %p160 = por %p158, %p159
      %p161 = scmp.ne.s32.totalorder %s147, %s148
      %p162 = scmp.eq.s32.totalorder %s88, 1
      %p163 = por %p161, %p162
      %p165 = scmp.ne.s32.totalorder %s148, %s164
      %p166 = scmp.eq.s32.totalorder %s88, 0
      %p167 = por %p165, %p166
      %s169 = sadd.s32 %s168, 1
      %p172 = scmp.eq.s32.totalorder %s82, 1
      %p173 = scmp.ne.s32.totalorder %s168, %s170
      %p174 = scmp.eq.s32.totalorder %s82, 0
      %p175 = por %p173, %p174
      %p176 = scmp.ne.s32.totalorder %s168, %s170
      %p177 = scmp.eq.s32.totalorder %s87, 1
      %p178 = por %p176, %p177
      %p179 = scmp.ne.s32.totalorder %s170, %s171
      %p180 = scmp.eq.s32.totalorder %s87, 0
      %p181 = por %p179, %p180
      %p182 = scmp.ne.s32.totalorder %s170, %s171
      %p183 = scmp.eq.s32.totalorder %s88, 1
      %p184 = por %p182, %p183
      %p186 = scmp.ne.s32.totalorder %s171, %s185
      %p187 = scmp.eq.s32.totalorder %s88, 0
      %p188 = por %p186, %p187
      %s190 = sadd.s32 %s189, 1
      %p193 = scmp.eq.s32.totalorder %s82, 1
      %p194 = scmp.ne.s32.totalorder %s189, %s191
      %p195 = scmp.eq.s32.totalorder %s82, 0
      %p196 = por %p194, %p195
      %p197 = scmp.ne.s32.totalorder %s189, %s191
      %p198 = scmp.eq.s32.totalorder %s87, 1
      %p199 = por %p197, %p198
      %p200 = scmp.ne.s32.totalorder %s191, %s192
      %p201 = scmp.eq.s32.totalorder %s87, 0
      %p202 = por %p200, %p201
      %p203 = scmp.ne.s32.totalorder %s191, %s192
      %p204 = scmp.eq.s32.totalorder %s88, 1
      %p205 = por %p203, %p204
      %p207 = scmp.ne.s32.totalorder %s192, %s206
      %p208 = scmp.eq.s32.totalorder %s88, 0
      %p209 = por %p207, %p208
      %s211 = sadd.s32 %s210, 1
      %p214 = scmp.eq.s32.totalorder %s82, 1
      %p215 = scmp.ne.s32.totalorder %s210, %s212
      %p216 = scmp.eq.s32.totalorder %s82, 0
      %p217 = por %p215, %p216
      %p218 = scmp.ne.s32.totalorder %s210, %s212
      %p219 = scmp.eq.s32.totalorder %s87, 1
      %p220 = por %p218, %p219
      %p221 = scmp.ne.s32.totalorder %s212, %s213
      %p222 = scmp.eq.s32.totalorder %s87, 0
      %p223 = por %p221, %p222
      %p224 = scmp.ne.s32.totalorder %s212, %s213
      %p225 = scmp.eq.s32.totalorder %s88, 1
      %p226 = por %p224, %p225
      %p228 = scmp.ne.s32.totalorder %s213, %s227
      %p229 = scmp.eq.s32.totalorder %s88, 0
      %p230 = por %p228, %p229
      %s232 = sadd.s32 %s231, 1
      %p235 = scmp.eq.s32.totalorder %s82, 1
      %p236 = scmp.ne.s32.totalorder %s231, %s233
      %p237 = scmp.eq.s32.totalorder %s82, 0
      %p238 = por %p236, %p237
      %p239 = scmp.ne.s32.totalorder %s231, %s233
      %p240 = scmp.eq.s32.totalorder %s87, 1
      %p241 = por %p239, %p240
      %p242 = scmp.ne.s32.totalorder %s233, %s234
      %p243 = scmp.eq.s32.totalorder %s87, 0
      %p244 = por %p242, %p243
      %p245 = scmp.ne.s32.totalorder %s233, %s234
      %p246 = scmp.eq.s32.totalorder %s88, 1
      %p247 = por %p245, %p246
      %p249 = scmp.ne.s32.totalorder %s234, %s248
      %p250 = scmp.eq.s32.totalorder %s88, 0
      %p251 = por %p249, %p250
      %s253 = sadd.s32 %s252, 1
      %p256 = scmp.eq.s32.totalorder %s82, 1
      %p257 = scmp.ne.s32.totalorder %s252, %s254
      %p258 = scmp.eq.s32.totalorder %s82, 0
      %p259 = por %p257, %p258
      %p260 = scmp.ne.s32.totalorder %s252, %s254
      %p261 = scmp.eq.s32.totalorder %s87, 1
      %p262 = por %p260, %p261
      %p263 = scmp.ne.s32.totalorder %s254, %s255
      %p264 = scmp.eq.s32.totalorder %s87, 0
      %p265 = por %p263, %p264
      %p266 = scmp.ne.s32.totalorder %s254, %s255
      %p267 = scmp.eq.s32.totalorder %s88, 1
      %p268 = por %p266, %p267
      %p270 = scmp.ne.s32.totalorder %s255, %s269
      %p271 = scmp.eq.s32.totalorder %s88, 0
      %p272 = por %p270, %p271
      %s274 = sadd.s32 %s273, 1
      %p277 = scmp.eq.s32.totalorder %s82, 1
      %p278 = scmp.ne.s32.totalorder %s273, %s275
      %p279 = scmp.eq.s32.totalorder %s82, 0
      %p280 = por %p278, %p279
      %p281 = scmp.ne.s32.totalorder %s273, %s275
      %p282 = scmp.eq.s32.totalorder %s87, 1
      %p283 = por %p281, %p282
      %p284 = scmp.ne.s32.totalorder %s275, %s276
      %p285 = scmp.eq.s32.totalorder %s87, 0
      %p286 = por %p284, %p285
      %p287 = scmp.ne.s32.totalorder %s275, %s276
      %p288 = scmp.eq.s32.totalorder %s88, 1
      %p289 = por %p287, %p288
      %p291 = scmp.ne.s32.totalorder %s276, %s290
      %p292 = scmp.eq.s32.totalorder %s88, 0
      %p293 = por %p291, %p292
      %s295 = sadd.s32 %s294, 1
      %p298 = scmp.eq.s32.totalorder %s82, 1
      %p299 = scmp.ne.s32.totalorder %s294, %s296
      %p300 = scmp.eq.s32.totalorder %s82, 0
      %p301 = por %p299, %p300
      %p302 = scmp.ne.s32.totalorder %s294, %s296
      %p303 = scmp.eq.s32.totalorder %s87, 1
      %p304 = por %p302, %p303
      %p305 = scmp.ne.s32.totalorder %s296, %s297
      %p306 = scmp.eq.s32.totalorder %s87, 0
      %p307 = por %p305, %p306
      %p308 = scmp.ne.s32.totalorder %s296, %s297
      %p309 = scmp.eq.s32.totalorder %s88, 1
      %p310 = por %p308, %p309
      %p312 = scmp.ne.s32.totalorder %s297, %s311
      %p313 = scmp.eq.s32.totalorder %s88, 0
      %p314 = por %p312, %p313
      %s316 = sadd.s32 %s315, 1
      %p319 = scmp.eq.s32.totalorder %s82, 1
      %p320 = scmp.ne.s32.totalorder %s315, %s317
      %p321 = scmp.eq.s32.totalorder %s82, 0
      %p322 = por %p320, %p321
      %p323 = scmp.ne.s32.totalorder %s315, %s317
      %p324 = scmp.eq.s32.totalorder %s87, 1
      %p325 = por %p323, %p324
      %p326 = scmp.ne.s32.totalorder %s317, %s318
      %p327 = scmp.eq.s32.totalorder %s87, 0
      %p328 = por %p326, %p327
      %p329 = scmp.ne.s32.totalorder %s317, %s318
      %p330 = scmp.eq.s32.totalorder %s88, 1
      %p331 = por %p329, %p330
      %p333 = scmp.ne.s32.totalorder %s318, %s332
      %p334 = scmp.eq.s32.totalorder %s88, 0
      %p335 = por %p333, %p334
      %s337 = sadd.s32 %s336, 1
      %p340 = scmp.eq.s32.totalorder %s82, 1
      %p341 = scmp.ne.s32.totalorder %s336, %s338
      %p342 = scmp.eq.s32.totalorder %s82, 0
      %p343 = por %p341, %p342
      %p344 = scmp.ne.s32.totalorder %s336, %s338
      %p345 = scmp.eq.s32.totalorder %s87, 1
      %p346 = por %p344, %p345
      %p347 = scmp.ne.s32.totalorder %s338, %s339
      %p348 = scmp.eq.s32.totalorder %s87, 0
      %p349 = por %p347, %p348
      %p350 = scmp.ne.s32.totalorder %s338, %s339
      %p351 = scmp.eq.s32.totalorder %s88, 1
      %p352 = por %p350, %p351
      %p354 = scmp.ne.s32.totalorder %s339, %s353
      %p355 = scmp.eq.s32.totalorder %s88, 0
      %p356 = por %p354, %p355
      %s358 = sadd.s32 %s357, 1
      %p361 = scmp.eq.s32.totalorder %s82, 1
      %p362 = scmp.ne.s32.totalorder %s357, %s359
      %p363 = scmp.eq.s32.totalorder %s82, 0
      %p364 = por %p362, %p363
      %p365 = scmp.ne.s32.totalorder %s357, %s359
      %p366 = scmp.eq.s32.totalorder %s87, 1
      %p367 = por %p365, %p366
      %p368 = scmp.ne.s32.totalorder %s359, %s360
      %p369 = scmp.eq.s32.totalorder %s87, 0
      %p370 = por %p368, %p369
      %p371 = scmp.ne.s32.totalorder %s359, %s360
      %p372 = scmp.eq.s32.totalorder %s88, 1
      %p373 = por %p371, %p372
      %p375 = scmp.ne.s32.totalorder %s360, %s374
      %p376 = scmp.eq.s32.totalorder %s88, 0
      %p377 = por %p375, %p376
      %s379 = sadd.s32 %s378, 1
      %p382 = scmp.eq.s32.totalorder %s82, 1
      %p383 = scmp.ne.s32.totalorder %s378, %s380
      %p384 = scmp.eq.s32.totalorder %s82, 0
      %p385 = por %p383, %p384
      %p386 = scmp.ne.s32.totalorder %s378, %s380
      %p387 = scmp.eq.s32.totalorder %s87, 1
      %p388 = por %p386, %p387
      %p389 = scmp.ne.s32.totalorder %s380, %s381
      %p390 = scmp.eq.s32.totalorder %s87, 0
      %p391 = por %p389, %p390
      %p392 = scmp.ne.s32.totalorder %s380, %s381
      %p393 = scmp.eq.s32.totalorder %s88, 1
      %p394 = por %p392, %p393
      %p396 = scmp.ne.s32.totalorder %s381, %s395
      %p397 = scmp.eq.s32.totalorder %s88, 0
      %p398 = por %p396, %p397
      %s400 = sadd.s32 %s399, 1
      %p403 = scmp.eq.s32.totalorder %s82, 1
      %p404 = scmp.ne.s32.totalorder %s399, %s401
      %p405 = scmp.eq.s32.totalorder %s82, 0
      %p406 = por %p404, %p405
      %p407 = scmp.ne.s32.totalorder %s399, %s401
      %p408 = scmp.eq.s32.totalorder %s87, 1
      %p409 = por %p407, %p408
      %p410 = scmp.ne.s32.totalorder %s401, %s402
      %p411 = scmp.eq.s32.totalorder %s87, 0
      %p412 = por %p410, %p411
      %p413 = scmp.ne.s32.totalorder %s401, %s402
      %p414 = scmp.eq.s32.totalorder %s88, 1
      %p415 = por %p413, %p414
      %p417 = scmp.ne.s32.totalorder %s402, %s416
      %p418 = scmp.eq.s32.totalorder %s88, 0
      %p419 = por %p417, %p418
      %s421 = sadd.s32 %s420, 1
      %p424 = scmp.eq.s32.totalorder %s82, 1
      %p425 = scmp.ne.s32.totalorder %s420, %s422
      %p426 = scmp.eq.s32.totalorder %s82, 0
      %p427 = por %p425, %p426
      %p428 = scmp.ne.s32.totalorder %s420, %s422
      %p429 = scmp.eq.s32.totalorder %s87, 1
      %p430 = por %p428, %p429
      %p431 = scmp.ne.s32.totalorder %s422, %s423
      %p432 = scmp.eq.s32.totalorder %s87, 0
      %p433 = por %p431, %p432
      %p434 = scmp.ne.s32.totalorder %s422, %s423
      %p435 = scmp.eq.s32.totalorder %s88, 1
      %p436 = por %p434, %p435
      %p438 = scmp.ne.s32.totalorder %s423, %s437
      %p439 = scmp.eq.s32.totalorder %s88, 0
      %p440 = por %p438, %p439
      %s442 = sadd.s32 %s441, 1
      %p445 = scmp.eq.s32.totalorder %s82, 1
      %p446 = scmp.ne.s32.totalorder %s441, %s443
      %p447 = scmp.eq.s32.totalorder %s82, 0
      %p448 = por %p446, %p447
      %p449 = scmp.ne.s32.totalorder %s441, %s443
      %p450 = scmp.eq.s32.totalorder %s87, 1
      %p451 = por %p449, %p450
      %p452 = scmp.ne.s32.totalorder %s443, %s444
      %p453 = scmp.eq.s32.totalorder %s87, 0
      %p454 = por %p452, %p453
      %p455 = scmp.ne.s32.totalorder %s443, %s444
      %p456 = scmp.eq.s32.totalorder %s88, 1
      %p457 = por %p455, %p456
      %p459 = scmp.ne.s32.totalorder %s444, %s458
      %p460 = scmp.eq.s32.totalorder %s88, 0
      %p461 = por %p459, %p460
      %s463 = sadd.s32 %s462, 1
      %p466 = scmp.eq.s32.totalorder %s82, 1
      %p467 = scmp.ne.s32.totalorder %s462, %s464
      %p468 = scmp.eq.s32.totalorder %s82, 0
      %p469 = por %p467, %p468
      %p470 = scmp.ne.s32.totalorder %s462, %s464
      %p471 = scmp.eq.s32.totalorder %s87, 1
      %p472 = por %p470, %p471
      %p473 = scmp.ne.s32.totalorder %s464, %s465
      %p474 = scmp.eq.s32.totalorder %s87, 0
      %p475 = por %p473, %p474
      %p476 = scmp.ne.s32.totalorder %s464, %s465
      %p477 = scmp.eq.s32.totalorder %s88, 1
      %p478 = por %p476, %p477
      %p480 = scmp.ne.s32.totalorder %s465, %s479
      %p481 = scmp.eq.s32.totalorder %s88, 0
      %p482 = por %p480, %p481
      %s484 = sadd.s32 %s483, 1
      %p487 = scmp.eq.s32.totalorder %s82, 1
      %p488 = scmp.ne.s32.totalorder %s483, %s485
      %p489 = scmp.eq.s32.totalorder %s82, 0
      %p490 = por %p488, %p489
      %p491 = scmp.ne.s32.totalorder %s483, %s485
      %p492 = scmp.eq.s32.totalorder %s87, 1
      %p493 = por %p491, %p492
      %p494 = scmp.ne.s32.totalorder %s485, %s486
      %p495 = scmp.eq.s32.totalorder %s87, 0
      %p496 = por %p494, %p495
      %p497 = scmp.ne.s32.totalorder %s485, %s486
      %p498 = scmp.eq.s32.totalorder %s88, 1
      %p499 = por %p497, %p498
      %p501 = scmp.ne.s32.totalorder %s486, %s500
      %p502 = scmp.eq.s32.totalorder %s88, 0
      %p503 = por %p501, %p502
      %s505 = sadd.s32 %s504, 1
      %p508 = scmp.eq.s32.totalorder %s82, 1
      %p509 = scmp.ne.s32.totalorder %s504, %s506
      %p510 = scmp.eq.s32.totalorder %s82, 0
      %p511 = por %p509, %p510
      %p512 = scmp.ne.s32.totalorder %s504, %s506
      %p513 = scmp.eq.s32.totalorder %s87, 1
      %p514 = por %p512, %p513
      %p515 = scmp.ne.s32.totalorder %s506, %s507
      %p516 = scmp.eq.s32.totalorder %s87, 0
      %p517 = por %p515, %p516
      %p518 = scmp.ne.s32.totalorder %s506, %s507
      %p519 = scmp.eq.s32.totalorder %s88, 1
      %p520 = por %p518, %p519
      %p522 = scmp.ne.s32.totalorder %s507, %s521
      %p523 = scmp.eq.s32.totalorder %s88, 0
      %p524 = por %p522, %p523
      %s526 = sadd.s32 %s525, 1
      %p529 = scmp.eq.s32.totalorder %s82, 1
      %p530 = scmp.ne.s32.totalorder %s525, %s527
      %p531 = scmp.eq.s32.totalorder %s82, 0
      %p532 = por %p530, %p531
      %p533 = scmp.ne.s32.totalorder %s525, %s527
      %p534 = scmp.eq.s32.totalorder %s87, 1
      %p535 = por %p533, %p534
      %p536 = scmp.ne.s32.totalorder %s527, %s528
      %p537 = scmp.eq.s32.totalorder %s87, 0
      %p538 = por %p536, %p537
      %p539 = scmp.ne.s32.totalorder %s527, %s528
      %p540 = scmp.eq.s32.totalorder %s88, 1
      %p541 = por %p539, %p540
      %p543 = scmp.ne.s32.totalorder %s528, %s542
      %p544 = scmp.eq.s32.totalorder %s88, 0
      %p545 = por %p543, %p544
      %s547 = sadd.s32 %s546, 1
      %p550 = scmp.eq.s32.totalorder %s82, 1
      %p551 = scmp.ne.s32.totalorder %s546, %s548
      %p552 = scmp.eq.s32.totalorder %s82, 0
      %p553 = por %p551, %p552
      %p554 = scmp.ne.s32.totalorder %s546, %s548
      %p555 = scmp.eq.s32.totalorder %s87, 1
      %p556 = por %p554, %p555
      %p557 = scmp.ne.s32.totalorder %s548, %s549
      %p558 = scmp.eq.s32.totalorder %s87, 0
      %p559 = por %p557, %p558
      %p560 = scmp.ne.s32.totalorder %s548, %s549
      %p561 = scmp.eq.s32.totalorder %s88, 1
      %p562 = por %p560, %p561
      %p564 = scmp.ne.s32.totalorder %s549, %s563
      %p565 = scmp.eq.s32.totalorder %s88, 0
      %p566 = por %p564, %p565
      %s568 = sadd.s32 %s567, 1
      %p571 = scmp.eq.s32.totalorder %s82, 1
      %p572 = scmp.ne.s32.totalorder %s567, %s569
      %p573 = scmp.eq.s32.totalorder %s82, 0
      %p574 = por %p572, %p573
      %p575 = scmp.ne.s32.totalorder %s567, %s569
      %p576 = scmp.eq.s32.totalorder %s87, 1
      %p577 = por %p575, %p576
      %p578 = scmp.ne.s32.totalorder %s569, %s570
      %p579 = scmp.eq.s32.totalorder %s87, 0
      %p580 = por %p578, %p579
      %p581 = scmp.ne.s32.totalorder %s569, %s570
      %p582 = scmp.eq.s32.totalorder %s88, 1
      %p583 = por %p581, %p582
      %p585 = scmp.ne.s32.totalorder %s570, %s584
      %p586 = scmp.eq.s32.totalorder %s88, 0
      %p587 = por %p585, %p586
      %s589 = sadd.s32 %s588, 1
      %p592 = scmp.eq.s32.totalorder %s82, 1
      %p593 = scmp.ne.s32.totalorder %s588, %s590
      %p594 = scmp.eq.s32.totalorder %s82, 0
      %p595 = por %p593, %p594
      %p596 = scmp.ne.s32.totalorder %s588, %s590
      %p597 = scmp.eq.s32.totalorder %s87, 1
      %p598 = por %p596, %p597
      %p599 = scmp.ne.s32.totalorder %s590, %s591
      %p600 = scmp.eq.s32.totalorder %s87, 0
      %p601 = por %p599, %p600
      %p602 = scmp.ne.s32.totalorder %s590, %s591
      %p603 = scmp.eq.s32.totalorder %s88, 1
      %p604 = por %p602, %p603
      %p606 = scmp.ne.s32.totalorder %s591, %s605
      %p607 = scmp.eq.s32.totalorder %s88, 0
      %p608 = por %p606, %p607
      %s610 = sadd.s32 %s609, 1
      %p613 = scmp.eq.s32.totalorder %s82, 1
      %p614 = scmp.ne.s32.totalorder %s609, %s611
      %p615 = scmp.eq.s32.totalorder %s82, 0
      %p616 = por %p614, %p615
      %p617 = scmp.ne.s32.totalorder %s609, %s611
      %p618 = scmp.eq.s32.totalorder %s87, 1
      %p619 = por %p617, %p618
      %p620 = scmp.ne.s32.totalorder %s611, %s612
      %p621 = scmp.eq.s32.totalorder %s87, 0
      %p622 = por %p620, %p621
      %p623 = scmp.ne.s32.totalorder %s611, %s612
      %p624 = scmp.eq.s32.totalorder %s88, 1
      %p625 = por %p623, %p624
      %p627 = scmp.ne.s32.totalorder %s612, %s626
      %p628 = scmp.eq.s32.totalorder %s88, 0
      %p629 = por %p627, %p628
      %s631 = sadd.s32 %s630, 1
      %p634 = scmp.eq.s32.totalorder %s82, 1
      %p635 = scmp.ne.s32.totalorder %s630, %s632
      %p636 = scmp.eq.s32.totalorder %s82, 0
      %p637 = por %p635, %p636
      %p638 = scmp.ne.s32.totalorder %s630, %s632
      %p639 = scmp.eq.s32.totalorder %s87, 1
      %p640 = por %p638, %p639
      %p641 = scmp.ne.s32.totalorder %s632, %s633
      %p642 = scmp.eq.s32.totalorder %s87, 0
      %p643 = por %p641, %p642
      %p644 = scmp.ne.s32.totalorder %s632, %s633
      %p645 = scmp.eq.s32.totalorder %s88, 1
      %p646 = por %p644, %p645
      %p648 = scmp.ne.s32.totalorder %s633, %s647
      %p649 = scmp.eq.s32.totalorder %s88, 0
      %p650 = por %p648, %p649
      %s652 = sadd.s32 %s651, 1
      %p655 = scmp.eq.s32.totalorder %s82, 1
      %p656 = scmp.ne.s32.totalorder %s651, %s653
      %p657 = scmp.eq.s32.totalorder %s82, 0
      %p658 = por %p656, %p657
      %p659 = scmp.ne.s32.totalorder %s651, %s653
      %p660 = scmp.eq.s32.totalorder %s87, 1
      %p661 = por %p659, %p660
      %p662 = scmp.ne.s32.totalorder %s653, %s654
      %p663 = scmp.eq.s32.totalorder %s87, 0
      %p664 = por %p662, %p663
      %p665 = scmp.ne.s32.totalorder %s653, %s654
      %p666 = scmp.eq.s32.totalorder %s88, 1
      %p667 = por %p665, %p666
      %p669 = scmp.ne.s32.totalorder %s654, %s668
      %p670 = scmp.eq.s32.totalorder %s88, 0
      %p671 = por %p669, %p670
      %s672 = ssub.s32 %s82, %s89
      %p673 = scmp.eq.s32.totalorder %s672, 0
      %s675 = sadd.s32 %s674, 1
      %s676 = scalar_select %p673, %s674, %s675
      %p679 = pneg %p673
      %p680 = scmp.eq.s32.totalorder %s82, 1
      %p681 = por %p679, %p680
      %p682 = scmp.ne.s32.totalorder %s674, %s677
      %p683 = scmp.eq.s32.totalorder %s82, 0
      %p684 = por %p682, %p683
      %p685 = scmp.ne.s32.totalorder %s674, %s677
      %p686 = scmp.eq.s32.totalorder %s87, 1
      %p687 = por %p685, %p686
      %p688 = scmp.ne.s32.totalorder %s677, %s678
      %p689 = scmp.eq.s32.totalorder %s87, 0
      %p690 = por %p688, %p689
      %p691 = scmp.ne.s32.totalorder %s677, %s678
      %p692 = scmp.eq.s32.totalorder %s88, 1
      %p693 = por %p691, %p692
      %p695 = scmp.ne.s32.totalorder %s678, %s694
      %p696 = scmp.eq.s32.totalorder %s88, 0
      %p697 = por %p695, %p696
      %s698 = ssub.s32 %s82, %s89
      %p699 = scmp.eq.s32.totalorder %s698, 0
      %s701 = sadd.s32 %s700, 1
      %s702 = scalar_select %p699, %s700, %s701
      %p705 = pneg %p699
      %p706 = scmp.eq.s32.totalorder %s82, 1
      %p707 = por %p705, %p706
      %p708 = scmp.ne.s32.totalorder %s700, %s703
      %p709 = scmp.eq.s32.totalorder %s82, 0
      %p710 = por %p708, %p709
      %p711 = scmp.ne.s32.totalorder %s700, %s703
      %p712 = scmp.eq.s32.totalorder %s87, 1
      %p713 = por %p711, %p712
      %p714 = scmp.ne.s32.totalorder %s703, %s704
      %p715 = scmp.eq.s32.totalorder %s87, 0
      %p716 = por %p714, %p715
      %p717 = scmp.ne.s32.totalorder %s703, %s704
      %p718 = scmp.eq.s32.totalorder %s88, 1
      %p719 = por %p717, %p718
      %p721 = scmp.ne.s32.totalorder %s704, %s720
      %p722 = scmp.eq.s32.totalorder %s88, 0
      %p723 = por %p721, %p722
      %s724 = ssub.s32 %s82, %s89
      %p725 = scmp.eq.s32.totalorder %s724, 0
      %s727 = sadd.s32 %s726, 1
      %s728 = scalar_select %p725, %s726, %s727
      %p731 = pneg %p725
      %p732 = scmp.eq.s32.totalorder %s82, 1
      %p733 = por %p731, %p732
      %p734 = scmp.ne.s32.totalorder %s726, %s729
      %p735 = scmp.eq.s32.totalorder %s82, 0
      %p736 = por %p734, %p735
      %p737 = scmp.ne.s32.totalorder %s726, %s729
      %p738 = scmp.eq.s32.totalorder %s87, 1
      %p739 = por %p737, %p738
      %p740 = scmp.ne.s32.totalorder %s729, %s730
      %p741 = scmp.eq.s32.totalorder %s87, 0
      %p742 = por %p740, %p741
      %p743 = scmp.ne.s32.totalorder %s729, %s730
      %p744 = scmp.eq.s32.totalorder %s88, 1
      %p745 = por %p743, %p744
      %p747 = scmp.ne.s32.totalorder %s730, %s746
      %p748 = scmp.eq.s32.totalorder %s88, 0
      %p749 = por %p747, %p748
      %p750 = scmp.le.s32.totalorder 1, %s82
      %p751 = scmp.lt.s32.totalorder %s82, 3
      %p752 = pnand %p750, %p751
      %p753 = pneg %p752
      // Predicated region
      $region9: #{tpu_custom_call.1} parent=5 // pred_check
        _
      $region10: #{tpu_custom_call.1} parent=5 // pred_check_branch
        %755 = sbr.rel (%p752) target = $region12
      $region11: #{tpu_custom_call.1} parent=5 // pred_region
        %s756 = ssub.s32 %s82, 1
        // Predicated region
        $region13: #{tpu_custom_call.1} parent=11 // pred_check
          %p757 = pneg %p181
        $region14: #{tpu_custom_call.1} parent=11 // pred_check_branch
          %759 = sbr.rel (%p757) target = $region16
        $region15: #{tpu_custom_call.1} parent=11 // pred_region
          %s761 = ssub.s32 6144, 6144
          %762 = vsyncadd [#allocation6], %s761
          %s763 = sshll.u32 [#allocation5], 4
          %s764 = int_to_ptr.vmem [resolvable:$true] %s763
          %769 = dma.hbm_to_vmem [thread:$0]  %s7, 6144, %s764, [#allocation6], 128, 128, 8
        $region16: #{tpu_custom_call.1} parent=11 // pred_fallthru
          _
        // Predicated region
        $region17: #{tpu_custom_call.1} parent=11 // pred_check
          %p770 = pneg %p202
        $region18: #{tpu_custom_call.1} parent=11 // pred_check_branch
          %772 = sbr.rel (%p770) target = $region20
        $region19: #{tpu_custom_call.1} parent=11 // pred_region
          %s774 = ssub.s32 48, 48
          %775 = vsyncadd [#allocation6], %s774
          %s777 = sshll.u32 [#allocation7], 4
          %s778 = int_to_ptr.vmem [resolvable:$true] %s777
          %780 = dma.hbm_to_vmem [thread:$0]  %s9, 48, %s778, [#allocation6]
        $region20: #{tpu_custom_call.1} parent=11 // pred_fallthru
          _
        // Predicated region
        $region21: #{tpu_custom_call.1} parent=11 // pred_check
          %p781 = pneg %p223
        $region22: #{tpu_custom_call.1} parent=11 // pred_check_branch
          %783 = sbr.rel (%p781) target = $region24
        $region23: #{tpu_custom_call.1} parent=11 // pred_region
          %s785 = ssub.s32 2048, 2048
          %786 = vsyncadd [#allocation9], %s785
          %s787 = sshll.u32 [#allocation8], 4
          %s788 = int_to_ptr.vmem [resolvable:$true] %s787
          %793 = dma.hbm_to_vmem [thread:$0]  %s11, 2048, %s788, [#allocation9], 128, 128, 8
        $region24: #{tpu_custom_call.1} parent=11 // pred_fallthru
          _
        // Predicated region
        $region25: #{tpu_custom_call.1} parent=11 // pred_check
          %p794 = pneg %p244
        $region26: #{tpu_custom_call.1} parent=11 // pred_check_branch
          %796 = sbr.rel (%p794) target = $region28
        $region27: #{tpu_custom_call.1} parent=11 // pred_region
          %s798 = ssub.s32 16, 16
          %799 = vsyncadd [#allocation9], %s798
          %s801 = sshll.u32 [#allocation10], 4
          %s802 = int_to_ptr.vmem [resolvable:$true] %s801
          %804 = dma.hbm_to_vmem [thread:$0]  %s13, 16, %s802, [#allocation9]
        $region28: #{tpu_custom_call.1} parent=11 // pred_fallthru
          _
        // Predicated region
        $region29: #{tpu_custom_call.1} parent=11 // pred_check
          %p805 = pneg %p265
        $region30: #{tpu_custom_call.1} parent=11 // pred_check_branch
          %807 = sbr.rel (%p805) target = $region32
        $region31: #{tpu_custom_call.1} parent=11 // pred_region
          %s809 = ssub.s32 16, 16
          %810 = vsyncadd [#allocation12], %s809
          %s812 = sshll.u32 [#allocation11], 4
          %s813 = int_to_ptr.vmem [resolvable:$true] %s812
          %815 = dma.hbm_to_vmem [thread:$0]  %s15, 16, %s813, [#allocation12]
        $region32: #{tpu_custom_call.1} parent=11 // pred_fallthru
          _
        // Predicated region
        $region33: #{tpu_custom_call.1} parent=11 // pred_check
          %p816 = pneg %p286
        $region34: #{tpu_custom_call.1} parent=11 // pred_check_branch
          %818 = sbr.rel (%p816) target = $region36
        $region35: #{tpu_custom_call.1} parent=11 // pred_region
          %s820 = ssub.s32 16, 16
          %821 = vsyncadd [#allocation12], %s820
          %s823 = sshll.u32 [#allocation13], 4
          %s824 = int_to_ptr.vmem [resolvable:$true] %s823
          %826 = dma.hbm_to_vmem [thread:$0]  %s17, 16, %s824, [#allocation12]
        $region36: #{tpu_custom_call.1} parent=11 // pred_fallthru
          _
        // Predicated region
        $region37: #{tpu_custom_call.1} parent=11 // pred_check
          %p827 = pneg %p307
        $region38: #{tpu_custom_call.1} parent=11 // pred_check_branch
          %829 = sbr.rel (%p827) target = $region40
        $region39: #{tpu_custom_call.1} parent=11 // pred_region
          %s831 = ssub.s32 16, 16
          %832 = vsyncadd [#allocation15], %s831
          %s834 = sshll.u32 [#allocation14], 4
          %s835 = int_to_ptr.vmem [resolvable:$true] %s834
          %837 = dma.hbm_to_vmem [thread:$0]  %s19, 16, %s835, [#allocation15]
        $region40: #{tpu_custom_call.1} parent=11 // pred_fallthru
          _
        // Predicated region
        $region41: #{tpu_custom_call.1} parent=11 // pred_check
          %p838 = pneg %p328
        $region42: #{tpu_custom_call.1} parent=11 // pred_check_branch
          %840 = sbr.rel (%p838) target = $region44
        $region43: #{tpu_custom_call.1} parent=11 // pred_region
          %s842 = ssub.s32 16, 16
          %843 = vsyncadd [#allocation15], %s842
          %s845 = sshll.u32 [#allocation16], 4
          %s846 = int_to_ptr.vmem [resolvable:$true] %s845
          %848 = dma.hbm_to_vmem [thread:$0]  %s21, 16, %s846, [#allocation15]
        $region44: #{tpu_custom_call.1} parent=11 // pred_fallthru
          _
        // Predicated region
        $region45: #{tpu_custom_call.1} parent=11 // pred_check
          %p849 = pneg %p349
        $region46: #{tpu_custom_call.1} parent=11 // pred_check_branch
          %851 = sbr.rel (%p849) target = $region48
        $region47: #{tpu_custom_call.1} parent=11 // pred_region
          %s853 = ssub.s32 32768, 32768
          %854 = vsyncadd [#allocation18], %s853
          %s855 = sshll.u32 [#allocation17], 4
          %s856 = int_to_ptr.vmem [resolvable:$true] %s855
          %861 = dma.hbm_to_vmem [thread:$0]  %s23, 32768, %s856, [#allocation18], 128, 128, 8
        $region48: #{tpu_custom_call.1} parent=11 // pred_fallthru
          _
        // Predicated region
        $region49: #{tpu_custom_call.1} parent=11 // pred_check
          %p862 = pneg %p370
        $region50: #{tpu_custom_call.1} parent=11 // pred_check_branch
          %864 = sbr.rel (%p862) target = $region52
        $region51: #{tpu_custom_call.1} parent=11 // pred_region
          _
        $region52: #{tpu_custom_call.1} parent=11 // pred_fallthru
          _
        // Predicated region
        $region53: #{tpu_custom_call.1} parent=11 // pred_check
          %p865 = pneg %p391
        $region54: #{tpu_custom_call.1} parent=11 // pred_check_branch
          %867 = sbr.rel (%p865) target = $region56
        $region55: #{tpu_custom_call.1} parent=11 // pred_region
          %s869 = ssub.s32 32768, 32768
          %870 = vsyncadd [#allocation18], %s869
          %s871 = sshll.u32 [#allocation19], 4
          %s872 = int_to_ptr.vmem [resolvable:$true] %s871
          %877 = dma.hbm_to_vmem [thread:$0]  %s27, 32768, %s872, [#allocation18], 2048, 2048, 128
        $region56: #{tpu_custom_call.1} parent=11 // pred_fallthru
          _
        // Predicated region
        $region57: #{tpu_custom_call.1} parent=11 // pred_check
          %p878 = pneg %p412
        $region58: #{tpu_custom_call.1} parent=11 // pred_check_branch
          %880 = sbr.rel (%p878) target = $region60
        $region59: #{tpu_custom_call.1} parent=11 // pred_region
          _
        $region60: #{tpu_custom_call.1} parent=11 // pred_fallthru
          _
        // Predicated region
        $region61: #{tpu_custom_call.1} parent=11 // pred_check
          %p881 = pneg %p433
        $region62: #{tpu_custom_call.1} parent=11 // pred_check_branch
          %883 = sbr.rel (%p881) target = $region64
        $region63: #{tpu_custom_call.1} parent=11 // pred_region
          %s885 = ssub.s32 6144, 6144
          %886 = vsyncadd [#allocation21], %s885
          %s887 = sshll.u32 [#allocation20], 4
          %s888 = int_to_ptr.vmem [resolvable:$true] %s887
          %893 = dma.hbm_to_vmem [thread:$0]  %s31, 6144, %s888, [#allocation21], 128, 128, 8
        $region64: #{tpu_custom_call.1} parent=11 // pred_fallthru
          _
        // Predicated region
        $region65: #{tpu_custom_call.1} parent=11 // pred_check
          %p894 = pneg %p454
        $region66: #{tpu_custom_call.1} parent=11 // pred_check_branch
          %896 = sbr.rel (%p894) target = $region68
        $region67: #{tpu_custom_call.1} parent=11 // pred_region
          _
        $region68: #{tpu_custom_call.1} parent=11 // pred_fallthru
          _
        // Predicated region
        $region69: #{tpu_custom_call.1} parent=11 // pred_check
          %p897 = pneg %p475
        $region70: #{tpu_custom_call.1} parent=11 // pred_check_branch
          %899 = sbr.rel (%p897) target = $region72
        $region71: #{tpu_custom_call.1} parent=11 // pred_region
          %s901 = ssub.s32 2048, 2048
          %902 = vsyncadd [#allocation21], %s901
          %s903 = sshll.u32 [#allocation22], 4
          %s904 = int_to_ptr.vmem [resolvable:$true] %s903
          %909 = dma.hbm_to_vmem [thread:$0]  %s35, 2048, %s904, [#allocation21], 128, 128, 8
        $region72: #{tpu_custom_call.1} parent=11 // pred_fallthru
          _
        // Predicated region
        $region73: #{tpu_custom_call.1} parent=11 // pred_check
          %p910 = pneg %p496
        $region74: #{tpu_custom_call.1} parent=11 // pred_check_branch
          %912 = sbr.rel (%p910) target = $region76
        $region75: #{tpu_custom_call.1} parent=11 // pred_region
          _
        $region76: #{tpu_custom_call.1} parent=11 // pred_fallthru
          _
        // Predicated region
        $region77: #{tpu_custom_call.1} parent=11 // pred_check
          %p913 = pneg %p517
        $region78: #{tpu_custom_call.1} parent=11 // pred_check_branch
          %915 = sbr.rel (%p913) target = $region80
        $region79: #{tpu_custom_call.1} parent=11 // pred_region
          _
        $region80: #{tpu_custom_call.1} parent=11 // pred_fallthru
          _
        // Predicated region
        $region81: #{tpu_custom_call.1} parent=11 // pred_check
          %p916 = pneg %p538
        $region82: #{tpu_custom_call.1} parent=11 // pred_check_branch
          %918 = sbr.rel (%p916) target = $region84
        $region83: #{tpu_custom_call.1} parent=11 // pred_region
          _
        $region84: #{tpu_custom_call.1} parent=11 // pred_fallthru
          _
        // Predicated region
        $region85: #{tpu_custom_call.1} parent=11 // pred_check
          %p919 = pneg %p559
        $region86: #{tpu_custom_call.1} parent=11 // pred_check_branch
          %921 = sbr.rel (%p919) target = $region88
        $region87: #{tpu_custom_call.1} parent=11 // pred_region
          _
        $region88: #{tpu_custom_call.1} parent=11 // pred_fallthru
          _
        // Predicated region
        $region89: #{tpu_custom_call.1} parent=11 // pred_check
          %p922 = pneg %p580
        $region90: #{tpu_custom_call.1} parent=11 // pred_check_branch
          %924 = sbr.rel (%p922) target = $region92
        $region91: #{tpu_custom_call.1} parent=11 // pred_region
          _
        $region92: #{tpu_custom_call.1} parent=11 // pred_fallthru
          _
        // Predicated region
        $region93: #{tpu_custom_call.1} parent=11 // pred_check
          %p925 = pneg %p601
        $region94: #{tpu_custom_call.1} parent=11 // pred_check_branch
          %927 = sbr.rel (%p925) target = $region96
        $region95: #{tpu_custom_call.1} parent=11 // pred_region
          %s929 = ssub.s32 32768, 32768
          %930 = vsyncadd [#allocation24], %s929
          %s931 = sshll.u32 [#allocation23], 4
          %s932 = int_to_ptr.vmem [resolvable:$true] %s931
          %937 = dma.hbm_to_vmem [thread:$0]  %s47, 32768, %s932, [#allocation24], 128, 128, 8
        $region96: #{tpu_custom_call.1} parent=11 // pred_fallthru
          _
        // Predicated region
        $region97: #{tpu_custom_call.1} parent=11 // pred_check
          %p938 = pneg %p622
        $region98: #{tpu_custom_call.1} parent=11 // pred_check_branch
          %940 = sbr.rel (%p938) target = $region100
        $region99: #{tpu_custom_call.1} parent=11 // pred_region
          _
        $region100: #{tpu_custom_call.1} parent=11 // pred_fallthru
          _
        // Predicated region
        $region101: #{tpu_custom_call.1} parent=11 // pred_check
          %p941 = pneg %p643
        $region102: #{tpu_custom_call.1} parent=11 // pred_check_branch
          %943 = sbr.rel (%p941) target = $region104
        $region103: #{tpu_custom_call.1} parent=11 // pred_region
          %s945 = ssub.s32 32768, 32768
          %946 = vsyncadd [#allocation24], %s945
          %s947 = sshll.u32 [#allocation25], 4
          %s948 = int_to_ptr.vmem [resolvable:$true] %s947
          %953 = dma.hbm_to_vmem [thread:$0]  %s51, 32768, %s948, [#allocation24], 2048, 2048, 128
        $region104: #{tpu_custom_call.1} parent=11 // pred_fallthru
          _
        // Predicated region
        $region105: #{tpu_custom_call.1} parent=11 // pred_check
          %p954 = pneg %p664
        $region106: #{tpu_custom_call.1} parent=11 // pred_check_branch
          %956 = sbr.rel (%p954) target = $region108
        $region107: #{tpu_custom_call.1} parent=11 // pred_region
          _
        $region108: #{tpu_custom_call.1} parent=11 // pred_fallthru
          _
      $region12: #{tpu_custom_call.1} parent=5 // pred_fallthru
        _
      %p957 = scmp.lt.s32.totalorder %s82, 2
      // Predicated region
      $region109: #{tpu_custom_call.1} parent=5 // pred_check
        %p958 = pneg %p957
      $region110: #{tpu_custom_call.1} parent=5 // pred_check_branch
        %960 = sbr.rel (%p958) target = $region112
      $region111: #{tpu_custom_call.1} parent=5 // pred_region
        // Predicated region
        $region113: #{tpu_custom_call.1} parent=111 // pred_check
          %p961 = pneg %p102
        $region114: #{tpu_custom_call.1} parent=111 // pred_check_branch
          %963 = sbr.rel (%p961) target = $region116
        $region115: #{tpu_custom_call.1} parent=111 // pred_region
          %p964 = scmp.lt.s32.totalorder %s82, 1
          %s965 = scalar_select %p964, %s82, 1
          %s966 = smul.addr %s965, 8
          %s967 = scalar_lea.vmem %s1, %s966
        $region116: #{tpu_custom_call.1} parent=111 // pred_fallthru
          _
        // Predicated region
        $region117: #{tpu_custom_call.1} parent=111 // pred_check
          %p968 = pneg %p128
        $region118: #{tpu_custom_call.1} parent=111 // pred_check_branch
          %970 = sbr.rel (%p968) target = $region120
        $region119: #{tpu_custom_call.1} parent=111 // pred_region
          %p971 = scmp.lt.s32.totalorder %s82, 1
          %s972 = scalar_select %p971, %s82, 1
          %s973 = smul.addr %s972, 8
          %s974 = scalar_lea.vmem %s3, %s973
        $region120: #{tpu_custom_call.1} parent=111 // pred_fallthru
          _
        // Predicated region
        $region121: #{tpu_custom_call.1} parent=111 // pred_check
          %p975 = pneg %p154
        $region122: #{tpu_custom_call.1} parent=111 // pred_check_branch
          %977 = sbr.rel (%p975) target = $region124
        $region123: #{tpu_custom_call.1} parent=111 // pred_region
          %s978 = sand.u32 %s144, 1
          %s979 = scalar_lea.sflag [#allocation3], %s978
          %s980 = sand.u32 %s144, 1
          %s981 = smul.addr %s980, 4
          %s982 = scalar_lea.vmem [#allocation2], %s981
          %s984 = ssub.s32 64, 64
          %985 = vsyncadd %s979, %s984
          %s986 = smul.addr %s82, 64
          %s987 = scalar_lea.hbm %s5, %s986
          %s989 = sshll.u32 %s982, 4
          %s990 = int_to_ptr.vmem [resolvable:$true] %s989
          %992 = dma.hbm_to_vmem [thread:$0]  %s987, 64, %s990, %s979
        $region124: #{tpu_custom_call.1} parent=111 // pred_fallthru
          _
      $region112: #{tpu_custom_call.1} parent=5 // pred_fallthru
        _
      %p993 = scmp.le.s32.totalorder 1, %s82
      %p994 = scmp.lt.s32.totalorder %s82, 3
      %p995 = pnand %p993, %p994
      %p996 = pneg %p995
      // Predicated region
      $region125: #{tpu_custom_call.1} parent=5 // pred_check
        _
      $region126: #{tpu_custom_call.1} parent=5 // pred_check_branch
        %998 = sbr.rel (%p995) target = $region128
      $region127: #{tpu_custom_call.1} parent=5 // pred_region
        %s999 = ssub.s32 %s82, 1
        %s1000 = sand.u32 %s147, 1
        %s1001 = scalar_lea.sflag [#allocation3], %s1000
        %s1002 = sand.u32 %s147, 1
        %s1003 = smul.addr %s1002, 4
        %s1004 = scalar_lea.vmem [#allocation2], %s1003
        // Predicated region
        $region129: #{tpu_custom_call.1} parent=127 // pred_check
          %p1005 = pneg %p160
        $region130: #{tpu_custom_call.1} parent=127 // pred_check_branch
          %1007 = sbr.rel (%p1005) target = $region132
        $region131: #{tpu_custom_call.1} parent=127 // pred_region
          %1008 = dma.done %s1001, 64
        $region132: #{tpu_custom_call.1} parent=127 // pred_fallthru
          _
        // Predicated region
        $region133: #{tpu_custom_call.1} parent=127 // pred_check
          %p1009 = pneg %p181
        $region134: #{tpu_custom_call.1} parent=127 // pred_check_branch
          %1011 = sbr.rel (%p1009) target = $region136
        $region135: #{tpu_custom_call.1} parent=127 // pred_region
          %1012 = dma.done [#allocation6], 6144
        $region136: #{tpu_custom_call.1} parent=127 // pred_fallthru
          _
        // Predicated region
        $region137: #{tpu_custom_call.1} parent=127 // pred_check
          %p1013 = pneg %p202
        $region138: #{tpu_custom_call.1} parent=127 // pred_check_branch
          %1015 = sbr.rel (%p1013) target = $region140
        $region139: #{tpu_custom_call.1} parent=127 // pred_region
          %1016 = dma.done [#allocation6], 48
        $region140: #{tpu_custom_call.1} parent=127 // pred_fallthru
          _
        // Predicated region
        $region141: #{tpu_custom_call.1} parent=127 // pred_check
          %p1017 = pneg %p223
        $region142: #{tpu_custom_call.1} parent=127 // pred_check_branch
          %1019 = sbr.rel (%p1017) target = $region144
        $region143: #{tpu_custom_call.1} parent=127 // pred_region
          %1020 = dma.done [#allocation9], 2048
        $region144: #{tpu_custom_call.1} parent=127 // pred_fallthru
          _
        // Predicated region
        $region145: #{tpu_custom_call.1} parent=127 // pred_check
          %p1021 = pneg %p244
        $region146: #{tpu_custom_call.1} parent=127 // pred_check_branch
          %1023 = sbr.rel (%p1021) target = $region148
        $region147: #{tpu_custom_call.1} parent=127 // pred_region
          %1024 = dma.done [#allocation9], 16
        $region148: #{tpu_custom_call.1} parent=127 // pred_fallthru
          _
        // Predicated region
        $region149: #{tpu_custom_call.1} parent=127 // pred_check
          %p1025 = pneg %p265
        $region150: #{tpu_custom_call.1} parent=127 // pred_check_branch
          %1027 = sbr.rel (%p1025) target = $region152
        $region151: #{tpu_custom_call.1} parent=127 // pred_region
          %1028 = dma.done [#allocation12], 16
        $region152: #{tpu_custom_call.1} parent=127 // pred_fallthru
          _
        // Predicated region
        $region153: #{tpu_custom_call.1} parent=127 // pred_check
          %p1029 = pneg %p286
        $region154: #{tpu_custom_call.1} parent=127 // pred_check_branch
          %1031 = sbr.rel (%p1029) target = $region156
        $region155: #{tpu_custom_call.1} parent=127 // pred_region
          %1032 = dma.done [#allocation12], 16
        $region156: #{tpu_custom_call.1} parent=127 // pred_fallthru
          _
        // Predicated region
        $region157: #{tpu_custom_call.1} parent=127 // pred_check
          %p1033 = pneg %p307
        $region158: #{tpu_custom_call.1} parent=127 // pred_check_branch
          %1035 = sbr.rel (%p1033) target = $region160
        $region159: #{tpu_custom_call.1} parent=127 // pred_region
          %1036 = dma.done [#allocation15], 16
        $region160: #{tpu_custom_call.1} parent=127 // pred_fallthru
          _
        // Predicated region
        $region161: #{tpu_custom_call.1} parent=127 // pred_check
          %p1037 = pneg %p328
        $region162: #{tpu_custom_call.1} parent=127 // pred_check_branch
          %1039 = sbr.rel (%p1037) target = $region164
        $region163: #{tpu_custom_call.1} parent=127 // pred_region
          %1040 = dma.done [#allocation15], 16
        $region164: #{tpu_custom_call.1} parent=127 // pred_fallthru
          _
        // Predicated region
        $region165: #{tpu_custom_call.1} parent=127 // pred_check
          %p1041 = pneg %p349
        $region166: #{tpu_custom_call.1} parent=127 // pred_check_branch
          %1043 = sbr.rel (%p1041) target = $region168
        $region167: #{tpu_custom_call.1} parent=127 // pred_region
          %1044 = dma.done [#allocation18], 32768
        $region168: #{tpu_custom_call.1} parent=127 // pred_fallthru
          _
        // Predicated region
        $region169: #{tpu_custom_call.1} parent=127 // pred_check
          %p1045 = pneg %p391
        $region170: #{tpu_custom_call.1} parent=127 // pred_check_branch
          %1047 = sbr.rel (%p1045) target = $region172
        $region171: #{tpu_custom_call.1} parent=127 // pred_region
          %1048 = dma.done [#allocation18], 32768
        $region172: #{tpu_custom_call.1} parent=127 // pred_fallthru
          _
        // Predicated region
        $region173: #{tpu_custom_call.1} parent=127 // pred_check
          %p1049 = pneg %p433
        $region174: #{tpu_custom_call.1} parent=127 // pred_check_branch
          %1051 = sbr.rel (%p1049) target = $region176
        $region175: #{tpu_custom_call.1} parent=127 // pred_region
          %1052 = dma.done [#allocation21], 6144
        $region176: #{tpu_custom_call.1} parent=127 // pred_fallthru
          _
        // Predicated region
        $region177: #{tpu_custom_call.1} parent=127 // pred_check
          %p1053 = pneg %p475
        $region178: #{tpu_custom_call.1} parent=127 // pred_check_branch
          %1055 = sbr.rel (%p1053) target = $region180
        $region179: #{tpu_custom_call.1} parent=127 // pred_region
          %1056 = dma.done [#allocation21], 2048
        $region180: #{tpu_custom_call.1} parent=127 // pred_fallthru
          _
        // Predicated region
        $region181: #{tpu_custom_call.1} parent=127 // pred_check
          %p1057 = pneg %p601
        $region182: #{tpu_custom_call.1} parent=127 // pred_check_branch
          %1059 = sbr.rel (%p1057) target = $region184
        $region183: #{tpu_custom_call.1} parent=127 // pred_region
          %1060 = dma.done [#allocation24], 32768
        $region184: #{tpu_custom_call.1} parent=127 // pred_fallthru
          _
        // Predicated region
        $region185: #{tpu_custom_call.1} parent=127 // pred_check
          %p1061 = pneg %p643
        $region186: #{tpu_custom_call.1} parent=127 // pred_check_branch
          %1063 = sbr.rel (%p1061) target = $region188
        $region187: #{tpu_custom_call.1} parent=127 // pred_region
          %1064 = dma.done [#allocation24], 32768
        $region188: #{tpu_custom_call.1} parent=127 // pred_fallthru
          _
        %p1065 = scmp.lt.s32.totalorder %s87, 1
        %s1066 = scalar_select %p1065, %s87, 1
        %s1067 = smul.addr %s1066, 8
        %s1068 = scalar_lea.vmem %s1, %s1067
        %p1069 = pneg %p108
        %p1070 = pneg %p105
        %p1071 = scmp.lt.s32.totalorder %s87, 1
        %s1072 = scalar_select %p1071, %s87, 1
        %s1073 = smul.addr %s1072, 8
        %s1074 = scalar_lea.vmem %s3, %s1073
        %p1075 = pneg %p134
        %p1076 = pneg %p131
        %s1077 = sand.u32 %s147, 1
        %s1078 = scalar_lea.sflag [#allocation3], %s1077
        %s1079 = sand.u32 %s147, 1
        %s1080 = smul.addr %s1079, 4
        %s1081 = scalar_lea.vmem [#allocation2], %s1080
        %p1082 = pneg %p160
        %p1083 = pneg %p157
        %p1084 = pneg %p181
        %p1085 = pneg %p178
        %p1086 = pneg %p202
        %p1087 = pneg %p199
        %p1088 = pneg %p223
        %p1089 = pneg %p220
        %p1090 = pneg %p244
        %p1091 = pneg %p241
        %p1092 = pneg %p265
        %p1093 = pneg %p262
        %p1094 = pneg %p286
        %p1095 = pneg %p283
        %p1096 = pneg %p307
        %p1097 = pneg %p304
        %p1098 = pneg %p328
        %p1099 = pneg %p325
        %p1100 = pneg %p349
        %p1101 = pneg %p346
        %p1102 = pneg %p370
        %p1103 = pneg %p367
        %p1104 = pneg %p391
        %p1105 = pneg %p388
        %p1106 = pneg %p412
        %p1107 = pneg %p409
        %p1108 = pneg %p433
        %p1109 = pneg %p430
        %p1110 = pneg %p454
        %p1111 = pneg %p451
        %p1112 = pneg %p475
        %p1113 = pneg %p472
        %p1114 = pneg %p496
        %p1115 = pneg %p493
        %p1116 = pneg %p517
        %p1117 = pneg %p514
        %p1118 = pneg %p538
        %p1119 = pneg %p535
        %p1120 = pneg %p559
        %p1121 = pneg %p556
        %p1122 = pneg %p580
        %p1123 = pneg %p577
        %p1124 = pneg %p601
        %p1125 = pneg %p598
        %p1126 = pneg %p622
        %p1127 = pneg %p619
        %p1128 = pneg %p643
        %p1129 = pneg %p640
        %p1130 = pneg %p664
        %p1131 = pneg %p661
        %p1132 = pneg %p690
        %p1133 = pneg %p687
        %s1134 = sand.u32 %s677, 1
        %s1135 = scalar_lea.sflag [#allocation4], %s1134
        %s1136 = sand.u32 %s677, 1
        %s1137 = smul.addr %s1136, 8
        %s1138 = scalar_lea.vmem [#allocation26], %s1137
        %p1139 = pneg %p716
        %p1140 = pneg %p713
        %p1141 = scmp.lt.s32.totalorder %s87, 1
        %s1142 = scalar_select %p1141, %s87, 1
        %s1143 = smul.addr %s1142, 8
        %s1144 = scalar_lea.vmem %s57, %s1143
        %p1145 = pneg %p742
        %p1146 = pneg %p739
        %s1147 = sand.u32 %s729, 1
        %s1148 = scalar_lea.sflag [#allocation28], %s1147
        %s1149 = sand.u32 %s729, 1
        %s1150 = smul.addr %s1149, 4
        %s1151 = scalar_lea.vmem [#allocation27], %s1150
        %p1152 = scmp.lt.s32.totalorder %s87, 1
        %s1153 = scalar_select %p1152, %s87, 1
        %s1154 = smul.addr %s1153, 8
        %s1155 = scalar_lea.vmem %s1, %s1154
        %p1156 = scmp.lt.s32.totalorder %s87, 1
        %s1157 = scalar_select %p1156, %s87, 1
        %s1158 = smul.addr %s1157, 8
        %s1159 = scalar_lea.vmem %s3, %s1158
        %p1160 = scmp.lt.s32.totalorder %s87, 1
        %s1161 = scalar_select %p1160, %s87, 1
        %s1162 = smul.addr %s1161, 8
        %s1163 = scalar_lea.vmem %s57, %s1162
        %v1164 = vld [vmem:[%s1155] sm:$0xff]
        %v1165 = vld [vmem:[%s1159] sm:$0x3f]
        %v1166 = vld [vmem:[%s1004] sm:$0xf]
        %v1167 = vld [vmem:[#allocation5] sm:$0xff]
        %v1168 = vld [vmem:[#allocation5 + $0x8] sm:$0xff]
        %v1169 = vld [vmem:[#allocation5 + $0x10] sm:$0xff]
        %v1170 = vld [vmem:[#allocation5 + $0x18] sm:$0xff]
        %v1171 = vld [vmem:[#allocation5 + $0x20] sm:$0xff]
        %v1172 = vld [vmem:[#allocation5 + $0x28] sm:$0xff]
        %v1173 = vld [vmem:[#allocation5 + $0x30] sm:$0xff]
        %v1174 = vld [vmem:[#allocation5 + $0x38] sm:$0xff]
        %v1175 = vld [vmem:[#allocation5 + $0x40] sm:$0xff]
        %v1176 = vld [vmem:[#allocation5 + $0x48] sm:$0xff]
        %v1177 = vld [vmem:[#allocation5 + $0x50] sm:$0xff]
        %v1178 = vld [vmem:[#allocation5 + $0x58] sm:$0xff]
        %v1179 = vld [vmem:[#allocation5 + $0x60] sm:$0xff]
        %v1180 = vld [vmem:[#allocation5 + $0x68] sm:$0xff]
        %v1181 = vld [vmem:[#allocation5 + $0x70] sm:$0xff]
        %v1182 = vld [vmem:[#allocation5 + $0x78] sm:$0xff]
        %v1183 = vld [vmem:[#allocation5 + $0x80] sm:$0xff]
        %v1184 = vld [vmem:[#allocation5 + $0x88] sm:$0xff]
        %v1185 = vld [vmem:[#allocation5 + $0x90] sm:$0xff]
        %v1186 = vld [vmem:[#allocation5 + $0x98] sm:$0xff]
        %v1187 = vld [vmem:[#allocation5 + $0xa0] sm:$0xff]
        %v1188 = vld [vmem:[#allocation5 + $0xa8] sm:$0xff]
        %v1189 = vld [vmem:[#allocation5 + $0xb0] sm:$0xff]
        %v1190 = vld [vmem:[#allocation5 + $0xb8] sm:$0xff]
        %v1191 = vld [vmem:[#allocation5 + $0xc0] sm:$0xff]
        %v1192 = vld [vmem:[#allocation5 + $0xc8] sm:$0xff]
        %v1193 = vld [vmem:[#allocation5 + $0xd0] sm:$0xff]
        %v1194 = vld [vmem:[#allocation5 + $0xd8] sm:$0xff]
        %v1195 = vld [vmem:[#allocation5 + $0xe0] sm:$0xff]
        %v1196 = vld [vmem:[#allocation5 + $0xe8] sm:$0xff]
        %v1197 = vld [vmem:[#allocation5 + $0xf0] sm:$0xff]
        %v1198 = vld [vmem:[#allocation5 + $0xf8] sm:$0xff]
        %v1199 = vld [vmem:[#allocation5 + $0x100] sm:$0xff]
        %v1200 = vld [vmem:[#allocation5 + $0x108] sm:$0xff]
        %v1201 = vld [vmem:[#allocation5 + $0x110] sm:$0xff]
        %v1202 = vld [vmem:[#allocation5 + $0x118] sm:$0xff]
        %v1203 = vld [vmem:[#allocation5 + $0x120] sm:$0xff]
        %v1204 = vld [vmem:[#allocation5 + $0x128] sm:$0xff]
        %v1205 = vld [vmem:[#allocation5 + $0x130] sm:$0xff]
        %v1206 = vld [vmem:[#allocation5 + $0x138] sm:$0xff]
        %v1207 = vld [vmem:[#allocation5 + $0x140] sm:$0xff]
        %v1208 = vld [vmem:[#allocation5 + $0x148] sm:$0xff]
        %v1209 = vld [vmem:[#allocation5 + $0x150] sm:$0xff]
        %v1210 = vld [vmem:[#allocation5 + $0x158] sm:$0xff]
        %v1211 = vld [vmem:[#allocation5 + $0x160] sm:$0xff]
        %v1212 = vld [vmem:[#allocation5 + $0x168] sm:$0xff]
        %v1213 = vld [vmem:[#allocation5 + $0x170] sm:$0xff]
        %v1214 = vld [vmem:[#allocation5 + $0x178] sm:$0xff]
        %v1215 = vld [vmem:[#allocation7] sm:$0x7]
        %v1217 = vlaneseq
        %v1218 = vshrl.u32 %v1217, 7
        %v1219 = vsub.s32 0, %v1218
        %v1220 = vrot.slane %v1215, %v1219
        %v1221 = vlaneseq
        %v1222 = vshrl.u32 %v1221, 7
        %v1223 = vsub.s32 1, %v1222
        %v1224 = vrot.slane %v1215, %v1223
        %v1225 = vlaneseq
        %v1226 = vshrl.u32 %v1225, 7
        %v1227 = vsub.s32 2, %v1226
        %v1228 = vrot.slane %v1215, %v1227
        %1232 = vmatprep.subr.mxu0 0.0
        %1233 = vmatpush1.xpose.msra.mxu0 %v1182
        %1234 = vmatprep.subr.mxu0 0.0
        %1235 = vmatpush1.xpose.msra.mxu0 %v1181
        %1236 = vmatprep.subr.mxu0 0.0
        %1237 = vmatpush1.xpose.msra.mxu0 %v1180
        %1238 = vmatprep.subr.mxu0 0.0
        %1239 = vmatpush1.xpose.msra.mxu0 %v1179
        %1240 = vmatprep.subr.mxu0 0.0
        %1241 = vmatpush1.xpose.msra.mxu0 %v1178
        %1242 = vmatprep.subr.mxu0 0.0
        %1243 = vmatpush1.xpose.msra.mxu0 %v1177
        %1244 = vmatprep.subr.mxu0 0.0
        %1245 = vmatpush1.xpose.msra.mxu0 %v1176
        %1246 = vmatprep.subr.mxu0 0.0
        %1247 = vmatpush1.xpose.msra.mxu0 %v1175
        %1248 = vmatprep.subr.mxu0 0.0
        %1249 = vmatpush1.xpose.msra.mxu0 %v1174
        %1250 = vmatprep.subr.mxu0 0.0
        %1251 = vmatpush1.xpose.msra.mxu0 %v1173
        %1252 = vmatprep.subr.mxu0 0.0
        %1253 = vmatpush1.xpose.msra.mxu0 %v1172
        %1254 = vmatprep.subr.mxu0 0.0
        %1255 = vmatpush1.xpose.msra.mxu0 %v1171
        %1256 = vmatprep.subr.mxu0 0.0
        %1257 = vmatpush1.xpose.msra.mxu0 %v1170
        %1258 = vmatprep.subr.mxu0 0.0
        %1259 = vmatpush1.xpose.msra.mxu0 %v1169
        %1260 = vmatprep.subr.mxu0 0.0
        %1261 = vmatpush1.xpose.msra.mxu0 %v1168
        %1262 = vmatprep.subr.mxu0 0.0
        %1263 = vmatpush1.xpose.msra.mxu0 %v1167
        %1264 = vmatprep.subr.mxu0 0.0
        %1265 = vmatpush2.xpose.msra.mxu0 %v1198
        %1266 = vmatprep.subr.mxu0 0.0
        %1267 = vmatpush2.xpose.msra.mxu0 %v1197
        %1268 = vmatprep.subr.mxu0 0.0
        %1269 = vmatpush2.xpose.msra.mxu0 %v1196
        %1270 = vmatprep.subr.mxu0 0.0
        %1271 = vmatpush2.xpose.msra.mxu0 %v1195
        %1272 = vmatprep.subr.mxu0 0.0
        %1273 = vmatpush2.xpose.msra.mxu0 %v1194
        %1274 = vmatprep.subr.mxu0 0.0
        %1275 = vmatpush2.xpose.msra.mxu0 %v1193
        %1276 = vmatprep.subr.mxu0 0.0
        %1277 = vmatpush2.xpose.msra.mxu0 %v1192
        %1278 = vmatprep.subr.mxu0 0.0
        %1279 = vmatpush2.xpose.msra.mxu0 %v1191
        %1280 = vmatprep.subr.mxu0 0.0
        %1281 = vmatpush2.xpose.msra.mxu0 %v1190
        %1282 = vmatprep.subr.mxu0 0.0
        %1283 = vmatpush2.xpose.msra.mxu0 %v1189
        %1284 = vmatprep.subr.mxu0 0.0
        %1285 = vmatpush2.xpose.msra.mxu0 %v1188
        %1286 = vmatprep.subr.mxu0 0.0
        %1287 = vmatpush2.xpose.msra.mxu0 %v1187
        %1288 = vmatprep.subr.mxu0 0.0
        %1289 = vmatpush2.xpose.msra.mxu0 %v1186
        %1290 = vmatprep.subr.mxu0 0.0
        %1291 = vmatpush2.xpose.msra.mxu0 %v1185
        %1292 = vmatprep.subr.mxu0 0.0
        %1293 = vmatpush2.xpose.msra.mxu0 %v1184
        %1294 = vmatprep.subr.mxu0 0.0
        %1295 = vmatpush2.xpose.msra.mxu0 %v1183
        %1296 = vmatprep.mubr.f32.mxu0 0.0
        %1297 = vmatmul.mubr.f32.gmra.mxu0 %v1164
        %v1298 = vpop.f32.mrf.mxu0
        %v1299 = vadd.f32 %v1220, %v1298
        %v1300 = vpop.f32.mrf.mxu0
        %v1301 = vadd.f32 %v1224, %v1300
        %1302 = vmatprep.mubr.f32.mxu0 0.0
        %1303 = vmatmul.mubr.f32.gmra.mxu0 %v1166
        %v1304 = vpop.f32.mrf.mxu0
        %v1305 = vadd.f32 %v1220, %v1304
        %v1306 = vpop.f32.mrf.mxu0
        %v1307 = vadd.f32 %v1224, %v1306
        %1308 = vdwg.mxu0
        %1309 = vmatprep.subr.mxu0 0.0
        %1310 = vmatpush1.xpose.msra.mxu0 %v1214
        %1311 = vmatprep.subr.mxu0 0.0
        %1312 = vmatpush1.xpose.msra.mxu0 %v1213
        %1313 = vmatprep.subr.mxu0 0.0
        %1314 = vmatpush1.xpose.msra.mxu0 %v1212
        %1315 = vmatprep.subr.mxu0 0.0
        %1316 = vmatpush1.xpose.msra.mxu0 %v1211
        %1317 = vmatprep.subr.mxu0 0.0
        %1318 = vmatpush1.xpose.msra.mxu0 %v1210
        %1319 = vmatprep.subr.mxu0 0.0
        %1320 = vmatpush1.xpose.msra.mxu0 %v1209
        %1321 = vmatprep.subr.mxu0 0.0
        %1322 = vmatpush1.xpose.msra.mxu0 %v1208
        %1323 = vmatprep.subr.mxu0 0.0
        %1324 = vmatpush1.xpose.msra.mxu0 %v1207
        %1325 = vmatprep.subr.mxu0 0.0
        %1326 = vmatpush1.xpose.msra.mxu0 %v1206
        %1327 = vmatprep.subr.mxu0 0.0
        %1328 = vmatpush1.xpose.msra.mxu0 %v1205
        %1329 = vmatprep.subr.mxu0 0.0
        %1330 = vmatpush1.xpose.msra.mxu0 %v1204
        %1331 = vmatprep.subr.mxu0 0.0
        %1332 = vmatpush1.xpose.msra.mxu0 %v1203
        %1333 = vmatprep.subr.mxu0 0.0
        %1334 = vmatpush1.xpose.msra.mxu0 %v1202
        %1335 = vmatprep.subr.mxu0 0.0
        %1336 = vmatpush1.xpose.msra.mxu0 %v1201
        %1337 = vmatprep.subr.mxu0 0.0
        %1338 = vmatpush1.xpose.msra.mxu0 %v1200
        %1339 = vmatprep.subr.mxu0 0.0
        %1340 = vmatpush1.xpose.msra.mxu0 %v1199
        %1341 = vmatprep.subr.mxu0 0.0
        %1342 = vmatpush2.xpose.msra.mxu0 0.0
        %1343 = vmatprep.subr.mxu0 0.0
        %1344 = vmatpush2.xpose.msra.mxu0 0.0
        %1345 = vmatprep.subr.mxu0 0.0
        %1346 = vmatpush2.xpose.msra.mxu0 0.0
        %1347 = vmatprep.subr.mxu0 0.0
        %1348 = vmatpush2.xpose.msra.mxu0 0.0
        %1349 = vmatprep.subr.mxu0 0.0
        %1350 = vmatpush2.xpose.msra.mxu0 0.0
        %1351 = vmatprep.subr.mxu0 0.0
        %1352 = vmatpush2.xpose.msra.mxu0 0.0
        %1353 = vmatprep.subr.mxu0 0.0
        %1354 = vmatpush2.xpose.msra.mxu0 0.0
        %1355 = vmatprep.subr.mxu0 0.0
        %1356 = vmatpush2.xpose.msra.mxu0 0.0
        %1357 = vmatprep.subr.mxu0 0.0
        %1358 = vmatpush2.xpose.msra.mxu0 0.0
        %1359 = vmatprep.subr.mxu0 0.0
        %1360 = vmatpush2.xpose.msra.mxu0 0.0
        %1361 = vmatprep.subr.mxu0 0.0
        %1362 = vmatpush2.xpose.msra.mxu0 0.0
        %1363 = vmatprep.subr.mxu0 0.0
        %1364 = vmatpush2.xpose.msra.mxu0 0.0
        %1365 = vmatprep.subr.mxu0 0.0
        %1366 = vmatpush2.xpose.msra.mxu0 0.0
        %1367 = vmatprep.subr.mxu0 0.0
        %1368 = vmatpush2.xpose.msra.mxu0 0.0
        %1369 = vmatprep.subr.mxu0 0.0
        %1370 = vmatpush2.xpose.msra.mxu0 0.0
        %1371 = vmatprep.subr.mxu0 0.0
        %1372 = vmatpush2.xpose.msra.mxu0 0.0
        %1373 = vmatprep.mubr.f32.mxu0 0.0
        %1374 = vmatmul.mubr.f32.gmra.mxu0 %v1164
        %v1375 = vpop.f32.mrf.mxu0
        %v1376 = vadd.f32 %v1228, %v1375
        %v1377 = vpop.f32.mrf.mxu0
        %1378 = vmatprep.mubr.f32.mxu0 0.0
        %1379 = vmatmul.mubr.f32.gmra.mxu0 %v1166
        %v1380 = vpop.f32.mrf.mxu0
        %v1381 = vadd.f32 %v1228, %v1380
        %v1382 = vpop.f32.mrf.mxu0
        %1383 = vdwg.mxu0
        %v1384 = vmul.f32 %v1299, 0.17677669
        %v1385 = vmul.f32 %v1305, 0.17677669
        %v1386 = vld [vmem:[#allocation8] sm:$0xff]
        %v1387 = vld [vmem:[#allocation8 + $0x8] sm:$0xff]
        %v1388 = vld [vmem:[#allocation8 + $0x10] sm:$0xff]
        %v1389 = vld [vmem:[#allocation8 + $0x18] sm:$0xff]
        %v1390 = vld [vmem:[#allocation8 + $0x20] sm:$0xff]
        %v1391 = vld [vmem:[#allocation8 + $0x28] sm:$0xff]
        %v1392 = vld [vmem:[#allocation8 + $0x30] sm:$0xff]
        %v1393 = vld [vmem:[#allocation8 + $0x38] sm:$0xff]
        %v1394 = vld [vmem:[#allocation8 + $0x40] sm:$0xff]
        %v1395 = vld [vmem:[#allocation8 + $0x48] sm:$0xff]
        %v1396 = vld [vmem:[#allocation8 + $0x50] sm:$0xff]
        %v1397 = vld [vmem:[#allocation8 + $0x58] sm:$0xff]
        %v1398 = vld [vmem:[#allocation8 + $0x60] sm:$0xff]
        %v1399 = vld [vmem:[#allocation8 + $0x68] sm:$0xff]
        %v1400 = vld [vmem:[#allocation8 + $0x70] sm:$0xff]
        %v1401 = vld [vmem:[#allocation8 + $0x78] sm:$0xff]
        %v1402 = vld [vmem:[#allocation10] sm:$0x1]
        %vm1403 = vcmask 261120
        %v1405 = vsel %vm1403, %v1384, 0
        %v1408 = vsel %vm1403, %v1385, 0
        %v1411 = vsel %vm1403, %v1301, 0
        %v1414 = vsel %vm1403, %v1307, 0
        %1416 = vmatprep.subr.mxu0 0.0
        %1417 = vmatpush1.xpose.msra.mxu0 0.0
        %1418 = vmatprep.subr.mxu0 0.0
        %1419 = vmatpush1.xpose.msra.mxu0 0.0
        %1420 = vmatprep.subr.mxu0 0.0
        %1421 = vmatpush1.xpose.msra.mxu0 0.0
        %1422 = vmatprep.subr.mxu0 0.0
        %1423 = vmatpush1.xpose.msra.mxu0 0.0
        %1424 = vmatprep.subr.mxu0 0.0
        %1425 = vmatpush1.xpose.msra.mxu0 0.0
        %1426 = vmatprep.subr.mxu0 0.0
        %1427 = vmatpush1.xpose.msra.mxu0 0.0
        %1428 = vmatprep.subr.mxu0 0.0
        %1429 = vmatpush1.xpose.msra.mxu0 0.0
        %1430 = vmatprep.subr.mxu0 0.0
        %1431 = vmatpush1.xpose.msra.mxu0 0.0
        %1432 = vmatprep.subr.mxu0 0.0
        %1433 = vmatpush1.xpose.msra.mxu0 0.0
        %1434 = vmatprep.subr.mxu0 0.0
        %1435 = vmatpush1.xpose.msra.mxu0 0.0
        %1436 = vmatprep.subr.mxu0 0.0
        %1437 = vmatpush1.xpose.msra.mxu0 0.0
        %1438 = vmatprep.subr.mxu0 0.0
        %1439 = vmatpush1.xpose.msra.mxu0 0.0
        %1440 = vmatprep.subr.mxu0 0.0
        %1441 = vmatpush1.xpose.msra.mxu0 0.0
        %1442 = vmatprep.subr.mxu0 0.0
        %1443 = vmatpush1.xpose.msra.mxu0 0.0
        %1444 = vmatprep.subr.mxu0 0.0
        %1445 = vmatpush1.xpose.msra.mxu0 %v1414
        %1446 = vmatprep.subr.mxu0 0.0
        %1447 = vmatpush1.xpose.msra.mxu0 %v1411
        %1448 = vmatprep.subr.mxu0 0.0
        %1449 = vmatpush2.xpose.msra.mxu0 0.0
        %1450 = vmatprep.subr.mxu0 0.0
        %1451 = vmatpush2.xpose.msra.mxu0 0.0
        %1452 = vmatprep.subr.mxu0 0.0
        %1453 = vmatpush2.xpose.msra.mxu0 0.0
        %1454 = vmatprep.subr.mxu0 0.0
        %1455 = vmatpush2.xpose.msra.mxu0 0.0
        %1456 = vmatprep.subr.mxu0 0.0
        %1457 = vmatpush2.xpose.msra.mxu0 0.0
        %1458 = vmatprep.subr.mxu0 0.0
        %1459 = vmatpush2.xpose.msra.mxu0 0.0
        %1460 = vmatprep.subr.mxu0 0.0
        %1461 = vmatpush2.xpose.msra.mxu0 0.0
        %1462 = vmatprep.subr.mxu0 0.0
        %1463 = vmatpush2.xpose.msra.mxu0 0.0
        %1464 = vmatprep.subr.mxu0 0.0
        %1465 = vmatpush2.xpose.msra.mxu0 0.0
        %1466 = vmatprep.subr.mxu0 0.0
        %1467 = vmatpush2.xpose.msra.mxu0 0.0
        %1468 = vmatprep.subr.mxu0 0.0
        %1469 = vmatpush2.xpose.msra.mxu0 0.0
        %1470 = vmatprep.subr.mxu0 0.0
        %1471 = vmatpush2.xpose.msra.mxu0 0.0
        %1472 = vmatprep.subr.mxu0 0.0
        %1473 = vmatpush2.xpose.msra.mxu0 0.0
        %1474 = vmatprep.subr.mxu0 0.0
        %1475 = vmatpush2.xpose.msra.mxu0 0.0
        %1476 = vmatprep.subr.mxu0 0.0
        %1477 = vmatpush2.xpose.msra.mxu0 0.0
        %1478 = vmatprep.subr.mxu0 0.0
        %1479 = vmatpush2.xpose.msra.mxu0 0.0
        %1480 = vmatprep.mubr.f32.mxu0 0.0
        %1481 = vmatmul.mubr.f32.gmra.mxu0 %v1405
        %v1482 = vpop.f32.mrf.mxu0
        %v1483 = vadd.f32 0.0, %v1482
        %v1484 = vpop.f32.mrf.mxu0
        %1485 = vmatprep.mubr.f32.mxu0 0.0
        %1486 = vmatmul.mubr.f32.gmra.mxu0 %v1408
        %v1487 = vpop.f32.mrf.mxu0
        %v1488 = vadd.f32 0.0, %v1487
        %v1489 = vpop.f32.mrf.mxu0
        %1490 = vdwg.mxu0
        %vm1491 = vcmask 97280
        %v1492 = vsel %vm1491, %v1483, -inf
        %1493 = vmax.xlane.f32.xlu0 %v1492
        %v1494 = vpop.xlane.xlu0 %1493
        %vm1495 = vcmask 93184
        %v1496 = vsel %vm1495, %v1488, -inf
        %1497 = vmax.xlane.f32.xlu0 %v1496
        %v1498 = vpop.xlane.xlu0 %1497
        %v1499 = vsub.f32 %v1483, %v1494
        %v1500 = vsub.f32 %v1488, %v1498
        %v1501 = vmul.f32 %v1499, 1.442695
        %v1502 = vpow.pop %v1501
        %v1503 = vmul.f32 %v1500, 1.442695
        %v1504 = vpow.pop %v1503
        %v1505 = vsel %vm1491, %v1502, 0.0
        %1506 = vadd.xlane.f32.xlu0 %v1505
        %v1507 = vpop.xlane.xlu0 %1506
        %v1508 = vsel %vm1495, %v1504, 0.0
        %1509 = vadd.xlane.f32.xlu0 %v1508
        %v1510 = vpop.xlane.xlu0 %1509
        %v1511 = vrcp.pop %v1507
        %v1512 = vrcp.pop %v1510
        %v1513 = vmul.f32 %v1502, %v1511
        %v1514 = vmul.f32 %v1504, %v1512
        %v1516 = vsel %vm1491, %v1513, 0
        %v1519 = vsel %vm1491, %v1514, 0
        %vm1521 = vcmask 1043456
        %v1523 = vsel %vm1521, %v1381, 0
        %1525 = vmatprep.subr.mxu0 0.0
        %1526 = vmatpush1.msra.mxu0 0.0
        %1527 = vmatprep.subr.mxu0 0.0
        %1528 = vmatpush1.msra.mxu0 0.0
        %1529 = vmatprep.subr.mxu0 0.0
        %1530 = vmatpush1.msra.mxu0 0.0
        %1531 = vmatprep.subr.mxu0 0.0
        %1532 = vmatpush1.msra.mxu0 0.0
        %1533 = vmatprep.subr.mxu0 0.0
        %1534 = vmatpush1.msra.mxu0 0.0
        %1535 = vmatprep.subr.mxu0 0.0
        %1536 = vmatpush1.msra.mxu0 0.0
        %1537 = vmatprep.subr.mxu0 0.0
        %1538 = vmatpush1.msra.mxu0 0.0
        %1539 = vmatprep.subr.mxu0 0.0
        %1540 = vmatpush1.msra.mxu0 0.0
        %1541 = vmatprep.subr.mxu0 0.0
        %1542 = vmatpush1.msra.mxu0 0.0
        %1543 = vmatprep.subr.mxu0 0.0
        %1544 = vmatpush1.msra.mxu0 0.0
        %1545 = vmatprep.subr.mxu0 0.0
        %1546 = vmatpush1.msra.mxu0 0.0
        %1547 = vmatprep.subr.mxu0 0.0
        %1548 = vmatpush1.msra.mxu0 0.0
        %1549 = vmatprep.subr.mxu0 0.0
        %1550 = vmatpush1.msra.mxu0 0.0
        %1551 = vmatprep.subr.mxu0 0.0
        %1552 = vmatpush1.msra.mxu0 0.0
        %1553 = vmatprep.subr.mxu0 0.0
        %1554 = vmatpush1.msra.mxu0 %v1523
        %1555 = vmatprep.subr.mxu0 0.0
        %1556 = vmatpush1.msra.mxu0 %v1376
        %1557 = vmatprep.subr.mxu0 0.0
        %1558 = vmatpush2.msra.mxu0 0.0
        %1559 = vmatprep.subr.mxu0 0.0
        %1560 = vmatpush2.msra.mxu0 0.0
        %1561 = vmatprep.subr.mxu0 0.0
        %1562 = vmatpush2.msra.mxu0 0.0
        %1563 = vmatprep.subr.mxu0 0.0
        %1564 = vmatpush2.msra.mxu0 0.0
        %1565 = vmatprep.subr.mxu0 0.0
        %1566 = vmatpush2.msra.mxu0 0.0
        %1567 = vmatprep.subr.mxu0 0.0
        %1568 = vmatpush2.msra.mxu0 0.0
        %1569 = vmatprep.subr.mxu0 0.0
        %1570 = vmatpush2.msra.mxu0 0.0
        %1571 = vmatprep.subr.mxu0 0.0
        %1572 = vmatpush2.msra.mxu0 0.0
        %1573 = vmatprep.subr.mxu0 0.0
        %1574 = vmatpush2.msra.mxu0 0.0
        %1575 = vmatprep.subr.mxu0 0.0
        %1576 = vmatpush2.msra.mxu0 0.0
        %1577 = vmatprep.subr.mxu0 0.0
        %1578 = vmatpush2.msra.mxu0 0.0
        %1579 = vmatprep.subr.mxu0 0.0
        %1580 = vmatpush2.msra.mxu0 0.0
        %1581 = vmatprep.subr.mxu0 0.0
        %1582 = vmatpush2.msra.mxu0 0.0
        %1583 = vmatprep.subr.mxu0 0.0
        %1584 = vmatpush2.msra.mxu0 0.0
        %1585 = vmatprep.subr.mxu0 0.0
        %1586 = vmatpush2.msra.mxu0 0.0
        %1587 = vmatprep.subr.mxu0 0.0
        %1588 = vmatpush2.msra.mxu0 0.0
        %1589 = vmatprep.mubr.f32.mxu0 0.0
        %1590 = vmatmul.mubr.f32.gmra.mxu0 %v1516
        %v1591 = vpop.f32.mrf.mxu0
        %v1592 = vadd.f32 0.0, %v1591
        %v1593 = vpop.f32.mrf.mxu0
        %1594 = vmatprep.mubr.f32.mxu0 0.0
        %1595 = vmatmul.mubr.f32.gmra.mxu0 %v1519
        %v1596 = vpop.f32.mrf.mxu0
        %v1597 = vadd.f32 0.0, %v1596
        %v1598 = vpop.f32.mrf.mxu0
        %1599 = vdwg.mxu0
        %1600 = vrot.lane.b32.xlu0 %v1384, 96
        %v1601 = vpop.permute.xlu0 %1600
        %1602 = vrot.lane.b32.xlu0 %v1385, 96
        %v1603 = vpop.permute.xlu0 %1602
        %1604 = vrot.lane.b32.xlu0 %v1301, 96
        %v1605 = vpop.permute.xlu0 %1604
        %1606 = vrot.lane.b32.xlu0 %v1307, 96
        %v1607 = vpop.permute.xlu0 %1606
        %v1608 = vsel %vm1403, %v1601, 0
        %v1610 = vsel %vm1403, %v1603, 0
        %v1612 = vsel %vm1403, %v1605, 0
        %v1614 = vsel %vm1403, %v1607, 0
        %1616 = vmatprep.subr.mxu0 0.0
        %1617 = vmatpush1.xpose.msra.mxu0 0.0
        %1618 = vmatprep.subr.mxu0 0.0
        %1619 = vmatpush1.xpose.msra.mxu0 0.0
        %1620 = vmatprep.subr.mxu0 0.0
        %1621 = vmatpush1.xpose.msra.mxu0 0.0
        %1622 = vmatprep.subr.mxu0 0.0
        %1623 = vmatpush1.xpose.msra.mxu0 0.0
        %1624 = vmatprep.subr.mxu0 0.0
        %1625 = vmatpush1.xpose.msra.mxu0 0.0
        %1626 = vmatprep.subr.mxu0 0.0
        %1627 = vmatpush1.xpose.msra.mxu0 0.0
        %1628 = vmatprep.subr.mxu0 0.0
        %1629 = vmatpush1.xpose.msra.mxu0 0.0
        %1630 = vmatprep.subr.mxu0 0.0
        %1631 = vmatpush1.xpose.msra.mxu0 0.0
        %1632 = vmatprep.subr.mxu0 0.0
        %1633 = vmatpush1.xpose.msra.mxu0 0.0
        %1634 = vmatprep.subr.mxu0 0.0
        %1635 = vmatpush1.xpose.msra.mxu0 0.0
        %1636 = vmatprep.subr.mxu0 0.0
        %1637 = vmatpush1.xpose.msra.mxu0 0.0
        %1638 = vmatprep.subr.mxu0 0.0
        %1639 = vmatpush1.xpose.msra.mxu0 0.0
        %1640 = vmatprep.subr.mxu0 0.0
        %1641 = vmatpush1.xpose.msra.mxu0 0.0
        %1642 = vmatprep.subr.mxu0 0.0
        %1643 = vmatpush1.xpose.msra.mxu0 0.0
        %1644 = vmatprep.subr.mxu0 0.0
        %1645 = vmatpush1.xpose.msra.mxu0 %v1614
        %1646 = vmatprep.subr.mxu0 0.0
        %1647 = vmatpush1.xpose.msra.mxu0 %v1612
        %1648 = vmatprep.subr.mxu0 0.0
        %1649 = vmatpush2.xpose.msra.mxu0 0.0
        %1650 = vmatprep.subr.mxu0 0.0
        %1651 = vmatpush2.xpose.msra.mxu0 0.0
        %1652 = vmatprep.subr.mxu0 0.0
        %1653 = vmatpush2.xpose.msra.mxu0 0.0
        %1654 = vmatprep.subr.mxu0 0.0
        %1655 = vmatpush2.xpose.msra.mxu0 0.0
        %1656 = vmatprep.subr.mxu0 0.0
        %1657 = vmatpush2.xpose.msra.mxu0 0.0
        %1658 = vmatprep.subr.mxu0 0.0
        %1659 = vmatpush2.xpose.msra.mxu0 0.0
        %1660 = vmatprep.subr.mxu0 0.0
        %1661 = vmatpush2.xpose.msra.mxu0 0.0
        %1662 = vmatprep.subr.mxu0 0.0
        %1663 = vmatpush2.xpose.msra.mxu0 0.0
        %1664 = vmatprep.subr.mxu0 0.0
        %1665 = vmatpush2.xpose.msra.mxu0 0.0
        %1666 = vmatprep.subr.mxu0 0.0
        %1667 = vmatpush2.xpose.msra.mxu0 0.0
        %1668 = vmatprep.subr.mxu0 0.0
        %1669 = vmatpush2.xpose.msra.mxu0 0.0
        %1670 = vmatprep.subr.mxu0 0.0
        %1671 = vmatpush2.xpose.msra.mxu0 0.0
        %1672 = vmatprep.subr.mxu0 0.0
        %1673 = vmatpush2.xpose.msra.mxu0 0.0
        %1674 = vmatprep.subr.mxu0 0.0
        %1675 = vmatpush2.xpose.msra.mxu0 0.0
        %1676 = vmatprep.subr.mxu0 0.0
        %1677 = vmatpush2.xpose.msra.mxu0 0.0
        %1678 = vmatprep.subr.mxu0 0.0
        %1679 = vmatpush2.xpose.msra.mxu0 0.0
        %1680 = vmatprep.mubr.f32.mxu0 0.0
        %1681 = vmatmul.mubr.f32.gmra.mxu0 %v1608
        %v1682 = vpop.f32.mrf.mxu0
        %v1683 = vadd.f32 0.0, %v1682
        %v1684 = vpop.f32.mrf.mxu0
        %1685 = vmatprep.mubr.f32.mxu0 0.0
        %1686 = vmatmul.mubr.f32.gmra.mxu0 %v1610
        %v1687 = vpop.f32.mrf.mxu0
        %v1688 = vadd.f32 0.0, %v1687
        %v1689 = vpop.f32.mrf.mxu0
        %1690 = vdwg.mxu0
        %v1691 = vsel %vm1491, %v1683, -inf
        %1692 = vmax.xlane.f32.xlu0 %v1691
        %v1693 = vpop.xlane.xlu0 %1692
        %v1694 = vsel %vm1495, %v1688, -inf
        %1695 = vmax.xlane.f32.xlu0 %v1694
        %v1696 = vpop.xlane.xlu0 %1695
        %v1697 = vsub.f32 %v1683, %v1693
        %v1698 = vsub.f32 %v1688, %v1696
        %v1699 = vmul.f32 %v1697, 1.442695
        %v1700 = vpow.pop %v1699
        %v1701 = vmul.f32 %v1698, 1.442695
        %v1702 = vpow.pop %v1701
        %v1703 = vsel %vm1491, %v1700, 0.0
        %1704 = vadd.xlane.f32.xlu0 %v1703
        %v1705 = vpop.xlane.xlu0 %1704
        %v1706 = vsel %vm1495, %v1702, 0.0
        %1707 = vadd.xlane.f32.xlu0 %v1706
        %v1708 = vpop.xlane.xlu0 %1707
        %v1709 = vrcp.pop %v1705
        %v1710 = vrcp.pop %v1708
        %v1711 = vmul.f32 %v1700, %v1709
        %v1712 = vmul.f32 %v1702, %v1710
        %1714 = vrot.lane.b32.xlu0 %v1376, 96
        %v1715 = vpop.permute.xlu0 %1714
        %1716 = vrot.lane.b32.xlu0 %v1381, 96
        %v1717 = vpop.permute.xlu0 %1716
        %v1720 = vsel %vm1491, %v1711, 0
        %v1723 = vsel %vm1491, %v1712, 0
        %v1725 = vsel %vm1521, %v1717, 0
        %1727 = vmatprep.subr.mxu0 0.0
        %1728 = vmatpush1.msra.mxu0 0.0
        %1729 = vmatprep.subr.mxu0 0.0
        %1730 = vmatpush1.msra.mxu0 0.0
        %1731 = vmatprep.subr.mxu0 0.0
        %1732 = vmatpush1.msra.mxu0 0.0
        %1733 = vmatprep.subr.mxu0 0.0
        %1734 = vmatpush1.msra.mxu0 0.0
        %1735 = vmatprep.subr.mxu0 0.0
        %1736 = vmatpush1.msra.mxu0 0.0
        %1737 = vmatprep.subr.mxu0 0.0
        %1738 = vmatpush1.msra.mxu0 0.0
        %1739 = vmatprep.subr.mxu0 0.0
        %1740 = vmatpush1.msra.mxu0 0.0
        %1741 = vmatprep.subr.mxu0 0.0
        %1742 = vmatpush1.msra.mxu0 0.0
        %1743 = vmatprep.subr.mxu0 0.0
        %1744 = vmatpush1.msra.mxu0 0.0
        %1745 = vmatprep.subr.mxu0 0.0
        %1746 = vmatpush1.msra.mxu0 0.0
        %1747 = vmatprep.subr.mxu0 0.0
        %1748 = vmatpush1.msra.mxu0 0.0
        %1749 = vmatprep.subr.mxu0 0.0
        %1750 = vmatpush1.msra.mxu0 0.0
        %1751 = vmatprep.subr.mxu0 0.0
        %1752 = vmatpush1.msra.mxu0 0.0
        %1753 = vmatprep.subr.mxu0 0.0
        %1754 = vmatpush1.msra.mxu0 0.0
        %1755 = vmatprep.subr.mxu0 0.0
        %1756 = vmatpush1.msra.mxu0 %v1725
        %1757 = vmatprep.subr.mxu0 0.0
        %1758 = vmatpush1.msra.mxu0 %v1715
        %1759 = vmatprep.subr.mxu0 0.0
        %1760 = vmatpush2.msra.mxu0 0.0
        %1761 = vmatprep.subr.mxu0 0.0
        %1762 = vmatpush2.msra.mxu0 0.0
        %1763 = vmatprep.subr.mxu0 0.0
        %1764 = vmatpush2.msra.mxu0 0.0
        %1765 = vmatprep.subr.mxu0 0.0
        %1766 = vmatpush2.msra.mxu0 0.0
        %1767 = vmatprep.subr.mxu0 0.0
        %1768 = vmatpush2.msra.mxu0 0.0
        %1769 = vmatprep.subr.mxu0 0.0
        %1770 = vmatpush2.msra.mxu0 0.0
        %1771 = vmatprep.subr.mxu0 0.0
        %1772 = vmatpush2.msra.mxu0 0.0
        %1773 = vmatprep.subr.mxu0 0.0
        %1774 = vmatpush2.msra.mxu0 0.0
        %1775 = vmatprep.subr.mxu0 0.0
        %1776 = vmatpush2.msra.mxu0 0.0
        %1777 = vmatprep.subr.mxu0 0.0
        %1778 = vmatpush2.msra.mxu0 0.0
        %1779 = vmatprep.subr.mxu0 0.0
        %1780 = vmatpush2.msra.mxu0 0.0
        %1781 = vmatprep.subr.mxu0 0.0
        %1782 = vmatpush2.msra.mxu0 0.0
        %1783 = vmatprep.subr.mxu0 0.0
        %1784 = vmatpush2.msra.mxu0 0.0
        %1785 = vmatprep.subr.mxu0 0.0
        %1786 = vmatpush2.msra.mxu0 0.0
        %1787 = vmatprep.subr.mxu0 0.0
        %1788 = vmatpush2.msra.mxu0 0.0
        %1789 = vmatprep.subr.mxu0 0.0
        %1790 = vmatpush2.msra.mxu0 0.0
        %1791 = vmatprep.mubr.f32.mxu0 0.0
        %1792 = vmatmul.mubr.f32.gmra.mxu0 %v1720
        %v1793 = vpop.f32.mrf.mxu0
        %v1794 = vadd.f32 0.0, %v1793
        %v1795 = vpop.f32.mrf.mxu0
        %1796 = vmatprep.mubr.f32.mxu0 0.0
        %1797 = vmatmul.mubr.f32.gmra.mxu0 %v1723
        %v1798 = vpop.f32.mrf.mxu0
        %v1799 = vadd.f32 0.0, %v1798
        %v1800 = vpop.f32.mrf.mxu0
        %1801 = vdwg.mxu0
        %1818 = vrot.lane.b32.xlu0 %v1386, 96
        %v1819 = vpop.permute.xlu0 %1818
        %1820 = vrot.lane.b32.xlu0 %v1387, 96
        %v1821 = vpop.permute.xlu0 %1820
        %1822 = vrot.lane.b32.xlu0 %v1388, 96
        %v1823 = vpop.permute.xlu0 %1822
        %1824 = vrot.lane.b32.xlu0 %v1389, 96
        %v1825 = vpop.permute.xlu0 %1824
        %1826 = vrot.lane.b32.xlu0 %v1390, 96
        %v1827 = vpop.permute.xlu0 %1826
        %1828 = vrot.lane.b32.xlu0 %v1391, 96
        %v1829 = vpop.permute.xlu0 %1828
        %1830 = vrot.lane.b32.xlu0 %v1392, 96
        %v1831 = vpop.permute.xlu0 %1830
        %1832 = vrot.lane.b32.xlu0 %v1393, 96
        %v1833 = vpop.permute.xlu0 %1832
        %1834 = vrot.lane.b32.xlu0 %v1394, 96
        %v1835 = vpop.permute.xlu0 %1834
        %1836 = vrot.lane.b32.xlu0 %v1395, 96
        %v1837 = vpop.permute.xlu0 %1836
        %1838 = vrot.lane.b32.xlu0 %v1396, 96
        %v1839 = vpop.permute.xlu0 %1838
        %1840 = vrot.lane.b32.xlu0 %v1397, 96
        %v1841 = vpop.permute.xlu0 %1840
        %1842 = vrot.lane.b32.xlu0 %v1398, 96
        %v1843 = vpop.permute.xlu0 %1842
        %1844 = vrot.lane.b32.xlu0 %v1399, 96
        %v1845 = vpop.permute.xlu0 %1844
        %1846 = vrot.lane.b32.xlu0 %v1400, 96
        %v1847 = vpop.permute.xlu0 %1846
        %1848 = vrot.lane.b32.xlu0 %v1401, 96
        %v1849 = vpop.permute.xlu0 %1848
        %v1851 = vsel %vm1403, %v1794, 0
        %v1854 = vsel %vm1403, %v1799, 0
        %v1856 = vsel %vm1403, %v1819, 0
        %v1858 = vsel %vm1403, %v1821, 0
        %v1860 = vsel %vm1403, %v1823, 0
        %v1862 = vsel %vm1403, %v1825, 0
        %v1864 = vsel %vm1403, %v1827, 0
        %v1866 = vsel %vm1403, %v1829, 0
        %v1868 = vsel %vm1403, %v1831, 0
        %v1870 = vsel %vm1403, %v1833, 0
        %v1872 = vsel %vm1403, %v1835, 0
        %v1874 = vsel %vm1403, %v1837, 0
        %v1876 = vsel %vm1403, %v1839, 0
        %v1878 = vsel %vm1403, %v1841, 0
        %v1880 = vsel %vm1403, %v1843, 0
        %v1882 = vsel %vm1403, %v1845, 0
        %v1884 = vsel %vm1403, %v1847, 0
        %v1886 = vsel %vm1403, %v1849, 0
        %1888 = vmatprep.subr.mxu0 0.0
        %1889 = vmatpush1.xpose.msra.mxu0 %v1886
        %1890 = vmatprep.subr.mxu0 0.0
        %1891 = vmatpush1.xpose.msra.mxu0 %v1884
        %1892 = vmatprep.subr.mxu0 0.0
        %1893 = vmatpush1.xpose.msra.mxu0 %v1882
        %1894 = vmatprep.subr.mxu0 0.0
        %1895 = vmatpush1.xpose.msra.mxu0 %v1880
        %1896 = vmatprep.subr.mxu0 0.0
        %1897 = vmatpush1.xpose.msra.mxu0 %v1878
        %1898 = vmatprep.subr.mxu0 0.0
        %1899 = vmatpush1.xpose.msra.mxu0 %v1876
        %1900 = vmatprep.subr.mxu0 0.0
        %1901 = vmatpush1.xpose.msra.mxu0 %v1874
        %1902 = vmatprep.subr.mxu0 0.0
        %1903 = vmatpush1.xpose.msra.mxu0 %v1872
        %1904 = vmatprep.subr.mxu0 0.0
        %1905 = vmatpush1.xpose.msra.mxu0 %v1870
        %1906 = vmatprep.subr.mxu0 0.0
        %1907 = vmatpush1.xpose.msra.mxu0 %v1868
        %1908 = vmatprep.subr.mxu0 0.0
        %1909 = vmatpush1.xpose.msra.mxu0 %v1866
        %1910 = vmatprep.subr.mxu0 0.0
        %1911 = vmatpush1.xpose.msra.mxu0 %v1864
        %1912 = vmatprep.subr.mxu0 0.0
        %1913 = vmatpush1.xpose.msra.mxu0 %v1862
        %1914 = vmatprep.subr.mxu0 0.0
        %1915 = vmatpush1.xpose.msra.mxu0 %v1860
        %1916 = vmatprep.subr.mxu0 0.0
        %1917 = vmatpush1.xpose.msra.mxu0 %v1858
        %1918 = vmatprep.subr.mxu0 0.0
        %1919 = vmatpush1.xpose.msra.mxu0 %v1856
        %1920 = vmatprep.subr.mxu0 0.0
        %1921 = vmatpush2.xpose.msra.mxu0 0.0
        %1922 = vmatprep.subr.mxu0 0.0
        %1923 = vmatpush2.xpose.msra.mxu0 0.0
        %1924 = vmatprep.subr.mxu0 0.0
        %1925 = vmatpush2.xpose.msra.mxu0 0.0
        %1926 = vmatprep.subr.mxu0 0.0
        %1927 = vmatpush2.xpose.msra.mxu0 0.0
        %1928 = vmatprep.subr.mxu0 0.0
        %1929 = vmatpush2.xpose.msra.mxu0 0.0
        %1930 = vmatprep.subr.mxu0 0.0
        %1931 = vmatpush2.xpose.msra.mxu0 0.0
        %1932 = vmatprep.subr.mxu0 0.0
        %1933 = vmatpush2.xpose.msra.mxu0 0.0
        %1934 = vmatprep.subr.mxu0 0.0
        %1935 = vmatpush2.xpose.msra.mxu0 0.0
        %1936 = vmatprep.subr.mxu0 0.0
        %1937 = vmatpush2.xpose.msra.mxu0 0.0
        %1938 = vmatprep.subr.mxu0 0.0
        %1939 = vmatpush2.xpose.msra.mxu0 0.0
        %1940 = vmatprep.subr.mxu0 0.0
        %1941 = vmatpush2.xpose.msra.mxu0 0.0
        %1942 = vmatprep.subr.mxu0 0.0
        %1943 = vmatpush2.xpose.msra.mxu0 0.0
        %1944 = vmatprep.subr.mxu0 0.0
        %1945 = vmatpush2.xpose.msra.mxu0 0.0
        %1946 = vmatprep.subr.mxu0 0.0
        %1947 = vmatpush2.xpose.msra.mxu0 0.0
        %1948 = vmatprep.subr.mxu0 0.0
        %1949 = vmatpush2.xpose.msra.mxu0 0.0
        %1950 = vmatprep.subr.mxu0 0.0
        %1951 = vmatpush2.xpose.msra.mxu0 0.0
        %1952 = vmatprep.mubr.f32.mxu0 0.0
        %1953 = vmatmul.mubr.f32.gmra.mxu0 %v1851
        %v1954 = vpop.f32.mrf.mxu0
        %v1955 = vadd.f32 0.0, %v1954
        %v1956 = vpop.f32.mrf.mxu0
        %1957 = vmatprep.mubr.f32.mxu0 0.0
        %1958 = vmatmul.mubr.f32.gmra.mxu0 %v1854
        %v1959 = vpop.f32.mrf.mxu0
        %v1960 = vadd.f32 0.0, %v1959
        %v1961 = vpop.f32.mrf.mxu0
        %1962 = vdwg.mxu0
        %v1964 = vsel %vm1403, %v1592, 0
        %v1967 = vsel %vm1403, %v1597, 0
        %v1969 = vsel %vm1403, %v1386, 0
        %v1971 = vsel %vm1403, %v1387, 0
        %v1973 = vsel %vm1403, %v1388, 0
        %v1975 = vsel %vm1403, %v1389, 0
        %v1977 = vsel %vm1403, %v1390, 0
        %v1979 = vsel %vm1403, %v1391, 0
        %v1981 = vsel %vm1403, %v1392, 0
        %v1983 = vsel %vm1403, %v1393, 0
        %v1985 = vsel %vm1403, %v1394, 0
        %v1987 = vsel %vm1403, %v1395, 0
        %v1989 = vsel %vm1403, %v1396, 0
        %v1991 = vsel %vm1403, %v1397, 0
        %v1993 = vsel %vm1403, %v1398, 0
        %v1995 = vsel %vm1403, %v1399, 0
        %v1997 = vsel %vm1403, %v1400, 0
        %v1999 = vsel %vm1403, %v1401, 0
        %2001 = vmatprep.subr.mxu0 0.0
        %2002 = vmatpush1.xpose.msra.mxu0 %v1999
        %2003 = vmatprep.subr.mxu0 0.0
        %2004 = vmatpush1.xpose.msra.mxu0 %v1997
        %2005 = vmatprep.subr.mxu0 0.0
        %2006 = vmatpush1.xpose.msra.mxu0 %v1995
        %2007 = vmatprep.subr.mxu0 0.0
        %2008 = vmatpush1.xpose.msra.mxu0 %v1993
        %2009 = vmatprep.subr.mxu0 0.0
        %2010 = vmatpush1.xpose.msra.mxu0 %v1991
        %2011 = vmatprep.subr.mxu0 0.0
        %2012 = vmatpush1.xpose.msra.mxu0 %v1989
        %2013 = vmatprep.subr.mxu0 0.0
        %2014 = vmatpush1.xpose.msra.mxu0 %v1987
        %2015 = vmatprep.subr.mxu0 0.0
        %2016 = vmatpush1.xpose.msra.mxu0 %v1985
        %2017 = vmatprep.subr.mxu0 0.0
        %2018 = vmatpush1.xpose.msra.mxu0 %v1983
        %2019 = vmatprep.subr.mxu0 0.0
        %2020 = vmatpush1.xpose.msra.mxu0 %v1981
        %2021 = vmatprep.subr.mxu0 0.0
        %2022 = vmatpush1.xpose.msra.mxu0 %v1979
        %2023 = vmatprep.subr.mxu0 0.0
        %2024 = vmatpush1.xpose.msra.mxu0 %v1977
        %2025 = vmatprep.subr.mxu0 0.0
        %2026 = vmatpush1.xpose.msra.mxu0 %v1975
        %2027 = vmatprep.subr.mxu0 0.0
        %2028 = vmatpush1.xpose.msra.mxu0 %v1973
        %2029 = vmatprep.subr.mxu0 0.0
        %2030 = vmatpush1.xpose.msra.mxu0 %v1971
        %2031 = vmatprep.subr.mxu0 0.0
        %2032 = vmatpush1.xpose.msra.mxu0 %v1969
        %2033 = vmatprep.subr.mxu0 0.0
        %2034 = vmatpush2.xpose.msra.mxu0 0.0
        %2035 = vmatprep.subr.mxu0 0.0
        %2036 = vmatpush2.xpose.msra.mxu0 0.0
        %2037 = vmatprep.subr.mxu0 0.0
        %2038 = vmatpush2.xpose.msra.mxu0 0.0
        %2039 = vmatprep.subr.mxu0 0.0
        %2040 = vmatpush2.xpose.msra.mxu0 0.0
        %2041 = vmatprep.subr.mxu0 0.0
        %2042 = vmatpush2.xpose.msra.mxu0 0.0
        %2043 = vmatprep.subr.mxu0 0.0
        %2044 = vmatpush2.xpose.msra.mxu0 0.0
        %2045 = vmatprep.subr.mxu0 0.0
        %2046 = vmatpush2.xpose.msra.mxu0 0.0
        %2047 = vmatprep.subr.mxu0 0.0
        %2048 = vmatpush2.xpose.msra.mxu0 0.0
        %2049 = vmatprep.subr.mxu0 0.0
        %2050 = vmatpush2.xpose.msra.mxu0 0.0
        %2051 = vmatprep.subr.mxu0 0.0
        %2052 = vmatpush2.xpose.msra.mxu0 0.0
        %2053 = vmatprep.subr.mxu0 0.0
        %2054 = vmatpush2.xpose.msra.mxu0 0.0
        %2055 = vmatprep.subr.mxu0 0.0
        %2056 = vmatpush2.xpose.msra.mxu0 0.0
        %2057 = vmatprep.subr.mxu0 0.0
        %2058 = vmatpush2.xpose.msra.mxu0 0.0
        %2059 = vmatprep.subr.mxu0 0.0
        %2060 = vmatpush2.xpose.msra.mxu0 0.0
        %2061 = vmatprep.subr.mxu0 0.0
        %2062 = vmatpush2.xpose.msra.mxu0 0.0
        %2063 = vmatprep.subr.mxu0 0.0
        %2064 = vmatpush2.xpose.msra.mxu0 0.0
        %2065 = vmatprep.mubr.f32.mxu0 0.0
        %2066 = vmatmul.mubr.f32.gmra.mxu0 %v1964
        %v2067 = vpop.f32.mrf.mxu0
        %v2068 = vadd.f32 %v1955, %v2067
        %v2069 = vpop.f32.mrf.mxu0
        %2070 = vmatprep.mubr.f32.mxu0 0.0
        %2071 = vmatmul.mubr.f32.gmra.mxu0 %v1967
        %v2072 = vpop.f32.mrf.mxu0
        %v2073 = vadd.f32 %v1960, %v2072
        %v2074 = vpop.f32.mrf.mxu0
        %2075 = vdwg.mxu0
        %2076 = vrot.lane.b32.xlu0 %v1384, 64
        %v2077 = vpop.permute.xlu0 %2076
        %2078 = vrot.lane.b32.xlu0 %v1385, 64
        %v2079 = vpop.permute.xlu0 %2078
        %2080 = vrot.lane.b32.xlu0 %v1301, 64
        %v2081 = vpop.permute.xlu0 %2080
        %2082 = vrot.lane.b32.xlu0 %v1307, 64
        %v2083 = vpop.permute.xlu0 %2082
        %v2084 = vsel %vm1403, %v2077, 0
        %v2086 = vsel %vm1403, %v2079, 0
        %v2088 = vsel %vm1403, %v2081, 0
        %v2090 = vsel %vm1403, %v2083, 0
        %2092 = vmatprep.subr.mxu0 0.0
        %2093 = vmatpush1.xpose.msra.mxu0 0.0
        %2094 = vmatprep.subr.mxu0 0.0
        %2095 = vmatpush1.xpose.msra.mxu0 0.0
        %2096 = vmatprep.subr.mxu0 0.0
        %2097 = vmatpush1.xpose.msra.mxu0 0.0
        %2098 = vmatprep.subr.mxu0 0.0
        %2099 = vmatpush1.xpose.msra.mxu0 0.0
        %2100 = vmatprep.subr.mxu0 0.0
        %2101 = vmatpush1.xpose.msra.mxu0 0.0
        %2102 = vmatprep.subr.mxu0 0.0
        %2103 = vmatpush1.xpose.msra.mxu0 0.0
        %2104 = vmatprep.subr.mxu0 0.0
        %2105 = vmatpush1.xpose.msra.mxu0 0.0
        %2106 = vmatprep.subr.mxu0 0.0
        %2107 = vmatpush1.xpose.msra.mxu0 0.0
        %2108 = vmatprep.subr.mxu0 0.0
        %2109 = vmatpush1.xpose.msra.mxu0 0.0
        %2110 = vmatprep.subr.mxu0 0.0
        %2111 = vmatpush1.xpose.msra.mxu0 0.0
        %2112 = vmatprep.subr.mxu0 0.0
        %2113 = vmatpush1.xpose.msra.mxu0 0.0
        %2114 = vmatprep.subr.mxu0 0.0
        %2115 = vmatpush1.xpose.msra.mxu0 0.0
        %2116 = vmatprep.subr.mxu0 0.0
        %2117 = vmatpush1.xpose.msra.mxu0 0.0
        %2118 = vmatprep.subr.mxu0 0.0
        %2119 = vmatpush1.xpose.msra.mxu0 0.0
        %2120 = vmatprep.subr.mxu0 0.0
        %2121 = vmatpush1.xpose.msra.mxu0 %v2090
        %2122 = vmatprep.subr.mxu0 0.0
        %2123 = vmatpush1.xpose.msra.mxu0 %v2088
        %2124 = vmatprep.subr.mxu0 0.0
        %2125 = vmatpush2.xpose.msra.mxu0 0.0
        %2126 = vmatprep.subr.mxu0 0.0
        %2127 = vmatpush2.xpose.msra.mxu0 0.0
        %2128 = vmatprep.subr.mxu0 0.0
        %2129 = vmatpush2.xpose.msra.mxu0 0.0
        %2130 = vmatprep.subr.mxu0 0.0
        %2131 = vmatpush2.xpose.msra.mxu0 0.0
        %2132 = vmatprep.subr.mxu0 0.0
        %2133 = vmatpush2.xpose.msra.mxu0 0.0
        %2134 = vmatprep.subr.mxu0 0.0
        %2135 = vmatpush2.xpose.msra.mxu0 0.0
        %2136 = vmatprep.subr.mxu0 0.0
        %2137 = vmatpush2.xpose.msra.mxu0 0.0
        %2138 = vmatprep.subr.mxu0 0.0
        %2139 = vmatpush2.xpose.msra.mxu0 0.0
        %2140 = vmatprep.subr.mxu0 0.0
        %2141 = vmatpush2.xpose.msra.mxu0 0.0
        %2142 = vmatprep.subr.mxu0 0.0
        %2143 = vmatpush2.xpose.msra.mxu0 0.0
        %2144 = vmatprep.subr.mxu0 0.0
        %2145 = vmatpush2.xpose.msra.mxu0 0.0
        %2146 = vmatprep.subr.mxu0 0.0
        %2147 = vmatpush2.xpose.msra.mxu0 0.0
        %2148 = vmatprep.subr.mxu0 0.0
        %2149 = vmatpush2.xpose.msra.mxu0 0.0
        %2150 = vmatprep.subr.mxu0 0.0
        %2151 = vmatpush2.xpose.msra.mxu0 0.0
        %2152 = vmatprep.subr.mxu0 0.0
        %2153 = vmatpush2.xpose.msra.mxu0 0.0
        %2154 = vmatprep.subr.mxu0 0.0
        %2155 = vmatpush2.xpose.msra.mxu0 0.0
        %2156 = vmatprep.mubr.f32.mxu0 0.0
        %2157 = vmatmul.mubr.f32.gmra.mxu0 %v2084
        %v2158 = vpop.f32.mrf.mxu0
        %v2159 = vadd.f32 0.0, %v2158
        %v2160 = vpop.f32.mrf.mxu0
        %2161 = vmatprep.mubr.f32.mxu0 0.0
        %2162 = vmatmul.mubr.f32.gmra.mxu0 %v2086
        %v2163 = vpop.f32.mrf.mxu0
        %v2164 = vadd.f32 0.0, %v2163
        %v2165 = vpop.f32.mrf.mxu0
        %2166 = vdwg.mxu0
        %v2167 = vsel %vm1491, %v2159, -inf
        %2168 = vmax.xlane.f32.xlu0 %v2167
        %v2169 = vpop.xlane.xlu0 %2168
        %v2170 = vsel %vm1495, %v2164, -inf
        %2171 = vmax.xlane.f32.xlu0 %v2170
        %v2172 = vpop.xlane.xlu0 %2171
        %v2173 = vsub.f32 %v2159, %v2169
        %v2174 = vsub.f32 %v2164, %v2172
        %v2175 = vmul.f32 %v2173, 1.442695
        %v2176 = vpow.pop %v2175
        %v2177 = vmul.f32 %v2174, 1.442695
        %v2178 = vpow.pop %v2177
        %v2179 = vsel %vm1491, %v2176, 0.0
        %2180 = vadd.xlane.f32.xlu0 %v2179
        %v2181 = vpop.xlane.xlu0 %2180
        %v2182 = vsel %vm1495, %v2178, 0.0
        %2183 = vadd.xlane.f32.xlu0 %v2182
        %v2184 = vpop.xlane.xlu0 %2183
        %v2185 = vrcp.pop %v2181
        %v2186 = vrcp.pop %v2184
        %v2187 = vmul.f32 %v2176, %v2185
        %v2188 = vmul.f32 %v2178, %v2186
        %2189 = vrot.lane.b32.xlu0 %v1376, 64
        %v2190 = vpop.permute.xlu0 %2189
        %2191 = vrot.lane.b32.xlu0 %v1381, 64
        %v2192 = vpop.permute.xlu0 %2191
        %v2195 = vsel %vm1491, %v2187, 0
        %v2198 = vsel %vm1491, %v2188, 0
        %v2200 = vsel %vm1521, %v2192, 0
        %2202 = vmatprep.subr.mxu0 0.0
        %2203 = vmatpush1.msra.mxu0 0.0
        %2204 = vmatprep.subr.mxu0 0.0
        %2205 = vmatpush1.msra.mxu0 0.0
        %2206 = vmatprep.subr.mxu0 0.0
        %2207 = vmatpush1.msra.mxu0 0.0
        %2208 = vmatprep.subr.mxu0 0.0
        %2209 = vmatpush1.msra.mxu0 0.0
        %2210 = vmatprep.subr.mxu0 0.0
        %2211 = vmatpush1.msra.mxu0 0.0
        %2212 = vmatprep.subr.mxu0 0.0
        %2213 = vmatpush1.msra.mxu0 0.0
        %2214 = vmatprep.subr.mxu0 0.0
        %2215 = vmatpush1.msra.mxu0 0.0
        %2216 = vmatprep.subr.mxu0 0.0
        %2217 = vmatpush1.msra.mxu0 0.0
        %2218 = vmatprep.subr.mxu0 0.0
        %2219 = vmatpush1.msra.mxu0 0.0
        %2220 = vmatprep.subr.mxu0 0.0
        %2221 = vmatpush1.msra.mxu0 0.0
        %2222 = vmatprep.subr.mxu0 0.0
        %2223 = vmatpush1.msra.mxu0 0.0
        %2224 = vmatprep.subr.mxu0 0.0
        %2225 = vmatpush1.msra.mxu0 0.0
        %2226 = vmatprep.subr.mxu0 0.0
        %2227 = vmatpush1.msra.mxu0 0.0
        %2228 = vmatprep.subr.mxu0 0.0
        %2229 = vmatpush1.msra.mxu0 0.0
        %2230 = vmatprep.subr.mxu0 0.0
        %2231 = vmatpush1.msra.mxu0 %v2200
        %2232 = vmatprep.subr.mxu0 0.0
        %2233 = vmatpush1.msra.mxu0 %v2190
        %2234 = vmatprep.subr.mxu0 0.0
        %2235 = vmatpush2.msra.mxu0 0.0
        %2236 = vmatprep.subr.mxu0 0.0
        %2237 = vmatpush2.msra.mxu0 0.0
        %2238 = vmatprep.subr.mxu0 0.0
        %2239 = vmatpush2.msra.mxu0 0.0
        %2240 = vmatprep.subr.mxu0 0.0
        %2241 = vmatpush2.msra.mxu0 0.0
        %2242 = vmatprep.subr.mxu0 0.0
        %2243 = vmatpush2.msra.mxu0 0.0
        %2244 = vmatprep.subr.mxu0 0.0
        %2245 = vmatpush2.msra.mxu0 0.0
        %2246 = vmatprep.subr.mxu0 0.0
        %2247 = vmatpush2.msra.mxu0 0.0
        %2248 = vmatprep.subr.mxu0 0.0
        %2249 = vmatpush2.msra.mxu0 0.0
        %2250 = vmatprep.subr.mxu0 0.0
        %2251 = vmatpush2.msra.mxu0 0.0
        %2252 = vmatprep.subr.mxu0 0.0
        %2253 = vmatpush2.msra.mxu0 0.0
        %2254 = vmatprep.subr.mxu0 0.0
        %2255 = vmatpush2.msra.mxu0 0.0
        %2256 = vmatprep.subr.mxu0 0.0
        %2257 = vmatpush2.msra.mxu0 0.0
        %2258 = vmatprep.subr.mxu0 0.0
        %2259 = vmatpush2.msra.mxu0 0.0
        %2260 = vmatprep.subr.mxu0 0.0
        %2261 = vmatpush2.msra.mxu0 0.0
        %2262 = vmatprep.subr.mxu0 0.0
        %2263 = vmatpush2.msra.mxu0 0.0
        %2264 = vmatprep.subr.mxu0 0.0
        %2265 = vmatpush2.msra.mxu0 0.0
        %2266 = vmatprep.mubr.f32.mxu0 0.0
        %2267 = vmatmul.mubr.f32.gmra.mxu0 %v2195
        %v2268 = vpop.f32.mrf.mxu0
        %v2269 = vadd.f32 0.0, %v2268
        %v2270 = vpop.f32.mrf.mxu0
        %2271 = vmatprep.mubr.f32.mxu0 0.0
        %2272 = vmatmul.mubr.f32.gmra.mxu0 %v2198
        %v2273 = vpop.f32.mrf.mxu0
        %v2274 = vadd.f32 0.0, %v2273
        %v2275 = vpop.f32.mrf.mxu0
        %2276 = vdwg.mxu0
        %2277 = vrot.lane.b32.xlu0 %v1386, 64
        %v2278 = vpop.permute.xlu0 %2277
        %2279 = vrot.lane.b32.xlu0 %v1387, 64
        %v2280 = vpop.permute.xlu0 %2279
        %2281 = vrot.lane.b32.xlu0 %v1388, 64
        %v2282 = vpop.permute.xlu0 %2281
        %2283 = vrot.lane.b32.xlu0 %v1389, 64
        %v2284 = vpop.permute.xlu0 %2283
        %2285 = vrot.lane.b32.xlu0 %v1390, 64
        %v2286 = vpop.permute.xlu0 %2285
        %2287 = vrot.lane.b32.xlu0 %v1391, 64
        %v2288 = vpop.permute.xlu0 %2287
        %2289 = vrot.lane.b32.xlu0 %v1392, 64
        %v2290 = vpop.permute.xlu0 %2289
        %2291 = vrot.lane.b32.xlu0 %v1393, 64
        %v2292 = vpop.permute.xlu0 %2291
        %2293 = vrot.lane.b32.xlu0 %v1394, 64
        %v2294 = vpop.permute.xlu0 %2293
        %2295 = vrot.lane.b32.xlu0 %v1395, 64
        %v2296 = vpop.permute.xlu0 %2295
        %2297 = vrot.lane.b32.xlu0 %v1396, 64
        %v2298 = vpop.permute.xlu0 %2297
        %2299 = vrot.lane.b32.xlu0 %v1397, 64
        %v2300 = vpop.permute.xlu0 %2299
        %2301 = vrot.lane.b32.xlu0 %v1398, 64
        %v2302 = vpop.permute.xlu0 %2301
        %2303 = vrot.lane.b32.xlu0 %v1399, 64
        %v2304 = vpop.permute.xlu0 %2303
        %2305 = vrot.lane.b32.xlu0 %v1400, 64
        %v2306 = vpop.permute.xlu0 %2305
        %2307 = vrot.lane.b32.xlu0 %v1401, 64
        %v2308 = vpop.permute.xlu0 %2307
        %v2310 = vsel %vm1403, %v2269, 0
        %v2313 = vsel %vm1403, %v2274, 0
        %v2315 = vsel %vm1403, %v2278, 0
        %v2317 = vsel %vm1403, %v2280, 0
        %v2319 = vsel %vm1403, %v2282, 0
        %v2321 = vsel %vm1403, %v2284, 0
        %v2323 = vsel %vm1403, %v2286, 0
        %v2325 = vsel %vm1403, %v2288, 0
        %v2327 = vsel %vm1403, %v2290, 0
        %v2329 = vsel %vm1403, %v2292, 0
        %v2331 = vsel %vm1403, %v2294, 0
        %v2333 = vsel %vm1403, %v2296, 0
        %v2335 = vsel %vm1403, %v2298, 0
        %v2337 = vsel %vm1403, %v2300, 0
        %v2339 = vsel %vm1403, %v2302, 0
        %v2341 = vsel %vm1403, %v2304, 0
        %v2343 = vsel %vm1403, %v2306, 0
        %v2345 = vsel %vm1403, %v2308, 0
        %2347 = vmatprep.subr.mxu0 0.0
        %2348 = vmatpush1.xpose.msra.mxu0 %v2345
        %2349 = vmatprep.subr.mxu0 0.0
        %2350 = vmatpush1.xpose.msra.mxu0 %v2343
        %2351 = vmatprep.subr.mxu0 0.0
        %2352 = vmatpush1.xpose.msra.mxu0 %v2341
        %2353 = vmatprep.subr.mxu0 0.0
        %2354 = vmatpush1.xpose.msra.mxu0 %v2339
        %2355 = vmatprep.subr.mxu0 0.0
        %2356 = vmatpush1.xpose.msra.mxu0 %v2337
        %2357 = vmatprep.subr.mxu0 0.0
        %2358 = vmatpush1.xpose.msra.mxu0 %v2335
        %2359 = vmatprep.subr.mxu0 0.0
        %2360 = vmatpush1.xpose.msra.mxu0 %v2333
        %2361 = vmatprep.subr.mxu0 0.0
        %2362 = vmatpush1.xpose.msra.mxu0 %v2331
        %2363 = vmatprep.subr.mxu0 0.0
        %2364 = vmatpush1.xpose.msra.mxu0 %v2329
        %2365 = vmatprep.subr.mxu0 0.0
        %2366 = vmatpush1.xpose.msra.mxu0 %v2327
        %2367 = vmatprep.subr.mxu0 0.0
        %2368 = vmatpush1.xpose.msra.mxu0 %v2325
        %2369 = vmatprep.subr.mxu0 0.0
        %2370 = vmatpush1.xpose.msra.mxu0 %v2323
        %2371 = vmatprep.subr.mxu0 0.0
        %2372 = vmatpush1.xpose.msra.mxu0 %v2321
        %2373 = vmatprep.subr.mxu0 0.0
        %2374 = vmatpush1.xpose.msra.mxu0 %v2319
        %2375 = vmatprep.subr.mxu0 0.0
        %2376 = vmatpush1.xpose.msra.mxu0 %v2317
        %2377 = vmatprep.subr.mxu0 0.0
        %2378 = vmatpush1.xpose.msra.mxu0 %v2315
        %2379 = vmatprep.subr.mxu0 0.0
        %2380 = vmatpush2.xpose.msra.mxu0 0.0
        %2381 = vmatprep.subr.mxu0 0.0
        %2382 = vmatpush2.xpose.msra.mxu0 0.0
        %2383 = vmatprep.subr.mxu0 0.0
        %2384 = vmatpush2.xpose.msra.mxu0 0.0
        %2385 = vmatprep.subr.mxu0 0.0
        %2386 = vmatpush2.xpose.msra.mxu0 0.0
        %2387 = vmatprep.subr.mxu0 0.0
        %2388 = vmatpush2.xpose.msra.mxu0 0.0
        %2389 = vmatprep.subr.mxu0 0.0
        %2390 = vmatpush2.xpose.msra.mxu0 0.0
        %2391 = vmatprep.subr.mxu0 0.0
        %2392 = vmatpush2.xpose.msra.mxu0 0.0
        %2393 = vmatprep.subr.mxu0 0.0
        %2394 = vmatpush2.xpose.msra.mxu0 0.0
        %2395 = vmatprep.subr.mxu0 0.0
        %2396 = vmatpush2.xpose.msra.mxu0 0.0
        %2397 = vmatprep.subr.mxu0 0.0
        %2398 = vmatpush2.xpose.msra.mxu0 0.0
        %2399 = vmatprep.subr.mxu0 0.0
        %2400 = vmatpush2.xpose.msra.mxu0 0.0
        %2401 = vmatprep.subr.mxu0 0.0
        %2402 = vmatpush2.xpose.msra.mxu0 0.0
        %2403 = vmatprep.subr.mxu0 0.0
        %2404 = vmatpush2.xpose.msra.mxu0 0.0
        %2405 = vmatprep.subr.mxu0 0.0
        %2406 = vmatpush2.xpose.msra.mxu0 0.0
        %2407 = vmatprep.subr.mxu0 0.0
        %2408 = vmatpush2.xpose.msra.mxu0 0.0
        %2409 = vmatprep.subr.mxu0 0.0
        %2410 = vmatpush2.xpose.msra.mxu0 0.0
        %2411 = vmatprep.mubr.f32.mxu0 0.0
        %2412 = vmatmul.mubr.f32.gmra.mxu0 %v2310
        %v2413 = vpop.f32.mrf.mxu0
        %v2414 = vadd.f32 0.0, %v2413
        %v2415 = vpop.f32.mrf.mxu0
        %2416 = vmatprep.mubr.f32.mxu0 0.0
        %2417 = vmatmul.mubr.f32.gmra.mxu0 %v2313
        %v2418 = vpop.f32.mrf.mxu0
        %v2419 = vadd.f32 0.0, %v2418
        %v2420 = vpop.f32.mrf.mxu0
        %2421 = vdwg.mxu0
        %v2422 = vadd.f32 %v2068, %v2414
        %v2423 = vadd.f32 %v2073, %v2419
        %2424 = vrot.lane.b32.xlu0 %v1384, 32
        %v2425 = vpop.permute.xlu0 %2424
        %2426 = vrot.lane.b32.xlu0 %v1385, 32
        %v2427 = vpop.permute.xlu0 %2426
        %2428 = vrot.lane.b32.xlu0 %v1301, 32
        %v2429 = vpop.permute.xlu0 %2428
        %2430 = vrot.lane.b32.xlu0 %v1307, 32
        %v2431 = vpop.permute.xlu0 %2430
        %v2432 = vsel %vm1403, %v2425, 0
        %v2434 = vsel %vm1403, %v2427, 0
        %v2436 = vsel %vm1403, %v2429, 0
        %v2438 = vsel %vm1403, %v2431, 0
        %2440 = vmatprep.subr.mxu0 0.0
        %2441 = vmatpush1.xpose.msra.mxu0 0.0
        %2442 = vmatprep.subr.mxu0 0.0
        %2443 = vmatpush1.xpose.msra.mxu0 0.0
        %2444 = vmatprep.subr.mxu0 0.0
        %2445 = vmatpush1.xpose.msra.mxu0 0.0
        %2446 = vmatprep.subr.mxu0 0.0
        %2447 = vmatpush1.xpose.msra.mxu0 0.0
        %2448 = vmatprep.subr.mxu0 0.0
        %2449 = vmatpush1.xpose.msra.mxu0 0.0
        %2450 = vmatprep.subr.mxu0 0.0
        %2451 = vmatpush1.xpose.msra.mxu0 0.0
        %2452 = vmatprep.subr.mxu0 0.0
        %2453 = vmatpush1.xpose.msra.mxu0 0.0
        %2454 = vmatprep.subr.mxu0 0.0
        %2455 = vmatpush1.xpose.msra.mxu0 0.0
        %2456 = vmatprep.subr.mxu0 0.0
        %2457 = vmatpush1.xpose.msra.mxu0 0.0
        %2458 = vmatprep.subr.mxu0 0.0
        %2459 = vmatpush1.xpose.msra.mxu0 0.0
        %2460 = vmatprep.subr.mxu0 0.0
        %2461 = vmatpush1.xpose.msra.mxu0 0.0
        %2462 = vmatprep.subr.mxu0 0.0
        %2463 = vmatpush1.xpose.msra.mxu0 0.0
        %2464 = vmatprep.subr.mxu0 0.0
        %2465 = vmatpush1.xpose.msra.mxu0 0.0
        %2466 = vmatprep.subr.mxu0 0.0
        %2467 = vmatpush1.xpose.msra.mxu0 0.0
        %2468 = vmatprep.subr.mxu0 0.0
        %2469 = vmatpush1.xpose.msra.mxu0 %v2438
        %2470 = vmatprep.subr.mxu0 0.0
        %2471 = vmatpush1.xpose.msra.mxu0 %v2436
        %2472 = vmatprep.subr.mxu0 0.0
        %2473 = vmatpush2.xpose.msra.mxu0 0.0
        %2474 = vmatprep.subr.mxu0 0.0
        %2475 = vmatpush2.xpose.msra.mxu0 0.0
        %2476 = vmatprep.subr.mxu0 0.0
        %2477 = vmatpush2.xpose.msra.mxu0 0.0
        %2478 = vmatprep.subr.mxu0 0.0
        %2479 = vmatpush2.xpose.msra.mxu0 0.0
        %2480 = vmatprep.subr.mxu0 0.0
        %2481 = vmatpush2.xpose.msra.mxu0 0.0
        %2482 = vmatprep.subr.mxu0 0.0
        %2483 = vmatpush2.xpose.msra.mxu0 0.0
        %2484 = vmatprep.subr.mxu0 0.0
        %2485 = vmatpush2.xpose.msra.mxu0 0.0
        %2486 = vmatprep.subr.mxu0 0.0
        %2487 = vmatpush2.xpose.msra.mxu0 0.0
        %2488 = vmatprep.subr.mxu0 0.0
        %2489 = vmatpush2.xpose.msra.mxu0 0.0
        %2490 = vmatprep.subr.mxu0 0.0
        %2491 = vmatpush2.xpose.msra.mxu0 0.0
        %2492 = vmatprep.subr.mxu0 0.0
        %2493 = vmatpush2.xpose.msra.mxu0 0.0
        %2494 = vmatprep.subr.mxu0 0.0
        %2495 = vmatpush2.xpose.msra.mxu0 0.0
        %2496 = vmatprep.subr.mxu0 0.0
        %2497 = vmatpush2.xpose.msra.mxu0 0.0
        %2498 = vmatprep.subr.mxu0 0.0
        %2499 = vmatpush2.xpose.msra.mxu0 0.0
        %2500 = vmatprep.subr.mxu0 0.0
        %2501 = vmatpush2.xpose.msra.mxu0 0.0
        %2502 = vmatprep.subr.mxu0 0.0
        %2503 = vmatpush2.xpose.msra.mxu0 0.0
        %2504 = vmatprep.mubr.f32.mxu0 0.0
        %2505 = vmatmul.mubr.f32.gmra.mxu0 %v2432
        %v2506 = vpop.f32.mrf.mxu0
        %v2507 = vadd.f32 0.0, %v2506
        %v2508 = vpop.f32.mrf.mxu0
        %2509 = vmatprep.mubr.f32.mxu0 0.0
        %2510 = vmatmul.mubr.f32.gmra.mxu0 %v2434
        %v2511 = vpop.f32.mrf.mxu0
        %v2512 = vadd.f32 0.0, %v2511
        %v2513 = vpop.f32.mrf.mxu0
        %2514 = vdwg.mxu0
        %v2515 = vsel %vm1491, %v2507, -inf
        %2516 = vmax.xlane.f32.xlu0 %v2515
        %v2517 = vpop.xlane.xlu0 %2516
        %v2518 = vsel %vm1495, %v2512, -inf
        %2519 = vmax.xlane.f32.xlu0 %v2518
        %v2520 = vpop.xlane.xlu0 %2519
        %v2521 = vsub.f32 %v2507, %v2517
        %v2522 = vsub.f32 %v2512, %v2520
        %v2523 = vmul.f32 %v2521, 1.442695
        %v2524 = vpow.pop %v2523
        %v2525 = vmul.f32 %v2522, 1.442695
        %v2526 = vpow.pop %v2525
        %v2527 = vsel %vm1491, %v2524, 0.0
        %2528 = vadd.xlane.f32.xlu0 %v2527
        %v2529 = vpop.xlane.xlu0 %2528
        %v2530 = vsel %vm1495, %v2526, 0.0
        %2531 = vadd.xlane.f32.xlu0 %v2530
        %v2532 = vpop.xlane.xlu0 %2531
        %v2533 = vrcp.pop %v2529
        %v2534 = vrcp.pop %v2532
        %v2535 = vmul.f32 %v2524, %v2533
        %v2536 = vmul.f32 %v2526, %v2534
        %2537 = vrot.lane.b32.xlu0 %v1376, 32
        %v2538 = vpop.permute.xlu0 %2537
        %2539 = vrot.lane.b32.xlu0 %v1381, 32
        %v2540 = vpop.permute.xlu0 %2539
        %v2543 = vsel %vm1491, %v2535, 0
        %v2546 = vsel %vm1491, %v2536, 0
        %v2548 = vsel %vm1521, %v2540, 0
        %2550 = vmatprep.subr.mxu0 0.0
        %2551 = vmatpush1.msra.mxu0 0.0
        %2552 = vmatprep.subr.mxu0 0.0
        %2553 = vmatpush1.msra.mxu0 0.0
        %2554 = vmatprep.subr.mxu0 0.0
        %2555 = vmatpush1.msra.mxu0 0.0
        %2556 = vmatprep.subr.mxu0 0.0
        %2557 = vmatpush1.msra.mxu0 0.0
        %2558 = vmatprep.subr.mxu0 0.0
        %2559 = vmatpush1.msra.mxu0 0.0
        %2560 = vmatprep.subr.mxu0 0.0
        %2561 = vmatpush1.msra.mxu0 0.0
        %2562 = vmatprep.subr.mxu0 0.0
        %2563 = vmatpush1.msra.mxu0 0.0
        %2564 = vmatprep.subr.mxu0 0.0
        %2565 = vmatpush1.msra.mxu0 0.0
        %2566 = vmatprep.subr.mxu0 0.0
        %2567 = vmatpush1.msra.mxu0 0.0
        %2568 = vmatprep.subr.mxu0 0.0
        %2569 = vmatpush1.msra.mxu0 0.0
        %2570 = vmatprep.subr.mxu0 0.0
        %2571 = vmatpush1.msra.mxu0 0.0
        %2572 = vmatprep.subr.mxu0 0.0
        %2573 = vmatpush1.msra.mxu0 0.0
        %2574 = vmatprep.subr.mxu0 0.0
        %2575 = vmatpush1.msra.mxu0 0.0
        %2576 = vmatprep.subr.mxu0 0.0
        %2577 = vmatpush1.msra.mxu0 0.0
        %2578 = vmatprep.subr.mxu0 0.0
        %2579 = vmatpush1.msra.mxu0 %v2548
        %2580 = vmatprep.subr.mxu0 0.0
        %2581 = vmatpush1.msra.mxu0 %v2538
        %2582 = vmatprep.subr.mxu0 0.0
        %2583 = vmatpush2.msra.mxu0 0.0
        %2584 = vmatprep.subr.mxu0 0.0
        %2585 = vmatpush2.msra.mxu0 0.0
        %2586 = vmatprep.subr.mxu0 0.0
        %2587 = vmatpush2.msra.mxu0 0.0
        %2588 = vmatprep.subr.mxu0 0.0
        %2589 = vmatpush2.msra.mxu0 0.0
        %2590 = vmatprep.subr.mxu0 0.0
        %2591 = vmatpush2.msra.mxu0 0.0
        %2592 = vmatprep.subr.mxu0 0.0
        %2593 = vmatpush2.msra.mxu0 0.0
        %2594 = vmatprep.subr.mxu0 0.0
        %2595 = vmatpush2.msra.mxu0 0.0
        %2596 = vmatprep.subr.mxu0 0.0
        %2597 = vmatpush2.msra.mxu0 0.0
        %2598 = vmatprep.subr.mxu0 0.0
        %2599 = vmatpush2.msra.mxu0 0.0
        %2600 = vmatprep.subr.mxu0 0.0
        %2601 = vmatpush2.msra.mxu0 0.0
        %2602 = vmatprep.subr.mxu0 0.0
        %2603 = vmatpush2.msra.mxu0 0.0
        %2604 = vmatprep.subr.mxu0 0.0
        %2605 = vmatpush2.msra.mxu0 0.0
        %2606 = vmatprep.subr.mxu0 0.0
        %2607 = vmatpush2.msra.mxu0 0.0
        %2608 = vmatprep.subr.mxu0 0.0
        %2609 = vmatpush2.msra.mxu0 0.0
        %2610 = vmatprep.subr.mxu0 0.0
        %2611 = vmatpush2.msra.mxu0 0.0
        %2612 = vmatprep.subr.mxu0 0.0
        %2613 = vmatpush2.msra.mxu0 0.0
        %2614 = vmatprep.mubr.f32.mxu0 0.0
        %2615 = vmatmul.mubr.f32.gmra.mxu0 %v2543
        %v2616 = vpop.f32.mrf.mxu0
        %v2617 = vadd.f32 0.0, %v2616
        %v2618 = vpop.f32.mrf.mxu0
        %2619 = vmatprep.mubr.f32.mxu0 0.0
        %2620 = vmatmul.mubr.f32.gmra.mxu0 %v2546
        %v2621 = vpop.f32.mrf.mxu0
        %v2622 = vadd.f32 0.0, %v2621
        %v2623 = vpop.f32.mrf.mxu0
        %2624 = vdwg.mxu0
        %2625 = vrot.lane.b32.xlu0 %v1386, 32
        %v2626 = vpop.permute.xlu0 %2625
        %2627 = vrot.lane.b32.xlu0 %v1387, 32
        %v2628 = vpop.permute.xlu0 %2627
        %2629 = vrot.lane.b32.xlu0 %v1388, 32
        %v2630 = vpop.permute.xlu0 %2629
        %2631 = vrot.lane.b32.xlu0 %v1389, 32
        %v2632 = vpop.permute.xlu0 %2631
        %2633 = vrot.lane.b32.xlu0 %v1390, 32
        %v2634 = vpop.permute.xlu0 %2633
        %2635 = vrot.lane.b32.xlu0 %v1391, 32
        %v2636 = vpop.permute.xlu0 %2635
        %2637 = vrot.lane.b32.xlu0 %v1392, 32
        %v2638 = vpop.permute.xlu0 %2637
        %2639 = vrot.lane.b32.xlu0 %v1393, 32
        %v2640 = vpop.permute.xlu0 %2639
        %2641 = vrot.lane.b32.xlu0 %v1394, 32
        %v2642 = vpop.permute.xlu0 %2641
        %2643 = vrot.lane.b32.xlu0 %v1395, 32
        %v2644 = vpop.permute.xlu0 %2643
        %2645 = vrot.lane.b32.xlu0 %v1396, 32
        %v2646 = vpop.permute.xlu0 %2645
        %2647 = vrot.lane.b32.xlu0 %v1397, 32
        %v2648 = vpop.permute.xlu0 %2647
        %2649 = vrot.lane.b32.xlu0 %v1398, 32
        %v2650 = vpop.permute.xlu0 %2649
        %2651 = vrot.lane.b32.xlu0 %v1399, 32
        %v2652 = vpop.permute.xlu0 %2651
        %2653 = vrot.lane.b32.xlu0 %v1400, 32
        %v2654 = vpop.permute.xlu0 %2653
        %2655 = vrot.lane.b32.xlu0 %v1401, 32
        %v2656 = vpop.permute.xlu0 %2655
        %v2658 = vsel %vm1403, %v2617, 0
        %v2661 = vsel %vm1403, %v2622, 0
        %v2663 = vsel %vm1403, %v2626, 0
        %v2665 = vsel %vm1403, %v2628, 0
        %v2667 = vsel %vm1403, %v2630, 0
        %v2669 = vsel %vm1403, %v2632, 0
        %v2671 = vsel %vm1403, %v2634, 0
        %v2673 = vsel %vm1403, %v2636, 0
        %v2675 = vsel %vm1403, %v2638, 0
        %v2677 = vsel %vm1403, %v2640, 0
        %v2679 = vsel %vm1403, %v2642, 0
        %v2681 = vsel %vm1403, %v2644, 0
        %v2683 = vsel %vm1403, %v2646, 0
        %v2685 = vsel %vm1403, %v2648, 0
        %v2687 = vsel %vm1403, %v2650, 0
        %v2689 = vsel %vm1403, %v2652, 0
        %v2691 = vsel %vm1403, %v2654, 0
        %v2693 = vsel %vm1403, %v2656, 0
        %2695 = vmatprep.subr.mxu0 0.0
        %2696 = vmatpush1.xpose.msra.mxu0 %v2693
        %2697 = vmatprep.subr.mxu0 0.0
        %2698 = vmatpush1.xpose.msra.mxu0 %v2691
        %2699 = vmatprep.subr.mxu0 0.0
        %2700 = vmatpush1.xpose.msra.mxu0 %v2689
        %2701 = vmatprep.subr.mxu0 0.0
        %2702 = vmatpush1.xpose.msra.mxu0 %v2687
        %2703 = vmatprep.subr.mxu0 0.0
        %2704 = vmatpush1.xpose.msra.mxu0 %v2685
        %2705 = vmatprep.subr.mxu0 0.0
        %2706 = vmatpush1.xpose.msra.mxu0 %v2683
        %2707 = vmatprep.subr.mxu0 0.0
        %2708 = vmatpush1.xpose.msra.mxu0 %v2681
        %2709 = vmatprep.subr.mxu0 0.0
        %2710 = vmatpush1.xpose.msra.mxu0 %v2679
        %2711 = vmatprep.subr.mxu0 0.0
        %2712 = vmatpush1.xpose.msra.mxu0 %v2677
        %2713 = vmatprep.subr.mxu0 0.0
        %2714 = vmatpush1.xpose.msra.mxu0 %v2675
        %2715 = vmatprep.subr.mxu0 0.0
        %2716 = vmatpush1.xpose.msra.mxu0 %v2673
        %2717 = vmatprep.subr.mxu0 0.0
        %2718 = vmatpush1.xpose.msra.mxu0 %v2671
        %2719 = vmatprep.subr.mxu0 0.0
        %2720 = vmatpush1.xpose.msra.mxu0 %v2669
        %2721 = vmatprep.subr.mxu0 0.0
        %2722 = vmatpush1.xpose.msra.mxu0 %v2667
        %2723 = vmatprep.subr.mxu0 0.0
        %2724 = vmatpush1.xpose.msra.mxu0 %v2665
        %2725 = vmatprep.subr.mxu0 0.0
        %2726 = vmatpush1.xpose.msra.mxu0 %v2663
        %2727 = vmatprep.subr.mxu0 0.0
        %2728 = vmatpush2.xpose.msra.mxu0 0.0
        %2729 = vmatprep.subr.mxu0 0.0
        %2730 = vmatpush2.xpose.msra.mxu0 0.0
        %2731 = vmatprep.subr.mxu0 0.0
        %2732 = vmatpush2.xpose.msra.mxu0 0.0
        %2733 = vmatprep.subr.mxu0 0.0
        %2734 = vmatpush2.xpose.msra.mxu0 0.0
        %2735 = vmatprep.subr.mxu0 0.0
        %2736 = vmatpush2.xpose.msra.mxu0 0.0
        %2737 = vmatprep.subr.mxu0 0.0
        %2738 = vmatpush2.xpose.msra.mxu0 0.0
        %2739 = vmatprep.subr.mxu0 0.0
        %2740 = vmatpush2.xpose.msra.mxu0 0.0
        %2741 = vmatprep.subr.mxu0 0.0
        %2742 = vmatpush2.xpose.msra.mxu0 0.0
        %2743 = vmatprep.subr.mxu0 0.0
        %2744 = vmatpush2.xpose.msra.mxu0 0.0
        %2745 = vmatprep.subr.mxu0 0.0
        %2746 = vmatpush2.xpose.msra.mxu0 0.0
        %2747 = vmatprep.subr.mxu0 0.0
        %2748 = vmatpush2.xpose.msra.mxu0 0.0
        %2749 = vmatprep.subr.mxu0 0.0
        %2750 = vmatpush2.xpose.msra.mxu0 0.0
        %2751 = vmatprep.subr.mxu0 0.0
        %2752 = vmatpush2.xpose.msra.mxu0 0.0
        %2753 = vmatprep.subr.mxu0 0.0
        %2754 = vmatpush2.xpose.msra.mxu0 0.0
        %2755 = vmatprep.subr.mxu0 0.0
        %2756 = vmatpush2.xpose.msra.mxu0 0.0
        %2757 = vmatprep.subr.mxu0 0.0
        %2758 = vmatpush2.xpose.msra.mxu0 0.0
        %2759 = vmatprep.mubr.f32.mxu0 0.0
        %2760 = vmatmul.mubr.f32.gmra.mxu0 %v2658
        %v2761 = vpop.f32.mrf.mxu0
        %v2762 = vadd.f32 0.0, %v2761
        %v2763 = vpop.f32.mrf.mxu0
        %2764 = vmatprep.mubr.f32.mxu0 0.0
        %2765 = vmatmul.mubr.f32.gmra.mxu0 %v2661
        %v2766 = vpop.f32.mrf.mxu0
        %v2767 = vadd.f32 0.0, %v2766
        %v2768 = vpop.f32.mrf.mxu0
        %2769 = vdwg.mxu0
        %v2770 = vadd.f32 %v2422, %v2762
        %v2771 = vadd.f32 %v2423, %v2767
        %v2773 = vlaneseq
        %v2774 = vshrl.u32 %v2773, 7
        %v2775 = vsub.s32 0, %v2774
        %v2776 = vrot.slane %v1402, %v2775
        %v2778 = vadd.f32 %v2770, %v2776
        %v2779 = vadd.f32 %v2771, %v2776
        %v2780 = vadd.f32 %v1164, %v2778
        %v2781 = vadd.f32 %v1166, %v2779
        %v2782 = vld [vmem:[#allocation11] sm:$0x1]
        %v2783 = vld [vmem:[#allocation13] sm:$0x1]
        %2784 = vadd.xlane.f32.xlu0 %v2780
        %v2785 = vpop.xlane.xlu0 %2784
        %v2786 = vsel %vm1521, %v2781, 0.0
        %2787 = vadd.xlane.f32.xlu0 %v2786
        %v2788 = vpop.xlane.xlu0 %2787
        %v2789 = vrcp.pop 128.0
        %v2790 = vmul.f32 %v2785, %v2789
        %v2791 = vmul.f32 %v2788, %v2789
        %v2792 = vsub.f32 %v2780, %v2790
        %v2793 = vsub.f32 %v2781, %v2791
        %v2794 = vmul.f32 %v2792, %v2792
        %v2795 = vmul.f32 %v2793, %v2793
        %2796 = vadd.xlane.f32.xlu0 %v2794
        %v2797 = vpop.xlane.xlu0 %2796
        %v2798 = vsel %vm1521, %v2795, 0.0
        %2799 = vadd.xlane.f32.xlu0 %v2798
        %v2800 = vpop.xlane.xlu0 %2799
        %v2801 = vmul.f32 %v2797, %v2789
        %v2802 = vmul.f32 %v2800, %v2789
        %v2803 = vadd.f32 %v2801, 1e-05
        %v2804 = vadd.f32 %v2802, 1e-05
        %v2805 = vrsqrt.pop %v2803
        %v2806 = vrsqrt.pop %v2804
        %v2807 = vmul.f32 %v2792, %v2805
        %v2808 = vmul.f32 %v2793, %v2806
        %v2810 = vlaneseq
        %v2811 = vshrl.u32 %v2810, 7
        %v2812 = vsub.s32 0, %v2811
        %v2813 = vrot.slane %v2782, %v2812
        %v2815 = vmul.f32 %v2807, %v2813
        %v2816 = vmul.f32 %v2808, %v2813
        %v2818 = vlaneseq
        %v2819 = vshrl.u32 %v2818, 7
        %v2820 = vsub.s32 0, %v2819
        %v2821 = vrot.slane %v2783, %v2820
        %v2823 = vadd.f32 %v2815, %v2821
        %v2824 = vadd.f32 %v2816, %v2821
        %v2825 = vld [vmem:[#allocation17] sm:$0xff]
        %v2826 = vld [vmem:[#allocation17 + $0x8] sm:$0xff]
        %v2827 = vld [vmem:[#allocation17 + $0x10] sm:$0xff]
        %v2828 = vld [vmem:[#allocation17 + $0x18] sm:$0xff]
        %v2829 = vld [vmem:[#allocation17 + $0x20] sm:$0xff]
        %v2830 = vld [vmem:[#allocation17 + $0x28] sm:$0xff]
        %v2831 = vld [vmem:[#allocation17 + $0x30] sm:$0xff]
        %v2832 = vld [vmem:[#allocation17 + $0x38] sm:$0xff]
        %v2833 = vld [vmem:[#allocation17 + $0x40] sm:$0xff]
        %v2834 = vld [vmem:[#allocation17 + $0x48] sm:$0xff]
        %v2835 = vld [vmem:[#allocation17 + $0x50] sm:$0xff]
        %v2836 = vld [vmem:[#allocation17 + $0x58] sm:$0xff]
        %v2837 = vld [vmem:[#allocation17 + $0x60] sm:$0xff]
        %v2838 = vld [vmem:[#allocation17 + $0x68] sm:$0xff]
        %v2839 = vld [vmem:[#allocation17 + $0x70] sm:$0xff]
        %v2840 = vld [vmem:[#allocation17 + $0x78] sm:$0xff]
        %v2841 = vld [vmem:[#allocation17 + $0x80] sm:$0xff]
        %v2842 = vld [vmem:[#allocation17 + $0x88] sm:$0xff]
        %v2843 = vld [vmem:[#allocation17 + $0x90] sm:$0xff]
        %v2844 = vld [vmem:[#allocation17 + $0x98] sm:$0xff]
        %v2845 = vld [vmem:[#allocation17 + $0xa0] sm:$0xff]
        %v2846 = vld [vmem:[#allocation17 + $0xa8] sm:$0xff]
        %v2847 = vld [vmem:[#allocation17 + $0xb0] sm:$0xff]
        %v2848 = vld [vmem:[#allocation17 + $0xb8] sm:$0xff]
        %v2849 = vld [vmem:[#allocation17 + $0xc0] sm:$0xff]
        %v2850 = vld [vmem:[#allocation17 + $0xc8] sm:$0xff]
        %v2851 = vld [vmem:[#allocation17 + $0xd0] sm:$0xff]
        %v2852 = vld [vmem:[#allocation17 + $0xd8] sm:$0xff]
        %v2853 = vld [vmem:[#allocation17 + $0xe0] sm:$0xff]
        %v2854 = vld [vmem:[#allocation17 + $0xe8] sm:$0xff]
        %v2855 = vld [vmem:[#allocation17 + $0xf0] sm:$0xff]
        %v2856 = vld [vmem:[#allocation17 + $0xf8] sm:$0xff]
        %v2857 = vld [vmem:[#allocation17 + $0x100] sm:$0xff]
        %v2858 = vld [vmem:[#allocation17 + $0x108] sm:$0xff]
        %v2859 = vld [vmem:[#allocation17 + $0x110] sm:$0xff]
        %v2860 = vld [vmem:[#allocation17 + $0x118] sm:$0xff]
        %v2861 = vld [vmem:[#allocation17 + $0x120] sm:$0xff]
        %v2862 = vld [vmem:[#allocation17 + $0x128] sm:$0xff]
        %v2863 = vld [vmem:[#allocation17 + $0x130] sm:$0xff]
        %v2864 = vld [vmem:[#allocation17 + $0x138] sm:$0xff]
        %v2865 = vld [vmem:[#allocation17 + $0x140] sm:$0xff]
        %v2866 = vld [vmem:[#allocation17 + $0x148] sm:$0xff]
        %v2867 = vld [vmem:[#allocation17 + $0x150] sm:$0xff]
        %v2868 = vld [vmem:[#allocation17 + $0x158] sm:$0xff]
        %v2869 = vld [vmem:[#allocation17 + $0x160] sm:$0xff]
        %v2870 = vld [vmem:[#allocation17 + $0x168] sm:$0xff]
        %v2871 = vld [vmem:[#allocation17 + $0x170] sm:$0xff]
        %v2872 = vld [vmem:[#allocation17 + $0x178] sm:$0xff]
        %v2873 = vld [vmem:[#allocation17 + $0x180] sm:$0xff]
        %v2874 = vld [vmem:[#allocation17 + $0x188] sm:$0xff]
        %v2875 = vld [vmem:[#allocation17 + $0x190] sm:$0xff]
        %v2876 = vld [vmem:[#allocation17 + $0x198] sm:$0xff]
        %v2877 = vld [vmem:[#allocation17 + $0x1a0] sm:$0xff]
        %v2878 = vld [vmem:[#allocation17 + $0x1a8] sm:$0xff]
        %v2879 = vld [vmem:[#allocation17 + $0x1b0] sm:$0xff]
        %v2880 = vld [vmem:[#allocation17 + $0x1b8] sm:$0xff]
        %v2881 = vld [vmem:[#allocation17 + $0x1c0] sm:$0xff]
        %v2882 = vld [vmem:[#allocation17 + $0x1c8] sm:$0xff]
        %v2883 = vld [vmem:[#allocation17 + $0x1d0] sm:$0xff]
        %v2884 = vld [vmem:[#allocation17 + $0x1d8] sm:$0xff]
        %v2885 = vld [vmem:[#allocation17 + $0x1e0] sm:$0xff]
        %v2886 = vld [vmem:[#allocation17 + $0x1e8] sm:$0xff]
        %v2887 = vld [vmem:[#allocation17 + $0x1f0] sm:$0xff]
        %v2888 = vld [vmem:[#allocation17 + $0x1f8] sm:$0xff]
        %v2889 = vld [vmem:[#allocation17 + $0x200] sm:$0xff]
        %v2890 = vld [vmem:[#allocation17 + $0x208] sm:$0xff]
        %v2891 = vld [vmem:[#allocation17 + $0x210] sm:$0xff]
        %v2892 = vld [vmem:[#allocation17 + $0x218] sm:$0xff]
        %v2893 = vld [vmem:[#allocation17 + $0x220] sm:$0xff]
        %v2894 = vld [vmem:[#allocation17 + $0x228] sm:$0xff]
        %v2895 = vld [vmem:[#allocation17 + $0x230] sm:$0xff]
        %v2896 = vld [vmem:[#allocation17 + $0x238] sm:$0xff]
        %v2897 = vld [vmem:[#allocation17 + $0x240] sm:$0xff]
        %v2898 = vld [vmem:[#allocation17 + $0x248] sm:$0xff]
        %v2899 = vld [vmem:[#allocation17 + $0x250] sm:$0xff]
        %v2900 = vld [vmem:[#allocation17 + $0x258] sm:$0xff]
        %v2901 = vld [vmem:[#allocation17 + $0x260] sm:$0xff]
        %v2902 = vld [vmem:[#allocation17 + $0x268] sm:$0xff]
        %v2903 = vld [vmem:[#allocation17 + $0x270] sm:$0xff]
        %v2904 = vld [vmem:[#allocation17 + $0x278] sm:$0xff]
        %v2905 = vld [vmem:[#allocation17 + $0x280] sm:$0xff]
        %v2906 = vld [vmem:[#allocation17 + $0x288] sm:$0xff]
        %v2907 = vld [vmem:[#allocation17 + $0x290] sm:$0xff]
        %v2908 = vld [vmem:[#allocation17 + $0x298] sm:$0xff]
        %v2909 = vld [vmem:[#allocation17 + $0x2a0] sm:$0xff]
        %v2910 = vld [vmem:[#allocation17 + $0x2a8] sm:$0xff]
        %v2911 = vld [vmem:[#allocation17 + $0x2b0] sm:$0xff]
        %v2912 = vld [vmem:[#allocation17 + $0x2b8] sm:$0xff]
        %v2913 = vld [vmem:[#allocation17 + $0x2c0] sm:$0xff]
        %v2914 = vld [vmem:[#allocation17 + $0x2c8] sm:$0xff]
        %v2915 = vld [vmem:[#allocation17 + $0x2d0] sm:$0xff]
        %v2916 = vld [vmem:[#allocation17 + $0x2d8] sm:$0xff]
        %v2917 = vld [vmem:[#allocation17 + $0x2e0] sm:$0xff]
        %v2918 = vld [vmem:[#allocation17 + $0x2e8] sm:$0xff]
        %v2919 = vld [vmem:[#allocation17 + $0x2f0] sm:$0xff]
        %v2920 = vld [vmem:[#allocation17 + $0x2f8] sm:$0xff]
        %v2921 = vld [vmem:[#allocation17 + $0x300] sm:$0xff]
        %v2922 = vld [vmem:[#allocation17 + $0x308] sm:$0xff]
        %v2923 = vld [vmem:[#allocation17 + $0x310] sm:$0xff]
        %v2924 = vld [vmem:[#allocation17 + $0x318] sm:$0xff]
        %v2925 = vld [vmem:[#allocation17 + $0x320] sm:$0xff]
        %v2926 = vld [vmem:[#allocation17 + $0x328] sm:$0xff]
        %v2927 = vld [vmem:[#allocation17 + $0x330] sm:$0xff]
        %v2928 = vld [vmem:[#allocation17 + $0x338] sm:$0xff]
        %v2929 = vld [vmem:[#allocation17 + $0x340] sm:$0xff]
        %v2930 = vld [vmem:[#allocation17 + $0x348] sm:$0xff]
        %v2931 = vld [vmem:[#allocation17 + $0x350] sm:$0xff]
        %v2932 = vld [vmem:[#allocation17 + $0x358] sm:$0xff]
        %v2933 = vld [vmem:[#allocation17 + $0x360] sm:$0xff]
        %v2934 = vld [vmem:[#allocation17 + $0x368] sm:$0xff]
        %v2935 = vld [vmem:[#allocation17 + $0x370] sm:$0xff]
        %v2936 = vld [vmem:[#allocation17 + $0x378] sm:$0xff]
        %v2937 = vld [vmem:[#allocation17 + $0x380] sm:$0xff]
        %v2938 = vld [vmem:[#allocation17 + $0x388] sm:$0xff]
        %v2939 = vld [vmem:[#allocation17 + $0x390] sm:$0xff]
        %v2940 = vld [vmem:[#allocation17 + $0x398] sm:$0xff]
        %v2941 = vld [vmem:[#allocation17 + $0x3a0] sm:$0xff]
        %v2942 = vld [vmem:[#allocation17 + $0x3a8] sm:$0xff]
        %v2943 = vld [vmem:[#allocation17 + $0x3b0] sm:$0xff]
        %v2944 = vld [vmem:[#allocation17 + $0x3b8] sm:$0xff]
        %v2945 = vld [vmem:[#allocation17 + $0x3c0] sm:$0xff]
        %v2946 = vld [vmem:[#allocation17 + $0x3c8] sm:$0xff]
        %v2947 = vld [vmem:[#allocation17 + $0x3d0] sm:$0xff]
        %v2948 = vld [vmem:[#allocation17 + $0x3d8] sm:$0xff]
        %v2949 = vld [vmem:[#allocation17 + $0x3e0] sm:$0xff]
        %v2950 = vld [vmem:[#allocation17 + $0x3e8] sm:$0xff]
        %v2951 = vld [vmem:[#allocation17 + $0x3f0] sm:$0xff]
        %v2952 = vld [vmem:[#allocation17 + $0x3f8] sm:$0xff]
        %v2953 = vld [vmem:[#allocation17 + $0x400] sm:$0xff]
        %v2954 = vld [vmem:[#allocation17 + $0x408] sm:$0xff]
        %v2955 = vld [vmem:[#allocation17 + $0x410] sm:$0xff]
        %v2956 = vld [vmem:[#allocation17 + $0x418] sm:$0xff]
        %v2957 = vld [vmem:[#allocation17 + $0x420] sm:$0xff]
        %v2958 = vld [vmem:[#allocation17 + $0x428] sm:$0xff]
        %v2959 = vld [vmem:[#allocation17 + $0x430] sm:$0xff]
        %v2960 = vld [vmem:[#allocation17 + $0x438] sm:$0xff]
        %v2961 = vld [vmem:[#allocation17 + $0x440] sm:$0xff]
        %v2962 = vld [vmem:[#allocation17 + $0x448] sm:$0xff]
        %v2963 = vld [vmem:[#allocation17 + $0x450] sm:$0xff]
        %v2964 = vld [vmem:[#allocation17 + $0x458] sm:$0xff]
        %v2965 = vld [vmem:[#allocation17 + $0x460] sm:$0xff]
        %v2966 = vld [vmem:[#allocation17 + $0x468] sm:$0xff]
        %v2967 = vld [vmem:[#allocation17 + $0x470] sm:$0xff]
        %v2968 = vld [vmem:[#allocation17 + $0x478] sm:$0xff]
        %v2969 = vld [vmem:[#allocation17 + $0x480] sm:$0xff]
        %v2970 = vld [vmem:[#allocation17 + $0x488] sm:$0xff]
        %v2971 = vld [vmem:[#allocation17 + $0x490] sm:$0xff]
        %v2972 = vld [vmem:[#allocation17 + $0x498] sm:$0xff]
        %v2973 = vld [vmem:[#allocation17 + $0x4a0] sm:$0xff]
        %v2974 = vld [vmem:[#allocation17 + $0x4a8] sm:$0xff]
        %v2975 = vld [vmem:[#allocation17 + $0x4b0] sm:$0xff]
        %v2976 = vld [vmem:[#allocation17 + $0x4b8] sm:$0xff]
        %v2977 = vld [vmem:[#allocation17 + $0x4c0] sm:$0xff]
        %v2978 = vld [vmem:[#allocation17 + $0x4c8] sm:$0xff]
        %v2979 = vld [vmem:[#allocation17 + $0x4d0] sm:$0xff]
        %v2980 = vld [vmem:[#allocation17 + $0x4d8] sm:$0xff]
        %v2981 = vld [vmem:[#allocation17 + $0x4e0] sm:$0xff]
        %v2982 = vld [vmem:[#allocation17 + $0x4e8] sm:$0xff]
        %v2983 = vld [vmem:[#allocation17 + $0x4f0] sm:$0xff]
        %v2984 = vld [vmem:[#allocation17 + $0x4f8] sm:$0xff]
        %v2985 = vld [vmem:[#allocation17 + $0x500] sm:$0xff]
        %v2986 = vld [vmem:[#allocation17 + $0x508] sm:$0xff]
        %v2987 = vld [vmem:[#allocation17 + $0x510] sm:$0xff]
        %v2988 = vld [vmem:[#allocation17 + $0x518] sm:$0xff]
        %v2989 = vld [vmem:[#allocation17 + $0x520] sm:$0xff]
        %v2990 = vld [vmem:[#allocation17 + $0x528] sm:$0xff]
        %v2991 = vld [vmem:[#allocation17 + $0x530] sm:$0xff]
        %v2992 = vld [vmem:[#allocation17 + $0x538] sm:$0xff]
        %v2993 = vld [vmem:[#allocation17 + $0x540] sm:$0xff]
        %v2994 = vld [vmem:[#allocation17 + $0x548] sm:$0xff]
        %v2995 = vld [vmem:[#allocation17 + $0x550] sm:$0xff]
        %v2996 = vld [vmem:[#allocation17 + $0x558] sm:$0xff]
        %v2997 = vld [vmem:[#allocation17 + $0x560] sm:$0xff]
        %v2998 = vld [vmem:[#allocation17 + $0x568] sm:$0xff]
        %v2999 = vld [vmem:[#allocation17 + $0x570] sm:$0xff]
        %v3000 = vld [vmem:[#allocation17 + $0x578] sm:$0xff]
        %v3001 = vld [vmem:[#allocation17 + $0x580] sm:$0xff]
        %v3002 = vld [vmem:[#allocation17 + $0x588] sm:$0xff]
        %v3003 = vld [vmem:[#allocation17 + $0x590] sm:$0xff]
        %v3004 = vld [vmem:[#allocation17 + $0x598] sm:$0xff]
        %v3005 = vld [vmem:[#allocation17 + $0x5a0] sm:$0xff]
        %v3006 = vld [vmem:[#allocation17 + $0x5a8] sm:$0xff]
        %v3007 = vld [vmem:[#allocation17 + $0x5b0] sm:$0xff]
        %v3008 = vld [vmem:[#allocation17 + $0x5b8] sm:$0xff]
        %v3009 = vld [vmem:[#allocation17 + $0x5c0] sm:$0xff]
        %v3010 = vld [vmem:[#allocation17 + $0x5c8] sm:$0xff]
        %v3011 = vld [vmem:[#allocation17 + $0x5d0] sm:$0xff]
        %v3012 = vld [vmem:[#allocation17 + $0x5d8] sm:$0xff]
        %v3013 = vld [vmem:[#allocation17 + $0x5e0] sm:$0xff]
        %v3014 = vld [vmem:[#allocation17 + $0x5e8] sm:$0xff]
        %v3015 = vld [vmem:[#allocation17 + $0x5f0] sm:$0xff]
        %v3016 = vld [vmem:[#allocation17 + $0x5f8] sm:$0xff]
        %v3017 = vld [vmem:[#allocation17 + $0x600] sm:$0xff]
        %v3018 = vld [vmem:[#allocation17 + $0x608] sm:$0xff]
        %v3019 = vld [vmem:[#allocation17 + $0x610] sm:$0xff]
        %v3020 = vld [vmem:[#allocation17 + $0x618] sm:$0xff]
        %v3021 = vld [vmem:[#allocation17 + $0x620] sm:$0xff]
        %v3022 = vld [vmem:[#allocation17 + $0x628] sm:$0xff]
        %v3023 = vld [vmem:[#allocation17 + $0x630] sm:$0xff]
        %v3024 = vld [vmem:[#allocation17 + $0x638] sm:$0xff]
        %v3025 = vld [vmem:[#allocation17 + $0x640] sm:$0xff]
        %v3026 = vld [vmem:[#allocation17 + $0x648] sm:$0xff]
        %v3027 = vld [vmem:[#allocation17 + $0x650] sm:$0xff]
        %v3028 = vld [vmem:[#allocation17 + $0x658] sm:$0xff]
        %v3029 = vld [vmem:[#allocation17 + $0x660] sm:$0xff]
        %v3030 = vld [vmem:[#allocation17 + $0x668] sm:$0xff]
        %v3031 = vld [vmem:[#allocation17 + $0x670] sm:$0xff]
        %v3032 = vld [vmem:[#allocation17 + $0x678] sm:$0xff]
        %v3033 = vld [vmem:[#allocation17 + $0x680] sm:$0xff]
        %v3034 = vld [vmem:[#allocation17 + $0x688] sm:$0xff]
        %v3035 = vld [vmem:[#allocation17 + $0x690] sm:$0xff]
        %v3036 = vld [vmem:[#allocation17 + $0x698] sm:$0xff]
        %v3037 = vld [vmem:[#allocation17 + $0x6a0] sm:$0xff]
        %v3038 = vld [vmem:[#allocation17 + $0x6a8] sm:$0xff]
        %v3039 = vld [vmem:[#allocation17 + $0x6b0] sm:$0xff]
        %v3040 = vld [vmem:[#allocation17 + $0x6b8] sm:$0xff]
        %v3041 = vld [vmem:[#allocation17 + $0x6c0] sm:$0xff]
        %v3042 = vld [vmem:[#allocation17 + $0x6c8] sm:$0xff]
        %v3043 = vld [vmem:[#allocation17 + $0x6d0] sm:$0xff]
        %v3044 = vld [vmem:[#allocation17 + $0x6d8] sm:$0xff]
        %v3045 = vld [vmem:[#allocation17 + $0x6e0] sm:$0xff]
        %v3046 = vld [vmem:[#allocation17 + $0x6e8] sm:$0xff]
        %v3047 = vld [vmem:[#allocation17 + $0x6f0] sm:$0xff]
        %v3048 = vld [vmem:[#allocation17 + $0x6f8] sm:$0xff]
        %v3049 = vld [vmem:[#allocation17 + $0x700] sm:$0xff]
        %v3050 = vld [vmem:[#allocation17 + $0x708] sm:$0xff]
        %v3051 = vld [vmem:[#allocation17 + $0x710] sm:$0xff]
        %v3052 = vld [vmem:[#allocation17 + $0x718] sm:$0xff]
        %v3053 = vld [vmem:[#allocation17 + $0x720] sm:$0xff]
        %v3054 = vld [vmem:[#allocation17 + $0x728] sm:$0xff]
        %v3055 = vld [vmem:[#allocation17 + $0x730] sm:$0xff]
        %v3056 = vld [vmem:[#allocation17 + $0x738] sm:$0xff]
        %v3057 = vld [vmem:[#allocation17 + $0x740] sm:$0xff]
        %v3058 = vld [vmem:[#allocation17 + $0x748] sm:$0xff]
        %v3059 = vld [vmem:[#allocation17 + $0x750] sm:$0xff]
        %v3060 = vld [vmem:[#allocation17 + $0x758] sm:$0xff]
        %v3061 = vld [vmem:[#allocation17 + $0x760] sm:$0xff]
        %v3062 = vld [vmem:[#allocation17 + $0x768] sm:$0xff]
        %v3063 = vld [vmem:[#allocation17 + $0x770] sm:$0xff]
        %v3064 = vld [vmem:[#allocation17 + $0x778] sm:$0xff]
        %v3065 = vld [vmem:[#allocation17 + $0x780] sm:$0xff]
        %v3066 = vld [vmem:[#allocation17 + $0x788] sm:$0xff]
        %v3067 = vld [vmem:[#allocation17 + $0x790] sm:$0xff]
        %v3068 = vld [vmem:[#allocation17 + $0x798] sm:$0xff]
        %v3069 = vld [vmem:[#allocation17 + $0x7a0] sm:$0xff]
        %v3070 = vld [vmem:[#allocation17 + $0x7a8] sm:$0xff]
        %v3071 = vld [vmem:[#allocation17 + $0x7b0] sm:$0xff]
        %v3072 = vld [vmem:[#allocation17 + $0x7b8] sm:$0xff]
        %v3073 = vld [vmem:[#allocation17 + $0x7c0] sm:$0xff]
        %v3074 = vld [vmem:[#allocation17 + $0x7c8] sm:$0xff]
        %v3075 = vld [vmem:[#allocation17 + $0x7d0] sm:$0xff]
        %v3076 = vld [vmem:[#allocation17 + $0x7d8] sm:$0xff]
        %v3077 = vld [vmem:[#allocation17 + $0x7e0] sm:$0xff]
        %v3078 = vld [vmem:[#allocation17 + $0x7e8] sm:$0xff]
        %v3079 = vld [vmem:[#allocation17 + $0x7f0] sm:$0xff]
        %v3080 = vld [vmem:[#allocation17 + $0x7f8] sm:$0xff]
        %v3081 = vld [vmem:[%s25] sm:$0xff]
        %v3082 = vld [vmem:[%s25 + $0x8] sm:$0xff]
        %v3083 = vld [vmem:[#allocation19] sm:$0xff]
        %v3084 = vld [vmem:[#allocation19 + $0x8] sm:$0xff]
        %v3085 = vld [vmem:[#allocation19 + $0x10] sm:$0xff]
        %v3086 = vld [vmem:[#allocation19 + $0x18] sm:$0xff]
        %v3087 = vld [vmem:[#allocation19 + $0x20] sm:$0xff]
        %v3088 = vld [vmem:[#allocation19 + $0x28] sm:$0xff]
        %v3089 = vld [vmem:[#allocation19 + $0x30] sm:$0xff]
        %v3090 = vld [vmem:[#allocation19 + $0x38] sm:$0xff]
        %v3091 = vld [vmem:[#allocation19 + $0x40] sm:$0xff]
        %v3092 = vld [vmem:[#allocation19 + $0x48] sm:$0xff]
        %v3093 = vld [vmem:[#allocation19 + $0x50] sm:$0xff]
        %v3094 = vld [vmem:[#allocation19 + $0x58] sm:$0xff]
        %v3095 = vld [vmem:[#allocation19 + $0x60] sm:$0xff]
        %v3096 = vld [vmem:[#allocation19 + $0x68] sm:$0xff]
        %v3097 = vld [vmem:[#allocation19 + $0x70] sm:$0xff]
        %v3098 = vld [vmem:[#allocation19 + $0x78] sm:$0xff]
        %v3099 = vld [vmem:[#allocation19 + $0x80] sm:$0xff]
        %v3100 = vld [vmem:[#allocation19 + $0x88] sm:$0xff]
        %v3101 = vld [vmem:[#allocation19 + $0x90] sm:$0xff]
        %v3102 = vld [vmem:[#allocation19 + $0x98] sm:$0xff]
        %v3103 = vld [vmem:[#allocation19 + $0xa0] sm:$0xff]
        %v3104 = vld [vmem:[#allocation19 + $0xa8] sm:$0xff]
        %v3105 = vld [vmem:[#allocation19 + $0xb0] sm:$0xff]
        %v3106 = vld [vmem:[#allocation19 + $0xb8] sm:$0xff]
        %v3107 = vld [vmem:[#allocation19 + $0xc0] sm:$0xff]
        %v3108 = vld [vmem:[#allocation19 + $0xc8] sm:$0xff]
        %v3109 = vld [vmem:[#allocation19 + $0xd0] sm:$0xff]
        %v3110 = vld [vmem:[#allocation19 + $0xd8] sm:$0xff]
        %v3111 = vld [vmem:[#allocation19 + $0xe0] sm:$0xff]
        %v3112 = vld [vmem:[#allocation19 + $0xe8] sm:$0xff]
        %v3113 = vld [vmem:[#allocation19 + $0xf0] sm:$0xff]
        %v3114 = vld [vmem:[#allocation19 + $0xf8] sm:$0xff]
        %v3115 = vld [vmem:[#allocation19 + $0x100] sm:$0xff]
        %v3116 = vld [vmem:[#allocation19 + $0x108] sm:$0xff]
        %v3117 = vld [vmem:[#allocation19 + $0x110] sm:$0xff]
        %v3118 = vld [vmem:[#allocation19 + $0x118] sm:$0xff]
        %v3119 = vld [vmem:[#allocation19 + $0x120] sm:$0xff]
        %v3120 = vld [vmem:[#allocation19 + $0x128] sm:$0xff]
        %v3121 = vld [vmem:[#allocation19 + $0x130] sm:$0xff]
        %v3122 = vld [vmem:[#allocation19 + $0x138] sm:$0xff]
        %v3123 = vld [vmem:[#allocation19 + $0x140] sm:$0xff]
        %v3124 = vld [vmem:[#allocation19 + $0x148] sm:$0xff]
        %v3125 = vld [vmem:[#allocation19 + $0x150] sm:$0xff]
        %v3126 = vld [vmem:[#allocation19 + $0x158] sm:$0xff]
        %v3127 = vld [vmem:[#allocation19 + $0x160] sm:$0xff]
        %v3128 = vld [vmem:[#allocation19 + $0x168] sm:$0xff]
        %v3129 = vld [vmem:[#allocation19 + $0x170] sm:$0xff]
        %v3130 = vld [vmem:[#allocation19 + $0x178] sm:$0xff]
        %v3131 = vld [vmem:[#allocation19 + $0x180] sm:$0xff]
        %v3132 = vld [vmem:[#allocation19 + $0x188] sm:$0xff]
        %v3133 = vld [vmem:[#allocation19 + $0x190] sm:$0xff]
        %v3134 = vld [vmem:[#allocation19 + $0x198] sm:$0xff]
        %v3135 = vld [vmem:[#allocation19 + $0x1a0] sm:$0xff]
        %v3136 = vld [vmem:[#allocation19 + $0x1a8] sm:$0xff]
        %v3137 = vld [vmem:[#allocation19 + $0x1b0] sm:$0xff]
        %v3138 = vld [vmem:[#allocation19 + $0x1b8] sm:$0xff]
        %v3139 = vld [vmem:[#allocation19 + $0x1c0] sm:$0xff]
        %v3140 = vld [vmem:[#allocation19 + $0x1c8] sm:$0xff]
        %v3141 = vld [vmem:[#allocation19 + $0x1d0] sm:$0xff]
        %v3142 = vld [vmem:[#allocation19 + $0x1d8] sm:$0xff]
        %v3143 = vld [vmem:[#allocation19 + $0x1e0] sm:$0xff]
        %v3144 = vld [vmem:[#allocation19 + $0x1e8] sm:$0xff]
        %v3145 = vld [vmem:[#allocation19 + $0x1f0] sm:$0xff]
        %v3146 = vld [vmem:[#allocation19 + $0x1f8] sm:$0xff]
        %v3147 = vld [vmem:[#allocation19 + $0x200] sm:$0xff]
        %v3148 = vld [vmem:[#allocation19 + $0x208] sm:$0xff]
        %v3149 = vld [vmem:[#allocation19 + $0x210] sm:$0xff]
        %v3150 = vld [vmem:[#allocation19 + $0x218] sm:$0xff]
        %v3151 = vld [vmem:[#allocation19 + $0x220] sm:$0xff]
        %v3152 = vld [vmem:[#allocation19 + $0x228] sm:$0xff]
        %v3153 = vld [vmem:[#allocation19 + $0x230] sm:$0xff]
        %v3154 = vld [vmem:[#allocation19 + $0x238] sm:$0xff]
        %v3155 = vld [vmem:[#allocation19 + $0x240] sm:$0xff]
        %v3156 = vld [vmem:[#allocation19 + $0x248] sm:$0xff]
        %v3157 = vld [vmem:[#allocation19 + $0x250] sm:$0xff]
        %v3158 = vld [vmem:[#allocation19 + $0x258] sm:$0xff]
        %v3159 = vld [vmem:[#allocation19 + $0x260] sm:$0xff]
        %v3160 = vld [vmem:[#allocation19 + $0x268] sm:$0xff]
        %v3161 = vld [vmem:[#allocation19 + $0x270] sm:$0xff]
        %v3162 = vld [vmem:[#allocation19 + $0x278] sm:$0xff]
        %v3163 = vld [vmem:[#allocation19 + $0x280] sm:$0xff]
        %v3164 = vld [vmem:[#allocation19 + $0x288] sm:$0xff]
        %v3165 = vld [vmem:[#allocation19 + $0x290] sm:$0xff]
        %v3166 = vld [vmem:[#allocation19 + $0x298] sm:$0xff]
        %v3167 = vld [vmem:[#allocation19 + $0x2a0] sm:$0xff]
        %v3168 = vld [vmem:[#allocation19 + $0x2a8] sm:$0xff]
        %v3169 = vld [vmem:[#allocation19 + $0x2b0] sm:$0xff]
        %v3170 = vld [vmem:[#allocation19 + $0x2b8] sm:$0xff]
        %v3171 = vld [vmem:[#allocation19 + $0x2c0] sm:$0xff]
        %v3172 = vld [vmem:[#allocation19 + $0x2c8] sm:$0xff]
        %v3173 = vld [vmem:[#allocation19 + $0x2d0] sm:$0xff]
        %v3174 = vld [vmem:[#allocation19 + $0x2d8] sm:$0xff]
        %v3175 = vld [vmem:[#allocation19 + $0x2e0] sm:$0xff]
        %v3176 = vld [vmem:[#allocation19 + $0x2e8] sm:$0xff]
        %v3177 = vld [vmem:[#allocation19 + $0x2f0] sm:$0xff]
        %v3178 = vld [vmem:[#allocation19 + $0x2f8] sm:$0xff]
        %v3179 = vld [vmem:[#allocation19 + $0x300] sm:$0xff]
        %v3180 = vld [vmem:[#allocation19 + $0x308] sm:$0xff]
        %v3181 = vld [vmem:[#allocation19 + $0x310] sm:$0xff]
        %v3182 = vld [vmem:[#allocation19 + $0x318] sm:$0xff]
        %v3183 = vld [vmem:[#allocation19 + $0x320] sm:$0xff]
        %v3184 = vld [vmem:[#allocation19 + $0x328] sm:$0xff]
        %v3185 = vld [vmem:[#allocation19 + $0x330] sm:$0xff]
        %v3186 = vld [vmem:[#allocation19 + $0x338] sm:$0xff]
        %v3187 = vld [vmem:[#allocation19 + $0x340] sm:$0xff]
        %v3188 = vld [vmem:[#allocation19 + $0x348] sm:$0xff]
        %v3189 = vld [vmem:[#allocation19 + $0x350] sm:$0xff]
        %v3190 = vld [vmem:[#allocation19 + $0x358] sm:$0xff]
        %v3191 = vld [vmem:[#allocation19 + $0x360] sm:$0xff]
        %v3192 = vld [vmem:[#allocation19 + $0x368] sm:$0xff]
        %v3193 = vld [vmem:[#allocation19 + $0x370] sm:$0xff]
        %v3194 = vld [vmem:[#allocation19 + $0x378] sm:$0xff]
        %v3195 = vld [vmem:[#allocation19 + $0x380] sm:$0xff]
        %v3196 = vld [vmem:[#allocation19 + $0x388] sm:$0xff]
        %v3197 = vld [vmem:[#allocation19 + $0x390] sm:$0xff]
        %v3198 = vld [vmem:[#allocation19 + $0x398] sm:$0xff]
        %v3199 = vld [vmem:[#allocation19 + $0x3a0] sm:$0xff]
        %v3200 = vld [vmem:[#allocation19 + $0x3a8] sm:$0xff]
        %v3201 = vld [vmem:[#allocation19 + $0x3b0] sm:$0xff]
        %v3202 = vld [vmem:[#allocation19 + $0x3b8] sm:$0xff]
        %v3203 = vld [vmem:[#allocation19 + $0x3c0] sm:$0xff]
        %v3204 = vld [vmem:[#allocation19 + $0x3c8] sm:$0xff]
        %v3205 = vld [vmem:[#allocation19 + $0x3d0] sm:$0xff]
        %v3206 = vld [vmem:[#allocation19 + $0x3d8] sm:$0xff]
        %v3207 = vld [vmem:[#allocation19 + $0x3e0] sm:$0xff]
        %v3208 = vld [vmem:[#allocation19 + $0x3e8] sm:$0xff]
        %v3209 = vld [vmem:[#allocation19 + $0x3f0] sm:$0xff]
        %v3210 = vld [vmem:[#allocation19 + $0x3f8] sm:$0xff]
        %v3211 = vld [vmem:[#allocation19 + $0x400] sm:$0xff]
        %v3212 = vld [vmem:[#allocation19 + $0x408] sm:$0xff]
        %v3213 = vld [vmem:[#allocation19 + $0x410] sm:$0xff]
        %v3214 = vld [vmem:[#allocation19 + $0x418] sm:$0xff]
        %v3215 = vld [vmem:[#allocation19 + $0x420] sm:$0xff]
        %v3216 = vld [vmem:[#allocation19 + $0x428] sm:$0xff]
        %v3217 = vld [vmem:[#allocation19 + $0x430] sm:$0xff]
        %v3218 = vld [vmem:[#allocation19 + $0x438] sm:$0xff]
        %v3219 = vld [vmem:[#allocation19 + $0x440] sm:$0xff]
        %v3220 = vld [vmem:[#allocation19 + $0x448] sm:$0xff]
        %v3221 = vld [vmem:[#allocation19 + $0x450] sm:$0xff]
        %v3222 = vld [vmem:[#allocation19 + $0x458] sm:$0xff]
        %v3223 = vld [vmem:[#allocation19 + $0x460] sm:$0xff]
        %v3224 = vld [vmem:[#allocation19 + $0x468] sm:$0xff]
        %v3225 = vld [vmem:[#allocation19 + $0x470] sm:$0xff]
        %v3226 = vld [vmem:[#allocation19 + $0x478] sm:$0xff]
        %v3227 = vld [vmem:[#allocation19 + $0x480] sm:$0xff]
        %v3228 = vld [vmem:[#allocation19 + $0x488] sm:$0xff]
        %v3229 = vld [vmem:[#allocation19 + $0x490] sm:$0xff]
        %v3230 = vld [vmem:[#allocation19 + $0x498] sm:$0xff]
        %v3231 = vld [vmem:[#allocation19 + $0x4a0] sm:$0xff]
        %v3232 = vld [vmem:[#allocation19 + $0x4a8] sm:$0xff]
        %v3233 = vld [vmem:[#allocation19 + $0x4b0] sm:$0xff]
        %v3234 = vld [vmem:[#allocation19 + $0x4b8] sm:$0xff]
        %v3235 = vld [vmem:[#allocation19 + $0x4c0] sm:$0xff]
        %v3236 = vld [vmem:[#allocation19 + $0x4c8] sm:$0xff]
        %v3237 = vld [vmem:[#allocation19 + $0x4d0] sm:$0xff]
        %v3238 = vld [vmem:[#allocation19 + $0x4d8] sm:$0xff]
        %v3239 = vld [vmem:[#allocation19 + $0x4e0] sm:$0xff]
        %v3240 = vld [vmem:[#allocation19 + $0x4e8] sm:$0xff]
        %v3241 = vld [vmem:[#allocation19 + $0x4f0] sm:$0xff]
        %v3242 = vld [vmem:[#allocation19 + $0x4f8] sm:$0xff]
        %v3243 = vld [vmem:[#allocation19 + $0x500] sm:$0xff]
        %v3244 = vld [vmem:[#allocation19 + $0x508] sm:$0xff]
        %v3245 = vld [vmem:[#allocation19 + $0x510] sm:$0xff]
        %v3246 = vld [vmem:[#allocation19 + $0x518] sm:$0xff]
        %v3247 = vld [vmem:[#allocation19 + $0x520] sm:$0xff]
        %v3248 = vld [vmem:[#allocation19 + $0x528] sm:$0xff]
        %v3249 = vld [vmem:[#allocation19 + $0x530] sm:$0xff]
        %v3250 = vld [vmem:[#allocation19 + $0x538] sm:$0xff]
        %v3251 = vld [vmem:[#allocation19 + $0x540] sm:$0xff]
        %v3252 = vld [vmem:[#allocation19 + $0x548] sm:$0xff]
        %v3253 = vld [vmem:[#allocation19 + $0x550] sm:$0xff]
        %v3254 = vld [vmem:[#allocation19 + $0x558] sm:$0xff]
        %v3255 = vld [vmem:[#allocation19 + $0x560] sm:$0xff]
        %v3256 = vld [vmem:[#allocation19 + $0x568] sm:$0xff]
        %v3257 = vld [vmem:[#allocation19 + $0x570] sm:$0xff]
        %v3258 = vld [vmem:[#allocation19 + $0x578] sm:$0xff]
        %v3259 = vld [vmem:[#allocation19 + $0x580] sm:$0xff]
        %v3260 = vld [vmem:[#allocation19 + $0x588] sm:$0xff]
        %v3261 = vld [vmem:[#allocation19 + $0x590] sm:$0xff]
        %v3262 = vld [vmem:[#allocation19 + $0x598] sm:$0xff]
        %v3263 = vld [vmem:[#allocation19 + $0x5a0] sm:$0xff]
        %v3264 = vld [vmem:[#allocation19 + $0x5a8] sm:$0xff]
        %v3265 = vld [vmem:[#allocation19 + $0x5b0] sm:$0xff]
        %v3266 = vld [vmem:[#allocation19 + $0x5b8] sm:$0xff]
        %v3267 = vld [vmem:[#allocation19 + $0x5c0] sm:$0xff]
        %v3268 = vld [vmem:[#allocation19 + $0x5c8] sm:$0xff]
        %v3269 = vld [vmem:[#allocation19 + $0x5d0] sm:$0xff]
        %v3270 = vld [vmem:[#allocation19 + $0x5d8] sm:$0xff]
        %v3271 = vld [vmem:[#allocation19 + $0x5e0] sm:$0xff]
        %v3272 = vld [vmem:[#allocation19 + $0x5e8] sm:$0xff]
        %v3273 = vld [vmem:[#allocation19 + $0x5f0] sm:$0xff]
        %v3274 = vld [vmem:[#allocation19 + $0x5f8] sm:$0xff]
        %v3275 = vld [vmem:[#allocation19 + $0x600] sm:$0xff]
        %v3276 = vld [vmem:[#allocation19 + $0x608] sm:$0xff]
        %v3277 = vld [vmem:[#allocation19 + $0x610] sm:$0xff]
        %v3278 = vld [vmem:[#allocation19 + $0x618] sm:$0xff]
        %v3279 = vld [vmem:[#allocation19 + $0x620] sm:$0xff]
        %v3280 = vld [vmem:[#allocation19 + $0x628] sm:$0xff]
        %v3281 = vld [vmem:[#allocation19 + $0x630] sm:$0xff]
        %v3282 = vld [vmem:[#allocation19 + $0x638] sm:$0xff]
        %v3283 = vld [vmem:[#allocation19 + $0x640] sm:$0xff]
        %v3284 = vld [vmem:[#allocation19 + $0x648] sm:$0xff]
        %v3285 = vld [vmem:[#allocation19 + $0x650] sm:$0xff]
        %v3286 = vld [vmem:[#allocation19 + $0x658] sm:$0xff]
        %v3287 = vld [vmem:[#allocation19 + $0x660] sm:$0xff]
        %v3288 = vld [vmem:[#allocation19 + $0x668] sm:$0xff]
        %v3289 = vld [vmem:[#allocation19 + $0x670] sm:$0xff]
        %v3290 = vld [vmem:[#allocation19 + $0x678] sm:$0xff]
        %v3291 = vld [vmem:[#allocation19 + $0x680] sm:$0xff]
        %v3292 = vld [vmem:[#allocation19 + $0x688] sm:$0xff]
        %v3293 = vld [vmem:[#allocation19 + $0x690] sm:$0xff]
        %v3294 = vld [vmem:[#allocation19 + $0x698] sm:$0xff]
        %v3295 = vld [vmem:[#allocation19 + $0x6a0] sm:$0xff]
        %v3296 = vld [vmem:[#allocation19 + $0x6a8] sm:$0xff]
        %v3297 = vld [vmem:[#allocation19 + $0x6b0] sm:$0xff]
        %v3298 = vld [vmem:[#allocation19 + $0x6b8] sm:$0xff]
        %v3299 = vld [vmem:[#allocation19 + $0x6c0] sm:$0xff]
        %v3300 = vld [vmem:[#allocation19 + $0x6c8] sm:$0xff]
        %v3301 = vld [vmem:[#allocation19 + $0x6d0] sm:$0xff]
        %v3302 = vld [vmem:[#allocation19 + $0x6d8] sm:$0xff]
        %v3303 = vld [vmem:[#allocation19 + $0x6e0] sm:$0xff]
        %v3304 = vld [vmem:[#allocation19 + $0x6e8] sm:$0xff]
        %v3305 = vld [vmem:[#allocation19 + $0x6f0] sm:$0xff]
        %v3306 = vld [vmem:[#allocation19 + $0x6f8] sm:$0xff]
        %v3307 = vld [vmem:[#allocation19 + $0x700] sm:$0xff]
        %v3308 = vld [vmem:[#allocation19 + $0x708] sm:$0xff]
        %v3309 = vld [vmem:[#allocation19 + $0x710] sm:$0xff]
        %v3310 = vld [vmem:[#allocation19 + $0x718] sm:$0xff]
        %v3311 = vld [vmem:[#allocation19 + $0x720] sm:$0xff]
        %v3312 = vld [vmem:[#allocation19 + $0x728] sm:$0xff]
        %v3313 = vld [vmem:[#allocation19 + $0x730] sm:$0xff]
        %v3314 = vld [vmem:[#allocation19 + $0x738] sm:$0xff]
        %v3315 = vld [vmem:[#allocation19 + $0x740] sm:$0xff]
        %v3316 = vld [vmem:[#allocation19 + $0x748] sm:$0xff]
        %v3317 = vld [vmem:[#allocation19 + $0x750] sm:$0xff]
        %v3318 = vld [vmem:[#allocation19 + $0x758] sm:$0xff]
        %v3319 = vld [vmem:[#allocation19 + $0x760] sm:$0xff]
        %v3320 = vld [vmem:[#allocation19 + $0x768] sm:$0xff]
        %v3321 = vld [vmem:[#allocation19 + $0x770] sm:$0xff]
        %v3322 = vld [vmem:[#allocation19 + $0x778] sm:$0xff]
        %v3323 = vld [vmem:[#allocation19 + $0x780] sm:$0xff]
        %v3324 = vld [vmem:[#allocation19 + $0x788] sm:$0xff]
        %v3325 = vld [vmem:[#allocation19 + $0x790] sm:$0xff]
        %v3326 = vld [vmem:[#allocation19 + $0x798] sm:$0xff]
        %v3327 = vld [vmem:[#allocation19 + $0x7a0] sm:$0xff]
        %v3328 = vld [vmem:[#allocation19 + $0x7a8] sm:$0xff]
        %v3329 = vld [vmem:[#allocation19 + $0x7b0] sm:$0xff]
        %v3330 = vld [vmem:[#allocation19 + $0x7b8] sm:$0xff]
        %v3331 = vld [vmem:[#allocation19 + $0x7c0] sm:$0xff]
        %v3332 = vld [vmem:[#allocation19 + $0x7c8] sm:$0xff]
        %v3333 = vld [vmem:[#allocation19 + $0x7d0] sm:$0xff]
        %v3334 = vld [vmem:[#allocation19 + $0x7d8] sm:$0xff]
        %v3335 = vld [vmem:[#allocation19 + $0x7e0] sm:$0xff]
        %v3336 = vld [vmem:[#allocation19 + $0x7e8] sm:$0xff]
        %v3337 = vld [vmem:[#allocation19 + $0x7f0] sm:$0xff]
        %v3338 = vld [vmem:[#allocation19 + $0x7f8] sm:$0xff]
        %v3339 = vld [vmem:[%s29] sm:$0x1]
        %v3342 = vlaneseq
        %v3343 = vshrl.u32 %v3342, 7
        %v3344 = vsub.s32 0, %v3343
        %v3345 = vrot.slane %v3081, %v3344
        %v3346 = vlaneseq
        %v3347 = vshrl.u32 %v3346, 7
        %v3348 = vsub.s32 1, %v3347
        %v3349 = vrot.slane %v3081, %v3348
        %v3350 = vlaneseq
        %v3351 = vshrl.u32 %v3350, 7
        %v3352 = vsub.s32 2, %v3351
        %v3353 = vrot.slane %v3081, %v3352
        %v3354 = vlaneseq
        %v3355 = vshrl.u32 %v3354, 7
        %v3356 = vsub.s32 3, %v3355
        %v3357 = vrot.slane %v3081, %v3356
        %v3358 = vlaneseq
        %v3359 = vshrl.u32 %v3358, 7
        %v3360 = vsub.s32 4, %v3359
        %v3361 = vrot.slane %v3081, %v3360
        %v3362 = vlaneseq
        %v3363 = vshrl.u32 %v3362, 7
        %v3364 = vsub.s32 5, %v3363
        %v3365 = vrot.slane %v3081, %v3364
        %v3366 = vlaneseq
        %v3367 = vshrl.u32 %v3366, 7
        %v3368 = vsub.s32 6, %v3367
        %v3369 = vrot.slane %v3081, %v3368
        %v3370 = vlaneseq
        %v3371 = vshrl.u32 %v3370, 7
        %v3372 = vsub.s32 7, %v3371
        %v3373 = vrot.slane %v3081, %v3372
        %v3374 = vlaneseq
        %v3375 = vshrl.u32 %v3374, 7
        %v3376 = vsub.s32 0, %v3375
        %v3377 = vrot.slane %v3082, %v3376
        %v3378 = vlaneseq
        %v3379 = vshrl.u32 %v3378, 7
        %v3380 = vsub.s32 1, %v3379
        %v3381 = vrot.slane %v3082, %v3380
        %v3382 = vlaneseq
        %v3383 = vshrl.u32 %v3382, 7
        %v3384 = vsub.s32 2, %v3383
        %v3385 = vrot.slane %v3082, %v3384
        %v3386 = vlaneseq
        %v3387 = vshrl.u32 %v3386, 7
        %v3388 = vsub.s32 3, %v3387
        %v3389 = vrot.slane %v3082, %v3388
        %v3390 = vlaneseq
        %v3391 = vshrl.u32 %v3390, 7
        %v3392 = vsub.s32 4, %v3391
        %v3393 = vrot.slane %v3082, %v3392
        %v3394 = vlaneseq
        %v3395 = vshrl.u32 %v3394, 7
        %v3396 = vsub.s32 5, %v3395
        %v3397 = vrot.slane %v3082, %v3396
        %v3398 = vlaneseq
        %v3399 = vshrl.u32 %v3398, 7
        %v3400 = vsub.s32 6, %v3399
        %v3401 = vrot.slane %v3082, %v3400
        %v3402 = vlaneseq
        %v3403 = vshrl.u32 %v3402, 7
        %v3404 = vsub.s32 7, %v3403
        %v3405 = vrot.slane %v3082, %v3404
        %3422 = vmatprep.subr.mxu0 0.0
        %3423 = vmatpush1.xpose.msra.mxu0 %v2840
        %3424 = vmatprep.subr.mxu0 0.0
        %3425 = vmatpush1.xpose.msra.mxu0 %v2839
        %3426 = vmatprep.subr.mxu0 0.0
        %3427 = vmatpush1.xpose.msra.mxu0 %v2838
        %3428 = vmatprep.subr.mxu0 0.0
        %3429 = vmatpush1.xpose.msra.mxu0 %v2837
        %3430 = vmatprep.subr.mxu0 0.0
        %3431 = vmatpush1.xpose.msra.mxu0 %v2836
        %3432 = vmatprep.subr.mxu0 0.0
        %3433 = vmatpush1.xpose.msra.mxu0 %v2835
        %3434 = vmatprep.subr.mxu0 0.0
        %3435 = vmatpush1.xpose.msra.mxu0 %v2834
        %3436 = vmatprep.subr.mxu0 0.0
        %3437 = vmatpush1.xpose.msra.mxu0 %v2833
        %3438 = vmatprep.subr.mxu0 0.0
        %3439 = vmatpush1.xpose.msra.mxu0 %v2832
        %3440 = vmatprep.subr.mxu0 0.0
        %3441 = vmatpush1.xpose.msra.mxu0 %v2831
        %3442 = vmatprep.subr.mxu0 0.0
        %3443 = vmatpush1.xpose.msra.mxu0 %v2830
        %3444 = vmatprep.subr.mxu0 0.0
        %3445 = vmatpush1.xpose.msra.mxu0 %v2829
        %3446 = vmatprep.subr.mxu0 0.0
        %3447 = vmatpush1.xpose.msra.mxu0 %v2828
        %3448 = vmatprep.subr.mxu0 0.0
        %3449 = vmatpush1.xpose.msra.mxu0 %v2827
        %3450 = vmatprep.subr.mxu0 0.0
        %3451 = vmatpush1.xpose.msra.mxu0 %v2826
        %3452 = vmatprep.subr.mxu0 0.0
        %3453 = vmatpush1.xpose.msra.mxu0 %v2825
        %3454 = vmatprep.subr.mxu0 0.0
        %3455 = vmatpush2.xpose.msra.mxu0 %v2856
        %3456 = vmatprep.subr.mxu0 0.0
        %3457 = vmatpush2.xpose.msra.mxu0 %v2855
        %3458 = vmatprep.subr.mxu0 0.0
        %3459 = vmatpush2.xpose.msra.mxu0 %v2854
        %3460 = vmatprep.subr.mxu0 0.0
        %3461 = vmatpush2.xpose.msra.mxu0 %v2853
        %3462 = vmatprep.subr.mxu0 0.0
        %3463 = vmatpush2.xpose.msra.mxu0 %v2852
        %3464 = vmatprep.subr.mxu0 0.0
        %3465 = vmatpush2.xpose.msra.mxu0 %v2851
        %3466 = vmatprep.subr.mxu0 0.0
        %3467 = vmatpush2.xpose.msra.mxu0 %v2850
        %3468 = vmatprep.subr.mxu0 0.0
        %3469 = vmatpush2.xpose.msra.mxu0 %v2849
        %3470 = vmatprep.subr.mxu0 0.0
        %3471 = vmatpush2.xpose.msra.mxu0 %v2848
        %3472 = vmatprep.subr.mxu0 0.0
        %3473 = vmatpush2.xpose.msra.mxu0 %v2847
        %3474 = vmatprep.subr.mxu0 0.0
        %3475 = vmatpush2.xpose.msra.mxu0 %v2846
        %3476 = vmatprep.subr.mxu0 0.0
        %3477 = vmatpush2.xpose.msra.mxu0 %v2845
        %3478 = vmatprep.subr.mxu0 0.0
        %3479 = vmatpush2.xpose.msra.mxu0 %v2844
        %3480 = vmatprep.subr.mxu0 0.0
        %3481 = vmatpush2.xpose.msra.mxu0 %v2843
        %3482 = vmatprep.subr.mxu0 0.0
        %3483 = vmatpush2.xpose.msra.mxu0 %v2842
        %3484 = vmatprep.subr.mxu0 0.0
        %3485 = vmatpush2.xpose.msra.mxu0 %v2841
        %3486 = vmatprep.mubr.f32.mxu0 0.0
        %3487 = vmatmul.mubr.f32.gmra.mxu0 %v2823
        %v3488 = vpop.f32.mrf.mxu0
        %v3489 = vadd.f32 %v3345, %v3488
        %v3490 = vpop.f32.mrf.mxu0
        %v3491 = vadd.f32 %v3349, %v3490
        %3492 = vmatprep.mubr.f32.mxu0 0.0
        %3493 = vmatmul.mubr.f32.gmra.mxu0 %v2824
        %v3494 = vpop.f32.mrf.mxu0
        %v3495 = vadd.f32 %v3345, %v3494
        %v3496 = vpop.f32.mrf.mxu0
        %v3497 = vadd.f32 %v3349, %v3496
        %3498 = vdwg.mxu0
        %3499 = vmatprep.subr.mxu0 0.0
        %3500 = vmatpush1.xpose.msra.mxu0 %v2872
        %3501 = vmatprep.subr.mxu0 0.0
        %3502 = vmatpush1.xpose.msra.mxu0 %v2871
        %3503 = vmatprep.subr.mxu0 0.0
        %3504 = vmatpush1.xpose.msra.mxu0 %v2870
        %3505 = vmatprep.subr.mxu0 0.0
        %3506 = vmatpush1.xpose.msra.mxu0 %v2869
        %3507 = vmatprep.subr.mxu0 0.0
        %3508 = vmatpush1.xpose.msra.mxu0 %v2868
        %3509 = vmatprep.subr.mxu0 0.0
        %3510 = vmatpush1.xpose.msra.mxu0 %v2867
        %3511 = vmatprep.subr.mxu0 0.0
        %3512 = vmatpush1.xpose.msra.mxu0 %v2866
        %3513 = vmatprep.subr.mxu0 0.0
        %3514 = vmatpush1.xpose.msra.mxu0 %v2865
        %3515 = vmatprep.subr.mxu0 0.0
        %3516 = vmatpush1.xpose.msra.mxu0 %v2864
        %3517 = vmatprep.subr.mxu0 0.0
        %3518 = vmatpush1.xpose.msra.mxu0 %v2863
        %3519 = vmatprep.subr.mxu0 0.0
        %3520 = vmatpush1.xpose.msra.mxu0 %v2862
        %3521 = vmatprep.subr.mxu0 0.0
        %3522 = vmatpush1.xpose.msra.mxu0 %v2861
        %3523 = vmatprep.subr.mxu0 0.0
        %3524 = vmatpush1.xpose.msra.mxu0 %v2860
        %3525 = vmatprep.subr.mxu0 0.0
        %3526 = vmatpush1.xpose.msra.mxu0 %v2859
        %3527 = vmatprep.subr.mxu0 0.0
        %3528 = vmatpush1.xpose.msra.mxu0 %v2858
        %3529 = vmatprep.subr.mxu0 0.0
        %3530 = vmatpush1.xpose.msra.mxu0 %v2857
        %3531 = vmatprep.subr.mxu0 0.0
        %3532 = vmatpush2.xpose.msra.mxu0 %v2888
        %3533 = vmatprep.subr.mxu0 0.0
        %3534 = vmatpush2.xpose.msra.mxu0 %v2887
        %3535 = vmatprep.subr.mxu0 0.0
        %3536 = vmatpush2.xpose.msra.mxu0 %v2886
        %3537 = vmatprep.subr.mxu0 0.0
        %3538 = vmatpush2.xpose.msra.mxu0 %v2885
        %3539 = vmatprep.subr.mxu0 0.0
        %3540 = vmatpush2.xpose.msra.mxu0 %v2884
        %3541 = vmatprep.subr.mxu0 0.0
        %3542 = vmatpush2.xpose.msra.mxu0 %v2883
        %3543 = vmatprep.subr.mxu0 0.0
        %3544 = vmatpush2.xpose.msra.mxu0 %v2882
        %3545 = vmatprep.subr.mxu0 0.0
        %3546 = vmatpush2.xpose.msra.mxu0 %v2881
        %3547 = vmatprep.subr.mxu0 0.0
        %3548 = vmatpush2.xpose.msra.mxu0 %v2880
        %3549 = vmatprep.subr.mxu0 0.0
        %3550 = vmatpush2.xpose.msra.mxu0 %v2879
        %3551 = vmatprep.subr.mxu0 0.0
        %3552 = vmatpush2.xpose.msra.mxu0 %v2878
        %3553 = vmatprep.subr.mxu0 0.0
        %3554 = vmatpush2.xpose.msra.mxu0 %v2877
        %3555 = vmatprep.subr.mxu0 0.0
        %3556 = vmatpush2.xpose.msra.mxu0 %v2876
        %3557 = vmatprep.subr.mxu0 0.0
        %3558 = vmatpush2.xpose.msra.mxu0 %v2875
        %3559 = vmatprep.subr.mxu0 0.0
        %3560 = vmatpush2.xpose.msra.mxu0 %v2874
        %3561 = vmatprep.subr.mxu0 0.0
        %3562 = vmatpush2.xpose.msra.mxu0 %v2873
        %3563 = vmatprep.mubr.f32.mxu0 0.0
        %3564 = vmatmul.mubr.f32.gmra.mxu0 %v2823
        %v3565 = vpop.f32.mrf.mxu0
        %v3566 = vadd.f32 %v3353, %v3565
        %v3567 = vpop.f32.mrf.mxu0
        %v3568 = vadd.f32 %v3357, %v3567
        %3569 = vmatprep.mubr.f32.mxu0 0.0
        %3570 = vmatmul.mubr.f32.gmra.mxu0 %v2824
        %v3571 = vpop.f32.mrf.mxu0
        %v3572 = vadd.f32 %v3353, %v3571
        %v3573 = vpop.f32.mrf.mxu0
        %v3574 = vadd.f32 %v3357, %v3573
        %3575 = vdwg.mxu0
        %3576 = vmatprep.subr.mxu0 0.0
        %3577 = vmatpush1.xpose.msra.mxu0 %v2904
        %3578 = vmatprep.subr.mxu0 0.0
        %3579 = vmatpush1.xpose.msra.mxu0 %v2903
        %3580 = vmatprep.subr.mxu0 0.0
        %3581 = vmatpush1.xpose.msra.mxu0 %v2902
        %3582 = vmatprep.subr.mxu0 0.0
        %3583 = vmatpush1.xpose.msra.mxu0 %v2901
        %3584 = vmatprep.subr.mxu0 0.0
        %3585 = vmatpush1.xpose.msra.mxu0 %v2900
        %3586 = vmatprep.subr.mxu0 0.0
        %3587 = vmatpush1.xpose.msra.mxu0 %v2899
        %3588 = vmatprep.subr.mxu0 0.0
        %3589 = vmatpush1.xpose.msra.mxu0 %v2898
        %3590 = vmatprep.subr.mxu0 0.0
        %3591 = vmatpush1.xpose.msra.mxu0 %v2897
        %3592 = vmatprep.subr.mxu0 0.0
        %3593 = vmatpush1.xpose.msra.mxu0 %v2896
        %3594 = vmatprep.subr.mxu0 0.0
        %3595 = vmatpush1.xpose.msra.mxu0 %v2895
        %3596 = vmatprep.subr.mxu0 0.0
        %3597 = vmatpush1.xpose.msra.mxu0 %v2894
        %3598 = vmatprep.subr.mxu0 0.0
        %3599 = vmatpush1.xpose.msra.mxu0 %v2893
        %3600 = vmatprep.subr.mxu0 0.0
        %3601 = vmatpush1.xpose.msra.mxu0 %v2892
        %3602 = vmatprep.subr.mxu0 0.0
        %3603 = vmatpush1.xpose.msra.mxu0 %v2891
        %3604 = vmatprep.subr.mxu0 0.0
        %3605 = vmatpush1.xpose.msra.mxu0 %v2890
        %3606 = vmatprep.subr.mxu0 0.0
        %3607 = vmatpush1.xpose.msra.mxu0 %v2889
        %3608 = vmatprep.subr.mxu0 0.0
        %3609 = vmatpush2.xpose.msra.mxu0 %v2920
        %3610 = vmatprep.subr.mxu0 0.0
        %3611 = vmatpush2.xpose.msra.mxu0 %v2919
        %3612 = vmatprep.subr.mxu0 0.0
        %3613 = vmatpush2.xpose.msra.mxu0 %v2918
        %3614 = vmatprep.subr.mxu0 0.0
        %3615 = vmatpush2.xpose.msra.mxu0 %v2917
        %3616 = vmatprep.subr.mxu0 0.0
        %3617 = vmatpush2.xpose.msra.mxu0 %v2916
        %3618 = vmatprep.subr.mxu0 0.0
        %3619 = vmatpush2.xpose.msra.mxu0 %v2915
        %3620 = vmatprep.subr.mxu0 0.0
        %3621 = vmatpush2.xpose.msra.mxu0 %v2914
        %3622 = vmatprep.subr.mxu0 0.0
        %3623 = vmatpush2.xpose.msra.mxu0 %v2913
        %3624 = vmatprep.subr.mxu0 0.0
        %3625 = vmatpush2.xpose.msra.mxu0 %v2912
        %3626 = vmatprep.subr.mxu0 0.0
        %3627 = vmatpush2.xpose.msra.mxu0 %v2911
        %3628 = vmatprep.subr.mxu0 0.0
        %3629 = vmatpush2.xpose.msra.mxu0 %v2910
        %3630 = vmatprep.subr.mxu0 0.0
        %3631 = vmatpush2.xpose.msra.mxu0 %v2909
        %3632 = vmatprep.subr.mxu0 0.0
        %3633 = vmatpush2.xpose.msra.mxu0 %v2908
        %3634 = vmatprep.subr.mxu0 0.0
        %3635 = vmatpush2.xpose.msra.mxu0 %v2907
        %3636 = vmatprep.subr.mxu0 0.0
        %3637 = vmatpush2.xpose.msra.mxu0 %v2906
        %3638 = vmatprep.subr.mxu0 0.0
        %3639 = vmatpush2.xpose.msra.mxu0 %v2905
        %3640 = vmatprep.mubr.f32.mxu0 0.0
        %3641 = vmatmul.mubr.f32.gmra.mxu0 %v2823
        %v3642 = vpop.f32.mrf.mxu0
        %v3643 = vadd.f32 %v3361, %v3642
        %v3644 = vpop.f32.mrf.mxu0
        %v3645 = vadd.f32 %v3365, %v3644
        %3646 = vmatprep.mubr.f32.mxu0 0.0
        %3647 = vmatmul.mubr.f32.gmra.mxu0 %v2824
        %v3648 = vpop.f32.mrf.mxu0
        %v3649 = vadd.f32 %v3361, %v3648
        %v3650 = vpop.f32.mrf.mxu0
        %v3651 = vadd.f32 %v3365, %v3650
        %3652 = vdwg.mxu0
        %3653 = vmatprep.subr.mxu0 0.0
        %3654 = vmatpush1.xpose.msra.mxu0 %v2936
        %3655 = vmatprep.subr.mxu0 0.0
        %3656 = vmatpush1.xpose.msra.mxu0 %v2935
        %3657 = vmatprep.subr.mxu0 0.0
        %3658 = vmatpush1.xpose.msra.mxu0 %v2934
        %3659 = vmatprep.subr.mxu0 0.0
        %3660 = vmatpush1.xpose.msra.mxu0 %v2933
        %3661 = vmatprep.subr.mxu0 0.0
        %3662 = vmatpush1.xpose.msra.mxu0 %v2932
        %3663 = vmatprep.subr.mxu0 0.0
        %3664 = vmatpush1.xpose.msra.mxu0 %v2931
        %3665 = vmatprep.subr.mxu0 0.0
        %3666 = vmatpush1.xpose.msra.mxu0 %v2930
        %3667 = vmatprep.subr.mxu0 0.0
        %3668 = vmatpush1.xpose.msra.mxu0 %v2929
        %3669 = vmatprep.subr.mxu0 0.0
        %3670 = vmatpush1.xpose.msra.mxu0 %v2928
        %3671 = vmatprep.subr.mxu0 0.0
        %3672 = vmatpush1.xpose.msra.mxu0 %v2927
        %3673 = vmatprep.subr.mxu0 0.0
        %3674 = vmatpush1.xpose.msra.mxu0 %v2926
        %3675 = vmatprep.subr.mxu0 0.0
        %3676 = vmatpush1.xpose.msra.mxu0 %v2925
        %3677 = vmatprep.subr.mxu0 0.0
        %3678 = vmatpush1.xpose.msra.mxu0 %v2924
        %3679 = vmatprep.subr.mxu0 0.0
        %3680 = vmatpush1.xpose.msra.mxu0 %v2923
        %3681 = vmatprep.subr.mxu0 0.0
        %3682 = vmatpush1.xpose.msra.mxu0 %v2922
        %3683 = vmatprep.subr.mxu0 0.0
        %3684 = vmatpush1.xpose.msra.mxu0 %v2921
        %3685 = vmatprep.subr.mxu0 0.0
        %3686 = vmatpush2.xpose.msra.mxu0 %v2952
        %3687 = vmatprep.subr.mxu0 0.0
        %3688 = vmatpush2.xpose.msra.mxu0 %v2951
        %3689 = vmatprep.subr.mxu0 0.0
        %3690 = vmatpush2.xpose.msra.mxu0 %v2950
        %3691 = vmatprep.subr.mxu0 0.0
        %3692 = vmatpush2.xpose.msra.mxu0 %v2949
        %3693 = vmatprep.subr.mxu0 0.0
        %3694 = vmatpush2.xpose.msra.mxu0 %v2948
        %3695 = vmatprep.subr.mxu0 0.0
        %3696 = vmatpush2.xpose.msra.mxu0 %v2947
        %3697 = vmatprep.subr.mxu0 0.0
        %3698 = vmatpush2.xpose.msra.mxu0 %v2946
        %3699 = vmatprep.subr.mxu0 0.0
        %3700 = vmatpush2.xpose.msra.mxu0 %v2945
        %3701 = vmatprep.subr.mxu0 0.0
        %3702 = vmatpush2.xpose.msra.mxu0 %v2944
        %3703 = vmatprep.subr.mxu0 0.0
        %3704 = vmatpush2.xpose.msra.mxu0 %v2943
        %3705 = vmatprep.subr.mxu0 0.0
        %3706 = vmatpush2.xpose.msra.mxu0 %v2942
        %3707 = vmatprep.subr.mxu0 0.0
        %3708 = vmatpush2.xpose.msra.mxu0 %v2941
        %3709 = vmatprep.subr.mxu0 0.0
        %3710 = vmatpush2.xpose.msra.mxu0 %v2940
        %3711 = vmatprep.subr.mxu0 0.0
        %3712 = vmatpush2.xpose.msra.mxu0 %v2939
        %3713 = vmatprep.subr.mxu0 0.0
        %3714 = vmatpush2.xpose.msra.mxu0 %v2938
        %3715 = vmatprep.subr.mxu0 0.0
        %3716 = vmatpush2.xpose.msra.mxu0 %v2937
        %3717 = vmatprep.mubr.f32.mxu0 0.0
        %3718 = vmatmul.mubr.f32.gmra.mxu0 %v2823
        %v3719 = vpop.f32.mrf.mxu0
        %v3720 = vadd.f32 %v3369, %v3719
        %v3721 = vpop.f32.mrf.mxu0
        %v3722 = vadd.f32 %v3373, %v3721
        %3723 = vmatprep.mubr.f32.mxu0 0.0
        %3724 = vmatmul.mubr.f32.gmra.mxu0 %v2824
        %v3725 = vpop.f32.mrf.mxu0
        %v3726 = vadd.f32 %v3369, %v3725
        %v3727 = vpop.f32.mrf.mxu0
        %v3728 = vadd.f32 %v3373, %v3727
        %3729 = vdwg.mxu0
        %3730 = vmatprep.subr.mxu0 0.0
        %3731 = vmatpush1.xpose.msra.mxu0 %v2968
        %3732 = vmatprep.subr.mxu0 0.0
        %3733 = vmatpush1.xpose.msra.mxu0 %v2967
        %3734 = vmatprep.subr.mxu0 0.0
        %3735 = vmatpush1.xpose.msra.mxu0 %v2966
        %3736 = vmatprep.subr.mxu0 0.0
        %3737 = vmatpush1.xpose.msra.mxu0 %v2965
        %3738 = vmatprep.subr.mxu0 0.0
        %3739 = vmatpush1.xpose.msra.mxu0 %v2964
        %3740 = vmatprep.subr.mxu0 0.0
        %3741 = vmatpush1.xpose.msra.mxu0 %v2963
        %3742 = vmatprep.subr.mxu0 0.0
        %3743 = vmatpush1.xpose.msra.mxu0 %v2962
        %3744 = vmatprep.subr.mxu0 0.0
        %3745 = vmatpush1.xpose.msra.mxu0 %v2961
        %3746 = vmatprep.subr.mxu0 0.0
        %3747 = vmatpush1.xpose.msra.mxu0 %v2960
        %3748 = vmatprep.subr.mxu0 0.0
        %3749 = vmatpush1.xpose.msra.mxu0 %v2959
        %3750 = vmatprep.subr.mxu0 0.0
        %3751 = vmatpush1.xpose.msra.mxu0 %v2958
        %3752 = vmatprep.subr.mxu0 0.0
        %3753 = vmatpush1.xpose.msra.mxu0 %v2957
        %3754 = vmatprep.subr.mxu0 0.0
        %3755 = vmatpush1.xpose.msra.mxu0 %v2956
        %3756 = vmatprep.subr.mxu0 0.0
        %3757 = vmatpush1.xpose.msra.mxu0 %v2955
        %3758 = vmatprep.subr.mxu0 0.0
        %3759 = vmatpush1.xpose.msra.mxu0 %v2954
        %3760 = vmatprep.subr.mxu0 0.0
        %3761 = vmatpush1.xpose.msra.mxu0 %v2953
        %3762 = vmatprep.subr.mxu0 0.0
        %3763 = vmatpush2.xpose.msra.mxu0 %v2984
        %3764 = vmatprep.subr.mxu0 0.0
        %3765 = vmatpush2.xpose.msra.mxu0 %v2983
        %3766 = vmatprep.subr.mxu0 0.0
        %3767 = vmatpush2.xpose.msra.mxu0 %v2982
        %3768 = vmatprep.subr.mxu0 0.0
        %3769 = vmatpush2.xpose.msra.mxu0 %v2981
        %3770 = vmatprep.subr.mxu0 0.0
        %3771 = vmatpush2.xpose.msra.mxu0 %v2980
        %3772 = vmatprep.subr.mxu0 0.0
        %3773 = vmatpush2.xpose.msra.mxu0 %v2979
        %3774 = vmatprep.subr.mxu0 0.0
        %3775 = vmatpush2.xpose.msra.mxu0 %v2978
        %3776 = vmatprep.subr.mxu0 0.0
        %3777 = vmatpush2.xpose.msra.mxu0 %v2977
        %3778 = vmatprep.subr.mxu0 0.0
        %3779 = vmatpush2.xpose.msra.mxu0 %v2976
        %3780 = vmatprep.subr.mxu0 0.0
        %3781 = vmatpush2.xpose.msra.mxu0 %v2975
        %3782 = vmatprep.subr.mxu0 0.0
        %3783 = vmatpush2.xpose.msra.mxu0 %v2974
        %3784 = vmatprep.subr.mxu0 0.0
        %3785 = vmatpush2.xpose.msra.mxu0 %v2973
        %3786 = vmatprep.subr.mxu0 0.0
        %3787 = vmatpush2.xpose.msra.mxu0 %v2972
        %3788 = vmatprep.subr.mxu0 0.0
        %3789 = vmatpush2.xpose.msra.mxu0 %v2971
        %3790 = vmatprep.subr.mxu0 0.0
        %3791 = vmatpush2.xpose.msra.mxu0 %v2970
        %3792 = vmatprep.subr.mxu0 0.0
        %3793 = vmatpush2.xpose.msra.mxu0 %v2969
        %3794 = vmatprep.mubr.f32.mxu0 0.0
        %3795 = vmatmul.mubr.f32.gmra.mxu0 %v2823
        %v3796 = vpop.f32.mrf.mxu0
        %v3797 = vadd.f32 %v3377, %v3796
        %v3798 = vpop.f32.mrf.mxu0
        %v3799 = vadd.f32 %v3381, %v3798
        %3800 = vmatprep.mubr.f32.mxu0 0.0
        %3801 = vmatmul.mubr.f32.gmra.mxu0 %v2824
        %v3802 = vpop.f32.mrf.mxu0
        %v3803 = vadd.f32 %v3377, %v3802
        %v3804 = vpop.f32.mrf.mxu0
        %v3805 = vadd.f32 %v3381, %v3804
        %3806 = vdwg.mxu0
        %3807 = vmatprep.subr.mxu0 0.0
        %3808 = vmatpush1.xpose.msra.mxu0 %v3000
        %3809 = vmatprep.subr.mxu0 0.0
        %3810 = vmatpush1.xpose.msra.mxu0 %v2999
        %3811 = vmatprep.subr.mxu0 0.0
        %3812 = vmatpush1.xpose.msra.mxu0 %v2998
        %3813 = vmatprep.subr.mxu0 0.0
        %3814 = vmatpush1.xpose.msra.mxu0 %v2997
        %3815 = vmatprep.subr.mxu0 0.0
        %3816 = vmatpush1.xpose.msra.mxu0 %v2996
        %3817 = vmatprep.subr.mxu0 0.0
        %3818 = vmatpush1.xpose.msra.mxu0 %v2995
        %3819 = vmatprep.subr.mxu0 0.0
        %3820 = vmatpush1.xpose.msra.mxu0 %v2994
        %3821 = vmatprep.subr.mxu0 0.0
        %3822 = vmatpush1.xpose.msra.mxu0 %v2993
        %3823 = vmatprep.subr.mxu0 0.0
        %3824 = vmatpush1.xpose.msra.mxu0 %v2992
        %3825 = vmatprep.subr.mxu0 0.0
        %3826 = vmatpush1.xpose.msra.mxu0 %v2991
        %3827 = vmatprep.subr.mxu0 0.0
        %3828 = vmatpush1.xpose.msra.mxu0 %v2990
        %3829 = vmatprep.subr.mxu0 0.0
        %3830 = vmatpush1.xpose.msra.mxu0 %v2989
        %3831 = vmatprep.subr.mxu0 0.0
        %3832 = vmatpush1.xpose.msra.mxu0 %v2988
        %3833 = vmatprep.subr.mxu0 0.0
        %3834 = vmatpush1.xpose.msra.mxu0 %v2987
        %3835 = vmatprep.subr.mxu0 0.0
        %3836 = vmatpush1.xpose.msra.mxu0 %v2986
        %3837 = vmatprep.subr.mxu0 0.0
        %3838 = vmatpush1.xpose.msra.mxu0 %v2985
        %3839 = vmatprep.subr.mxu0 0.0
        %3840 = vmatpush2.xpose.msra.mxu0 %v3016
        %3841 = vmatprep.subr.mxu0 0.0
        %3842 = vmatpush2.xpose.msra.mxu0 %v3015
        %3843 = vmatprep.subr.mxu0 0.0
        %3844 = vmatpush2.xpose.msra.mxu0 %v3014
        %3845 = vmatprep.subr.mxu0 0.0
        %3846 = vmatpush2.xpose.msra.mxu0 %v3013
        %3847 = vmatprep.subr.mxu0 0.0
        %3848 = vmatpush2.xpose.msra.mxu0 %v3012
        %3849 = vmatprep.subr.mxu0 0.0
        %3850 = vmatpush2.xpose.msra.mxu0 %v3011
        %3851 = vmatprep.subr.mxu0 0.0
        %3852 = vmatpush2.xpose.msra.mxu0 %v3010
        %3853 = vmatprep.subr.mxu0 0.0
        %3854 = vmatpush2.xpose.msra.mxu0 %v3009
        %3855 = vmatprep.subr.mxu0 0.0
        %3856 = vmatpush2.xpose.msra.mxu0 %v3008
        %3857 = vmatprep.subr.mxu0 0.0
        %3858 = vmatpush2.xpose.msra.mxu0 %v3007
        %3859 = vmatprep.subr.mxu0 0.0
        %3860 = vmatpush2.xpose.msra.mxu0 %v3006
        %3861 = vmatprep.subr.mxu0 0.0
        %3862 = vmatpush2.xpose.msra.mxu0 %v3005
        %3863 = vmatprep.subr.mxu0 0.0
        %3864 = vmatpush2.xpose.msra.mxu0 %v3004
        %3865 = vmatprep.subr.mxu0 0.0
        %3866 = vmatpush2.xpose.msra.mxu0 %v3003
        %3867 = vmatprep.subr.mxu0 0.0
        %3868 = vmatpush2.xpose.msra.mxu0 %v3002
        %3869 = vmatprep.subr.mxu0 0.0
        %3870 = vmatpush2.xpose.msra.mxu0 %v3001
        %3871 = vmatprep.mubr.f32.mxu0 0.0
        %3872 = vmatmul.mubr.f32.gmra.mxu0 %v2823
        %v3873 = vpop.f32.mrf.mxu0
        %v3874 = vadd.f32 %v3385, %v3873
        %v3875 = vpop.f32.mrf.mxu0
        %v3876 = vadd.f32 %v3389, %v3875
        %3877 = vmatprep.mubr.f32.mxu0 0.0
        %3878 = vmatmul.mubr.f32.gmra.mxu0 %v2824
        %v3879 = vpop.f32.mrf.mxu0
        %v3880 = vadd.f32 %v3385, %v3879
        %v3881 = vpop.f32.mrf.mxu0
        %v3882 = vadd.f32 %v3389, %v3881
        %3883 = vdwg.mxu0
        %3884 = vmatprep.subr.mxu0 0.0
        %3885 = vmatpush1.xpose.msra.mxu0 %v3032
        %3886 = vmatprep.subr.mxu0 0.0
        %3887 = vmatpush1.xpose.msra.mxu0 %v3031
        %3888 = vmatprep.subr.mxu0 0.0
        %3889 = vmatpush1.xpose.msra.mxu0 %v3030
        %3890 = vmatprep.subr.mxu0 0.0
        %3891 = vmatpush1.xpose.msra.mxu0 %v3029
        %3892 = vmatprep.subr.mxu0 0.0
        %3893 = vmatpush1.xpose.msra.mxu0 %v3028
        %3894 = vmatprep.subr.mxu0 0.0
        %3895 = vmatpush1.xpose.msra.mxu0 %v3027
        %3896 = vmatprep.subr.mxu0 0.0
        %3897 = vmatpush1.xpose.msra.mxu0 %v3026
        %3898 = vmatprep.subr.mxu0 0.0
        %3899 = vmatpush1.xpose.msra.mxu0 %v3025
        %3900 = vmatprep.subr.mxu0 0.0
        %3901 = vmatpush1.xpose.msra.mxu0 %v3024
        %3902 = vmatprep.subr.mxu0 0.0
        %3903 = vmatpush1.xpose.msra.mxu0 %v3023
        %3904 = vmatprep.subr.mxu0 0.0
        %3905 = vmatpush1.xpose.msra.mxu0 %v3022
        %3906 = vmatprep.subr.mxu0 0.0
        %3907 = vmatpush1.xpose.msra.mxu0 %v3021
        %3908 = vmatprep.subr.mxu0 0.0
        %3909 = vmatpush1.xpose.msra.mxu0 %v3020
        %3910 = vmatprep.subr.mxu0 0.0
        %3911 = vmatpush1.xpose.msra.mxu0 %v3019
        %3912 = vmatprep.subr.mxu0 0.0
        %3913 = vmatpush1.xpose.msra.mxu0 %v3018
        %3914 = vmatprep.subr.mxu0 0.0
        %3915 = vmatpush1.xpose.msra.mxu0 %v3017
        %3916 = vmatprep.subr.mxu0 0.0
        %3917 = vmatpush2.xpose.msra.mxu0 %v3048
        %3918 = vmatprep.subr.mxu0 0.0
        %3919 = vmatpush2.xpose.msra.mxu0 %v3047
        %3920 = vmatprep.subr.mxu0 0.0
        %3921 = vmatpush2.xpose.msra.mxu0 %v3046
        %3922 = vmatprep.subr.mxu0 0.0
        %3923 = vmatpush2.xpose.msra.mxu0 %v3045
        %3924 = vmatprep.subr.mxu0 0.0
        %3925 = vmatpush2.xpose.msra.mxu0 %v3044
        %3926 = vmatprep.subr.mxu0 0.0
        %3927 = vmatpush2.xpose.msra.mxu0 %v3043
        %3928 = vmatprep.subr.mxu0 0.0
        %3929 = vmatpush2.xpose.msra.mxu0 %v3042
        %3930 = vmatprep.subr.mxu0 0.0
        %3931 = vmatpush2.xpose.msra.mxu0 %v3041
        %3932 = vmatprep.subr.mxu0 0.0
        %3933 = vmatpush2.xpose.msra.mxu0 %v3040
        %3934 = vmatprep.subr.mxu0 0.0
        %3935 = vmatpush2.xpose.msra.mxu0 %v3039
        %3936 = vmatprep.subr.mxu0 0.0
        %3937 = vmatpush2.xpose.msra.mxu0 %v3038
        %3938 = vmatprep.subr.mxu0 0.0
        %3939 = vmatpush2.xpose.msra.mxu0 %v3037
        %3940 = vmatprep.subr.mxu0 0.0
        %3941 = vmatpush2.xpose.msra.mxu0 %v3036
        %3942 = vmatprep.subr.mxu0 0.0
        %3943 = vmatpush2.xpose.msra.mxu0 %v3035
        %3944 = vmatprep.subr.mxu0 0.0
        %3945 = vmatpush2.xpose.msra.mxu0 %v3034
        %3946 = vmatprep.subr.mxu0 0.0
        %3947 = vmatpush2.xpose.msra.mxu0 %v3033
        %3948 = vmatprep.mubr.f32.mxu0 0.0
        %3949 = vmatmul.mubr.f32.gmra.mxu0 %v2823
        %v3950 = vpop.f32.mrf.mxu0
        %v3951 = vadd.f32 %v3393, %v3950
        %v3952 = vpop.f32.mrf.mxu0
        %v3953 = vadd.f32 %v3397, %v3952
        %3954 = vmatprep.mubr.f32.mxu0 0.0
        %3955 = vmatmul.mubr.f32.gmra.mxu0 %v2824
        %v3956 = vpop.f32.mrf.mxu0
        %v3957 = vadd.f32 %v3393, %v3956
        %v3958 = vpop.f32.mrf.mxu0
        %v3959 = vadd.f32 %v3397, %v3958
        %3960 = vdwg.mxu0
        %3961 = vmatprep.subr.mxu0 0.0
        %3962 = vmatpush1.xpose.msra.mxu0 %v3064
        %3963 = vmatprep.subr.mxu0 0.0
        %3964 = vmatpush1.xpose.msra.mxu0 %v3063
        %3965 = vmatprep.subr.mxu0 0.0
        %3966 = vmatpush1.xpose.msra.mxu0 %v3062
        %3967 = vmatprep.subr.mxu0 0.0
        %3968 = vmatpush1.xpose.msra.mxu0 %v3061
        %3969 = vmatprep.subr.mxu0 0.0
        %3970 = vmatpush1.xpose.msra.mxu0 %v3060
        %3971 = vmatprep.subr.mxu0 0.0
        %3972 = vmatpush1.xpose.msra.mxu0 %v3059
        %3973 = vmatprep.subr.mxu0 0.0
        %3974 = vmatpush1.xpose.msra.mxu0 %v3058
        %3975 = vmatprep.subr.mxu0 0.0
        %3976 = vmatpush1.xpose.msra.mxu0 %v3057
        %3977 = vmatprep.subr.mxu0 0.0
        %3978 = vmatpush1.xpose.msra.mxu0 %v3056
        %3979 = vmatprep.subr.mxu0 0.0
        %3980 = vmatpush1.xpose.msra.mxu0 %v3055
        %3981 = vmatprep.subr.mxu0 0.0
        %3982 = vmatpush1.xpose.msra.mxu0 %v3054
        %3983 = vmatprep.subr.mxu0 0.0
        %3984 = vmatpush1.xpose.msra.mxu0 %v3053
        %3985 = vmatprep.subr.mxu0 0.0
        %3986 = vmatpush1.xpose.msra.mxu0 %v3052
        %3987 = vmatprep.subr.mxu0 0.0
        %3988 = vmatpush1.xpose.msra.mxu0 %v3051
        %3989 = vmatprep.subr.mxu0 0.0
        %3990 = vmatpush1.xpose.msra.mxu0 %v3050
        %3991 = vmatprep.subr.mxu0 0.0
        %3992 = vmatpush1.xpose.msra.mxu0 %v3049
        %3993 = vmatprep.subr.mxu0 0.0
        %3994 = vmatpush2.xpose.msra.mxu0 %v3080
        %3995 = vmatprep.subr.mxu0 0.0
        %3996 = vmatpush2.xpose.msra.mxu0 %v3079
        %3997 = vmatprep.subr.mxu0 0.0
        %3998 = vmatpush2.xpose.msra.mxu0 %v3078
        %3999 = vmatprep.subr.mxu0 0.0
        %4000 = vmatpush2.xpose.msra.mxu0 %v3077
        %4001 = vmatprep.subr.mxu0 0.0
        %4002 = vmatpush2.xpose.msra.mxu0 %v3076
        %4003 = vmatprep.subr.mxu0 0.0
        %4004 = vmatpush2.xpose.msra.mxu0 %v3075
        %4005 = vmatprep.subr.mxu0 0.0
        %4006 = vmatpush2.xpose.msra.mxu0 %v3074
        %4007 = vmatprep.subr.mxu0 0.0
        %4008 = vmatpush2.xpose.msra.mxu0 %v3073
        %4009 = vmatprep.subr.mxu0 0.0
        %4010 = vmatpush2.xpose.msra.mxu0 %v3072
        %4011 = vmatprep.subr.mxu0 0.0
        %4012 = vmatpush2.xpose.msra.mxu0 %v3071
        %4013 = vmatprep.subr.mxu0 0.0
        %4014 = vmatpush2.xpose.msra.mxu0 %v3070
        %4015 = vmatprep.subr.mxu0 0.0
        %4016 = vmatpush2.xpose.msra.mxu0 %v3069
        %4017 = vmatprep.subr.mxu0 0.0
        %4018 = vmatpush2.xpose.msra.mxu0 %v3068
        %4019 = vmatprep.subr.mxu0 0.0
        %4020 = vmatpush2.xpose.msra.mxu0 %v3067
        %4021 = vmatprep.subr.mxu0 0.0
        %4022 = vmatpush2.xpose.msra.mxu0 %v3066
        %4023 = vmatprep.subr.mxu0 0.0
        %4024 = vmatpush2.xpose.msra.mxu0 %v3065
        %4025 = vmatprep.mubr.f32.mxu0 0.0
        %4026 = vmatmul.mubr.f32.gmra.mxu0 %v2823
        %v4027 = vpop.f32.mrf.mxu0
        %v4028 = vadd.f32 %v3401, %v4027
        %v4029 = vpop.f32.mrf.mxu0
        %v4030 = vadd.f32 %v3405, %v4029
        %4031 = vmatprep.mubr.f32.mxu0 0.0
        %4032 = vmatmul.mubr.f32.gmra.mxu0 %v2824
        %v4033 = vpop.f32.mrf.mxu0
        %v4034 = vadd.f32 %v3401, %v4033
        %v4035 = vpop.f32.mrf.mxu0
        %v4036 = vadd.f32 %v3405, %v4035
        %4037 = vdwg.mxu0
        %v4038 = vmax.f32 %v3489, 0.0
        %v4039 = vmax.f32 %v3491, 0.0
        %v4040 = vmax.f32 %v3566, 0.0
        %v4041 = vmax.f32 %v3568, 0.0
        %v4042 = vmax.f32 %v3643, 0.0
        %v4043 = vmax.f32 %v3645, 0.0
        %v4044 = vmax.f32 %v3720, 0.0
        %v4045 = vmax.f32 %v3722, 0.0
        %v4046 = vmax.f32 %v3797, 0.0
        %v4047 = vmax.f32 %v3799, 0.0
        %v4048 = vmax.f32 %v3874, 0.0
        %v4049 = vmax.f32 %v3876, 0.0
        %v4050 = vmax.f32 %v3951, 0.0
        %v4051 = vmax.f32 %v3953, 0.0
        %v4052 = vmax.f32 %v4028, 0.0
        %v4053 = vmax.f32 %v4030, 0.0
        %v4054 = vmax.f32 %v3495, 0.0
        %v4055 = vmax.f32 %v3497, 0.0
        %v4056 = vmax.f32 %v3572, 0.0
        %v4057 = vmax.f32 %v3574, 0.0
        %v4058 = vmax.f32 %v3649, 0.0
        %v4059 = vmax.f32 %v3651, 0.0
        %v4060 = vmax.f32 %v3726, 0.0
        %v4061 = vmax.f32 %v3728, 0.0
        %v4062 = vmax.f32 %v3803, 0.0
        %v4063 = vmax.f32 %v3805, 0.0
        %v4064 = vmax.f32 %v3880, 0.0
        %v4065 = vmax.f32 %v3882, 0.0
        %v4066 = vmax.f32 %v3957, 0.0
        %v4067 = vmax.f32 %v3959, 0.0
        %v4068 = vmax.f32 %v4034, 0.0
        %v4069 = vmax.f32 %v4036, 0.0
        %v4071 = vlaneseq
        %v4072 = vshrl.u32 %v4071, 7
        %v4073 = vsub.s32 0, %v4072
        %v4074 = vrot.slane %v3339, %v4073
        %4076 = vmatprep.subr.mxu0 %v3324
        %4077 = vmatpush1.xpose.msra.mxu0 %v3323
        %4078 = vmatprep.subr.mxu0 %v3308
        %4079 = vmatpush1.xpose.msra.mxu0 %v3307
        %4080 = vmatprep.subr.mxu0 %v3292
        %4081 = vmatpush1.xpose.msra.mxu0 %v3291
        %4082 = vmatprep.subr.mxu0 %v3276
        %4083 = vmatpush1.xpose.msra.mxu0 %v3275
        %4084 = vmatprep.subr.mxu0 %v3260
        %4085 = vmatpush1.xpose.msra.mxu0 %v3259
        %4086 = vmatprep.subr.mxu0 %v3244
        %4087 = vmatpush1.xpose.msra.mxu0 %v3243
        %4088 = vmatprep.subr.mxu0 %v3228
        %4089 = vmatpush1.xpose.msra.mxu0 %v3227
        %4090 = vmatprep.subr.mxu0 %v3212
        %4091 = vmatpush1.xpose.msra.mxu0 %v3211
        %4092 = vmatprep.subr.mxu0 %v3196
        %4093 = vmatpush1.xpose.msra.mxu0 %v3195
        %4094 = vmatprep.subr.mxu0 %v3180
        %4095 = vmatpush1.xpose.msra.mxu0 %v3179
        %4096 = vmatprep.subr.mxu0 %v3164
        %4097 = vmatpush1.xpose.msra.mxu0 %v3163
        %4098 = vmatprep.subr.mxu0 %v3148
        %4099 = vmatpush1.xpose.msra.mxu0 %v3147
        %4100 = vmatprep.subr.mxu0 %v3132
        %4101 = vmatpush1.xpose.msra.mxu0 %v3131
        %4102 = vmatprep.subr.mxu0 %v3116
        %4103 = vmatpush1.xpose.msra.mxu0 %v3115
        %4104 = vmatprep.subr.mxu0 %v3100
        %4105 = vmatpush1.xpose.msra.mxu0 %v3099
        %4106 = vmatprep.subr.mxu0 %v3084
        %4107 = vmatpush1.xpose.msra.mxu0 %v3083
        %4108 = vmatprep.subr.mxu0 0.0
        %4109 = vmatpush2.xpose.msra.mxu0 0.0
        %4110 = vmatprep.subr.mxu0 0.0
        %4111 = vmatpush2.xpose.msra.mxu0 0.0
        %4112 = vmatprep.subr.mxu0 0.0
        %4113 = vmatpush2.xpose.msra.mxu0 0.0
        %4114 = vmatprep.subr.mxu0 0.0
        %4115 = vmatpush2.xpose.msra.mxu0 0.0
        %4116 = vmatprep.subr.mxu0 0.0
        %4117 = vmatpush2.xpose.msra.mxu0 0.0
        %4118 = vmatprep.subr.mxu0 0.0
        %4119 = vmatpush2.xpose.msra.mxu0 0.0
        %4120 = vmatprep.subr.mxu0 0.0
        %4121 = vmatpush2.xpose.msra.mxu0 0.0
        %4122 = vmatprep.subr.mxu0 0.0
        %4123 = vmatpush2.xpose.msra.mxu0 0.0
        %4124 = vmatprep.subr.mxu0 0.0
        %4125 = vmatpush2.xpose.msra.mxu0 0.0
        %4126 = vmatprep.subr.mxu0 0.0
        %4127 = vmatpush2.xpose.msra.mxu0 0.0
        %4128 = vmatprep.subr.mxu0 0.0
        %4129 = vmatpush2.xpose.msra.mxu0 0.0
        %4130 = vmatprep.subr.mxu0 0.0
        %4131 = vmatpush2.xpose.msra.mxu0 0.0
        %4132 = vmatprep.subr.mxu0 0.0
        %4133 = vmatpush2.xpose.msra.mxu0 0.0
        %4134 = vmatprep.subr.mxu0 0.0
        %4135 = vmatpush2.xpose.msra.mxu0 0.0
        %4136 = vmatprep.subr.mxu0 0.0
        %4137 = vmatpush2.xpose.msra.mxu0 0.0
        %4138 = vmatprep.subr.mxu0 0.0
        %4139 = vmatpush2.xpose.msra.mxu0 0.0
        %4140 = vmatprep.mubr.f32.mxu0 %v4039
        %4141 = vmatmul.mubr.f32.gmra.mxu0 %v4038
        %v4142 = vpop.f32.mrf.mxu0
        %v4143 = vadd.f32 %v4074, %v4142
        %v4144 = vpop.f32.mrf.mxu0
        %4145 = vmatprep.mubr.f32.mxu0 %v4055
        %4146 = vmatmul.mubr.f32.gmra.mxu0 %v4054
        %v4147 = vpop.f32.mrf.mxu0
        %v4148 = vadd.f32 %v4074, %v4147
        %v4149 = vpop.f32.mrf.mxu0
        %4150 = vdwg.mxu0
        %4151 = vmatprep.subr.mxu0 %v3326
        %4152 = vmatpush1.xpose.msra.mxu0 %v3325
        %4153 = vmatprep.subr.mxu0 %v3310
        %4154 = vmatpush1.xpose.msra.mxu0 %v3309
        %4155 = vmatprep.subr.mxu0 %v3294
        %4156 = vmatpush1.xpose.msra.mxu0 %v3293
        %4157 = vmatprep.subr.mxu0 %v3278
        %4158 = vmatpush1.xpose.msra.mxu0 %v3277
        %4159 = vmatprep.subr.mxu0 %v3262
        %4160 = vmatpush1.xpose.msra.mxu0 %v3261
        %4161 = vmatprep.subr.mxu0 %v3246
        %4162 = vmatpush1.xpose.msra.mxu0 %v3245
        %4163 = vmatprep.subr.mxu0 %v3230
        %4164 = vmatpush1.xpose.msra.mxu0 %v3229
        %4165 = vmatprep.subr.mxu0 %v3214
        %4166 = vmatpush1.xpose.msra.mxu0 %v3213
        %4167 = vmatprep.subr.mxu0 %v3198
        %4168 = vmatpush1.xpose.msra.mxu0 %v3197
        %4169 = vmatprep.subr.mxu0 %v3182
        %4170 = vmatpush1.xpose.msra.mxu0 %v3181
        %4171 = vmatprep.subr.mxu0 %v3166
        %4172 = vmatpush1.xpose.msra.mxu0 %v3165
        %4173 = vmatprep.subr.mxu0 %v3150
        %4174 = vmatpush1.xpose.msra.mxu0 %v3149
        %4175 = vmatprep.subr.mxu0 %v3134
        %4176 = vmatpush1.xpose.msra.mxu0 %v3133
        %4177 = vmatprep.subr.mxu0 %v3118
        %4178 = vmatpush1.xpose.msra.mxu0 %v3117
        %4179 = vmatprep.subr.mxu0 %v3102
        %4180 = vmatpush1.xpose.msra.mxu0 %v3101
        %4181 = vmatprep.subr.mxu0 %v3086
        %4182 = vmatpush1.xpose.msra.mxu0 %v3085
        %4183 = vmatprep.subr.mxu0 0.0
        %4184 = vmatpush2.xpose.msra.mxu0 0.0
        %4185 = vmatprep.subr.mxu0 0.0
        %4186 = vmatpush2.xpose.msra.mxu0 0.0
        %4187 = vmatprep.subr.mxu0 0.0
        %4188 = vmatpush2.xpose.msra.mxu0 0.0
        %4189 = vmatprep.subr.mxu0 0.0
        %4190 = vmatpush2.xpose.msra.mxu0 0.0
        %4191 = vmatprep.subr.mxu0 0.0
        %4192 = vmatpush2.xpose.msra.mxu0 0.0
        %4193 = vmatprep.subr.mxu0 0.0
        %4194 = vmatpush2.xpose.msra.mxu0 0.0
        %4195 = vmatprep.subr.mxu0 0.0
        %4196 = vmatpush2.xpose.msra.mxu0 0.0
        %4197 = vmatprep.subr.mxu0 0.0
        %4198 = vmatpush2.xpose.msra.mxu0 0.0
        %4199 = vmatprep.subr.mxu0 0.0
        %4200 = vmatpush2.xpose.msra.mxu0 0.0
        %4201 = vmatprep.subr.mxu0 0.0
        %4202 = vmatpush2.xpose.msra.mxu0 0.0
        %4203 = vmatprep.subr.mxu0 0.0
        %4204 = vmatpush2.xpose.msra.mxu0 0.0
        %4205 = vmatprep.subr.mxu0 0.0
        %4206 = vmatpush2.xpose.msra.mxu0 0.0
        %4207 = vmatprep.subr.mxu0 0.0
        %4208 = vmatpush2.xpose.msra.mxu0 0.0
        %4209 = vmatprep.subr.mxu0 0.0
        %4210 = vmatpush2.xpose.msra.mxu0 0.0
        %4211 = vmatprep.subr.mxu0 0.0
        %4212 = vmatpush2.xpose.msra.mxu0 0.0
        %4213 = vmatprep.subr.mxu0 0.0
        %4214 = vmatpush2.xpose.msra.mxu0 0.0
        %4215 = vmatprep.mubr.f32.mxu0 %v4041
        %4216 = vmatmul.mubr.f32.gmra.mxu0 %v4040
        %v4217 = vpop.f32.mrf.mxu0
        %v4218 = vadd.f32 %v4143, %v4217
        %v4219 = vpop.f32.mrf.mxu0
        %4220 = vmatprep.mubr.f32.mxu0 %v4057
        %4221 = vmatmul.mubr.f32.gmra.mxu0 %v4056
        %v4222 = vpop.f32.mrf.mxu0
        %v4223 = vadd.f32 %v4148, %v4222
        %v4224 = vpop.f32.mrf.mxu0
        %4225 = vdwg.mxu0
        %4226 = vmatprep.subr.mxu0 %v3328
        %4227 = vmatpush1.xpose.msra.mxu0 %v3327
        %4228 = vmatprep.subr.mxu0 %v3312
        %4229 = vmatpush1.xpose.msra.mxu0 %v3311
        %4230 = vmatprep.subr.mxu0 %v3296
        %4231 = vmatpush1.xpose.msra.mxu0 %v3295
        %4232 = vmatprep.subr.mxu0 %v3280
        %4233 = vmatpush1.xpose.msra.mxu0 %v3279
        %4234 = vmatprep.subr.mxu0 %v3264
        %4235 = vmatpush1.xpose.msra.mxu0 %v3263
        %4236 = vmatprep.subr.mxu0 %v3248
        %4237 = vmatpush1.xpose.msra.mxu0 %v3247
        %4238 = vmatprep.subr.mxu0 %v3232
        %4239 = vmatpush1.xpose.msra.mxu0 %v3231
        %4240 = vmatprep.subr.mxu0 %v3216
        %4241 = vmatpush1.xpose.msra.mxu0 %v3215
        %4242 = vmatprep.subr.mxu0 %v3200
        %4243 = vmatpush1.xpose.msra.mxu0 %v3199
        %4244 = vmatprep.subr.mxu0 %v3184
        %4245 = vmatpush1.xpose.msra.mxu0 %v3183
        %4246 = vmatprep.subr.mxu0 %v3168
        %4247 = vmatpush1.xpose.msra.mxu0 %v3167
        %4248 = vmatprep.subr.mxu0 %v3152
        %4249 = vmatpush1.xpose.msra.mxu0 %v3151
        %4250 = vmatprep.subr.mxu0 %v3136
        %4251 = vmatpush1.xpose.msra.mxu0 %v3135
        %4252 = vmatprep.subr.mxu0 %v3120
        %4253 = vmatpush1.xpose.msra.mxu0 %v3119
        %4254 = vmatprep.subr.mxu0 %v3104
        %4255 = vmatpush1.xpose.msra.mxu0 %v3103
        %4256 = vmatprep.subr.mxu0 %v3088
        %4257 = vmatpush1.xpose.msra.mxu0 %v3087
        %4258 = vmatprep.subr.mxu0 0.0
        %4259 = vmatpush2.xpose.msra.mxu0 0.0
        %4260 = vmatprep.subr.mxu0 0.0
        %4261 = vmatpush2.xpose.msra.mxu0 0.0
        %4262 = vmatprep.subr.mxu0 0.0
        %4263 = vmatpush2.xpose.msra.mxu0 0.0
        %4264 = vmatprep.subr.mxu0 0.0
        %4265 = vmatpush2.xpose.msra.mxu0 0.0
        %4266 = vmatprep.subr.mxu0 0.0
        %4267 = vmatpush2.xpose.msra.mxu0 0.0
        %4268 = vmatprep.subr.mxu0 0.0
        %4269 = vmatpush2.xpose.msra.mxu0 0.0
        %4270 = vmatprep.subr.mxu0 0.0
        %4271 = vmatpush2.xpose.msra.mxu0 0.0
        %4272 = vmatprep.subr.mxu0 0.0
        %4273 = vmatpush2.xpose.msra.mxu0 0.0
        %4274 = vmatprep.subr.mxu0 0.0
        %4275 = vmatpush2.xpose.msra.mxu0 0.0
        %4276 = vmatprep.subr.mxu0 0.0
        %4277 = vmatpush2.xpose.msra.mxu0 0.0
        %4278 = vmatprep.subr.mxu0 0.0
        %4279 = vmatpush2.xpose.msra.mxu0 0.0
        %4280 = vmatprep.subr.mxu0 0.0
        %4281 = vmatpush2.xpose.msra.mxu0 0.0
        %4282 = vmatprep.subr.mxu0 0.0
        %4283 = vmatpush2.xpose.msra.mxu0 0.0
        %4284 = vmatprep.subr.mxu0 0.0
        %4285 = vmatpush2.xpose.msra.mxu0 0.0
        %4286 = vmatprep.subr.mxu0 0.0
        %4287 = vmatpush2.xpose.msra.mxu0 0.0
        %4288 = vmatprep.subr.mxu0 0.0
        %4289 = vmatpush2.xpose.msra.mxu0 0.0
        %4290 = vmatprep.mubr.f32.mxu0 %v4043
        %4291 = vmatmul.mubr.f32.gmra.mxu0 %v4042
        %v4292 = vpop.f32.mrf.mxu0
        %v4293 = vadd.f32 %v4218, %v4292
        %v4294 = vpop.f32.mrf.mxu0
        %4295 = vmatprep.mubr.f32.mxu0 %v4059
        %4296 = vmatmul.mubr.f32.gmra.mxu0 %v4058
        %v4297 = vpop.f32.mrf.mxu0
        %v4298 = vadd.f32 %v4223, %v4297
        %v4299 = vpop.f32.mrf.mxu0
        %4300 = vdwg.mxu0
        %4301 = vmatprep.subr.mxu0 %v3330
        %4302 = vmatpush1.xpose.msra.mxu0 %v3329
        %4303 = vmatprep.subr.mxu0 %v3314
        %4304 = vmatpush1.xpose.msra.mxu0 %v3313
        %4305 = vmatprep.subr.mxu0 %v3298
        %4306 = vmatpush1.xpose.msra.mxu0 %v3297
        %4307 = vmatprep.subr.mxu0 %v3282
        %4308 = vmatpush1.xpose.msra.mxu0 %v3281
        %4309 = vmatprep.subr.mxu0 %v3266
        %4310 = vmatpush1.xpose.msra.mxu0 %v3265
        %4311 = vmatprep.subr.mxu0 %v3250
        %4312 = vmatpush1.xpose.msra.mxu0 %v3249
        %4313 = vmatprep.subr.mxu0 %v3234
        %4314 = vmatpush1.xpose.msra.mxu0 %v3233
        %4315 = vmatprep.subr.mxu0 %v3218
        %4316 = vmatpush1.xpose.msra.mxu0 %v3217
        %4317 = vmatprep.subr.mxu0 %v3202
        %4318 = vmatpush1.xpose.msra.mxu0 %v3201
        %4319 = vmatprep.subr.mxu0 %v3186
        %4320 = vmatpush1.xpose.msra.mxu0 %v3185
        %4321 = vmatprep.subr.mxu0 %v3170
        %4322 = vmatpush1.xpose.msra.mxu0 %v3169
        %4323 = vmatprep.subr.mxu0 %v3154
        %4324 = vmatpush1.xpose.msra.mxu0 %v3153
        %4325 = vmatprep.subr.mxu0 %v3138
        %4326 = vmatpush1.xpose.msra.mxu0 %v3137
        %4327 = vmatprep.subr.mxu0 %v3122
        %4328 = vmatpush1.xpose.msra.mxu0 %v3121
        %4329 = vmatprep.subr.mxu0 %v3106
        %4330 = vmatpush1.xpose.msra.mxu0 %v3105
        %4331 = vmatprep.subr.mxu0 %v3090
        %4332 = vmatpush1.xpose.msra.mxu0 %v3089
        %4333 = vmatprep.subr.mxu0 0.0
        %4334 = vmatpush2.xpose.msra.mxu0 0.0
        %4335 = vmatprep.subr.mxu0 0.0
        %4336 = vmatpush2.xpose.msra.mxu0 0.0
        %4337 = vmatprep.subr.mxu0 0.0
        %4338 = vmatpush2.xpose.msra.mxu0 0.0
        %4339 = vmatprep.subr.mxu0 0.0
        %4340 = vmatpush2.xpose.msra.mxu0 0.0
        %4341 = vmatprep.subr.mxu0 0.0
        %4342 = vmatpush2.xpose.msra.mxu0 0.0
        %4343 = vmatprep.subr.mxu0 0.0
        %4344 = vmatpush2.xpose.msra.mxu0 0.0
        %4345 = vmatprep.subr.mxu0 0.0
        %4346 = vmatpush2.xpose.msra.mxu0 0.0
        %4347 = vmatprep.subr.mxu0 0.0
        %4348 = vmatpush2.xpose.msra.mxu0 0.0
        %4349 = vmatprep.subr.mxu0 0.0
        %4350 = vmatpush2.xpose.msra.mxu0 0.0
        %4351 = vmatprep.subr.mxu0 0.0
        %4352 = vmatpush2.xpose.msra.mxu0 0.0
        %4353 = vmatprep.subr.mxu0 0.0
        %4354 = vmatpush2.xpose.msra.mxu0 0.0
        %4355 = vmatprep.subr.mxu0 0.0
        %4356 = vmatpush2.xpose.msra.mxu0 0.0
        %4357 = vmatprep.subr.mxu0 0.0
        %4358 = vmatpush2.xpose.msra.mxu0 0.0
        %4359 = vmatprep.subr.mxu0 0.0
        %4360 = vmatpush2.xpose.msra.mxu0 0.0
        %4361 = vmatprep.subr.mxu0 0.0
        %4362 = vmatpush2.xpose.msra.mxu0 0.0
        %4363 = vmatprep.subr.mxu0 0.0
        %4364 = vmatpush2.xpose.msra.mxu0 0.0
        %4365 = vmatprep.mubr.f32.mxu0 %v4045
        %4366 = vmatmul.mubr.f32.gmra.mxu0 %v4044
        %v4367 = vpop.f32.mrf.mxu0
        %v4368 = vadd.f32 %v4293, %v4367
        %v4369 = vpop.f32.mrf.mxu0
        %4370 = vmatprep.mubr.f32.mxu0 %v4061
        %4371 = vmatmul.mubr.f32.gmra.mxu0 %v4060
        %v4372 = vpop.f32.mrf.mxu0
        %v4373 = vadd.f32 %v4298, %v4372
        %v4374 = vpop.f32.mrf.mxu0
        %4375 = vdwg.mxu0
        %4376 = vmatprep.subr.mxu0 %v3332
        %4377 = vmatpush1.xpose.msra.mxu0 %v3331
        %4378 = vmatprep.subr.mxu0 %v3316
        %4379 = vmatpush1.xpose.msra.mxu0 %v3315
        %4380 = vmatprep.subr.mxu0 %v3300
        %4381 = vmatpush1.xpose.msra.mxu0 %v3299
        %4382 = vmatprep.subr.mxu0 %v3284
        %4383 = vmatpush1.xpose.msra.mxu0 %v3283
        %4384 = vmatprep.subr.mxu0 %v3268
        %4385 = vmatpush1.xpose.msra.mxu0 %v3267
        %4386 = vmatprep.subr.mxu0 %v3252
        %4387 = vmatpush1.xpose.msra.mxu0 %v3251
        %4388 = vmatprep.subr.mxu0 %v3236
        %4389 = vmatpush1.xpose.msra.mxu0 %v3235
        %4390 = vmatprep.subr.mxu0 %v3220
        %4391 = vmatpush1.xpose.msra.mxu0 %v3219
        %4392 = vmatprep.subr.mxu0 %v3204
        %4393 = vmatpush1.xpose.msra.mxu0 %v3203
        %4394 = vmatprep.subr.mxu0 %v3188
        %4395 = vmatpush1.xpose.msra.mxu0 %v3187
        %4396 = vmatprep.subr.mxu0 %v3172
        %4397 = vmatpush1.xpose.msra.mxu0 %v3171
        %4398 = vmatprep.subr.mxu0 %v3156
        %4399 = vmatpush1.xpose.msra.mxu0 %v3155
        %4400 = vmatprep.subr.mxu0 %v3140
        %4401 = vmatpush1.xpose.msra.mxu0 %v3139
        %4402 = vmatprep.subr.mxu0 %v3124
        %4403 = vmatpush1.xpose.msra.mxu0 %v3123
        %4404 = vmatprep.subr.mxu0 %v3108
        %4405 = vmatpush1.xpose.msra.mxu0 %v3107
        %4406 = vmatprep.subr.mxu0 %v3092
        %4407 = vmatpush1.xpose.msra.mxu0 %v3091
        %4408 = vmatprep.subr.mxu0 0.0
        %4409 = vmatpush2.xpose.msra.mxu0 0.0
        %4410 = vmatprep.subr.mxu0 0.0
        %4411 = vmatpush2.xpose.msra.mxu0 0.0
        %4412 = vmatprep.subr.mxu0 0.0
        %4413 = vmatpush2.xpose.msra.mxu0 0.0
        %4414 = vmatprep.subr.mxu0 0.0
        %4415 = vmatpush2.xpose.msra.mxu0 0.0
        %4416 = vmatprep.subr.mxu0 0.0
        %4417 = vmatpush2.xpose.msra.mxu0 0.0
        %4418 = vmatprep.subr.mxu0 0.0
        %4419 = vmatpush2.xpose.msra.mxu0 0.0
        %4420 = vmatprep.subr.mxu0 0.0
        %4421 = vmatpush2.xpose.msra.mxu0 0.0
        %4422 = vmatprep.subr.mxu0 0.0
        %4423 = vmatpush2.xpose.msra.mxu0 0.0
        %4424 = vmatprep.subr.mxu0 0.0
        %4425 = vmatpush2.xpose.msra.mxu0 0.0
        %4426 = vmatprep.subr.mxu0 0.0
        %4427 = vmatpush2.xpose.msra.mxu0 0.0
        %4428 = vmatprep.subr.mxu0 0.0
        %4429 = vmatpush2.xpose.msra.mxu0 0.0
        %4430 = vmatprep.subr.mxu0 0.0
        %4431 = vmatpush2.xpose.msra.mxu0 0.0
        %4432 = vmatprep.subr.mxu0 0.0
        %4433 = vmatpush2.xpose.msra.mxu0 0.0
        %4434 = vmatprep.subr.mxu0 0.0
        %4435 = vmatpush2.xpose.msra.mxu0 0.0
        %4436 = vmatprep.subr.mxu0 0.0
        %4437 = vmatpush2.xpose.msra.mxu0 0.0
        %4438 = vmatprep.subr.mxu0 0.0
        %4439 = vmatpush2.xpose.msra.mxu0 0.0
        %4440 = vmatprep.mubr.f32.mxu0 %v4047
        %4441 = vmatmul.mubr.f32.gmra.mxu0 %v4046
        %v4442 = vpop.f32.mrf.mxu0
        %v4443 = vadd.f32 %v4368, %v4442
        %v4444 = vpop.f32.mrf.mxu0
        %4445 = vmatprep.mubr.f32.mxu0 %v4063
        %4446 = vmatmul.mubr.f32.gmra.mxu0 %v4062
        %v4447 = vpop.f32.mrf.mxu0
        %v4448 = vadd.f32 %v4373, %v4447
        %v4449 = vpop.f32.mrf.mxu0
        %4450 = vdwg.mxu0
        %4451 = vmatprep.subr.mxu0 %v3334
        %4452 = vmatpush1.xpose.msra.mxu0 %v3333
        %4453 = vmatprep.subr.mxu0 %v3318
        %4454 = vmatpush1.xpose.msra.mxu0 %v3317
        %4455 = vmatprep.subr.mxu0 %v3302
        %4456 = vmatpush1.xpose.msra.mxu0 %v3301
        %4457 = vmatprep.subr.mxu0 %v3286
        %4458 = vmatpush1.xpose.msra.mxu0 %v3285
        %4459 = vmatprep.subr.mxu0 %v3270
        %4460 = vmatpush1.xpose.msra.mxu0 %v3269
        %4461 = vmatprep.subr.mxu0 %v3254
        %4462 = vmatpush1.xpose.msra.mxu0 %v3253
        %4463 = vmatprep.subr.mxu0 %v3238
        %4464 = vmatpush1.xpose.msra.mxu0 %v3237
        %4465 = vmatprep.subr.mxu0 %v3222
        %4466 = vmatpush1.xpose.msra.mxu0 %v3221
        %4467 = vmatprep.subr.mxu0 %v3206
        %4468 = vmatpush1.xpose.msra.mxu0 %v3205
        %4469 = vmatprep.subr.mxu0 %v3190
        %4470 = vmatpush1.xpose.msra.mxu0 %v3189
        %4471 = vmatprep.subr.mxu0 %v3174
        %4472 = vmatpush1.xpose.msra.mxu0 %v3173
        %4473 = vmatprep.subr.mxu0 %v3158
        %4474 = vmatpush1.xpose.msra.mxu0 %v3157
        %4475 = vmatprep.subr.mxu0 %v3142
        %4476 = vmatpush1.xpose.msra.mxu0 %v3141
        %4477 = vmatprep.subr.mxu0 %v3126
        %4478 = vmatpush1.xpose.msra.mxu0 %v3125
        %4479 = vmatprep.subr.mxu0 %v3110
        %4480 = vmatpush1.xpose.msra.mxu0 %v3109
        %4481 = vmatprep.subr.mxu0 %v3094
        %4482 = vmatpush1.xpose.msra.mxu0 %v3093
        %4483 = vmatprep.subr.mxu0 0.0
        %4484 = vmatpush2.xpose.msra.mxu0 0.0
        %4485 = vmatprep.subr.mxu0 0.0
        %4486 = vmatpush2.xpose.msra.mxu0 0.0
        %4487 = vmatprep.subr.mxu0 0.0
        %4488 = vmatpush2.xpose.msra.mxu0 0.0
        %4489 = vmatprep.subr.mxu0 0.0
        %4490 = vmatpush2.xpose.msra.mxu0 0.0
        %4491 = vmatprep.subr.mxu0 0.0
        %4492 = vmatpush2.xpose.msra.mxu0 0.0
        %4493 = vmatprep.subr.mxu0 0.0
        %4494 = vmatpush2.xpose.msra.mxu0 0.0
        %4495 = vmatprep.subr.mxu0 0.0
        %4496 = vmatpush2.xpose.msra.mxu0 0.0
        %4497 = vmatprep.subr.mxu0 0.0
        %4498 = vmatpush2.xpose.msra.mxu0 0.0
        %4499 = vmatprep.subr.mxu0 0.0
        %4500 = vmatpush2.xpose.msra.mxu0 0.0
        %4501 = vmatprep.subr.mxu0 0.0
        %4502 = vmatpush2.xpose.msra.mxu0 0.0
        %4503 = vmatprep.subr.mxu0 0.0
        %4504 = vmatpush2.xpose.msra.mxu0 0.0
        %4505 = vmatprep.subr.mxu0 0.0
        %4506 = vmatpush2.xpose.msra.mxu0 0.0
        %4507 = vmatprep.subr.mxu0 0.0
        %4508 = vmatpush2.xpose.msra.mxu0 0.0
        %4509 = vmatprep.subr.mxu0 0.0
        %4510 = vmatpush2.xpose.msra.mxu0 0.0
        %4511 = vmatprep.subr.mxu0 0.0
        %4512 = vmatpush2.xpose.msra.mxu0 0.0
        %4513 = vmatprep.subr.mxu0 0.0
        %4514 = vmatpush2.xpose.msra.mxu0 0.0
        %4515 = vmatprep.mubr.f32.mxu0 %v4049
        %4516 = vmatmul.mubr.f32.gmra.mxu0 %v4048
        %v4517 = vpop.f32.mrf.mxu0
        %v4518 = vadd.f32 %v4443, %v4517
        %v4519 = vpop.f32.mrf.mxu0
        %4520 = vmatprep.mubr.f32.mxu0 %v4065
        %4521 = vmatmul.mubr.f32.gmra.mxu0 %v4064
        %v4522 = vpop.f32.mrf.mxu0
        %v4523 = vadd.f32 %v4448, %v4522
        %v4524 = vpop.f32.mrf.mxu0
        %4525 = vdwg.mxu0
        %4526 = vmatprep.subr.mxu0 %v3336
        %4527 = vmatpush1.xpose.msra.mxu0 %v3335
        %4528 = vmatprep.subr.mxu0 %v3320
        %4529 = vmatpush1.xpose.msra.mxu0 %v3319
        %4530 = vmatprep.subr.mxu0 %v3304
        %4531 = vmatpush1.xpose.msra.mxu0 %v3303
        %4532 = vmatprep.subr.mxu0 %v3288
        %4533 = vmatpush1.xpose.msra.mxu0 %v3287
        %4534 = vmatprep.subr.mxu0 %v3272
        %4535 = vmatpush1.xpose.msra.mxu0 %v3271
        %4536 = vmatprep.subr.mxu0 %v3256
        %4537 = vmatpush1.xpose.msra.mxu0 %v3255
        %4538 = vmatprep.subr.mxu0 %v3240
        %4539 = vmatpush1.xpose.msra.mxu0 %v3239
        %4540 = vmatprep.subr.mxu0 %v3224
        %4541 = vmatpush1.xpose.msra.mxu0 %v3223
        %4542 = vmatprep.subr.mxu0 %v3208
        %4543 = vmatpush1.xpose.msra.mxu0 %v3207
        %4544 = vmatprep.subr.mxu0 %v3192
        %4545 = vmatpush1.xpose.msra.mxu0 %v3191
        %4546 = vmatprep.subr.mxu0 %v3176
        %4547 = vmatpush1.xpose.msra.mxu0 %v3175
        %4548 = vmatprep.subr.mxu0 %v3160
        %4549 = vmatpush1.xpose.msra.mxu0 %v3159
        %4550 = vmatprep.subr.mxu0 %v3144
        %4551 = vmatpush1.xpose.msra.mxu0 %v3143
        %4552 = vmatprep.subr.mxu0 %v3128
        %4553 = vmatpush1.xpose.msra.mxu0 %v3127
        %4554 = vmatprep.subr.mxu0 %v3112
        %4555 = vmatpush1.xpose.msra.mxu0 %v3111
        %4556 = vmatprep.subr.mxu0 %v3096
        %4557 = vmatpush1.xpose.msra.mxu0 %v3095
        %4558 = vmatprep.subr.mxu0 0.0
        %4559 = vmatpush2.xpose.msra.mxu0 0.0
        %4560 = vmatprep.subr.mxu0 0.0
        %4561 = vmatpush2.xpose.msra.mxu0 0.0
        %4562 = vmatprep.subr.mxu0 0.0
        %4563 = vmatpush2.xpose.msra.mxu0 0.0
        %4564 = vmatprep.subr.mxu0 0.0
        %4565 = vmatpush2.xpose.msra.mxu0 0.0
        %4566 = vmatprep.subr.mxu0 0.0
        %4567 = vmatpush2.xpose.msra.mxu0 0.0
        %4568 = vmatprep.subr.mxu0 0.0
        %4569 = vmatpush2.xpose.msra.mxu0 0.0
        %4570 = vmatprep.subr.mxu0 0.0
        %4571 = vmatpush2.xpose.msra.mxu0 0.0
        %4572 = vmatprep.subr.mxu0 0.0
        %4573 = vmatpush2.xpose.msra.mxu0 0.0
        %4574 = vmatprep.subr.mxu0 0.0
        %4575 = vmatpush2.xpose.msra.mxu0 0.0
        %4576 = vmatprep.subr.mxu0 0.0
        %4577 = vmatpush2.xpose.msra.mxu0 0.0
        %4578 = vmatprep.subr.mxu0 0.0
        %4579 = vmatpush2.xpose.msra.mxu0 0.0
        %4580 = vmatprep.subr.mxu0 0.0
        %4581 = vmatpush2.xpose.msra.mxu0 0.0
        %4582 = vmatprep.subr.mxu0 0.0
        %4583 = vmatpush2.xpose.msra.mxu0 0.0
        %4584 = vmatprep.subr.mxu0 0.0
        %4585 = vmatpush2.xpose.msra.mxu0 0.0
        %4586 = vmatprep.subr.mxu0 0.0
        %4587 = vmatpush2.xpose.msra.mxu0 0.0
        %4588 = vmatprep.subr.mxu0 0.0
        %4589 = vmatpush2.xpose.msra.mxu0 0.0
        %4590 = vmatprep.mubr.f32.mxu0 %v4051
        %4591 = vmatmul.mubr.f32.gmra.mxu0 %v4050
        %v4592 = vpop.f32.mrf.mxu0
        %v4593 = vadd.f32 %v4518, %v4592
        %v4594 = vpop.f32.mrf.mxu0
        %4595 = vmatprep.mubr.f32.mxu0 %v4067
        %4596 = vmatmul.mubr.f32.gmra.mxu0 %v4066
        %v4597 = vpop.f32.mrf.mxu0
        %v4598 = vadd.f32 %v4523, %v4597
        %v4599 = vpop.f32.mrf.mxu0
        %4600 = vdwg.mxu0
        %4601 = vmatprep.subr.mxu0 %v3338
        %4602 = vmatpush1.xpose.msra.mxu0 %v3337
        %4603 = vmatprep.subr.mxu0 %v3322
        %4604 = vmatpush1.xpose.msra.mxu0 %v3321
        %4605 = vmatprep.subr.mxu0 %v3306
        %4606 = vmatpush1.xpose.msra.mxu0 %v3305
        %4607 = vmatprep.subr.mxu0 %v3290
        %4608 = vmatpush1.xpose.msra.mxu0 %v3289
        %4609 = vmatprep.subr.mxu0 %v3274
        %4610 = vmatpush1.xpose.msra.mxu0 %v3273
        %4611 = vmatprep.subr.mxu0 %v3258
        %4612 = vmatpush1.xpose.msra.mxu0 %v3257
        %4613 = vmatprep.subr.mxu0 %v3242
        %4614 = vmatpush1.xpose.msra.mxu0 %v3241
        %4615 = vmatprep.subr.mxu0 %v3226
        %4616 = vmatpush1.xpose.msra.mxu0 %v3225
        %4617 = vmatprep.subr.mxu0 %v3210
        %4618 = vmatpush1.xpose.msra.mxu0 %v3209
        %4619 = vmatprep.subr.mxu0 %v3194
        %4620 = vmatpush1.xpose.msra.mxu0 %v3193
        %4621 = vmatprep.subr.mxu0 %v3178
        %4622 = vmatpush1.xpose.msra.mxu0 %v3177
        %4623 = vmatprep.subr.mxu0 %v3162
        %4624 = vmatpush1.xpose.msra.mxu0 %v3161
        %4625 = vmatprep.subr.mxu0 %v3146
        %4626 = vmatpush1.xpose.msra.mxu0 %v3145
        %4627 = vmatprep.subr.mxu0 %v3130
        %4628 = vmatpush1.xpose.msra.mxu0 %v3129
        %4629 = vmatprep.subr.mxu0 %v3114
        %4630 = vmatpush1.xpose.msra.mxu0 %v3113
        %4631 = vmatprep.subr.mxu0 %v3098
        %4632 = vmatpush1.xpose.msra.mxu0 %v3097
        %4633 = vmatprep.subr.mxu0 0.0
        %4634 = vmatpush2.xpose.msra.mxu0 0.0
        %4635 = vmatprep.subr.mxu0 0.0
        %4636 = vmatpush2.xpose.msra.mxu0 0.0
        %4637 = vmatprep.subr.mxu0 0.0
        %4638 = vmatpush2.xpose.msra.mxu0 0.0
        %4639 = vmatprep.subr.mxu0 0.0
        %4640 = vmatpush2.xpose.msra.mxu0 0.0
        %4641 = vmatprep.subr.mxu0 0.0
        %4642 = vmatpush2.xpose.msra.mxu0 0.0
        %4643 = vmatprep.subr.mxu0 0.0
        %4644 = vmatpush2.xpose.msra.mxu0 0.0
        %4645 = vmatprep.subr.mxu0 0.0
        %4646 = vmatpush2.xpose.msra.mxu0 0.0
        %4647 = vmatprep.subr.mxu0 0.0
        %4648 = vmatpush2.xpose.msra.mxu0 0.0
        %4649 = vmatprep.subr.mxu0 0.0
        %4650 = vmatpush2.xpose.msra.mxu0 0.0
        %4651 = vmatprep.subr.mxu0 0.0
        %4652 = vmatpush2.xpose.msra.mxu0 0.0
        %4653 = vmatprep.subr.mxu0 0.0
        %4654 = vmatpush2.xpose.msra.mxu0 0.0
        %4655 = vmatprep.subr.mxu0 0.0
        %4656 = vmatpush2.xpose.msra.mxu0 0.0
        %4657 = vmatprep.subr.mxu0 0.0
        %4658 = vmatpush2.xpose.msra.mxu0 0.0
        %4659 = vmatprep.subr.mxu0 0.0
        %4660 = vmatpush2.xpose.msra.mxu0 0.0
        %4661 = vmatprep.subr.mxu0 0.0
        %4662 = vmatpush2.xpose.msra.mxu0 0.0
        %4663 = vmatprep.subr.mxu0 0.0
        %4664 = vmatpush2.xpose.msra.mxu0 0.0
        %4665 = vmatprep.mubr.f32.mxu0 %v4053
        %4666 = vmatmul.mubr.f32.gmra.mxu0 %v4052
        %v4667 = vpop.f32.mrf.mxu0
        %v4668 = vadd.f32 %v4593, %v4667
        %v4669 = vpop.f32.mrf.mxu0
        %4670 = vmatprep.mubr.f32.mxu0 %v4069
        %4671 = vmatmul.mubr.f32.gmra.mxu0 %v4068
        %v4672 = vpop.f32.mrf.mxu0
        %v4673 = vadd.f32 %v4598, %v4672
        %v4674 = vpop.f32.mrf.mxu0
        %4675 = vdwg.mxu0
        %v4676 = vadd.f32 %v2823, %v4668
        %v4677 = vadd.f32 %v2824, %v4673
        %v4678 = vld [vmem:[#allocation14] sm:$0x1]
        %v4679 = vld [vmem:[#allocation16] sm:$0x1]
        %4680 = vadd.xlane.f32.xlu0 %v4676
        %v4681 = vpop.xlane.xlu0 %4680
        %v4682 = vsel %vm1521, %v4677, 0.0
        %4683 = vadd.xlane.f32.xlu0 %v4682
        %v4684 = vpop.xlane.xlu0 %4683
        %v4685 = vmul.f32 %v4681, %v2789
        %v4686 = vmul.f32 %v4684, %v2789
        %v4687 = vsub.f32 %v4676, %v4685
        %v4688 = vsub.f32 %v4677, %v4686
        %v4689 = vmul.f32 %v4687, %v4687
        %v4690 = vmul.f32 %v4688, %v4688
        %4691 = vadd.xlane.f32.xlu0 %v4689
        %v4692 = vpop.xlane.xlu0 %4691
        %v4693 = vsel %vm1521, %v4690, 0.0
        %4694 = vadd.xlane.f32.xlu0 %v4693
        %v4695 = vpop.xlane.xlu0 %4694
        %v4696 = vmul.f32 %v4692, %v2789
        %v4697 = vmul.f32 %v4695, %v2789
        %v4698 = vadd.f32 %v4696, 1e-05
        %v4699 = vadd.f32 %v4697, 1e-05
        %v4700 = vrsqrt.pop %v4698
        %v4701 = vrsqrt.pop %v4699
        %v4702 = vmul.f32 %v4687, %v4700
        %v4703 = vmul.f32 %v4688, %v4701
        %v4705 = vlaneseq
        %v4706 = vshrl.u32 %v4705, 7
        %v4707 = vsub.s32 0, %v4706
        %v4708 = vrot.slane %v4678, %v4707
        %v4710 = vmul.f32 %v4702, %v4708
        %v4711 = vmul.f32 %v4703, %v4708
        %v4713 = vlaneseq
        %v4714 = vshrl.u32 %v4713, 7
        %v4715 = vsub.s32 0, %v4714
        %v4716 = vrot.slane %v4679, %v4715
        %v4718 = vadd.f32 %v4710, %v4716
        %v4719 = vadd.f32 %v4711, %v4716
        %v4721 = vrot.slane %v4719, 2
        %vm4723 = vcmask 1045504
        %v4724 = vsel %vm4723, %v1165, %v4721
        %v4725 = vld [vmem:[#allocation20] sm:$0xff]
        %v4726 = vld [vmem:[#allocation20 + $0x8] sm:$0xff]
        %v4727 = vld [vmem:[#allocation20 + $0x10] sm:$0xff]
        %v4728 = vld [vmem:[#allocation20 + $0x18] sm:$0xff]
        %v4729 = vld [vmem:[#allocation20 + $0x20] sm:$0xff]
        %v4730 = vld [vmem:[#allocation20 + $0x28] sm:$0xff]
        %v4731 = vld [vmem:[#allocation20 + $0x30] sm:$0xff]
        %v4732 = vld [vmem:[#allocation20 + $0x38] sm:$0xff]
        %v4733 = vld [vmem:[#allocation20 + $0x40] sm:$0xff]
        %v4734 = vld [vmem:[#allocation20 + $0x48] sm:$0xff]
        %v4735 = vld [vmem:[#allocation20 + $0x50] sm:$0xff]
        %v4736 = vld [vmem:[#allocation20 + $0x58] sm:$0xff]
        %v4737 = vld [vmem:[#allocation20 + $0x60] sm:$0xff]
        %v4738 = vld [vmem:[#allocation20 + $0x68] sm:$0xff]
        %v4739 = vld [vmem:[#allocation20 + $0x70] sm:$0xff]
        %v4740 = vld [vmem:[#allocation20 + $0x78] sm:$0xff]
        %v4741 = vld [vmem:[#allocation20 + $0x80] sm:$0xff]
        %v4742 = vld [vmem:[#allocation20 + $0x88] sm:$0xff]
        %v4743 = vld [vmem:[#allocation20 + $0x90] sm:$0xff]
        %v4744 = vld [vmem:[#allocation20 + $0x98] sm:$0xff]
        %v4745 = vld [vmem:[#allocation20 + $0xa0] sm:$0xff]
        %v4746 = vld [vmem:[#allocation20 + $0xa8] sm:$0xff]
        %v4747 = vld [vmem:[#allocation20 + $0xb0] sm:$0xff]
        %v4748 = vld [vmem:[#allocation20 + $0xb8] sm:$0xff]
        %v4749 = vld [vmem:[#allocation20 + $0xc0] sm:$0xff]
        %v4750 = vld [vmem:[#allocation20 + $0xc8] sm:$0xff]
        %v4751 = vld [vmem:[#allocation20 + $0xd0] sm:$0xff]
        %v4752 = vld [vmem:[#allocation20 + $0xd8] sm:$0xff]
        %v4753 = vld [vmem:[#allocation20 + $0xe0] sm:$0xff]
        %v4754 = vld [vmem:[#allocation20 + $0xe8] sm:$0xff]
        %v4755 = vld [vmem:[#allocation20 + $0xf0] sm:$0xff]
        %v4756 = vld [vmem:[#allocation20 + $0xf8] sm:$0xff]
        %v4757 = vld [vmem:[#allocation20 + $0x100] sm:$0xff]
        %v4758 = vld [vmem:[#allocation20 + $0x108] sm:$0xff]
        %v4759 = vld [vmem:[#allocation20 + $0x110] sm:$0xff]
        %v4760 = vld [vmem:[#allocation20 + $0x118] sm:$0xff]
        %v4761 = vld [vmem:[#allocation20 + $0x120] sm:$0xff]
        %v4762 = vld [vmem:[#allocation20 + $0x128] sm:$0xff]
        %v4763 = vld [vmem:[#allocation20 + $0x130] sm:$0xff]
        %v4764 = vld [vmem:[#allocation20 + $0x138] sm:$0xff]
        %v4765 = vld [vmem:[#allocation20 + $0x140] sm:$0xff]
        %v4766 = vld [vmem:[#allocation20 + $0x148] sm:$0xff]
        %v4767 = vld [vmem:[#allocation20 + $0x150] sm:$0xff]
        %v4768 = vld [vmem:[#allocation20 + $0x158] sm:$0xff]
        %v4769 = vld [vmem:[#allocation20 + $0x160] sm:$0xff]
        %v4770 = vld [vmem:[#allocation20 + $0x168] sm:$0xff]
        %v4771 = vld [vmem:[#allocation20 + $0x170] sm:$0xff]
        %v4772 = vld [vmem:[#allocation20 + $0x178] sm:$0xff]
        %v4773 = vld [vmem:[%s33] sm:$0x7]
        %v4775 = vlaneseq
        %v4776 = vshrl.u32 %v4775, 7
        %v4777 = vsub.s32 0, %v4776
        %v4778 = vrot.slane %v4773, %v4777
        %v4779 = vlaneseq
        %v4780 = vshrl.u32 %v4779, 7
        %v4781 = vsub.s32 1, %v4780
        %v4782 = vrot.slane %v4773, %v4781
        %v4783 = vlaneseq
        %v4784 = vshrl.u32 %v4783, 7
        %v4785 = vsub.s32 2, %v4784
        %v4786 = vrot.slane %v4773, %v4785
        %4790 = vmatprep.subr.mxu0 0.0
        %4791 = vmatpush1.xpose.msra.mxu0 %v4740
        %4792 = vmatprep.subr.mxu0 0.0
        %4793 = vmatpush1.xpose.msra.mxu0 %v4739
        %4794 = vmatprep.subr.mxu0 0.0
        %4795 = vmatpush1.xpose.msra.mxu0 %v4738
        %4796 = vmatprep.subr.mxu0 0.0
        %4797 = vmatpush1.xpose.msra.mxu0 %v4737
        %4798 = vmatprep.subr.mxu0 0.0
        %4799 = vmatpush1.xpose.msra.mxu0 %v4736
        %4800 = vmatprep.subr.mxu0 0.0
        %4801 = vmatpush1.xpose.msra.mxu0 %v4735
        %4802 = vmatprep.subr.mxu0 0.0
        %4803 = vmatpush1.xpose.msra.mxu0 %v4734
        %4804 = vmatprep.subr.mxu0 0.0
        %4805 = vmatpush1.xpose.msra.mxu0 %v4733
        %4806 = vmatprep.subr.mxu0 0.0
        %4807 = vmatpush1.xpose.msra.mxu0 %v4732
        %4808 = vmatprep.subr.mxu0 0.0
        %4809 = vmatpush1.xpose.msra.mxu0 %v4731
        %4810 = vmatprep.subr.mxu0 0.0
        %4811 = vmatpush1.xpose.msra.mxu0 %v4730
        %4812 = vmatprep.subr.mxu0 0.0
        %4813 = vmatpush1.xpose.msra.mxu0 %v4729
        %4814 = vmatprep.subr.mxu0 0.0
        %4815 = vmatpush1.xpose.msra.mxu0 %v4728
        %4816 = vmatprep.subr.mxu0 0.0
        %4817 = vmatpush1.xpose.msra.mxu0 %v4727
        %4818 = vmatprep.subr.mxu0 0.0
        %4819 = vmatpush1.xpose.msra.mxu0 %v4726
        %4820 = vmatprep.subr.mxu0 0.0
        %4821 = vmatpush1.xpose.msra.mxu0 %v4725
        %4822 = vmatprep.subr.mxu0 0.0
        %4823 = vmatpush2.xpose.msra.mxu0 %v4756
        %4824 = vmatprep.subr.mxu0 0.0
        %4825 = vmatpush2.xpose.msra.mxu0 %v4755
        %4826 = vmatprep.subr.mxu0 0.0
        %4827 = vmatpush2.xpose.msra.mxu0 %v4754
        %4828 = vmatprep.subr.mxu0 0.0
        %4829 = vmatpush2.xpose.msra.mxu0 %v4753
        %4830 = vmatprep.subr.mxu0 0.0
        %4831 = vmatpush2.xpose.msra.mxu0 %v4752
        %4832 = vmatprep.subr.mxu0 0.0
        %4833 = vmatpush2.xpose.msra.mxu0 %v4751
        %4834 = vmatprep.subr.mxu0 0.0
        %4835 = vmatpush2.xpose.msra.mxu0 %v4750
        %4836 = vmatprep.subr.mxu0 0.0
        %4837 = vmatpush2.xpose.msra.mxu0 %v4749
        %4838 = vmatprep.subr.mxu0 0.0
        %4839 = vmatpush2.xpose.msra.mxu0 %v4748
        %4840 = vmatprep.subr.mxu0 0.0
        %4841 = vmatpush2.xpose.msra.mxu0 %v4747
        %4842 = vmatprep.subr.mxu0 0.0
        %4843 = vmatpush2.xpose.msra.mxu0 %v4746
        %4844 = vmatprep.subr.mxu0 0.0
        %4845 = vmatpush2.xpose.msra.mxu0 %v4745
        %4846 = vmatprep.subr.mxu0 0.0
        %4847 = vmatpush2.xpose.msra.mxu0 %v4744
        %4848 = vmatprep.subr.mxu0 0.0
        %4849 = vmatpush2.xpose.msra.mxu0 %v4743
        %4850 = vmatprep.subr.mxu0 0.0
        %4851 = vmatpush2.xpose.msra.mxu0 %v4742
        %4852 = vmatprep.subr.mxu0 0.0
        %4853 = vmatpush2.xpose.msra.mxu0 %v4741
        %4854 = vmatprep.mubr.f32.mxu0 0.0
        %4855 = vmatmul.mubr.f32.gmra.mxu0 %v4724
        %v4856 = vpop.f32.mrf.mxu0
        %v4857 = vadd.f32 %v4778, %v4856
        %v4858 = vpop.f32.mrf.mxu0
        %v4859 = vadd.f32 %v4782, %v4858
        %4860 = vmatprep.mubr.f32.mxu0 0.0
        %4861 = vmatmul.mubr.f32.gmra.mxu0 %v4721
        %v4862 = vpop.f32.mrf.mxu0
        %v4863 = vadd.f32 %v4778, %v4862
        %v4864 = vpop.f32.mrf.mxu0
        %v4865 = vadd.f32 %v4782, %v4864
        %4866 = vdwg.mxu0
        %4867 = vmatprep.subr.mxu0 0.0
        %4868 = vmatpush1.xpose.msra.mxu0 %v4772
        %4869 = vmatprep.subr.mxu0 0.0
        %4870 = vmatpush1.xpose.msra.mxu0 %v4771
        %4871 = vmatprep.subr.mxu0 0.0
        %4872 = vmatpush1.xpose.msra.mxu0 %v4770
        %4873 = vmatprep.subr.mxu0 0.0
        %4874 = vmatpush1.xpose.msra.mxu0 %v4769
        %4875 = vmatprep.subr.mxu0 0.0
        %4876 = vmatpush1.xpose.msra.mxu0 %v4768
        %4877 = vmatprep.subr.mxu0 0.0
        %4878 = vmatpush1.xpose.msra.mxu0 %v4767
        %4879 = vmatprep.subr.mxu0 0.0
        %4880 = vmatpush1.xpose.msra.mxu0 %v4766
        %4881 = vmatprep.subr.mxu0 0.0
        %4882 = vmatpush1.xpose.msra.mxu0 %v4765
        %4883 = vmatprep.subr.mxu0 0.0
        %4884 = vmatpush1.xpose.msra.mxu0 %v4764
        %4885 = vmatprep.subr.mxu0 0.0
        %4886 = vmatpush1.xpose.msra.mxu0 %v4763
        %4887 = vmatprep.subr.mxu0 0.0
        %4888 = vmatpush1.xpose.msra.mxu0 %v4762
        %4889 = vmatprep.subr.mxu0 0.0
        %4890 = vmatpush1.xpose.msra.mxu0 %v4761
        %4891 = vmatprep.subr.mxu0 0.0
        %4892 = vmatpush1.xpose.msra.mxu0 %v4760
        %4893 = vmatprep.subr.mxu0 0.0
        %4894 = vmatpush1.xpose.msra.mxu0 %v4759
        %4895 = vmatprep.subr.mxu0 0.0
        %4896 = vmatpush1.xpose.msra.mxu0 %v4758
        %4897 = vmatprep.subr.mxu0 0.0
        %4898 = vmatpush1.xpose.msra.mxu0 %v4757
        %4899 = vmatprep.subr.mxu0 0.0
        %4900 = vmatpush2.xpose.msra.mxu0 0.0
        %4901 = vmatprep.subr.mxu0 0.0
        %4902 = vmatpush2.xpose.msra.mxu0 0.0
        %4903 = vmatprep.subr.mxu0 0.0
        %4904 = vmatpush2.xpose.msra.mxu0 0.0
        %4905 = vmatprep.subr.mxu0 0.0
        %4906 = vmatpush2.xpose.msra.mxu0 0.0
        %4907 = vmatprep.subr.mxu0 0.0
        %4908 = vmatpush2.xpose.msra.mxu0 0.0
        %4909 = vmatprep.subr.mxu0 0.0
        %4910 = vmatpush2.xpose.msra.mxu0 0.0
        %4911 = vmatprep.subr.mxu0 0.0
        %4912 = vmatpush2.xpose.msra.mxu0 0.0
        %4913 = vmatprep.subr.mxu0 0.0
        %4914 = vmatpush2.xpose.msra.mxu0 0.0
        %4915 = vmatprep.subr.mxu0 0.0
        %4916 = vmatpush2.xpose.msra.mxu0 0.0
        %4917 = vmatprep.subr.mxu0 0.0
        %4918 = vmatpush2.xpose.msra.mxu0 0.0
        %4919 = vmatprep.subr.mxu0 0.0
        %4920 = vmatpush2.xpose.msra.mxu0 0.0
        %4921 = vmatprep.subr.mxu0 0.0
        %4922 = vmatpush2.xpose.msra.mxu0 0.0
        %4923 = vmatprep.subr.mxu0 0.0
        %4924 = vmatpush2.xpose.msra.mxu0 0.0
        %4925 = vmatprep.subr.mxu0 0.0
        %4926 = vmatpush2.xpose.msra.mxu0 0.0
        %4927 = vmatprep.subr.mxu0 0.0
        %4928 = vmatpush2.xpose.msra.mxu0 0.0
        %4929 = vmatprep.subr.mxu0 0.0
        %4930 = vmatpush2.xpose.msra.mxu0 0.0
        %4931 = vmatprep.mubr.f32.mxu0 0.0
        %4932 = vmatmul.mubr.f32.gmra.mxu0 %v4724
        %v4933 = vpop.f32.mrf.mxu0
        %v4934 = vadd.f32 %v4786, %v4933
        %v4935 = vpop.f32.mrf.mxu0
        %4936 = vmatprep.mubr.f32.mxu0 0.0
        %4937 = vmatmul.mubr.f32.gmra.mxu0 %v4721
        %v4938 = vpop.f32.mrf.mxu0
        %v4939 = vadd.f32 %v4786, %v4938
        %v4940 = vpop.f32.mrf.mxu0
        %4941 = vdwg.mxu0
        %v4942 = vmul.f32 %v4857, 0.17677669
        %v4943 = vmul.f32 %v4863, 0.17677669
        %v4944 = vld [vmem:[#allocation22] sm:$0xff]
        %v4945 = vld [vmem:[#allocation22 + $0x8] sm:$0xff]
        %v4946 = vld [vmem:[#allocation22 + $0x10] sm:$0xff]
        %v4947 = vld [vmem:[#allocation22 + $0x18] sm:$0xff]
        %v4948 = vld [vmem:[#allocation22 + $0x20] sm:$0xff]
        %v4949 = vld [vmem:[#allocation22 + $0x28] sm:$0xff]
        %v4950 = vld [vmem:[#allocation22 + $0x30] sm:$0xff]
        %v4951 = vld [vmem:[#allocation22 + $0x38] sm:$0xff]
        %v4952 = vld [vmem:[#allocation22 + $0x40] sm:$0xff]
        %v4953 = vld [vmem:[#allocation22 + $0x48] sm:$0xff]
        %v4954 = vld [vmem:[#allocation22 + $0x50] sm:$0xff]
        %v4955 = vld [vmem:[#allocation22 + $0x58] sm:$0xff]
        %v4956 = vld [vmem:[#allocation22 + $0x60] sm:$0xff]
        %v4957 = vld [vmem:[#allocation22 + $0x68] sm:$0xff]
        %v4958 = vld [vmem:[#allocation22 + $0x70] sm:$0xff]
        %v4959 = vld [vmem:[#allocation22 + $0x78] sm:$0xff]
        %v4960 = vld [vmem:[%s37] sm:$0x1]
        %v4962 = vsel %vm1403, %v4942, 0
        %v4965 = vsel %vm1403, %v4943, 0
        %v4968 = vsel %vm1403, %v4859, 0
        %v4971 = vsel %vm1403, %v4865, 0
        %4973 = vmatprep.subr.mxu0 0.0
        %4974 = vmatpush1.xpose.msra.mxu0 0.0
        %4975 = vmatprep.subr.mxu0 0.0
        %4976 = vmatpush1.xpose.msra.mxu0 0.0
        %4977 = vmatprep.subr.mxu0 0.0
        %4978 = vmatpush1.xpose.msra.mxu0 0.0
        %4979 = vmatprep.subr.mxu0 0.0
        %4980 = vmatpush1.xpose.msra.mxu0 0.0
        %4981 = vmatprep.subr.mxu0 0.0
        %4982 = vmatpush1.xpose.msra.mxu0 0.0
        %4983 = vmatprep.subr.mxu0 0.0
        %4984 = vmatpush1.xpose.msra.mxu0 0.0
        %4985 = vmatprep.subr.mxu0 0.0
        %4986 = vmatpush1.xpose.msra.mxu0 0.0
        %4987 = vmatprep.subr.mxu0 0.0
        %4988 = vmatpush1.xpose.msra.mxu0 0.0
        %4989 = vmatprep.subr.mxu0 0.0
        %4990 = vmatpush1.xpose.msra.mxu0 0.0
        %4991 = vmatprep.subr.mxu0 0.0
        %4992 = vmatpush1.xpose.msra.mxu0 0.0
        %4993 = vmatprep.subr.mxu0 0.0
        %4994 = vmatpush1.xpose.msra.mxu0 0.0
        %4995 = vmatprep.subr.mxu0 0.0
        %4996 = vmatpush1.xpose.msra.mxu0 0.0
        %4997 = vmatprep.subr.mxu0 0.0
        %4998 = vmatpush1.xpose.msra.mxu0 0.0
        %4999 = vmatprep.subr.mxu0 0.0
        %5000 = vmatpush1.xpose.msra.mxu0 0.0
        %5001 = vmatprep.subr.mxu0 0.0
        %5002 = vmatpush1.xpose.msra.mxu0 %v4971
        %5003 = vmatprep.subr.mxu0 0.0
        %5004 = vmatpush1.xpose.msra.mxu0 %v4968
        %5005 = vmatprep.subr.mxu0 0.0
        %5006 = vmatpush2.xpose.msra.mxu0 0.0
        %5007 = vmatprep.subr.mxu0 0.0
        %5008 = vmatpush2.xpose.msra.mxu0 0.0
        %5009 = vmatprep.subr.mxu0 0.0
        %5010 = vmatpush2.xpose.msra.mxu0 0.0
        %5011 = vmatprep.subr.mxu0 0.0
        %5012 = vmatpush2.xpose.msra.mxu0 0.0
        %5013 = vmatprep.subr.mxu0 0.0
        %5014 = vmatpush2.xpose.msra.mxu0 0.0
        %5015 = vmatprep.subr.mxu0 0.0
        %5016 = vmatpush2.xpose.msra.mxu0 0.0
        %5017 = vmatprep.subr.mxu0 0.0
        %5018 = vmatpush2.xpose.msra.mxu0 0.0
        %5019 = vmatprep.subr.mxu0 0.0
        %5020 = vmatpush2.xpose.msra.mxu0 0.0
        %5021 = vmatprep.subr.mxu0 0.0
        %5022 = vmatpush2.xpose.msra.mxu0 0.0
        %5023 = vmatprep.subr.mxu0 0.0
        %5024 = vmatpush2.xpose.msra.mxu0 0.0
        %5025 = vmatprep.subr.mxu0 0.0
        %5026 = vmatpush2.xpose.msra.mxu0 0.0
        %5027 = vmatprep.subr.mxu0 0.0
        %5028 = vmatpush2.xpose.msra.mxu0 0.0
        %5029 = vmatprep.subr.mxu0 0.0
        %5030 = vmatpush2.xpose.msra.mxu0 0.0
        %5031 = vmatprep.subr.mxu0 0.0
        %5032 = vmatpush2.xpose.msra.mxu0 0.0
        %5033 = vmatprep.subr.mxu0 0.0
        %5034 = vmatpush2.xpose.msra.mxu0 0.0
        %5035 = vmatprep.subr.mxu0 0.0
        %5036 = vmatpush2.xpose.msra.mxu0 0.0
        %5037 = vmatprep.mubr.f32.mxu0 0.0
        %5038 = vmatmul.mubr.f32.gmra.mxu0 %v4962
        %v5039 = vpop.f32.mrf.mxu0
        %v5040 = vadd.f32 0.0, %v5039
        %v5041 = vpop.f32.mrf.mxu0
        %5042 = vmatprep.mubr.f32.mxu0 0.0
        %5043 = vmatmul.mubr.f32.gmra.mxu0 %v4965
        %v5044 = vpop.f32.mrf.mxu0
        %v5045 = vadd.f32 0.0, %v5044
        %v5046 = vpop.f32.mrf.mxu0
        %5047 = vdwg.mxu0
        %vm5048 = vcmask 80896
        %v5049 = vsel %vm5048, %v5040, -inf
        %5050 = vmax.xlane.f32.xlu0 %v5049
        %v5051 = vpop.xlane.xlu0 %5050
        %vm5052 = vcmask 74752
        %v5053 = vsel %vm5052, %v5045, -inf
        %5054 = vmax.xlane.f32.xlu0 %v5053
        %v5055 = vpop.xlane.xlu0 %5054
        %v5056 = vsub.f32 %v5040, %v5051
        %v5057 = vsub.f32 %v5045, %v5055
        %v5058 = vmul.f32 %v5056, 1.442695
        %v5059 = vpow.pop %v5058
        %v5060 = vmul.f32 %v5057, 1.442695
        %v5061 = vpow.pop %v5060
        %v5062 = vsel %vm5048, %v5059, 0.0
        %5063 = vadd.xlane.f32.xlu0 %v5062
        %v5064 = vpop.xlane.xlu0 %5063
        %v5065 = vsel %vm5052, %v5061, 0.0
        %5066 = vadd.xlane.f32.xlu0 %v5065
        %v5067 = vpop.xlane.xlu0 %5066
        %v5068 = vrcp.pop %v5064
        %v5069 = vrcp.pop %v5067
        %v5070 = vmul.f32 %v5059, %v5068
        %v5071 = vmul.f32 %v5061, %v5069
        %v5073 = vsel %vm5048, %v5070, 0
        %v5076 = vsel %vm5048, %v5071, 0
        %vm5078 = vcmask 1041408
        %v5080 = vsel %vm5078, %v4939, 0
        %5082 = vmatprep.subr.mxu0 0.0
        %5083 = vmatpush1.msra.mxu0 0.0
        %5084 = vmatprep.subr.mxu0 0.0
        %5085 = vmatpush1.msra.mxu0 0.0
        %5086 = vmatprep.subr.mxu0 0.0
        %5087 = vmatpush1.msra.mxu0 0.0
        %5088 = vmatprep.subr.mxu0 0.0
        %5089 = vmatpush1.msra.mxu0 0.0
        %5090 = vmatprep.subr.mxu0 0.0
        %5091 = vmatpush1.msra.mxu0 0.0
        %5092 = vmatprep.subr.mxu0 0.0
        %5093 = vmatpush1.msra.mxu0 0.0
        %5094 = vmatprep.subr.mxu0 0.0
        %5095 = vmatpush1.msra.mxu0 0.0
        %5096 = vmatprep.subr.mxu0 0.0
        %5097 = vmatpush1.msra.mxu0 0.0
        %5098 = vmatprep.subr.mxu0 0.0
        %5099 = vmatpush1.msra.mxu0 0.0
        %5100 = vmatprep.subr.mxu0 0.0
        %5101 = vmatpush1.msra.mxu0 0.0
        %5102 = vmatprep.subr.mxu0 0.0
        %5103 = vmatpush1.msra.mxu0 0.0
        %5104 = vmatprep.subr.mxu0 0.0
        %5105 = vmatpush1.msra.mxu0 0.0
        %5106 = vmatprep.subr.mxu0 0.0
        %5107 = vmatpush1.msra.mxu0 0.0
        %5108 = vmatprep.subr.mxu0 0.0
        %5109 = vmatpush1.msra.mxu0 0.0
        %5110 = vmatprep.subr.mxu0 0.0
        %5111 = vmatpush1.msra.mxu0 %v5080
        %5112 = vmatprep.subr.mxu0 0.0
        %5113 = vmatpush1.msra.mxu0 %v4934
        %5114 = vmatprep.subr.mxu0 0.0
        %5115 = vmatpush2.msra.mxu0 0.0
        %5116 = vmatprep.subr.mxu0 0.0
        %5117 = vmatpush2.msra.mxu0 0.0
        %5118 = vmatprep.subr.mxu0 0.0
        %5119 = vmatpush2.msra.mxu0 0.0
        %5120 = vmatprep.subr.mxu0 0.0
        %5121 = vmatpush2.msra.mxu0 0.0
        %5122 = vmatprep.subr.mxu0 0.0
        %5123 = vmatpush2.msra.mxu0 0.0
        %5124 = vmatprep.subr.mxu0 0.0
        %5125 = vmatpush2.msra.mxu0 0.0
        %5126 = vmatprep.subr.mxu0 0.0
        %5127 = vmatpush2.msra.mxu0 0.0
        %5128 = vmatprep.subr.mxu0 0.0
        %5129 = vmatpush2.msra.mxu0 0.0
        %5130 = vmatprep.subr.mxu0 0.0
        %5131 = vmatpush2.msra.mxu0 0.0
        %5132 = vmatprep.subr.mxu0 0.0
        %5133 = vmatpush2.msra.mxu0 0.0
        %5134 = vmatprep.subr.mxu0 0.0
        %5135 = vmatpush2.msra.mxu0 0.0
        %5136 = vmatprep.subr.mxu0 0.0
        %5137 = vmatpush2.msra.mxu0 0.0
        %5138 = vmatprep.subr.mxu0 0.0
        %5139 = vmatpush2.msra.mxu0 0.0
        %5140 = vmatprep.subr.mxu0 0.0
        %5141 = vmatpush2.msra.mxu0 0.0
        %5142 = vmatprep.subr.mxu0 0.0
        %5143 = vmatpush2.msra.mxu0 0.0
        %5144 = vmatprep.subr.mxu0 0.0
        %5145 = vmatpush2.msra.mxu0 0.0
        %5146 = vmatprep.mubr.f32.mxu0 0.0
        %5147 = vmatmul.mubr.f32.gmra.mxu0 %v5073
        %v5148 = vpop.f32.mrf.mxu0
        %v5149 = vadd.f32 0.0, %v5148
        %v5150 = vpop.f32.mrf.mxu0
        %5151 = vmatprep.mubr.f32.mxu0 0.0
        %5152 = vmatmul.mubr.f32.gmra.mxu0 %v5076
        %v5153 = vpop.f32.mrf.mxu0
        %v5154 = vadd.f32 0.0, %v5153
        %v5155 = vpop.f32.mrf.mxu0
        %5156 = vdwg.mxu0
        %5157 = vrot.lane.b32.xlu0 %v4942, 96
        %v5158 = vpop.permute.xlu0 %5157
        %5159 = vrot.lane.b32.xlu0 %v4943, 96
        %v5160 = vpop.permute.xlu0 %5159
        %5161 = vrot.lane.b32.xlu0 %v4859, 96
        %v5162 = vpop.permute.xlu0 %5161
        %5163 = vrot.lane.b32.xlu0 %v4865, 96
        %v5164 = vpop.permute.xlu0 %5163
        %v5165 = vsel %vm1403, %v5158, 0
        %v5167 = vsel %vm1403, %v5160, 0
        %v5169 = vsel %vm1403, %v5162, 0
        %v5171 = vsel %vm1403, %v5164, 0
        %5173 = vmatprep.subr.mxu0 0.0
        %5174 = vmatpush1.xpose.msra.mxu0 0.0
        %5175 = vmatprep.subr.mxu0 0.0
        %5176 = vmatpush1.xpose.msra.mxu0 0.0
        %5177 = vmatprep.subr.mxu0 0.0
        %5178 = vmatpush1.xpose.msra.mxu0 0.0
        %5179 = vmatprep.subr.mxu0 0.0
        %5180 = vmatpush1.xpose.msra.mxu0 0.0
        %5181 = vmatprep.subr.mxu0 0.0
        %5182 = vmatpush1.xpose.msra.mxu0 0.0
        %5183 = vmatprep.subr.mxu0 0.0
        %5184 = vmatpush1.xpose.msra.mxu0 0.0
        %5185 = vmatprep.subr.mxu0 0.0
        %5186 = vmatpush1.xpose.msra.mxu0 0.0
        %5187 = vmatprep.subr.mxu0 0.0
        %5188 = vmatpush1.xpose.msra.mxu0 0.0
        %5189 = vmatprep.subr.mxu0 0.0
        %5190 = vmatpush1.xpose.msra.mxu0 0.0
        %5191 = vmatprep.subr.mxu0 0.0
        %5192 = vmatpush1.xpose.msra.mxu0 0.0
        %5193 = vmatprep.subr.mxu0 0.0
        %5194 = vmatpush1.xpose.msra.mxu0 0.0
        %5195 = vmatprep.subr.mxu0 0.0
        %5196 = vmatpush1.xpose.msra.mxu0 0.0
        %5197 = vmatprep.subr.mxu0 0.0
        %5198 = vmatpush1.xpose.msra.mxu0 0.0
        %5199 = vmatprep.subr.mxu0 0.0
        %5200 = vmatpush1.xpose.msra.mxu0 0.0
        %5201 = vmatprep.subr.mxu0 0.0
        %5202 = vmatpush1.xpose.msra.mxu0 %v5171
        %5203 = vmatprep.subr.mxu0 0.0
        %5204 = vmatpush1.xpose.msra.mxu0 %v5169
        %5205 = vmatprep.subr.mxu0 0.0
        %5206 = vmatpush2.xpose.msra.mxu0 0.0
        %5207 = vmatprep.subr.mxu0 0.0
        %5208 = vmatpush2.xpose.msra.mxu0 0.0
        %5209 = vmatprep.subr.mxu0 0.0
        %5210 = vmatpush2.xpose.msra.mxu0 0.0
        %5211 = vmatprep.subr.mxu0 0.0
        %5212 = vmatpush2.xpose.msra.mxu0 0.0
        %5213 = vmatprep.subr.mxu0 0.0
        %5214 = vmatpush2.xpose.msra.mxu0 0.0
        %5215 = vmatprep.subr.mxu0 0.0
        %5216 = vmatpush2.xpose.msra.mxu0 0.0
        %5217 = vmatprep.subr.mxu0 0.0
        %5218 = vmatpush2.xpose.msra.mxu0 0.0
        %5219 = vmatprep.subr.mxu0 0.0
        %5220 = vmatpush2.xpose.msra.mxu0 0.0
        %5221 = vmatprep.subr.mxu0 0.0
        %5222 = vmatpush2.xpose.msra.mxu0 0.0
        %5223 = vmatprep.subr.mxu0 0.0
        %5224 = vmatpush2.xpose.msra.mxu0 0.0
        %5225 = vmatprep.subr.mxu0 0.0
        %5226 = vmatpush2.xpose.msra.mxu0 0.0
        %5227 = vmatprep.subr.mxu0 0.0
        %5228 = vmatpush2.xpose.msra.mxu0 0.0
        %5229 = vmatprep.subr.mxu0 0.0
        %5230 = vmatpush2.xpose.msra.mxu0 0.0
        %5231 = vmatprep.subr.mxu0 0.0
        %5232 = vmatpush2.xpose.msra.mxu0 0.0
        %5233 = vmatprep.subr.mxu0 0.0
        %5234 = vmatpush2.xpose.msra.mxu0 0.0
        %5235 = vmatprep.subr.mxu0 0.0
        %5236 = vmatpush2.xpose.msra.mxu0 0.0
        %5237 = vmatprep.mubr.f32.mxu0 0.0
        %5238 = vmatmul.mubr.f32.gmra.mxu0 %v5165
        %v5239 = vpop.f32.mrf.mxu0
        %v5240 = vadd.f32 0.0, %v5239
        %v5241 = vpop.f32.mrf.mxu0
        %5242 = vmatprep.mubr.f32.mxu0 0.0
        %5243 = vmatmul.mubr.f32.gmra.mxu0 %v5167
        %v5244 = vpop.f32.mrf.mxu0
        %v5245 = vadd.f32 0.0, %v5244
        %v5246 = vpop.f32.mrf.mxu0
        %5247 = vdwg.mxu0
        %v5248 = vsel %vm5048, %v5240, -inf
        %5249 = vmax.xlane.f32.xlu0 %v5248
        %v5250 = vpop.xlane.xlu0 %5249
        %v5251 = vsel %vm5052, %v5245, -inf
        %5252 = vmax.xlane.f32.xlu0 %v5251
        %v5253 = vpop.xlane.xlu0 %5252
        %v5254 = vsub.f32 %v5240, %v5250
        %v5255 = vsub.f32 %v5245, %v5253
        %v5256 = vmul.f32 %v5254, 1.442695
        %v5257 = vpow.pop %v5256
        %v5258 = vmul.f32 %v5255, 1.442695
        %v5259 = vpow.pop %v5258
        %v5260 = vsel %vm5048, %v5257, 0.0
        %5261 = vadd.xlane.f32.xlu0 %v5260
        %v5262 = vpop.xlane.xlu0 %5261
        %v5263 = vsel %vm5052, %v5259, 0.0
        %5264 = vadd.xlane.f32.xlu0 %v5263
        %v5265 = vpop.xlane.xlu0 %5264
        %v5266 = vrcp.pop %v5262
        %v5267 = vrcp.pop %v5265
        %v5268 = vmul.f32 %v5257, %v5266
        %v5269 = vmul.f32 %v5259, %v5267
        %5271 = vrot.lane.b32.xlu0 %v4934, 96
        %v5272 = vpop.permute.xlu0 %5271
        %5273 = vrot.lane.b32.xlu0 %v4939, 96
        %v5274 = vpop.permute.xlu0 %5273
        %v5277 = vsel %vm5048, %v5268, 0
        %v5280 = vsel %vm5048, %v5269, 0
        %v5282 = vsel %vm5078, %v5274, 0
        %5284 = vmatprep.subr.mxu0 0.0
        %5285 = vmatpush1.msra.mxu0 0.0
        %5286 = vmatprep.subr.mxu0 0.0
        %5287 = vmatpush1.msra.mxu0 0.0
        %5288 = vmatprep.subr.mxu0 0.0
        %5289 = vmatpush1.msra.mxu0 0.0
        %5290 = vmatprep.subr.mxu0 0.0
        %5291 = vmatpush1.msra.mxu0 0.0
        %5292 = vmatprep.subr.mxu0 0.0
        %5293 = vmatpush1.msra.mxu0 0.0
        %5294 = vmatprep.subr.mxu0 0.0
        %5295 = vmatpush1.msra.mxu0 0.0
        %5296 = vmatprep.subr.mxu0 0.0
        %5297 = vmatpush1.msra.mxu0 0.0
        %5298 = vmatprep.subr.mxu0 0.0
        %5299 = vmatpush1.msra.mxu0 0.0
        %5300 = vmatprep.subr.mxu0 0.0
        %5301 = vmatpush1.msra.mxu0 0.0
        %5302 = vmatprep.subr.mxu0 0.0
        %5303 = vmatpush1.msra.mxu0 0.0
        %5304 = vmatprep.subr.mxu0 0.0
        %5305 = vmatpush1.msra.mxu0 0.0
        %5306 = vmatprep.subr.mxu0 0.0
        %5307 = vmatpush1.msra.mxu0 0.0
        %5308 = vmatprep.subr.mxu0 0.0
        %5309 = vmatpush1.msra.mxu0 0.0
        %5310 = vmatprep.subr.mxu0 0.0
        %5311 = vmatpush1.msra.mxu0 0.0
        %5312 = vmatprep.subr.mxu0 0.0
        %5313 = vmatpush1.msra.mxu0 %v5282
        %5314 = vmatprep.subr.mxu0 0.0
        %5315 = vmatpush1.msra.mxu0 %v5272
        %5316 = vmatprep.subr.mxu0 0.0
        %5317 = vmatpush2.msra.mxu0 0.0
        %5318 = vmatprep.subr.mxu0 0.0
        %5319 = vmatpush2.msra.mxu0 0.0
        %5320 = vmatprep.subr.mxu0 0.0
        %5321 = vmatpush2.msra.mxu0 0.0
        %5322 = vmatprep.subr.mxu0 0.0
        %5323 = vmatpush2.msra.mxu0 0.0
        %5324 = vmatprep.subr.mxu0 0.0
        %5325 = vmatpush2.msra.mxu0 0.0
        %5326 = vmatprep.subr.mxu0 0.0
        %5327 = vmatpush2.msra.mxu0 0.0
        %5328 = vmatprep.subr.mxu0 0.0
        %5329 = vmatpush2.msra.mxu0 0.0
        %5330 = vmatprep.subr.mxu0 0.0
        %5331 = vmatpush2.msra.mxu0 0.0
        %5332 = vmatprep.subr.mxu0 0.0
        %5333 = vmatpush2.msra.mxu0 0.0
        %5334 = vmatprep.subr.mxu0 0.0
        %5335 = vmatpush2.msra.mxu0 0.0
        %5336 = vmatprep.subr.mxu0 0.0
        %5337 = vmatpush2.msra.mxu0 0.0
        %5338 = vmatprep.subr.mxu0 0.0
        %5339 = vmatpush2.msra.mxu0 0.0
        %5340 = vmatprep.subr.mxu0 0.0
        %5341 = vmatpush2.msra.mxu0 0.0
        %5342 = vmatprep.subr.mxu0 0.0
        %5343 = vmatpush2.msra.mxu0 0.0
        %5344 = vmatprep.subr.mxu0 0.0
        %5345 = vmatpush2.msra.mxu0 0.0
        %5346 = vmatprep.subr.mxu0 0.0
        %5347 = vmatpush2.msra.mxu0 0.0
        %5348 = vmatprep.mubr.f32.mxu0 0.0
        %5349 = vmatmul.mubr.f32.gmra.mxu0 %v5277
        %v5350 = vpop.f32.mrf.mxu0
        %v5351 = vadd.f32 0.0, %v5350
        %v5352 = vpop.f32.mrf.mxu0
        %5353 = vmatprep.mubr.f32.mxu0 0.0
        %5354 = vmatmul.mubr.f32.gmra.mxu0 %v5280
        %v5355 = vpop.f32.mrf.mxu0
        %v5356 = vadd.f32 0.0, %v5355
        %v5357 = vpop.f32.mrf.mxu0
        %5358 = vdwg.mxu0
        %5375 = vrot.lane.b32.xlu0 %v4944, 96
        %v5376 = vpop.permute.xlu0 %5375
        %5377 = vrot.lane.b32.xlu0 %v4945, 96
        %v5378 = vpop.permute.xlu0 %5377
        %5379 = vrot.lane.b32.xlu0 %v4946, 96
        %v5380 = vpop.permute.xlu0 %5379
        %5381 = vrot.lane.b32.xlu0 %v4947, 96
        %v5382 = vpop.permute.xlu0 %5381
        %5383 = vrot.lane.b32.xlu0 %v4948, 96
        %v5384 = vpop.permute.xlu0 %5383
        %5385 = vrot.lane.b32.xlu0 %v4949, 96
        %v5386 = vpop.permute.xlu0 %5385
        %5387 = vrot.lane.b32.xlu0 %v4950, 96
        %v5388 = vpop.permute.xlu0 %5387
        %5389 = vrot.lane.b32.xlu0 %v4951, 96
        %v5390 = vpop.permute.xlu0 %5389
        %5391 = vrot.lane.b32.xlu0 %v4952, 96
        %v5392 = vpop.permute.xlu0 %5391
        %5393 = vrot.lane.b32.xlu0 %v4953, 96
        %v5394 = vpop.permute.xlu0 %5393
        %5395 = vrot.lane.b32.xlu0 %v4954, 96
        %v5396 = vpop.permute.xlu0 %5395
        %5397 = vrot.lane.b32.xlu0 %v4955, 96
        %v5398 = vpop.permute.xlu0 %5397
        %5399 = vrot.lane.b32.xlu0 %v4956, 96
        %v5400 = vpop.permute.xlu0 %5399
        %5401 = vrot.lane.b32.xlu0 %v4957, 96
        %v5402 = vpop.permute.xlu0 %5401
        %5403 = vrot.lane.b32.xlu0 %v4958, 96
        %v5404 = vpop.permute.xlu0 %5403
        %5405 = vrot.lane.b32.xlu0 %v4959, 96
        %v5406 = vpop.permute.xlu0 %5405
        %v5408 = vsel %vm1403, %v5351, 0
        %v5411 = vsel %vm1403, %v5356, 0
        %v5413 = vsel %vm1403, %v5376, 0
        %v5415 = vsel %vm1403, %v5378, 0
        %v5417 = vsel %vm1403, %v5380, 0
        %v5419 = vsel %vm1403, %v5382, 0
        %v5421 = vsel %vm1403, %v5384, 0
        %v5423 = vsel %vm1403, %v5386, 0
        %v5425 = vsel %vm1403, %v5388, 0
        %v5427 = vsel %vm1403, %v5390, 0
        %v5429 = vsel %vm1403, %v5392, 0
        %v5431 = vsel %vm1403, %v5394, 0
        %v5433 = vsel %vm1403, %v5396, 0
        %v5435 = vsel %vm1403, %v5398, 0
        %v5437 = vsel %vm1403, %v5400, 0
        %v5439 = vsel %vm1403, %v5402, 0
        %v5441 = vsel %vm1403, %v5404, 0
        %v5443 = vsel %vm1403, %v5406, 0
        %5445 = vmatprep.subr.mxu0 0.0
        %5446 = vmatpush1.xpose.msra.mxu0 %v5443
        %5447 = vmatprep.subr.mxu0 0.0
        %5448 = vmatpush1.xpose.msra.mxu0 %v5441
        %5449 = vmatprep.subr.mxu0 0.0
        %5450 = vmatpush1.xpose.msra.mxu0 %v5439
        %5451 = vmatprep.subr.mxu0 0.0
        %5452 = vmatpush1.xpose.msra.mxu0 %v5437
        %5453 = vmatprep.subr.mxu0 0.0
        %5454 = vmatpush1.xpose.msra.mxu0 %v5435
        %5455 = vmatprep.subr.mxu0 0.0
        %5456 = vmatpush1.xpose.msra.mxu0 %v5433
        %5457 = vmatprep.subr.mxu0 0.0
        %5458 = vmatpush1.xpose.msra.mxu0 %v5431
        %5459 = vmatprep.subr.mxu0 0.0
        %5460 = vmatpush1.xpose.msra.mxu0 %v5429
        %5461 = vmatprep.subr.mxu0 0.0
        %5462 = vmatpush1.xpose.msra.mxu0 %v5427
        %5463 = vmatprep.subr.mxu0 0.0
        %5464 = vmatpush1.xpose.msra.mxu0 %v5425
        %5465 = vmatprep.subr.mxu0 0.0
        %5466 = vmatpush1.xpose.msra.mxu0 %v5423
        %5467 = vmatprep.subr.mxu0 0.0
        %5468 = vmatpush1.xpose.msra.mxu0 %v5421
        %5469 = vmatprep.subr.mxu0 0.0
        %5470 = vmatpush1.xpose.msra.mxu0 %v5419
        %5471 = vmatprep.subr.mxu0 0.0
        %5472 = vmatpush1.xpose.msra.mxu0 %v5417
        %5473 = vmatprep.subr.mxu0 0.0
        %5474 = vmatpush1.xpose.msra.mxu0 %v5415
        %5475 = vmatprep.subr.mxu0 0.0
        %5476 = vmatpush1.xpose.msra.mxu0 %v5413
        %5477 = vmatprep.subr.mxu0 0.0
        %5478 = vmatpush2.xpose.msra.mxu0 0.0
        %5479 = vmatprep.subr.mxu0 0.0
        %5480 = vmatpush2.xpose.msra.mxu0 0.0
        %5481 = vmatprep.subr.mxu0 0.0
        %5482 = vmatpush2.xpose.msra.mxu0 0.0
        %5483 = vmatprep.subr.mxu0 0.0
        %5484 = vmatpush2.xpose.msra.mxu0 0.0
        %5485 = vmatprep.subr.mxu0 0.0
        %5486 = vmatpush2.xpose.msra.mxu0 0.0
        %5487 = vmatprep.subr.mxu0 0.0
        %5488 = vmatpush2.xpose.msra.mxu0 0.0
        %5489 = vmatprep.subr.mxu0 0.0
        %5490 = vmatpush2.xpose.msra.mxu0 0.0
        %5491 = vmatprep.subr.mxu0 0.0
        %5492 = vmatpush2.xpose.msra.mxu0 0.0
        %5493 = vmatprep.subr.mxu0 0.0
        %5494 = vmatpush2.xpose.msra.mxu0 0.0
        %5495 = vmatprep.subr.mxu0 0.0
        %5496 = vmatpush2.xpose.msra.mxu0 0.0
        %5497 = vmatprep.subr.mxu0 0.0
        %5498 = vmatpush2.xpose.msra.mxu0 0.0
        %5499 = vmatprep.subr.mxu0 0.0
        %5500 = vmatpush2.xpose.msra.mxu0 0.0
        %5501 = vmatprep.subr.mxu0 0.0
        %5502 = vmatpush2.xpose.msra.mxu0 0.0
        %5503 = vmatprep.subr.mxu0 0.0
        %5504 = vmatpush2.xpose.msra.mxu0 0.0
        %5505 = vmatprep.subr.mxu0 0.0
        %5506 = vmatpush2.xpose.msra.mxu0 0.0
        %5507 = vmatprep.subr.mxu0 0.0
        %5508 = vmatpush2.xpose.msra.mxu0 0.0
        %5509 = vmatprep.mubr.f32.mxu0 0.0
        %5510 = vmatmul.mubr.f32.gmra.mxu0 %v5408
        %v5511 = vpop.f32.mrf.mxu0
        %v5512 = vadd.f32 0.0, %v5511
        %v5513 = vpop.f32.mrf.mxu0
        %5514 = vmatprep.mubr.f32.mxu0 0.0
        %5515 = vmatmul.mubr.f32.gmra.mxu0 %v5411
        %v5516 = vpop.f32.mrf.mxu0
        %v5517 = vadd.f32 0.0, %v5516
        %v5518 = vpop.f32.mrf.mxu0
        %5519 = vdwg.mxu0
        %v5521 = vsel %vm1403, %v5149, 0
        %v5524 = vsel %vm1403, %v5154, 0
        %v5526 = vsel %vm1403, %v4944, 0
        %v5528 = vsel %vm1403, %v4945, 0
        %v5530 = vsel %vm1403, %v4946, 0
        %v5532 = vsel %vm1403, %v4947, 0
        %v5534 = vsel %vm1403, %v4948, 0
        %v5536 = vsel %vm1403, %v4949, 0
        %v5538 = vsel %vm1403, %v4950, 0
        %v5540 = vsel %vm1403, %v4951, 0
        %v5542 = vsel %vm1403, %v4952, 0
        %v5544 = vsel %vm1403, %v4953, 0
        %v5546 = vsel %vm1403, %v4954, 0
        %v5548 = vsel %vm1403, %v4955, 0
        %v5550 = vsel %vm1403, %v4956, 0
        %v5552 = vsel %vm1403, %v4957, 0
        %v5554 = vsel %vm1403, %v4958, 0
        %v5556 = vsel %vm1403, %v4959, 0
        %5558 = vmatprep.subr.mxu0 0.0
        %5559 = vmatpush1.xpose.msra.mxu0 %v5556
        %5560 = vmatprep.subr.mxu0 0.0
        %5561 = vmatpush1.xpose.msra.mxu0 %v5554
        %5562 = vmatprep.subr.mxu0 0.0
        %5563 = vmatpush1.xpose.msra.mxu0 %v5552
        %5564 = vmatprep.subr.mxu0 0.0
        %5565 = vmatpush1.xpose.msra.mxu0 %v5550
        %5566 = vmatprep.subr.mxu0 0.0
        %5567 = vmatpush1.xpose.msra.mxu0 %v5548
        %5568 = vmatprep.subr.mxu0 0.0
        %5569 = vmatpush1.xpose.msra.mxu0 %v5546
        %5570 = vmatprep.subr.mxu0 0.0
        %5571 = vmatpush1.xpose.msra.mxu0 %v5544
        %5572 = vmatprep.subr.mxu0 0.0
        %5573 = vmatpush1.xpose.msra.mxu0 %v5542
        %5574 = vmatprep.subr.mxu0 0.0
        %5575 = vmatpush1.xpose.msra.mxu0 %v5540
        %5576 = vmatprep.subr.mxu0 0.0
        %5577 = vmatpush1.xpose.msra.mxu0 %v5538
        %5578 = vmatprep.subr.mxu0 0.0
        %5579 = vmatpush1.xpose.msra.mxu0 %v5536
        %5580 = vmatprep.subr.mxu0 0.0
        %5581 = vmatpush1.xpose.msra.mxu0 %v5534
        %5582 = vmatprep.subr.mxu0 0.0
        %5583 = vmatpush1.xpose.msra.mxu0 %v5532
        %5584 = vmatprep.subr.mxu0 0.0
        %5585 = vmatpush1.xpose.msra.mxu0 %v5530
        %5586 = vmatprep.subr.mxu0 0.0
        %5587 = vmatpush1.xpose.msra.mxu0 %v5528
        %5588 = vmatprep.subr.mxu0 0.0
        %5589 = vmatpush1.xpose.msra.mxu0 %v5526
        %5590 = vmatprep.subr.mxu0 0.0
        %5591 = vmatpush2.xpose.msra.mxu0 0.0
        %5592 = vmatprep.subr.mxu0 0.0
        %5593 = vmatpush2.xpose.msra.mxu0 0.0
        %5594 = vmatprep.subr.mxu0 0.0
        %5595 = vmatpush2.xpose.msra.mxu0 0.0
        %5596 = vmatprep.subr.mxu0 0.0
        %5597 = vmatpush2.xpose.msra.mxu0 0.0
        %5598 = vmatprep.subr.mxu0 0.0
        %5599 = vmatpush2.xpose.msra.mxu0 0.0
        %5600 = vmatprep.subr.mxu0 0.0
        %5601 = vmatpush2.xpose.msra.mxu0 0.0
        %5602 = vmatprep.subr.mxu0 0.0
        %5603 = vmatpush2.xpose.msra.mxu0 0.0
        %5604 = vmatprep.subr.mxu0 0.0
        %5605 = vmatpush2.xpose.msra.mxu0 0.0
        %5606 = vmatprep.subr.mxu0 0.0
        %5607 = vmatpush2.xpose.msra.mxu0 0.0
        %5608 = vmatprep.subr.mxu0 0.0
        %5609 = vmatpush2.xpose.msra.mxu0 0.0
        %5610 = vmatprep.subr.mxu0 0.0
        %5611 = vmatpush2.xpose.msra.mxu0 0.0
        %5612 = vmatprep.subr.mxu0 0.0
        %5613 = vmatpush2.xpose.msra.mxu0 0.0
        %5614 = vmatprep.subr.mxu0 0.0
        %5615 = vmatpush2.xpose.msra.mxu0 0.0
        %5616 = vmatprep.subr.mxu0 0.0
        %5617 = vmatpush2.xpose.msra.mxu0 0.0
        %5618 = vmatprep.subr.mxu0 0.0
        %5619 = vmatpush2.xpose.msra.mxu0 0.0
        %5620 = vmatprep.subr.mxu0 0.0
        %5621 = vmatpush2.xpose.msra.mxu0 0.0
        %5622 = vmatprep.mubr.f32.mxu0 0.0
        %5623 = vmatmul.mubr.f32.gmra.mxu0 %v5521
        %v5624 = vpop.f32.mrf.mxu0
        %v5625 = vadd.f32 %v5512, %v5624
        %v5626 = vpop.f32.mrf.mxu0
        %5627 = vmatprep.mubr.f32.mxu0 0.0
        %5628 = vmatmul.mubr.f32.gmra.mxu0 %v5524
        %v5629 = vpop.f32.mrf.mxu0
        %v5630 = vadd.f32 %v5517, %v5629
        %v5631 = vpop.f32.mrf.mxu0
        %5632 = vdwg.mxu0
        %5633 = vrot.lane.b32.xlu0 %v4942, 64
        %v5634 = vpop.permute.xlu0 %5633
        %5635 = vrot.lane.b32.xlu0 %v4943, 64
        %v5636 = vpop.permute.xlu0 %5635
        %5637 = vrot.lane.b32.xlu0 %v4859, 64
        %v5638 = vpop.permute.xlu0 %5637
        %5639 = vrot.lane.b32.xlu0 %v4865, 64
        %v5640 = vpop.permute.xlu0 %5639
        %v5641 = vsel %vm1403, %v5634, 0
        %v5643 = vsel %vm1403, %v5636, 0
        %v5645 = vsel %vm1403, %v5638, 0
        %v5647 = vsel %vm1403, %v5640, 0
        %5649 = vmatprep.subr.mxu0 0.0
        %5650 = vmatpush1.xpose.msra.mxu0 0.0
        %5651 = vmatprep.subr.mxu0 0.0
        %5652 = vmatpush1.xpose.msra.mxu0 0.0
        %5653 = vmatprep.subr.mxu0 0.0
        %5654 = vmatpush1.xpose.msra.mxu0 0.0
        %5655 = vmatprep.subr.mxu0 0.0
        %5656 = vmatpush1.xpose.msra.mxu0 0.0
        %5657 = vmatprep.subr.mxu0 0.0
        %5658 = vmatpush1.xpose.msra.mxu0 0.0
        %5659 = vmatprep.subr.mxu0 0.0
        %5660 = vmatpush1.xpose.msra.mxu0 0.0
        %5661 = vmatprep.subr.mxu0 0.0
        %5662 = vmatpush1.xpose.msra.mxu0 0.0
        %5663 = vmatprep.subr.mxu0 0.0
        %5664 = vmatpush1.xpose.msra.mxu0 0.0
        %5665 = vmatprep.subr.mxu0 0.0
        %5666 = vmatpush1.xpose.msra.mxu0 0.0
        %5667 = vmatprep.subr.mxu0 0.0
        %5668 = vmatpush1.xpose.msra.mxu0 0.0
        %5669 = vmatprep.subr.mxu0 0.0
        %5670 = vmatpush1.xpose.msra.mxu0 0.0
        %5671 = vmatprep.subr.mxu0 0.0
        %5672 = vmatpush1.xpose.msra.mxu0 0.0
        %5673 = vmatprep.subr.mxu0 0.0
        %5674 = vmatpush1.xpose.msra.mxu0 0.0
        %5675 = vmatprep.subr.mxu0 0.0
        %5676 = vmatpush1.xpose.msra.mxu0 0.0
        %5677 = vmatprep.subr.mxu0 0.0
        %5678 = vmatpush1.xpose.msra.mxu0 %v5647
        %5679 = vmatprep.subr.mxu0 0.0
        %5680 = vmatpush1.xpose.msra.mxu0 %v5645
        %5681 = vmatprep.subr.mxu0 0.0
        %5682 = vmatpush2.xpose.msra.mxu0 0.0
        %5683 = vmatprep.subr.mxu0 0.0
        %5684 = vmatpush2.xpose.msra.mxu0 0.0
        %5685 = vmatprep.subr.mxu0 0.0
        %5686 = vmatpush2.xpose.msra.mxu0 0.0
        %5687 = vmatprep.subr.mxu0 0.0
        %5688 = vmatpush2.xpose.msra.mxu0 0.0
        %5689 = vmatprep.subr.mxu0 0.0
        %5690 = vmatpush2.xpose.msra.mxu0 0.0
        %5691 = vmatprep.subr.mxu0 0.0
        %5692 = vmatpush2.xpose.msra.mxu0 0.0
        %5693 = vmatprep.subr.mxu0 0.0
        %5694 = vmatpush2.xpose.msra.mxu0 0.0
        %5695 = vmatprep.subr.mxu0 0.0
        %5696 = vmatpush2.xpose.msra.mxu0 0.0
        %5697 = vmatprep.subr.mxu0 0.0
        %5698 = vmatpush2.xpose.msra.mxu0 0.0
        %5699 = vmatprep.subr.mxu0 0.0
        %5700 = vmatpush2.xpose.msra.mxu0 0.0
        %5701 = vmatprep.subr.mxu0 0.0
        %5702 = vmatpush2.xpose.msra.mxu0 0.0
        %5703 = vmatprep.subr.mxu0 0.0
        %5704 = vmatpush2.xpose.msra.mxu0 0.0
        %5705 = vmatprep.subr.mxu0 0.0
        %5706 = vmatpush2.xpose.msra.mxu0 0.0
        %5707 = vmatprep.subr.mxu0 0.0
        %5708 = vmatpush2.xpose.msra.mxu0 0.0
        %5709 = vmatprep.subr.mxu0 0.0
        %5710 = vmatpush2.xpose.msra.mxu0 0.0
        %5711 = vmatprep.subr.mxu0 0.0
        %5712 = vmatpush2.xpose.msra.mxu0 0.0
        %5713 = vmatprep.mubr.f32.mxu0 0.0
        %5714 = vmatmul.mubr.f32.gmra.mxu0 %v5641
        %v5715 = vpop.f32.mrf.mxu0
        %v5716 = vadd.f32 0.0, %v5715
        %v5717 = vpop.f32.mrf.mxu0
        %5718 = vmatprep.mubr.f32.mxu0 0.0
        %5719 = vmatmul.mubr.f32.gmra.mxu0 %v5643
        %v5720 = vpop.f32.mrf.mxu0
        %v5721 = vadd.f32 0.0, %v5720
        %v5722 = vpop.f32.mrf.mxu0
        %5723 = vdwg.mxu0
        %v5724 = vsel %vm5048, %v5716, -inf
        %5725 = vmax.xlane.f32.xlu0 %v5724
        %v5726 = vpop.xlane.xlu0 %5725
        %v5727 = vsel %vm5052, %v5721, -inf
        %5728 = vmax.xlane.f32.xlu0 %v5727
        %v5729 = vpop.xlane.xlu0 %5728
        %v5730 = vsub.f32 %v5716, %v5726
        %v5731 = vsub.f32 %v5721, %v5729
        %v5732 = vmul.f32 %v5730, 1.442695
        %v5733 = vpow.pop %v5732
        %v5734 = vmul.f32 %v5731, 1.442695
        %v5735 = vpow.pop %v5734
        %v5736 = vsel %vm5048, %v5733, 0.0
        %5737 = vadd.xlane.f32.xlu0 %v5736
        %v5738 = vpop.xlane.xlu0 %5737
        %v5739 = vsel %vm5052, %v5735, 0.0
        %5740 = vadd.xlane.f32.xlu0 %v5739
        %v5741 = vpop.xlane.xlu0 %5740
        %v5742 = vrcp.pop %v5738
        %v5743 = vrcp.pop %v5741
        %v5744 = vmul.f32 %v5733, %v5742
        %v5745 = vmul.f32 %v5735, %v5743
        %5746 = vrot.lane.b32.xlu0 %v4934, 64
        %v5747 = vpop.permute.xlu0 %5746
        %5748 = vrot.lane.b32.xlu0 %v4939, 64
        %v5749 = vpop.permute.xlu0 %5748
        %v5752 = vsel %vm5048, %v5744, 0
        %v5755 = vsel %vm5048, %v5745, 0
        %v5757 = vsel %vm5078, %v5749, 0
        %5759 = vmatprep.subr.mxu0 0.0
        %5760 = vmatpush1.msra.mxu0 0.0
        %5761 = vmatprep.subr.mxu0 0.0
        %5762 = vmatpush1.msra.mxu0 0.0
        %5763 = vmatprep.subr.mxu0 0.0
        %5764 = vmatpush1.msra.mxu0 0.0
        %5765 = vmatprep.subr.mxu0 0.0
        %5766 = vmatpush1.msra.mxu0 0.0
        %5767 = vmatprep.subr.mxu0 0.0
        %5768 = vmatpush1.msra.mxu0 0.0
        %5769 = vmatprep.subr.mxu0 0.0
        %5770 = vmatpush1.msra.mxu0 0.0
        %5771 = vmatprep.subr.mxu0 0.0
        %5772 = vmatpush1.msra.mxu0 0.0
        %5773 = vmatprep.subr.mxu0 0.0
        %5774 = vmatpush1.msra.mxu0 0.0
        %5775 = vmatprep.subr.mxu0 0.0
        %5776 = vmatpush1.msra.mxu0 0.0
        %5777 = vmatprep.subr.mxu0 0.0
        %5778 = vmatpush1.msra.mxu0 0.0
        %5779 = vmatprep.subr.mxu0 0.0
        %5780 = vmatpush1.msra.mxu0 0.0
        %5781 = vmatprep.subr.mxu0 0.0
        %5782 = vmatpush1.msra.mxu0 0.0
        %5783 = vmatprep.subr.mxu0 0.0
        %5784 = vmatpush1.msra.mxu0 0.0
        %5785 = vmatprep.subr.mxu0 0.0
        %5786 = vmatpush1.msra.mxu0 0.0
        %5787 = vmatprep.subr.mxu0 0.0
        %5788 = vmatpush1.msra.mxu0 %v5757
        %5789 = vmatprep.subr.mxu0 0.0
        %5790 = vmatpush1.msra.mxu0 %v5747
        %5791 = vmatprep.subr.mxu0 0.0
        %5792 = vmatpush2.msra.mxu0 0.0
        %5793 = vmatprep.subr.mxu0 0.0
        %5794 = vmatpush2.msra.mxu0 0.0
        %5795 = vmatprep.subr.mxu0 0.0
        %5796 = vmatpush2.msra.mxu0 0.0
        %5797 = vmatprep.subr.mxu0 0.0
        %5798 = vmatpush2.msra.mxu0 0.0
        %5799 = vmatprep.subr.mxu0 0.0
        %5800 = vmatpush2.msra.mxu0 0.0
        %5801 = vmatprep.subr.mxu0 0.0
        %5802 = vmatpush2.msra.mxu0 0.0
        %5803 = vmatprep.subr.mxu0 0.0
        %5804 = vmatpush2.msra.mxu0 0.0
        %5805 = vmatprep.subr.mxu0 0.0
        %5806 = vmatpush2.msra.mxu0 0.0
        %5807 = vmatprep.subr.mxu0 0.0
        %5808 = vmatpush2.msra.mxu0 0.0
        %5809 = vmatprep.subr.mxu0 0.0
        %5810 = vmatpush2.msra.mxu0 0.0
        %5811 = vmatprep.subr.mxu0 0.0
        %5812 = vmatpush2.msra.mxu0 0.0
        %5813 = vmatprep.subr.mxu0 0.0
        %5814 = vmatpush2.msra.mxu0 0.0
        %5815 = vmatprep.subr.mxu0 0.0
        %5816 = vmatpush2.msra.mxu0 0.0
        %5817 = vmatprep.subr.mxu0 0.0
        %5818 = vmatpush2.msra.mxu0 0.0
        %5819 = vmatprep.subr.mxu0 0.0
        %5820 = vmatpush2.msra.mxu0 0.0
        %5821 = vmatprep.subr.mxu0 0.0
        %5822 = vmatpush2.msra.mxu0 0.0
        %5823 = vmatprep.mubr.f32.mxu0 0.0
        %5824 = vmatmul.mubr.f32.gmra.mxu0 %v5752
        %v5825 = vpop.f32.mrf.mxu0
        %v5826 = vadd.f32 0.0, %v5825
        %v5827 = vpop.f32.mrf.mxu0
        %5828 = vmatprep.mubr.f32.mxu0 0.0
        %5829 = vmatmul.mubr.f32.gmra.mxu0 %v5755
        %v5830 = vpop.f32.mrf.mxu0
        %v5831 = vadd.f32 0.0, %v5830
        %v5832 = vpop.f32.mrf.mxu0
        %5833 = vdwg.mxu0
        %5834 = vrot.lane.b32.xlu0 %v4944, 64
        %v5835 = vpop.permute.xlu0 %5834
        %5836 = vrot.lane.b32.xlu0 %v4945, 64
        %v5837 = vpop.permute.xlu0 %5836
        %5838 = vrot.lane.b32.xlu0 %v4946, 64
        %v5839 = vpop.permute.xlu0 %5838
        %5840 = vrot.lane.b32.xlu0 %v4947, 64
        %v5841 = vpop.permute.xlu0 %5840
        %5842 = vrot.lane.b32.xlu0 %v4948, 64
        %v5843 = vpop.permute.xlu0 %5842
        %5844 = vrot.lane.b32.xlu0 %v4949, 64
        %v5845 = vpop.permute.xlu0 %5844
        %5846 = vrot.lane.b32.xlu0 %v4950, 64
        %v5847 = vpop.permute.xlu0 %5846
        %5848 = vrot.lane.b32.xlu0 %v4951, 64
        %v5849 = vpop.permute.xlu0 %5848
        %5850 = vrot.lane.b32.xlu0 %v4952, 64
        %v5851 = vpop.permute.xlu0 %5850
        %5852 = vrot.lane.b32.xlu0 %v4953, 64
        %v5853 = vpop.permute.xlu0 %5852
        %5854 = vrot.lane.b32.xlu0 %v4954, 64
        %v5855 = vpop.permute.xlu0 %5854
        %5856 = vrot.lane.b32.xlu0 %v4955, 64
        %v5857 = vpop.permute.xlu0 %5856
        %5858 = vrot.lane.b32.xlu0 %v4956, 64
        %v5859 = vpop.permute.xlu0 %5858
        %5860 = vrot.lane.b32.xlu0 %v4957, 64
        %v5861 = vpop.permute.xlu0 %5860
        %5862 = vrot.lane.b32.xlu0 %v4958, 64
        %v5863 = vpop.permute.xlu0 %5862
        %5864 = vrot.lane.b32.xlu0 %v4959, 64
        %v5865 = vpop.permute.xlu0 %5864
        %v5867 = vsel %vm1403, %v5826, 0
        %v5870 = vsel %vm1403, %v5831, 0
        %v5872 = vsel %vm1403, %v5835, 0
        %v5874 = vsel %vm1403, %v5837, 0
        %v5876 = vsel %vm1403, %v5839, 0
        %v5878 = vsel %vm1403, %v5841, 0
        %v5880 = vsel %vm1403, %v5843, 0
        %v5882 = vsel %vm1403, %v5845, 0
        %v5884 = vsel %vm1403, %v5847, 0
        %v5886 = vsel %vm1403, %v5849, 0
        %v5888 = vsel %vm1403, %v5851, 0
        %v5890 = vsel %vm1403, %v5853, 0
        %v5892 = vsel %vm1403, %v5855, 0
        %v5894 = vsel %vm1403, %v5857, 0
        %v5896 = vsel %vm1403, %v5859, 0
        %v5898 = vsel %vm1403, %v5861, 0
        %v5900 = vsel %vm1403, %v5863, 0
        %v5902 = vsel %vm1403, %v5865, 0
        %5904 = vmatprep.subr.mxu0 0.0
        %5905 = vmatpush1.xpose.msra.mxu0 %v5902
        %5906 = vmatprep.subr.mxu0 0.0
        %5907 = vmatpush1.xpose.msra.mxu0 %v5900
        %5908 = vmatprep.subr.mxu0 0.0
        %5909 = vmatpush1.xpose.msra.mxu0 %v5898
        %5910 = vmatprep.subr.mxu0 0.0
        %5911 = vmatpush1.xpose.msra.mxu0 %v5896
        %5912 = vmatprep.subr.mxu0 0.0
        %5913 = vmatpush1.xpose.msra.mxu0 %v5894
        %5914 = vmatprep.subr.mxu0 0.0
        %5915 = vmatpush1.xpose.msra.mxu0 %v5892
        %5916 = vmatprep.subr.mxu0 0.0
        %5917 = vmatpush1.xpose.msra.mxu0 %v5890
        %5918 = vmatprep.subr.mxu0 0.0
        %5919 = vmatpush1.xpose.msra.mxu0 %v5888
        %5920 = vmatprep.subr.mxu0 0.0
        %5921 = vmatpush1.xpose.msra.mxu0 %v5886
        %5922 = vmatprep.subr.mxu0 0.0
        %5923 = vmatpush1.xpose.msra.mxu0 %v5884
        %5924 = vmatprep.subr.mxu0 0.0
        %5925 = vmatpush1.xpose.msra.mxu0 %v5882
        %5926 = vmatprep.subr.mxu0 0.0
        %5927 = vmatpush1.xpose.msra.mxu0 %v5880
        %5928 = vmatprep.subr.mxu0 0.0
        %5929 = vmatpush1.xpose.msra.mxu0 %v5878
        %5930 = vmatprep.subr.mxu0 0.0
        %5931 = vmatpush1.xpose.msra.mxu0 %v5876
        %5932 = vmatprep.subr.mxu0 0.0
        %5933 = vmatpush1.xpose.msra.mxu0 %v5874
        %5934 = vmatprep.subr.mxu0 0.0
        %5935 = vmatpush1.xpose.msra.mxu0 %v5872
        %5936 = vmatprep.subr.mxu0 0.0
        %5937 = vmatpush2.xpose.msra.mxu0 0.0
        %5938 = vmatprep.subr.mxu0 0.0
        %5939 = vmatpush2.xpose.msra.mxu0 0.0
        %5940 = vmatprep.subr.mxu0 0.0
        %5941 = vmatpush2.xpose.msra.mxu0 0.0
        %5942 = vmatprep.subr.mxu0 0.0
        %5943 = vmatpush2.xpose.msra.mxu0 0.0
        %5944 = vmatprep.subr.mxu0 0.0
        %5945 = vmatpush2.xpose.msra.mxu0 0.0
        %5946 = vmatprep.subr.mxu0 0.0
        %5947 = vmatpush2.xpose.msra.mxu0 0.0
        %5948 = vmatprep.subr.mxu0 0.0
        %5949 = vmatpush2.xpose.msra.mxu0 0.0
        %5950 = vmatprep.subr.mxu0 0.0
        %5951 = vmatpush2.xpose.msra.mxu0 0.0
        %5952 = vmatprep.subr.mxu0 0.0
        %5953 = vmatpush2.xpose.msra.mxu0 0.0
        %5954 = vmatprep.subr.mxu0 0.0
        %5955 = vmatpush2.xpose.msra.mxu0 0.0
        %5956 = vmatprep.subr.mxu0 0.0
        %5957 = vmatpush2.xpose.msra.mxu0 0.0
        %5958 = vmatprep.subr.mxu0 0.0
        %5959 = vmatpush2.xpose.msra.mxu0 0.0
        %5960 = vmatprep.subr.mxu0 0.0
        %5961 = vmatpush2.xpose.msra.mxu0 0.0
        %5962 = vmatprep.subr.mxu0 0.0
        %5963 = vmatpush2.xpose.msra.mxu0 0.0
        %5964 = vmatprep.subr.mxu0 0.0
        %5965 = vmatpush2.xpose.msra.mxu0 0.0
        %5966 = vmatprep.subr.mxu0 0.0
        %5967 = vmatpush2.xpose.msra.mxu0 0.0
        %5968 = vmatprep.mubr.f32.mxu0 0.0
        %5969 = vmatmul.mubr.f32.gmra.mxu0 %v5867
        %v5970 = vpop.f32.mrf.mxu0
        %v5971 = vadd.f32 0.0, %v5970
        %v5972 = vpop.f32.mrf.mxu0
        %5973 = vmatprep.mubr.f32.mxu0 0.0
        %5974 = vmatmul.mubr.f32.gmra.mxu0 %v5870
        %v5975 = vpop.f32.mrf.mxu0
        %v5976 = vadd.f32 0.0, %v5975
        %v5977 = vpop.f32.mrf.mxu0
        %5978 = vdwg.mxu0
        %v5979 = vadd.f32 %v5625, %v5971
        %v5980 = vadd.f32 %v5630, %v5976
        %5981 = vrot.lane.b32.xlu0 %v4942, 32
        %v5982 = vpop.permute.xlu0 %5981
        %5983 = vrot.lane.b32.xlu0 %v4943, 32
        %v5984 = vpop.permute.xlu0 %5983
        %5985 = vrot.lane.b32.xlu0 %v4859, 32
        %v5986 = vpop.permute.xlu0 %5985
        %5987 = vrot.lane.b32.xlu0 %v4865, 32
        %v5988 = vpop.permute.xlu0 %5987
        %v5989 = vsel %vm1403, %v5982, 0
        %v5991 = vsel %vm1403, %v5984, 0
        %v5993 = vsel %vm1403, %v5986, 0
        %v5995 = vsel %vm1403, %v5988, 0
        %5997 = vmatprep.subr.mxu0 0.0
        %5998 = vmatpush1.xpose.msra.mxu0 0.0
        %5999 = vmatprep.subr.mxu0 0.0
        %6000 = vmatpush1.xpose.msra.mxu0 0.0
        %6001 = vmatprep.subr.mxu0 0.0
        %6002 = vmatpush1.xpose.msra.mxu0 0.0
        %6003 = vmatprep.subr.mxu0 0.0
        %6004 = vmatpush1.xpose.msra.mxu0 0.0
        %6005 = vmatprep.subr.mxu0 0.0
        %6006 = vmatpush1.xpose.msra.mxu0 0.0
        %6007 = vmatprep.subr.mxu0 0.0
        %6008 = vmatpush1.xpose.msra.mxu0 0.0
        %6009 = vmatprep.subr.mxu0 0.0
        %6010 = vmatpush1.xpose.msra.mxu0 0.0
        %6011 = vmatprep.subr.mxu0 0.0
        %6012 = vmatpush1.xpose.msra.mxu0 0.0
        %6013 = vmatprep.subr.mxu0 0.0
        %6014 = vmatpush1.xpose.msra.mxu0 0.0
        %6015 = vmatprep.subr.mxu0 0.0
        %6016 = vmatpush1.xpose.msra.mxu0 0.0
        %6017 = vmatprep.subr.mxu0 0.0
        %6018 = vmatpush1.xpose.msra.mxu0 0.0
        %6019 = vmatprep.subr.mxu0 0.0
        %6020 = vmatpush1.xpose.msra.mxu0 0.0
        %6021 = vmatprep.subr.mxu0 0.0
        %6022 = vmatpush1.xpose.msra.mxu0 0.0
        %6023 = vmatprep.subr.mxu0 0.0
        %6024 = vmatpush1.xpose.msra.mxu0 0.0
        %6025 = vmatprep.subr.mxu0 0.0
        %6026 = vmatpush1.xpose.msra.mxu0 %v5995
        %6027 = vmatprep.subr.mxu0 0.0
        %6028 = vmatpush1.xpose.msra.mxu0 %v5993
        %6029 = vmatprep.subr.mxu0 0.0
        %6030 = vmatpush2.xpose.msra.mxu0 0.0
        %6031 = vmatprep.subr.mxu0 0.0
        %6032 = vmatpush2.xpose.msra.mxu0 0.0
        %6033 = vmatprep.subr.mxu0 0.0
        %6034 = vmatpush2.xpose.msra.mxu0 0.0
        %6035 = vmatprep.subr.mxu0 0.0
        %6036 = vmatpush2.xpose.msra.mxu0 0.0
        %6037 = vmatprep.subr.mxu0 0.0
        %6038 = vmatpush2.xpose.msra.mxu0 0.0
        %6039 = vmatprep.subr.mxu0 0.0
        %6040 = vmatpush2.xpose.msra.mxu0 0.0
        %6041 = vmatprep.subr.mxu0 0.0
        %6042 = vmatpush2.xpose.msra.mxu0 0.0
        %6043 = vmatprep.subr.mxu0 0.0
        %6044 = vmatpush2.xpose.msra.mxu0 0.0
        %6045 = vmatprep.subr.mxu0 0.0
        %6046 = vmatpush2.xpose.msra.mxu0 0.0
        %6047 = vmatprep.subr.mxu0 0.0
        %6048 = vmatpush2.xpose.msra.mxu0 0.0
        %6049 = vmatprep.subr.mxu0 0.0
        %6050 = vmatpush2.xpose.msra.mxu0 0.0
        %6051 = vmatprep.subr.mxu0 0.0
        %6052 = vmatpush2.xpose.msra.mxu0 0.0
        %6053 = vmatprep.subr.mxu0 0.0
        %6054 = vmatpush2.xpose.msra.mxu0 0.0
        %6055 = vmatprep.subr.mxu0 0.0
        %6056 = vmatpush2.xpose.msra.mxu0 0.0
        %6057 = vmatprep.subr.mxu0 0.0
        %6058 = vmatpush2.xpose.msra.mxu0 0.0
        %6059 = vmatprep.subr.mxu0 0.0
        %6060 = vmatpush2.xpose.msra.mxu0 0.0
        %6061 = vmatprep.mubr.f32.mxu0 0.0
        %6062 = vmatmul.mubr.f32.gmra.mxu0 %v5989
        %v6063 = vpop.f32.mrf.mxu0
        %v6064 = vadd.f32 0.0, %v6063
        %v6065 = vpop.f32.mrf.mxu0
        %6066 = vmatprep.mubr.f32.mxu0 0.0
        %6067 = vmatmul.mubr.f32.gmra.mxu0 %v5991
        %v6068 = vpop.f32.mrf.mxu0
        %v6069 = vadd.f32 0.0, %v6068
        %v6070 = vpop.f32.mrf.mxu0
        %6071 = vdwg.mxu0
        %v6072 = vsel %vm5048, %v6064, -inf
        %6073 = vmax.xlane.f32.xlu0 %v6072
        %v6074 = vpop.xlane.xlu0 %6073
        %v6075 = vsel %vm5052, %v6069, -inf
        %6076 = vmax.xlane.f32.xlu0 %v6075
        %v6077 = vpop.xlane.xlu0 %6076
        %v6078 = vsub.f32 %v6064, %v6074
        %v6079 = vsub.f32 %v6069, %v6077
        %v6080 = vmul.f32 %v6078, 1.442695
        %v6081 = vpow.pop %v6080
        %v6082 = vmul.f32 %v6079, 1.442695
        %v6083 = vpow.pop %v6082
        %v6084 = vsel %vm5048, %v6081, 0.0
        %6085 = vadd.xlane.f32.xlu0 %v6084
        %v6086 = vpop.xlane.xlu0 %6085
        %v6087 = vsel %vm5052, %v6083, 0.0
        %6088 = vadd.xlane.f32.xlu0 %v6087
        %v6089 = vpop.xlane.xlu0 %6088
        %v6090 = vrcp.pop %v6086
        %v6091 = vrcp.pop %v6089
        %v6092 = vmul.f32 %v6081, %v6090
        %v6093 = vmul.f32 %v6083, %v6091
        %6094 = vrot.lane.b32.xlu0 %v4934, 32
        %v6095 = vpop.permute.xlu0 %6094
        %6096 = vrot.lane.b32.xlu0 %v4939, 32
        %v6097 = vpop.permute.xlu0 %6096
        %v6100 = vsel %vm5048, %v6092, 0
        %v6103 = vsel %vm5048, %v6093, 0
        %v6105 = vsel %vm5078, %v6097, 0
        %6107 = vmatprep.subr.mxu0 0.0
        %6108 = vmatpush1.msra.mxu0 0.0
        %6109 = vmatprep.subr.mxu0 0.0
        %6110 = vmatpush1.msra.mxu0 0.0
        %6111 = vmatprep.subr.mxu0 0.0
        %6112 = vmatpush1.msra.mxu0 0.0
        %6113 = vmatprep.subr.mxu0 0.0
        %6114 = vmatpush1.msra.mxu0 0.0
        %6115 = vmatprep.subr.mxu0 0.0
        %6116 = vmatpush1.msra.mxu0 0.0
        %6117 = vmatprep.subr.mxu0 0.0
        %6118 = vmatpush1.msra.mxu0 0.0
        %6119 = vmatprep.subr.mxu0 0.0
        %6120 = vmatpush1.msra.mxu0 0.0
        %6121 = vmatprep.subr.mxu0 0.0
        %6122 = vmatpush1.msra.mxu0 0.0
        %6123 = vmatprep.subr.mxu0 0.0
        %6124 = vmatpush1.msra.mxu0 0.0
        %6125 = vmatprep.subr.mxu0 0.0
        %6126 = vmatpush1.msra.mxu0 0.0
        %6127 = vmatprep.subr.mxu0 0.0
        %6128 = vmatpush1.msra.mxu0 0.0
        %6129 = vmatprep.subr.mxu0 0.0
        %6130 = vmatpush1.msra.mxu0 0.0
        %6131 = vmatprep.subr.mxu0 0.0
        %6132 = vmatpush1.msra.mxu0 0.0
        %6133 = vmatprep.subr.mxu0 0.0
        %6134 = vmatpush1.msra.mxu0 0.0
        %6135 = vmatprep.subr.mxu0 0.0
        %6136 = vmatpush1.msra.mxu0 %v6105
        %6137 = vmatprep.subr.mxu0 0.0
        %6138 = vmatpush1.msra.mxu0 %v6095
        %6139 = vmatprep.subr.mxu0 0.0
        %6140 = vmatpush2.msra.mxu0 0.0
        %6141 = vmatprep.subr.mxu0 0.0
        %6142 = vmatpush2.msra.mxu0 0.0
        %6143 = vmatprep.subr.mxu0 0.0
        %6144 = vmatpush2.msra.mxu0 0.0
        %6145 = vmatprep.subr.mxu0 0.0
        %6146 = vmatpush2.msra.mxu0 0.0
        %6147 = vmatprep.subr.mxu0 0.0
        %6148 = vmatpush2.msra.mxu0 0.0
        %6149 = vmatprep.subr.mxu0 0.0
        %6150 = vmatpush2.msra.mxu0 0.0
        %6151 = vmatprep.subr.mxu0 0.0
        %6152 = vmatpush2.msra.mxu0 0.0
        %6153 = vmatprep.subr.mxu0 0.0
        %6154 = vmatpush2.msra.mxu0 0.0
        %6155 = vmatprep.subr.mxu0 0.0
        %6156 = vmatpush2.msra.mxu0 0.0
        %6157 = vmatprep.subr.mxu0 0.0
        %6158 = vmatpush2.msra.mxu0 0.0
        %6159 = vmatprep.subr.mxu0 0.0
        %6160 = vmatpush2.msra.mxu0 0.0
        %6161 = vmatprep.subr.mxu0 0.0
        %6162 = vmatpush2.msra.mxu0 0.0
        %6163 = vmatprep.subr.mxu0 0.0
        %6164 = vmatpush2.msra.mxu0 0.0
        %6165 = vmatprep.subr.mxu0 0.0
        %6166 = vmatpush2.msra.mxu0 0.0
        %6167 = vmatprep.subr.mxu0 0.0
        %6168 = vmatpush2.msra.mxu0 0.0
        %6169 = vmatprep.subr.mxu0 0.0
        %6170 = vmatpush2.msra.mxu0 0.0
        %6171 = vmatprep.mubr.f32.mxu0 0.0
        %6172 = vmatmul.mubr.f32.gmra.mxu0 %v6100
        %v6173 = vpop.f32.mrf.mxu0
        %v6174 = vadd.f32 0.0, %v6173
        %v6175 = vpop.f32.mrf.mxu0
        %6176 = vmatprep.mubr.f32.mxu0 0.0
        %6177 = vmatmul.mubr.f32.gmra.mxu0 %v6103
        %v6178 = vpop.f32.mrf.mxu0
        %v6179 = vadd.f32 0.0, %v6178
        %v6180 = vpop.f32.mrf.mxu0
        %6181 = vdwg.mxu0
        %6182 = vrot.lane.b32.xlu0 %v4944, 32
        %v6183 = vpop.permute.xlu0 %6182
        %6184 = vrot.lane.b32.xlu0 %v4945, 32
        %v6185 = vpop.permute.xlu0 %6184
        %6186 = vrot.lane.b32.xlu0 %v4946, 32
        %v6187 = vpop.permute.xlu0 %6186
        %6188 = vrot.lane.b32.xlu0 %v4947, 32
        %v6189 = vpop.permute.xlu0 %6188
        %6190 = vrot.lane.b32.xlu0 %v4948, 32
        %v6191 = vpop.permute.xlu0 %6190
        %6192 = vrot.lane.b32.xlu0 %v4949, 32
        %v6193 = vpop.permute.xlu0 %6192
        %6194 = vrot.lane.b32.xlu0 %v4950, 32
        %v6195 = vpop.permute.xlu0 %6194
        %6196 = vrot.lane.b32.xlu0 %v4951, 32
        %v6197 = vpop.permute.xlu0 %6196
        %6198 = vrot.lane.b32.xlu0 %v4952, 32
        %v6199 = vpop.permute.xlu0 %6198
        %6200 = vrot.lane.b32.xlu0 %v4953, 32
        %v6201 = vpop.permute.xlu0 %6200
        %6202 = vrot.lane.b32.xlu0 %v4954, 32
        %v6203 = vpop.permute.xlu0 %6202
        %6204 = vrot.lane.b32.xlu0 %v4955, 32
        %v6205 = vpop.permute.xlu0 %6204
        %6206 = vrot.lane.b32.xlu0 %v4956, 32
        %v6207 = vpop.permute.xlu0 %6206
        %6208 = vrot.lane.b32.xlu0 %v4957, 32
        %v6209 = vpop.permute.xlu0 %6208
        %6210 = vrot.lane.b32.xlu0 %v4958, 32
        %v6211 = vpop.permute.xlu0 %6210
        %6212 = vrot.lane.b32.xlu0 %v4959, 32
        %v6213 = vpop.permute.xlu0 %6212
        %v6215 = vsel %vm1403, %v6174, 0
        %v6218 = vsel %vm1403, %v6179, 0
        %v6220 = vsel %vm1403, %v6183, 0
        %v6222 = vsel %vm1403, %v6185, 0
        %v6224 = vsel %vm1403, %v6187, 0
        %v6226 = vsel %vm1403, %v6189, 0
        %v6228 = vsel %vm1403, %v6191, 0
        %v6230 = vsel %vm1403, %v6193, 0
        %v6232 = vsel %vm1403, %v6195, 0
        %v6234 = vsel %vm1403, %v6197, 0
        %v6236 = vsel %vm1403, %v6199, 0
        %v6238 = vsel %vm1403, %v6201, 0
        %v6240 = vsel %vm1403, %v6203, 0
        %v6242 = vsel %vm1403, %v6205, 0
        %v6244 = vsel %vm1403, %v6207, 0
        %v6246 = vsel %vm1403, %v6209, 0
        %v6248 = vsel %vm1403, %v6211, 0
        %v6250 = vsel %vm1403, %v6213, 0
        %6252 = vmatprep.subr.mxu0 0.0
        %6253 = vmatpush1.xpose.msra.mxu0 %v6250
        %6254 = vmatprep.subr.mxu0 0.0
        %6255 = vmatpush1.xpose.msra.mxu0 %v6248
        %6256 = vmatprep.subr.mxu0 0.0
        %6257 = vmatpush1.xpose.msra.mxu0 %v6246
        %6258 = vmatprep.subr.mxu0 0.0
        %6259 = vmatpush1.xpose.msra.mxu0 %v6244
        %6260 = vmatprep.subr.mxu0 0.0
        %6261 = vmatpush1.xpose.msra.mxu0 %v6242
        %6262 = vmatprep.subr.mxu0 0.0
        %6263 = vmatpush1.xpose.msra.mxu0 %v6240
        %6264 = vmatprep.subr.mxu0 0.0
        %6265 = vmatpush1.xpose.msra.mxu0 %v6238
        %6266 = vmatprep.subr.mxu0 0.0
        %6267 = vmatpush1.xpose.msra.mxu0 %v6236
        %6268 = vmatprep.subr.mxu0 0.0
        %6269 = vmatpush1.xpose.msra.mxu0 %v6234
        %6270 = vmatprep.subr.mxu0 0.0
        %6271 = vmatpush1.xpose.msra.mxu0 %v6232
        %6272 = vmatprep.subr.mxu0 0.0
        %6273 = vmatpush1.xpose.msra.mxu0 %v6230
        %6274 = vmatprep.subr.mxu0 0.0
        %6275 = vmatpush1.xpose.msra.mxu0 %v6228
        %6276 = vmatprep.subr.mxu0 0.0
        %6277 = vmatpush1.xpose.msra.mxu0 %v6226
        %6278 = vmatprep.subr.mxu0 0.0
        %6279 = vmatpush1.xpose.msra.mxu0 %v6224
        %6280 = vmatprep.subr.mxu0 0.0
        %6281 = vmatpush1.xpose.msra.mxu0 %v6222
        %6282 = vmatprep.subr.mxu0 0.0
        %6283 = vmatpush1.xpose.msra.mxu0 %v6220
        %6284 = vmatprep.subr.mxu0 0.0
        %6285 = vmatpush2.xpose.msra.mxu0 0.0
        %6286 = vmatprep.subr.mxu0 0.0
        %6287 = vmatpush2.xpose.msra.mxu0 0.0
        %6288 = vmatprep.subr.mxu0 0.0
        %6289 = vmatpush2.xpose.msra.mxu0 0.0
        %6290 = vmatprep.subr.mxu0 0.0
        %6291 = vmatpush2.xpose.msra.mxu0 0.0
        %6292 = vmatprep.subr.mxu0 0.0
        %6293 = vmatpush2.xpose.msra.mxu0 0.0
        %6294 = vmatprep.subr.mxu0 0.0
        %6295 = vmatpush2.xpose.msra.mxu0 0.0
        %6296 = vmatprep.subr.mxu0 0.0
        %6297 = vmatpush2.xpose.msra.mxu0 0.0
        %6298 = vmatprep.subr.mxu0 0.0
        %6299 = vmatpush2.xpose.msra.mxu0 0.0
        %6300 = vmatprep.subr.mxu0 0.0
        %6301 = vmatpush2.xpose.msra.mxu0 0.0
        %6302 = vmatprep.subr.mxu0 0.0
        %6303 = vmatpush2.xpose.msra.mxu0 0.0
        %6304 = vmatprep.subr.mxu0 0.0
        %6305 = vmatpush2.xpose.msra.mxu0 0.0
        %6306 = vmatprep.subr.mxu0 0.0
        %6307 = vmatpush2.xpose.msra.mxu0 0.0
        %6308 = vmatprep.subr.mxu0 0.0
        %6309 = vmatpush2.xpose.msra.mxu0 0.0
        %6310 = vmatprep.subr.mxu0 0.0
        %6311 = vmatpush2.xpose.msra.mxu0 0.0
        %6312 = vmatprep.subr.mxu0 0.0
        %6313 = vmatpush2.xpose.msra.mxu0 0.0
        %6314 = vmatprep.subr.mxu0 0.0
        %6315 = vmatpush2.xpose.msra.mxu0 0.0
        %6316 = vmatprep.mubr.f32.mxu0 0.0
        %6317 = vmatmul.mubr.f32.gmra.mxu0 %v6215
        %v6318 = vpop.f32.mrf.mxu0
        %v6319 = vadd.f32 0.0, %v6318
        %v6320 = vpop.f32.mrf.mxu0
        %6321 = vmatprep.mubr.f32.mxu0 0.0
        %6322 = vmatmul.mubr.f32.gmra.mxu0 %v6218
        %v6323 = vpop.f32.mrf.mxu0
        %v6324 = vadd.f32 0.0, %v6323
        %v6325 = vpop.f32.mrf.mxu0
        %6326 = vdwg.mxu0
        %v6327 = vadd.f32 %v5979, %v6319
        %v6328 = vadd.f32 %v5980, %v6324
        %v6330 = vlaneseq
        %v6331 = vshrl.u32 %v6330, 7
        %v6332 = vsub.s32 0, %v6331
        %v6333 = vrot.slane %v4960, %v6332
        %v6335 = vadd.f32 %v6327, %v6333
        %v6336 = vadd.f32 %v6328, %v6333
        %v6337 = vadd.f32 %v4724, %v6335
        %v6338 = vadd.f32 %v4721, %v6336
        %v6339 = vld [vmem:[%s39] sm:$0x1]
        %v6340 = vld [vmem:[%s41] sm:$0x1]
        %6341 = vadd.xlane.f32.xlu0 %v6337
        %v6342 = vpop.xlane.xlu0 %6341
        %v6343 = vsel %vm5078, %v6338, 0.0
        %6344 = vadd.xlane.f32.xlu0 %v6343
        %v6345 = vpop.xlane.xlu0 %6344
        %v6346 = vmul.f32 %v6342, %v2789
        %v6347 = vmul.f32 %v6345, %v2789
        %v6348 = vsub.f32 %v6337, %v6346
        %v6349 = vsub.f32 %v6338, %v6347
        %v6350 = vmul.f32 %v6348, %v6348
        %v6351 = vmul.f32 %v6349, %v6349
        %6352 = vadd.xlane.f32.xlu0 %v6350
        %v6353 = vpop.xlane.xlu0 %6352
        %v6354 = vsel %vm5078, %v6351, 0.0
        %6355 = vadd.xlane.f32.xlu0 %v6354
        %v6356 = vpop.xlane.xlu0 %6355
        %v6357 = vmul.f32 %v6353, %v2789
        %v6358 = vmul.f32 %v6356, %v2789
        %v6359 = vadd.f32 %v6357, 1e-05
        %v6360 = vadd.f32 %v6358, 1e-05
        %v6361 = vrsqrt.pop %v6359
        %v6362 = vrsqrt.pop %v6360
        %v6363 = vmul.f32 %v6348, %v6361
        %v6364 = vmul.f32 %v6349, %v6362
        %v6366 = vlaneseq
        %v6367 = vshrl.u32 %v6366, 7
        %v6368 = vsub.s32 0, %v6367
        %v6369 = vrot.slane %v6339, %v6368
        %v6371 = vmul.f32 %v6363, %v6369
        %v6372 = vmul.f32 %v6364, %v6369
        %v6374 = vlaneseq
        %v6375 = vshrl.u32 %v6374, 7
        %v6376 = vsub.s32 0, %v6375
        %v6377 = vrot.slane %v6340, %v6376
        %v6379 = vadd.f32 %v6371, %v6377
        %v6380 = vadd.f32 %v6372, %v6377
        %v6381 = vld [vmem:[#allocation23] sm:$0xff]
        %v6382 = vld [vmem:[#allocation23 + $0x8] sm:$0xff]
        %v6383 = vld [vmem:[#allocation23 + $0x10] sm:$0xff]
        %v6384 = vld [vmem:[#allocation23 + $0x18] sm:$0xff]
        %v6385 = vld [vmem:[#allocation23 + $0x20] sm:$0xff]
        %v6386 = vld [vmem:[#allocation23 + $0x28] sm:$0xff]
        %v6387 = vld [vmem:[#allocation23 + $0x30] sm:$0xff]
        %v6388 = vld [vmem:[#allocation23 + $0x38] sm:$0xff]
        %v6389 = vld [vmem:[#allocation23 + $0x40] sm:$0xff]
        %v6390 = vld [vmem:[#allocation23 + $0x48] sm:$0xff]
        %v6391 = vld [vmem:[#allocation23 + $0x50] sm:$0xff]
        %v6392 = vld [vmem:[#allocation23 + $0x58] sm:$0xff]
        %v6393 = vld [vmem:[#allocation23 + $0x60] sm:$0xff]
        %v6394 = vld [vmem:[#allocation23 + $0x68] sm:$0xff]
        %v6395 = vld [vmem:[#allocation23 + $0x70] sm:$0xff]
        %v6396 = vld [vmem:[#allocation23 + $0x78] sm:$0xff]
        %v6397 = vld [vmem:[#allocation23 + $0x80] sm:$0xff]
        %v6398 = vld [vmem:[#allocation23 + $0x88] sm:$0xff]
        %v6399 = vld [vmem:[#allocation23 + $0x90] sm:$0xff]
        %v6400 = vld [vmem:[#allocation23 + $0x98] sm:$0xff]
        %v6401 = vld [vmem:[#allocation23 + $0xa0] sm:$0xff]
        %v6402 = vld [vmem:[#allocation23 + $0xa8] sm:$0xff]
        %v6403 = vld [vmem:[#allocation23 + $0xb0] sm:$0xff]
        %v6404 = vld [vmem:[#allocation23 + $0xb8] sm:$0xff]
        %v6405 = vld [vmem:[#allocation23 + $0xc0] sm:$0xff]
        %v6406 = vld [vmem:[#allocation23 + $0xc8] sm:$0xff]
        %v6407 = vld [vmem:[#allocation23 + $0xd0] sm:$0xff]
        %v6408 = vld [vmem:[#allocation23 + $0xd8] sm:$0xff]
        %v6409 = vld [vmem:[#allocation23 + $0xe0] sm:$0xff]
        %v6410 = vld [vmem:[#allocation23 + $0xe8] sm:$0xff]
        %v6411 = vld [vmem:[#allocation23 + $0xf0] sm:$0xff]
        %v6412 = vld [vmem:[#allocation23 + $0xf8] sm:$0xff]
        %v6413 = vld [vmem:[#allocation23 + $0x100] sm:$0xff]
        %v6414 = vld [vmem:[#allocation23 + $0x108] sm:$0xff]
        %v6415 = vld [vmem:[#allocation23 + $0x110] sm:$0xff]
        %v6416 = vld [vmem:[#allocation23 + $0x118] sm:$0xff]
        %v6417 = vld [vmem:[#allocation23 + $0x120] sm:$0xff]
        %v6418 = vld [vmem:[#allocation23 + $0x128] sm:$0xff]
        %v6419 = vld [vmem:[#allocation23 + $0x130] sm:$0xff]
        %v6420 = vld [vmem:[#allocation23 + $0x138] sm:$0xff]
        %v6421 = vld [vmem:[#allocation23 + $0x140] sm:$0xff]
        %v6422 = vld [vmem:[#allocation23 + $0x148] sm:$0xff]
        %v6423 = vld [vmem:[#allocation23 + $0x150] sm:$0xff]
        %v6424 = vld [vmem:[#allocation23 + $0x158] sm:$0xff]
        %v6425 = vld [vmem:[#allocation23 + $0x160] sm:$0xff]
        %v6426 = vld [vmem:[#allocation23 + $0x168] sm:$0xff]
        %v6427 = vld [vmem:[#allocation23 + $0x170] sm:$0xff]
        %v6428 = vld [vmem:[#allocation23 + $0x178] sm:$0xff]
        %v6429 = vld [vmem:[#allocation23 + $0x180] sm:$0xff]
        %v6430 = vld [vmem:[#allocation23 + $0x188] sm:$0xff]
        %v6431 = vld [vmem:[#allocation23 + $0x190] sm:$0xff]
        %v6432 = vld [vmem:[#allocation23 + $0x198] sm:$0xff]
        %v6433 = vld [vmem:[#allocation23 + $0x1a0] sm:$0xff]
        %v6434 = vld [vmem:[#allocation23 + $0x1a8] sm:$0xff]
        %v6435 = vld [vmem:[#allocation23 + $0x1b0] sm:$0xff]
        %v6436 = vld [vmem:[#allocation23 + $0x1b8] sm:$0xff]
        %v6437 = vld [vmem:[#allocation23 + $0x1c0] sm:$0xff]
        %v6438 = vld [vmem:[#allocation23 + $0x1c8] sm:$0xff]
        %v6439 = vld [vmem:[#allocation23 + $0x1d0] sm:$0xff]
        %v6440 = vld [vmem:[#allocation23 + $0x1d8] sm:$0xff]
        %v6441 = vld [vmem:[#allocation23 + $0x1e0] sm:$0xff]
        %v6442 = vld [vmem:[#allocation23 + $0x1e8] sm:$0xff]
        %v6443 = vld [vmem:[#allocation23 + $0x1f0] sm:$0xff]
        %v6444 = vld [vmem:[#allocation23 + $0x1f8] sm:$0xff]
        %v6445 = vld [vmem:[#allocation23 + $0x200] sm:$0xff]
        %v6446 = vld [vmem:[#allocation23 + $0x208] sm:$0xff]
        %v6447 = vld [vmem:[#allocation23 + $0x210] sm:$0xff]
        %v6448 = vld [vmem:[#allocation23 + $0x218] sm:$0xff]
        %v6449 = vld [vmem:[#allocation23 + $0x220] sm:$0xff]
        %v6450 = vld [vmem:[#allocation23 + $0x228] sm:$0xff]
        %v6451 = vld [vmem:[#allocation23 + $0x230] sm:$0xff]
        %v6452 = vld [vmem:[#allocation23 + $0x238] sm:$0xff]
        %v6453 = vld [vmem:[#allocation23 + $0x240] sm:$0xff]
        %v6454 = vld [vmem:[#allocation23 + $0x248] sm:$0xff]
        %v6455 = vld [vmem:[#allocation23 + $0x250] sm:$0xff]
        %v6456 = vld [vmem:[#allocation23 + $0x258] sm:$0xff]
        %v6457 = vld [vmem:[#allocation23 + $0x260] sm:$0xff]
        %v6458 = vld [vmem:[#allocation23 + $0x268] sm:$0xff]
        %v6459 = vld [vmem:[#allocation23 + $0x270] sm:$0xff]
        %v6460 = vld [vmem:[#allocation23 + $0x278] sm:$0xff]
        %v6461 = vld [vmem:[#allocation23 + $0x280] sm:$0xff]
        %v6462 = vld [vmem:[#allocation23 + $0x288] sm:$0xff]
        %v6463 = vld [vmem:[#allocation23 + $0x290] sm:$0xff]
        %v6464 = vld [vmem:[#allocation23 + $0x298] sm:$0xff]
        %v6465 = vld [vmem:[#allocation23 + $0x2a0] sm:$0xff]
        %v6466 = vld [vmem:[#allocation23 + $0x2a8] sm:$0xff]
        %v6467 = vld [vmem:[#allocation23 + $0x2b0] sm:$0xff]
        %v6468 = vld [vmem:[#allocation23 + $0x2b8] sm:$0xff]
        %v6469 = vld [vmem:[#allocation23 + $0x2c0] sm:$0xff]
        %v6470 = vld [vmem:[#allocation23 + $0x2c8] sm:$0xff]
        %v6471 = vld [vmem:[#allocation23 + $0x2d0] sm:$0xff]
        %v6472 = vld [vmem:[#allocation23 + $0x2d8] sm:$0xff]
        %v6473 = vld [vmem:[#allocation23 + $0x2e0] sm:$0xff]
        %v6474 = vld [vmem:[#allocation23 + $0x2e8] sm:$0xff]
        %v6475 = vld [vmem:[#allocation23 + $0x2f0] sm:$0xff]
        %v6476 = vld [vmem:[#allocation23 + $0x2f8] sm:$0xff]
        %v6477 = vld [vmem:[#allocation23 + $0x300] sm:$0xff]
        %v6478 = vld [vmem:[#allocation23 + $0x308] sm:$0xff]
        %v6479 = vld [vmem:[#allocation23 + $0x310] sm:$0xff]
        %v6480 = vld [vmem:[#allocation23 + $0x318] sm:$0xff]
        %v6481 = vld [vmem:[#allocation23 + $0x320] sm:$0xff]
        %v6482 = vld [vmem:[#allocation23 + $0x328] sm:$0xff]
        %v6483 = vld [vmem:[#allocation23 + $0x330] sm:$0xff]
        %v6484 = vld [vmem:[#allocation23 + $0x338] sm:$0xff]
        %v6485 = vld [vmem:[#allocation23 + $0x340] sm:$0xff]
        %v6486 = vld [vmem:[#allocation23 + $0x348] sm:$0xff]
        %v6487 = vld [vmem:[#allocation23 + $0x350] sm:$0xff]
        %v6488 = vld [vmem:[#allocation23 + $0x358] sm:$0xff]
        %v6489 = vld [vmem:[#allocation23 + $0x360] sm:$0xff]
        %v6490 = vld [vmem:[#allocation23 + $0x368] sm:$0xff]
        %v6491 = vld [vmem:[#allocation23 + $0x370] sm:$0xff]
        %v6492 = vld [vmem:[#allocation23 + $0x378] sm:$0xff]
        %v6493 = vld [vmem:[#allocation23 + $0x380] sm:$0xff]
        %v6494 = vld [vmem:[#allocation23 + $0x388] sm:$0xff]
        %v6495 = vld [vmem:[#allocation23 + $0x390] sm:$0xff]
        %v6496 = vld [vmem:[#allocation23 + $0x398] sm:$0xff]
        %v6497 = vld [vmem:[#allocation23 + $0x3a0] sm:$0xff]
        %v6498 = vld [vmem:[#allocation23 + $0x3a8] sm:$0xff]
        %v6499 = vld [vmem:[#allocation23 + $0x3b0] sm:$0xff]
        %v6500 = vld [vmem:[#allocation23 + $0x3b8] sm:$0xff]
        %v6501 = vld [vmem:[#allocation23 + $0x3c0] sm:$0xff]
        %v6502 = vld [vmem:[#allocation23 + $0x3c8] sm:$0xff]
        %v6503 = vld [vmem:[#allocation23 + $0x3d0] sm:$0xff]
        %v6504 = vld [vmem:[#allocation23 + $0x3d8] sm:$0xff]
        %v6505 = vld [vmem:[#allocation23 + $0x3e0] sm:$0xff]
        %v6506 = vld [vmem:[#allocation23 + $0x3e8] sm:$0xff]
        %v6507 = vld [vmem:[#allocation23 + $0x3f0] sm:$0xff]
        %v6508 = vld [vmem:[#allocation23 + $0x3f8] sm:$0xff]
        %v6509 = vld [vmem:[#allocation23 + $0x400] sm:$0xff]
        %v6510 = vld [vmem:[#allocation23 + $0x408] sm:$0xff]
        %v6511 = vld [vmem:[#allocation23 + $0x410] sm:$0xff]
        %v6512 = vld [vmem:[#allocation23 + $0x418] sm:$0xff]
        %v6513 = vld [vmem:[#allocation23 + $0x420] sm:$0xff]
        %v6514 = vld [vmem:[#allocation23 + $0x428] sm:$0xff]
        %v6515 = vld [vmem:[#allocation23 + $0x430] sm:$0xff]
        %v6516 = vld [vmem:[#allocation23 + $0x438] sm:$0xff]
        %v6517 = vld [vmem:[#allocation23 + $0x440] sm:$0xff]
        %v6518 = vld [vmem:[#allocation23 + $0x448] sm:$0xff]
        %v6519 = vld [vmem:[#allocation23 + $0x450] sm:$0xff]
        %v6520 = vld [vmem:[#allocation23 + $0x458] sm:$0xff]
        %v6521 = vld [vmem:[#allocation23 + $0x460] sm:$0xff]
        %v6522 = vld [vmem:[#allocation23 + $0x468] sm:$0xff]
        %v6523 = vld [vmem:[#allocation23 + $0x470] sm:$0xff]
        %v6524 = vld [vmem:[#allocation23 + $0x478] sm:$0xff]
        %v6525 = vld [vmem:[#allocation23 + $0x480] sm:$0xff]
        %v6526 = vld [vmem:[#allocation23 + $0x488] sm:$0xff]
        %v6527 = vld [vmem:[#allocation23 + $0x490] sm:$0xff]
        %v6528 = vld [vmem:[#allocation23 + $0x498] sm:$0xff]
        %v6529 = vld [vmem:[#allocation23 + $0x4a0] sm:$0xff]
        %v6530 = vld [vmem:[#allocation23 + $0x4a8] sm:$0xff]
        %v6531 = vld [vmem:[#allocation23 + $0x4b0] sm:$0xff]
        %v6532 = vld [vmem:[#allocation23 + $0x4b8] sm:$0xff]
        %v6533 = vld [vmem:[#allocation23 + $0x4c0] sm:$0xff]
        %v6534 = vld [vmem:[#allocation23 + $0x4c8] sm:$0xff]
        %v6535 = vld [vmem:[#allocation23 + $0x4d0] sm:$0xff]
        %v6536 = vld [vmem:[#allocation23 + $0x4d8] sm:$0xff]
        %v6537 = vld [vmem:[#allocation23 + $0x4e0] sm:$0xff]
        %v6538 = vld [vmem:[#allocation23 + $0x4e8] sm:$0xff]
        %v6539 = vld [vmem:[#allocation23 + $0x4f0] sm:$0xff]
        %v6540 = vld [vmem:[#allocation23 + $0x4f8] sm:$0xff]
        %v6541 = vld [vmem:[#allocation23 + $0x500] sm:$0xff]
        %v6542 = vld [vmem:[#allocation23 + $0x508] sm:$0xff]
        %v6543 = vld [vmem:[#allocation23 + $0x510] sm:$0xff]
        %v6544 = vld [vmem:[#allocation23 + $0x518] sm:$0xff]
        %v6545 = vld [vmem:[#allocation23 + $0x520] sm:$0xff]
        %v6546 = vld [vmem:[#allocation23 + $0x528] sm:$0xff]
        %v6547 = vld [vmem:[#allocation23 + $0x530] sm:$0xff]
        %v6548 = vld [vmem:[#allocation23 + $0x538] sm:$0xff]
        %v6549 = vld [vmem:[#allocation23 + $0x540] sm:$0xff]
        %v6550 = vld [vmem:[#allocation23 + $0x548] sm:$0xff]
        %v6551 = vld [vmem:[#allocation23 + $0x550] sm:$0xff]
        %v6552 = vld [vmem:[#allocation23 + $0x558] sm:$0xff]
        %v6553 = vld [vmem:[#allocation23 + $0x560] sm:$0xff]
        %v6554 = vld [vmem:[#allocation23 + $0x568] sm:$0xff]
        %v6555 = vld [vmem:[#allocation23 + $0x570] sm:$0xff]
        %v6556 = vld [vmem:[#allocation23 + $0x578] sm:$0xff]
        %v6557 = vld [vmem:[#allocation23 + $0x580] sm:$0xff]
        %v6558 = vld [vmem:[#allocation23 + $0x588] sm:$0xff]
        %v6559 = vld [vmem:[#allocation23 + $0x590] sm:$0xff]
        %v6560 = vld [vmem:[#allocation23 + $0x598] sm:$0xff]
        %v6561 = vld [vmem:[#allocation23 + $0x5a0] sm:$0xff]
        %v6562 = vld [vmem:[#allocation23 + $0x5a8] sm:$0xff]
        %v6563 = vld [vmem:[#allocation23 + $0x5b0] sm:$0xff]
        %v6564 = vld [vmem:[#allocation23 + $0x5b8] sm:$0xff]
        %v6565 = vld [vmem:[#allocation23 + $0x5c0] sm:$0xff]
        %v6566 = vld [vmem:[#allocation23 + $0x5c8] sm:$0xff]
        %v6567 = vld [vmem:[#allocation23 + $0x5d0] sm:$0xff]
        %v6568 = vld [vmem:[#allocation23 + $0x5d8] sm:$0xff]
        %v6569 = vld [vmem:[#allocation23 + $0x5e0] sm:$0xff]
        %v6570 = vld [vmem:[#allocation23 + $0x5e8] sm:$0xff]
        %v6571 = vld [vmem:[#allocation23 + $0x5f0] sm:$0xff]
        %v6572 = vld [vmem:[#allocation23 + $0x5f8] sm:$0xff]
        %v6573 = vld [vmem:[#allocation23 + $0x600] sm:$0xff]
        %v6574 = vld [vmem:[#allocation23 + $0x608] sm:$0xff]
        %v6575 = vld [vmem:[#allocation23 + $0x610] sm:$0xff]
        %v6576 = vld [vmem:[#allocation23 + $0x618] sm:$0xff]
        %v6577 = vld [vmem:[#allocation23 + $0x620] sm:$0xff]
        %v6578 = vld [vmem:[#allocation23 + $0x628] sm:$0xff]
        %v6579 = vld [vmem:[#allocation23 + $0x630] sm:$0xff]
        %v6580 = vld [vmem:[#allocation23 + $0x638] sm:$0xff]
        %v6581 = vld [vmem:[#allocation23 + $0x640] sm:$0xff]
        %v6582 = vld [vmem:[#allocation23 + $0x648] sm:$0xff]
        %v6583 = vld [vmem:[#allocation23 + $0x650] sm:$0xff]
        %v6584 = vld [vmem:[#allocation23 + $0x658] sm:$0xff]
        %v6585 = vld [vmem:[#allocation23 + $0x660] sm:$0xff]
        %v6586 = vld [vmem:[#allocation23 + $0x668] sm:$0xff]
        %v6587 = vld [vmem:[#allocation23 + $0x670] sm:$0xff]
        %v6588 = vld [vmem:[#allocation23 + $0x678] sm:$0xff]
        %v6589 = vld [vmem:[#allocation23 + $0x680] sm:$0xff]
        %v6590 = vld [vmem:[#allocation23 + $0x688] sm:$0xff]
        %v6591 = vld [vmem:[#allocation23 + $0x690] sm:$0xff]
        %v6592 = vld [vmem:[#allocation23 + $0x698] sm:$0xff]
        %v6593 = vld [vmem:[#allocation23 + $0x6a0] sm:$0xff]
        %v6594 = vld [vmem:[#allocation23 + $0x6a8] sm:$0xff]
        %v6595 = vld [vmem:[#allocation23 + $0x6b0] sm:$0xff]
        %v6596 = vld [vmem:[#allocation23 + $0x6b8] sm:$0xff]
        %v6597 = vld [vmem:[#allocation23 + $0x6c0] sm:$0xff]
        %v6598 = vld [vmem:[#allocation23 + $0x6c8] sm:$0xff]
        %v6599 = vld [vmem:[#allocation23 + $0x6d0] sm:$0xff]
        %v6600 = vld [vmem:[#allocation23 + $0x6d8] sm:$0xff]
        %v6601 = vld [vmem:[#allocation23 + $0x6e0] sm:$0xff]
        %v6602 = vld [vmem:[#allocation23 + $0x6e8] sm:$0xff]
        %v6603 = vld [vmem:[#allocation23 + $0x6f0] sm:$0xff]
        %v6604 = vld [vmem:[#allocation23 + $0x6f8] sm:$0xff]
        %v6605 = vld [vmem:[#allocation23 + $0x700] sm:$0xff]
        %v6606 = vld [vmem:[#allocation23 + $0x708] sm:$0xff]
        %v6607 = vld [vmem:[#allocation23 + $0x710] sm:$0xff]
        %v6608 = vld [vmem:[#allocation23 + $0x718] sm:$0xff]
        %v6609 = vld [vmem:[#allocation23 + $0x720] sm:$0xff]
        %v6610 = vld [vmem:[#allocation23 + $0x728] sm:$0xff]
        %v6611 = vld [vmem:[#allocation23 + $0x730] sm:$0xff]
        %v6612 = vld [vmem:[#allocation23 + $0x738] sm:$0xff]
        %v6613 = vld [vmem:[#allocation23 + $0x740] sm:$0xff]
        %v6614 = vld [vmem:[#allocation23 + $0x748] sm:$0xff]
        %v6615 = vld [vmem:[#allocation23 + $0x750] sm:$0xff]
        %v6616 = vld [vmem:[#allocation23 + $0x758] sm:$0xff]
        %v6617 = vld [vmem:[#allocation23 + $0x760] sm:$0xff]
        %v6618 = vld [vmem:[#allocation23 + $0x768] sm:$0xff]
        %v6619 = vld [vmem:[#allocation23 + $0x770] sm:$0xff]
        %v6620 = vld [vmem:[#allocation23 + $0x778] sm:$0xff]
        %v6621 = vld [vmem:[#allocation23 + $0x780] sm:$0xff]
        %v6622 = vld [vmem:[#allocation23 + $0x788] sm:$0xff]
        %v6623 = vld [vmem:[#allocation23 + $0x790] sm:$0xff]
        %v6624 = vld [vmem:[#allocation23 + $0x798] sm:$0xff]
        %v6625 = vld [vmem:[#allocation23 + $0x7a0] sm:$0xff]
        %v6626 = vld [vmem:[#allocation23 + $0x7a8] sm:$0xff]
        %v6627 = vld [vmem:[#allocation23 + $0x7b0] sm:$0xff]
        %v6628 = vld [vmem:[#allocation23 + $0x7b8] sm:$0xff]
        %v6629 = vld [vmem:[#allocation23 + $0x7c0] sm:$0xff]
        %v6630 = vld [vmem:[#allocation23 + $0x7c8] sm:$0xff]
        %v6631 = vld [vmem:[#allocation23 + $0x7d0] sm:$0xff]
        %v6632 = vld [vmem:[#allocation23 + $0x7d8] sm:$0xff]
        %v6633 = vld [vmem:[#allocation23 + $0x7e0] sm:$0xff]
        %v6634 = vld [vmem:[#allocation23 + $0x7e8] sm:$0xff]
        %v6635 = vld [vmem:[#allocation23 + $0x7f0] sm:$0xff]
        %v6636 = vld [vmem:[#allocation23 + $0x7f8] sm:$0xff]
        %v6637 = vld [vmem:[%s49] sm:$0xff]
        %v6638 = vld [vmem:[%s49 + $0x8] sm:$0xff]
        %v6639 = vld [vmem:[#allocation25] sm:$0xff]
        %v6640 = vld [vmem:[#allocation25 + $0x8] sm:$0xff]
        %v6641 = vld [vmem:[#allocation25 + $0x10] sm:$0xff]
        %v6642 = vld [vmem:[#allocation25 + $0x18] sm:$0xff]
        %v6643 = vld [vmem:[#allocation25 + $0x20] sm:$0xff]
        %v6644 = vld [vmem:[#allocation25 + $0x28] sm:$0xff]
        %v6645 = vld [vmem:[#allocation25 + $0x30] sm:$0xff]
        %v6646 = vld [vmem:[#allocation25 + $0x38] sm:$0xff]
        %v6647 = vld [vmem:[#allocation25 + $0x40] sm:$0xff]
        %v6648 = vld [vmem:[#allocation25 + $0x48] sm:$0xff]
        %v6649 = vld [vmem:[#allocation25 + $0x50] sm:$0xff]
        %v6650 = vld [vmem:[#allocation25 + $0x58] sm:$0xff]
        %v6651 = vld [vmem:[#allocation25 + $0x60] sm:$0xff]
        %v6652 = vld [vmem:[#allocation25 + $0x68] sm:$0xff]
        %v6653 = vld [vmem:[#allocation25 + $0x70] sm:$0xff]
        %v6654 = vld [vmem:[#allocation25 + $0x78] sm:$0xff]
        %v6655 = vld [vmem:[#allocation25 + $0x80] sm:$0xff]
        %v6656 = vld [vmem:[#allocation25 + $0x88] sm:$0xff]
        %v6657 = vld [vmem:[#allocation25 + $0x90] sm:$0xff]
        %v6658 = vld [vmem:[#allocation25 + $0x98] sm:$0xff]
        %v6659 = vld [vmem:[#allocation25 + $0xa0] sm:$0xff]
        %v6660 = vld [vmem:[#allocation25 + $0xa8] sm:$0xff]
        %v6661 = vld [vmem:[#allocation25 + $0xb0] sm:$0xff]
        %v6662 = vld [vmem:[#allocation25 + $0xb8] sm:$0xff]
        %v6663 = vld [vmem:[#allocation25 + $0xc0] sm:$0xff]
        %v6664 = vld [vmem:[#allocation25 + $0xc8] sm:$0xff]
        %v6665 = vld [vmem:[#allocation25 + $0xd0] sm:$0xff]
        %v6666 = vld [vmem:[#allocation25 + $0xd8] sm:$0xff]
        %v6667 = vld [vmem:[#allocation25 + $0xe0] sm:$0xff]
        %v6668 = vld [vmem:[#allocation25 + $0xe8] sm:$0xff]
        %v6669 = vld [vmem:[#allocation25 + $0xf0] sm:$0xff]
        %v6670 = vld [vmem:[#allocation25 + $0xf8] sm:$0xff]
        %v6671 = vld [vmem:[#allocation25 + $0x100] sm:$0xff]
        %v6672 = vld [vmem:[#allocation25 + $0x108] sm:$0xff]
        %v6673 = vld [vmem:[#allocation25 + $0x110] sm:$0xff]
        %v6674 = vld [vmem:[#allocation25 + $0x118] sm:$0xff]
        %v6675 = vld [vmem:[#allocation25 + $0x120] sm:$0xff]
        %v6676 = vld [vmem:[#allocation25 + $0x128] sm:$0xff]
        %v6677 = vld [vmem:[#allocation25 + $0x130] sm:$0xff]
        %v6678 = vld [vmem:[#allocation25 + $0x138] sm:$0xff]
        %v6679 = vld [vmem:[#allocation25 + $0x140] sm:$0xff]
        %v6680 = vld [vmem:[#allocation25 + $0x148] sm:$0xff]
        %v6681 = vld [vmem:[#allocation25 + $0x150] sm:$0xff]
        %v6682 = vld [vmem:[#allocation25 + $0x158] sm:$0xff]
        %v6683 = vld [vmem:[#allocation25 + $0x160] sm:$0xff]
        %v6684 = vld [vmem:[#allocation25 + $0x168] sm:$0xff]
        %v6685 = vld [vmem:[#allocation25 + $0x170] sm:$0xff]
        %v6686 = vld [vmem:[#allocation25 + $0x178] sm:$0xff]
        %v6687 = vld [vmem:[#allocation25 + $0x180] sm:$0xff]
        %v6688 = vld [vmem:[#allocation25 + $0x188] sm:$0xff]
        %v6689 = vld [vmem:[#allocation25 + $0x190] sm:$0xff]
        %v6690 = vld [vmem:[#allocation25 + $0x198] sm:$0xff]
        %v6691 = vld [vmem:[#allocation25 + $0x1a0] sm:$0xff]
        %v6692 = vld [vmem:[#allocation25 + $0x1a8] sm:$0xff]
        %v6693 = vld [vmem:[#allocation25 + $0x1b0] sm:$0xff]
        %v6694 = vld [vmem:[#allocation25 + $0x1b8] sm:$0xff]
        %v6695 = vld [vmem:[#allocation25 + $0x1c0] sm:$0xff]
        %v6696 = vld [vmem:[#allocation25 + $0x1c8] sm:$0xff]
        %v6697 = vld [vmem:[#allocation25 + $0x1d0] sm:$0xff]
        %v6698 = vld [vmem:[#allocation25 + $0x1d8] sm:$0xff]
        %v6699 = vld [vmem:[#allocation25 + $0x1e0] sm:$0xff]
        %v6700 = vld [vmem:[#allocation25 + $0x1e8] sm:$0xff]
        %v6701 = vld [vmem:[#allocation25 + $0x1f0] sm:$0xff]
        %v6702 = vld [vmem:[#allocation25 + $0x1f8] sm:$0xff]
        %v6703 = vld [vmem:[#allocation25 + $0x200] sm:$0xff]
        %v6704 = vld [vmem:[#allocation25 + $0x208] sm:$0xff]
        %v6705 = vld [vmem:[#allocation25 + $0x210] sm:$0xff]
        %v6706 = vld [vmem:[#allocation25 + $0x218] sm:$0xff]
        %v6707 = vld [vmem:[#allocation25 + $0x220] sm:$0xff]
        %v6708 = vld [vmem:[#allocation25 + $0x228] sm:$0xff]
        %v6709 = vld [vmem:[#allocation25 + $0x230] sm:$0xff]
        %v6710 = vld [vmem:[#allocation25 + $0x238] sm:$0xff]
        %v6711 = vld [vmem:[#allocation25 + $0x240] sm:$0xff]
        %v6712 = vld [vmem:[#allocation25 + $0x248] sm:$0xff]
        %v6713 = vld [vmem:[#allocation25 + $0x250] sm:$0xff]
        %v6714 = vld [vmem:[#allocation25 + $0x258] sm:$0xff]
        %v6715 = vld [vmem:[#allocation25 + $0x260] sm:$0xff]
        %v6716 = vld [vmem:[#allocation25 + $0x268] sm:$0xff]
        %v6717 = vld [vmem:[#allocation25 + $0x270] sm:$0xff]
        %v6718 = vld [vmem:[#allocation25 + $0x278] sm:$0xff]
        %v6719 = vld [vmem:[#allocation25 + $0x280] sm:$0xff]
        %v6720 = vld [vmem:[#allocation25 + $0x288] sm:$0xff]
        %v6721 = vld [vmem:[#allocation25 + $0x290] sm:$0xff]
        %v6722 = vld [vmem:[#allocation25 + $0x298] sm:$0xff]
        %v6723 = vld [vmem:[#allocation25 + $0x2a0] sm:$0xff]
        %v6724 = vld [vmem:[#allocation25 + $0x2a8] sm:$0xff]
        %v6725 = vld [vmem:[#allocation25 + $0x2b0] sm:$0xff]
        %v6726 = vld [vmem:[#allocation25 + $0x2b8] sm:$0xff]
        %v6727 = vld [vmem:[#allocation25 + $0x2c0] sm:$0xff]
        %v6728 = vld [vmem:[#allocation25 + $0x2c8] sm:$0xff]
        %v6729 = vld [vmem:[#allocation25 + $0x2d0] sm:$0xff]
        %v6730 = vld [vmem:[#allocation25 + $0x2d8] sm:$0xff]
        %v6731 = vld [vmem:[#allocation25 + $0x2e0] sm:$0xff]
        %v6732 = vld [vmem:[#allocation25 + $0x2e8] sm:$0xff]
        %v6733 = vld [vmem:[#allocation25 + $0x2f0] sm:$0xff]
        %v6734 = vld [vmem:[#allocation25 + $0x2f8] sm:$0xff]
        %v6735 = vld [vmem:[#allocation25 + $0x300] sm:$0xff]
        %v6736 = vld [vmem:[#allocation25 + $0x308] sm:$0xff]
        %v6737 = vld [vmem:[#allocation25 + $0x310] sm:$0xff]
        %v6738 = vld [vmem:[#allocation25 + $0x318] sm:$0xff]
        %v6739 = vld [vmem:[#allocation25 + $0x320] sm:$0xff]
        %v6740 = vld [vmem:[#allocation25 + $0x328] sm:$0xff]
        %v6741 = vld [vmem:[#allocation25 + $0x330] sm:$0xff]
        %v6742 = vld [vmem:[#allocation25 + $0x338] sm:$0xff]
        %v6743 = vld [vmem:[#allocation25 + $0x340] sm:$0xff]
        %v6744 = vld [vmem:[#allocation25 + $0x348] sm:$0xff]
        %v6745 = vld [vmem:[#allocation25 + $0x350] sm:$0xff]
        %v6746 = vld [vmem:[#allocation25 + $0x358] sm:$0xff]
        %v6747 = vld [vmem:[#allocation25 + $0x360] sm:$0xff]
        %v6748 = vld [vmem:[#allocation25 + $0x368] sm:$0xff]
        %v6749 = vld [vmem:[#allocation25 + $0x370] sm:$0xff]
        %v6750 = vld [vmem:[#allocation25 + $0x378] sm:$0xff]
        %v6751 = vld [vmem:[#allocation25 + $0x380] sm:$0xff]
        %v6752 = vld [vmem:[#allocation25 + $0x388] sm:$0xff]
        %v6753 = vld [vmem:[#allocation25 + $0x390] sm:$0xff]
        %v6754 = vld [vmem:[#allocation25 + $0x398] sm:$0xff]
        %v6755 = vld [vmem:[#allocation25 + $0x3a0] sm:$0xff]
        %v6756 = vld [vmem:[#allocation25 + $0x3a8] sm:$0xff]
        %v6757 = vld [vmem:[#allocation25 + $0x3b0] sm:$0xff]
        %v6758 = vld [vmem:[#allocation25 + $0x3b8] sm:$0xff]
        %v6759 = vld [vmem:[#allocation25 + $0x3c0] sm:$0xff]
        %v6760 = vld [vmem:[#allocation25 + $0x3c8] sm:$0xff]
        %v6761 = vld [vmem:[#allocation25 + $0x3d0] sm:$0xff]
        %v6762 = vld [vmem:[#allocation25 + $0x3d8] sm:$0xff]
        %v6763 = vld [vmem:[#allocation25 + $0x3e0] sm:$0xff]
        %v6764 = vld [vmem:[#allocation25 + $0x3e8] sm:$0xff]
        %v6765 = vld [vmem:[#allocation25 + $0x3f0] sm:$0xff]
        %v6766 = vld [vmem:[#allocation25 + $0x3f8] sm:$0xff]
        %v6767 = vld [vmem:[#allocation25 + $0x400] sm:$0xff]
        %v6768 = vld [vmem:[#allocation25 + $0x408] sm:$0xff]
        %v6769 = vld [vmem:[#allocation25 + $0x410] sm:$0xff]
        %v6770 = vld [vmem:[#allocation25 + $0x418] sm:$0xff]
        %v6771 = vld [vmem:[#allocation25 + $0x420] sm:$0xff]
        %v6772 = vld [vmem:[#allocation25 + $0x428] sm:$0xff]
        %v6773 = vld [vmem:[#allocation25 + $0x430] sm:$0xff]
        %v6774 = vld [vmem:[#allocation25 + $0x438] sm:$0xff]
        %v6775 = vld [vmem:[#allocation25 + $0x440] sm:$0xff]
        %v6776 = vld [vmem:[#allocation25 + $0x448] sm:$0xff]
        %v6777 = vld [vmem:[#allocation25 + $0x450] sm:$0xff]
        %v6778 = vld [vmem:[#allocation25 + $0x458] sm:$0xff]
        %v6779 = vld [vmem:[#allocation25 + $0x460] sm:$0xff]
        %v6780 = vld [vmem:[#allocation25 + $0x468] sm:$0xff]
        %v6781 = vld [vmem:[#allocation25 + $0x470] sm:$0xff]
        %v6782 = vld [vmem:[#allocation25 + $0x478] sm:$0xff]
        %v6783 = vld [vmem:[#allocation25 + $0x480] sm:$0xff]
        %v6784 = vld [vmem:[#allocation25 + $0x488] sm:$0xff]
        %v6785 = vld [vmem:[#allocation25 + $0x490] sm:$0xff]
        %v6786 = vld [vmem:[#allocation25 + $0x498] sm:$0xff]
        %v6787 = vld [vmem:[#allocation25 + $0x4a0] sm:$0xff]
        %v6788 = vld [vmem:[#allocation25 + $0x4a8] sm:$0xff]
        %v6789 = vld [vmem:[#allocation25 + $0x4b0] sm:$0xff]
        %v6790 = vld [vmem:[#allocation25 + $0x4b8] sm:$0xff]
        %v6791 = vld [vmem:[#allocation25 + $0x4c0] sm:$0xff]
        %v6792 = vld [vmem:[#allocation25 + $0x4c8] sm:$0xff]
        %v6793 = vld [vmem:[#allocation25 + $0x4d0] sm:$0xff]
        %v6794 = vld [vmem:[#allocation25 + $0x4d8] sm:$0xff]
        %v6795 = vld [vmem:[#allocation25 + $0x4e0] sm:$0xff]
        %v6796 = vld [vmem:[#allocation25 + $0x4e8] sm:$0xff]
        %v6797 = vld [vmem:[#allocation25 + $0x4f0] sm:$0xff]
        %v6798 = vld [vmem:[#allocation25 + $0x4f8] sm:$0xff]
        %v6799 = vld [vmem:[#allocation25 + $0x500] sm:$0xff]
        %v6800 = vld [vmem:[#allocation25 + $0x508] sm:$0xff]
        %v6801 = vld [vmem:[#allocation25 + $0x510] sm:$0xff]
        %v6802 = vld [vmem:[#allocation25 + $0x518] sm:$0xff]
        %v6803 = vld [vmem:[#allocation25 + $0x520] sm:$0xff]
        %v6804 = vld [vmem:[#allocation25 + $0x528] sm:$0xff]
        %v6805 = vld [vmem:[#allocation25 + $0x530] sm:$0xff]
        %v6806 = vld [vmem:[#allocation25 + $0x538] sm:$0xff]
        %v6807 = vld [vmem:[#allocation25 + $0x540] sm:$0xff]
        %v6808 = vld [vmem:[#allocation25 + $0x548] sm:$0xff]
        %v6809 = vld [vmem:[#allocation25 + $0x550] sm:$0xff]
        %v6810 = vld [vmem:[#allocation25 + $0x558] sm:$0xff]
        %v6811 = vld [vmem:[#allocation25 + $0x560] sm:$0xff]
        %v6812 = vld [vmem:[#allocation25 + $0x568] sm:$0xff]
        %v6813 = vld [vmem:[#allocation25 + $0x570] sm:$0xff]
        %v6814 = vld [vmem:[#allocation25 + $0x578] sm:$0xff]
        %v6815 = vld [vmem:[#allocation25 + $0x580] sm:$0xff]
        %v6816 = vld [vmem:[#allocation25 + $0x588] sm:$0xff]
        %v6817 = vld [vmem:[#allocation25 + $0x590] sm:$0xff]
        %v6818 = vld [vmem:[#allocation25 + $0x598] sm:$0xff]
        %v6819 = vld [vmem:[#allocation25 + $0x5a0] sm:$0xff]
        %v6820 = vld [vmem:[#allocation25 + $0x5a8] sm:$0xff]
        %v6821 = vld [vmem:[#allocation25 + $0x5b0] sm:$0xff]
        %v6822 = vld [vmem:[#allocation25 + $0x5b8] sm:$0xff]
        %v6823 = vld [vmem:[#allocation25 + $0x5c0] sm:$0xff]
        %v6824 = vld [vmem:[#allocation25 + $0x5c8] sm:$0xff]
        %v6825 = vld [vmem:[#allocation25 + $0x5d0] sm:$0xff]
        %v6826 = vld [vmem:[#allocation25 + $0x5d8] sm:$0xff]
        %v6827 = vld [vmem:[#allocation25 + $0x5e0] sm:$0xff]
        %v6828 = vld [vmem:[#allocation25 + $0x5e8] sm:$0xff]
        %v6829 = vld [vmem:[#allocation25 + $0x5f0] sm:$0xff]
        %v6830 = vld [vmem:[#allocation25 + $0x5f8] sm:$0xff]
        %v6831 = vld [vmem:[#allocation25 + $0x600] sm:$0xff]
        %v6832 = vld [vmem:[#allocation25 + $0x608] sm:$0xff]
        %v6833 = vld [vmem:[#allocation25 + $0x610] sm:$0xff]
        %v6834 = vld [vmem:[#allocation25 + $0x618] sm:$0xff]
        %v6835 = vld [vmem:[#allocation25 + $0x620] sm:$0xff]
        %v6836 = vld [vmem:[#allocation25 + $0x628] sm:$0xff]
        %v6837 = vld [vmem:[#allocation25 + $0x630] sm:$0xff]
        %v6838 = vld [vmem:[#allocation25 + $0x638] sm:$0xff]
        %v6839 = vld [vmem:[#allocation25 + $0x640] sm:$0xff]
        %v6840 = vld [vmem:[#allocation25 + $0x648] sm:$0xff]
        %v6841 = vld [vmem:[#allocation25 + $0x650] sm:$0xff]
        %v6842 = vld [vmem:[#allocation25 + $0x658] sm:$0xff]
        %v6843 = vld [vmem:[#allocation25 + $0x660] sm:$0xff]
        %v6844 = vld [vmem:[#allocation25 + $0x668] sm:$0xff]
        %v6845 = vld [vmem:[#allocation25 + $0x670] sm:$0xff]
        %v6846 = vld [vmem:[#allocation25 + $0x678] sm:$0xff]
        %v6847 = vld [vmem:[#allocation25 + $0x680] sm:$0xff]
        %v6848 = vld [vmem:[#allocation25 + $0x688] sm:$0xff]
        %v6849 = vld [vmem:[#allocation25 + $0x690] sm:$0xff]
        %v6850 = vld [vmem:[#allocation25 + $0x698] sm:$0xff]
        %v6851 = vld [vmem:[#allocation25 + $0x6a0] sm:$0xff]
        %v6852 = vld [vmem:[#allocation25 + $0x6a8] sm:$0xff]
        %v6853 = vld [vmem:[#allocation25 + $0x6b0] sm:$0xff]
        %v6854 = vld [vmem:[#allocation25 + $0x6b8] sm:$0xff]
        %v6855 = vld [vmem:[#allocation25 + $0x6c0] sm:$0xff]
        %v6856 = vld [vmem:[#allocation25 + $0x6c8] sm:$0xff]
        %v6857 = vld [vmem:[#allocation25 + $0x6d0] sm:$0xff]
        %v6858 = vld [vmem:[#allocation25 + $0x6d8] sm:$0xff]
        %v6859 = vld [vmem:[#allocation25 + $0x6e0] sm:$0xff]
        %v6860 = vld [vmem:[#allocation25 + $0x6e8] sm:$0xff]
        %v6861 = vld [vmem:[#allocation25 + $0x6f0] sm:$0xff]
        %v6862 = vld [vmem:[#allocation25 + $0x6f8] sm:$0xff]
        %v6863 = vld [vmem:[#allocation25 + $0x700] sm:$0xff]
        %v6864 = vld [vmem:[#allocation25 + $0x708] sm:$0xff]
        %v6865 = vld [vmem:[#allocation25 + $0x710] sm:$0xff]
        %v6866 = vld [vmem:[#allocation25 + $0x718] sm:$0xff]
        %v6867 = vld [vmem:[#allocation25 + $0x720] sm:$0xff]
        %v6868 = vld [vmem:[#allocation25 + $0x728] sm:$0xff]
        %v6869 = vld [vmem:[#allocation25 + $0x730] sm:$0xff]
        %v6870 = vld [vmem:[#allocation25 + $0x738] sm:$0xff]
        %v6871 = vld [vmem:[#allocation25 + $0x740] sm:$0xff]
        %v6872 = vld [vmem:[#allocation25 + $0x748] sm:$0xff]
        %v6873 = vld [vmem:[#allocation25 + $0x750] sm:$0xff]
        %v6874 = vld [vmem:[#allocation25 + $0x758] sm:$0xff]
        %v6875 = vld [vmem:[#allocation25 + $0x760] sm:$0xff]
        %v6876 = vld [vmem:[#allocation25 + $0x768] sm:$0xff]
        %v6877 = vld [vmem:[#allocation25 + $0x770] sm:$0xff]
        %v6878 = vld [vmem:[#allocation25 + $0x778] sm:$0xff]
        %v6879 = vld [vmem:[#allocation25 + $0x780] sm:$0xff]
        %v6880 = vld [vmem:[#allocation25 + $0x788] sm:$0xff]
        %v6881 = vld [vmem:[#allocation25 + $0x790] sm:$0xff]
        %v6882 = vld [vmem:[#allocation25 + $0x798] sm:$0xff]
        %v6883 = vld [vmem:[#allocation25 + $0x7a0] sm:$0xff]
        %v6884 = vld [vmem:[#allocation25 + $0x7a8] sm:$0xff]
        %v6885 = vld [vmem:[#allocation25 + $0x7b0] sm:$0xff]
        %v6886 = vld [vmem:[#allocation25 + $0x7b8] sm:$0xff]
        %v6887 = vld [vmem:[#allocation25 + $0x7c0] sm:$0xff]
        %v6888 = vld [vmem:[#allocation25 + $0x7c8] sm:$0xff]
        %v6889 = vld [vmem:[#allocation25 + $0x7d0] sm:$0xff]
        %v6890 = vld [vmem:[#allocation25 + $0x7d8] sm:$0xff]
        %v6891 = vld [vmem:[#allocation25 + $0x7e0] sm:$0xff]
        %v6892 = vld [vmem:[#allocation25 + $0x7e8] sm:$0xff]
        %v6893 = vld [vmem:[#allocation25 + $0x7f0] sm:$0xff]
        %v6894 = vld [vmem:[#allocation25 + $0x7f8] sm:$0xff]
        %v6895 = vld [vmem:[%s53] sm:$0x1]
        %v6898 = vlaneseq
        %v6899 = vshrl.u32 %v6898, 7
        %v6900 = vsub.s32 0, %v6899
        %v6901 = vrot.slane %v6637, %v6900
        %v6902 = vlaneseq
        %v6903 = vshrl.u32 %v6902, 7
        %v6904 = vsub.s32 1, %v6903
        %v6905 = vrot.slane %v6637, %v6904
        %v6906 = vlaneseq
        %v6907 = vshrl.u32 %v6906, 7
        %v6908 = vsub.s32 2, %v6907
        %v6909 = vrot.slane %v6637, %v6908
        %v6910 = vlaneseq
        %v6911 = vshrl.u32 %v6910, 7
        %v6912 = vsub.s32 3, %v6911
        %v6913 = vrot.slane %v6637, %v6912
        %v6914 = vlaneseq
        %v6915 = vshrl.u32 %v6914, 7
        %v6916 = vsub.s32 4, %v6915
        %v6917 = vrot.slane %v6637, %v6916
        %v6918 = vlaneseq
        %v6919 = vshrl.u32 %v6918, 7
        %v6920 = vsub.s32 5, %v6919
        %v6921 = vrot.slane %v6637, %v6920
        %v6922 = vlaneseq
        %v6923 = vshrl.u32 %v6922, 7
        %v6924 = vsub.s32 6, %v6923
        %v6925 = vrot.slane %v6637, %v6924
        %v6926 = vlaneseq
        %v6927 = vshrl.u32 %v6926, 7
        %v6928 = vsub.s32 7, %v6927
        %v6929 = vrot.slane %v6637, %v6928
        %v6930 = vlaneseq
        %v6931 = vshrl.u32 %v6930, 7
        %v6932 = vsub.s32 0, %v6931
        %v6933 = vrot.slane %v6638, %v6932
        %v6934 = vlaneseq
        %v6935 = vshrl.u32 %v6934, 7
        %v6936 = vsub.s32 1, %v6935
        %v6937 = vrot.slane %v6638, %v6936
        %v6938 = vlaneseq
        %v6939 = vshrl.u32 %v6938, 7
        %v6940 = vsub.s32 2, %v6939
        %v6941 = vrot.slane %v6638, %v6940
        %v6942 = vlaneseq
        %v6943 = vshrl.u32 %v6942, 7
        %v6944 = vsub.s32 3, %v6943
        %v6945 = vrot.slane %v6638, %v6944
        %v6946 = vlaneseq
        %v6947 = vshrl.u32 %v6946, 7
        %v6948 = vsub.s32 4, %v6947
        %v6949 = vrot.slane %v6638, %v6948
        %v6950 = vlaneseq
        %v6951 = vshrl.u32 %v6950, 7
        %v6952 = vsub.s32 5, %v6951
        %v6953 = vrot.slane %v6638, %v6952
        %v6954 = vlaneseq
        %v6955 = vshrl.u32 %v6954, 7
        %v6956 = vsub.s32 6, %v6955
        %v6957 = vrot.slane %v6638, %v6956
        %v6958 = vlaneseq
        %v6959 = vshrl.u32 %v6958, 7
        %v6960 = vsub.s32 7, %v6959
        %v6961 = vrot.slane %v6638, %v6960
        %6978 = vmatprep.subr.mxu0 0.0
        %6979 = vmatpush1.xpose.msra.mxu0 %v6396
        %6980 = vmatprep.subr.mxu0 0.0
        %6981 = vmatpush1.xpose.msra.mxu0 %v6395
        %6982 = vmatprep.subr.mxu0 0.0
        %6983 = vmatpush1.xpose.msra.mxu0 %v6394
        %6984 = vmatprep.subr.mxu0 0.0
        %6985 = vmatpush1.xpose.msra.mxu0 %v6393
        %6986 = vmatprep.subr.mxu0 0.0
        %6987 = vmatpush1.xpose.msra.mxu0 %v6392
        %6988 = vmatprep.subr.mxu0 0.0
        %6989 = vmatpush1.xpose.msra.mxu0 %v6391
        %6990 = vmatprep.subr.mxu0 0.0
        %6991 = vmatpush1.xpose.msra.mxu0 %v6390
        %6992 = vmatprep.subr.mxu0 0.0
        %6993 = vmatpush1.xpose.msra.mxu0 %v6389
        %6994 = vmatprep.subr.mxu0 0.0
        %6995 = vmatpush1.xpose.msra.mxu0 %v6388
        %6996 = vmatprep.subr.mxu0 0.0
        %6997 = vmatpush1.xpose.msra.mxu0 %v6387
        %6998 = vmatprep.subr.mxu0 0.0
        %6999 = vmatpush1.xpose.msra.mxu0 %v6386
        %7000 = vmatprep.subr.mxu0 0.0
        %7001 = vmatpush1.xpose.msra.mxu0 %v6385
        %7002 = vmatprep.subr.mxu0 0.0
        %7003 = vmatpush1.xpose.msra.mxu0 %v6384
        %7004 = vmatprep.subr.mxu0 0.0
        %7005 = vmatpush1.xpose.msra.mxu0 %v6383
        %7006 = vmatprep.subr.mxu0 0.0
        %7007 = vmatpush1.xpose.msra.mxu0 %v6382
        %7008 = vmatprep.subr.mxu0 0.0
        %7009 = vmatpush1.xpose.msra.mxu0 %v6381
        %7010 = vmatprep.subr.mxu0 0.0
        %7011 = vmatpush2.xpose.msra.mxu0 %v6412
        %7012 = vmatprep.subr.mxu0 0.0
        %7013 = vmatpush2.xpose.msra.mxu0 %v6411
        %7014 = vmatprep.subr.mxu0 0.0
        %7015 = vmatpush2.xpose.msra.mxu0 %v6410
        %7016 = vmatprep.subr.mxu0 0.0
        %7017 = vmatpush2.xpose.msra.mxu0 %v6409
        %7018 = vmatprep.subr.mxu0 0.0
        %7019 = vmatpush2.xpose.msra.mxu0 %v6408
        %7020 = vmatprep.subr.mxu0 0.0
        %7021 = vmatpush2.xpose.msra.mxu0 %v6407
        %7022 = vmatprep.subr.mxu0 0.0
        %7023 = vmatpush2.xpose.msra.mxu0 %v6406
        %7024 = vmatprep.subr.mxu0 0.0
        %7025 = vmatpush2.xpose.msra.mxu0 %v6405
        %7026 = vmatprep.subr.mxu0 0.0
        %7027 = vmatpush2.xpose.msra.mxu0 %v6404
        %7028 = vmatprep.subr.mxu0 0.0
        %7029 = vmatpush2.xpose.msra.mxu0 %v6403
        %7030 = vmatprep.subr.mxu0 0.0
        %7031 = vmatpush2.xpose.msra.mxu0 %v6402
        %7032 = vmatprep.subr.mxu0 0.0
        %7033 = vmatpush2.xpose.msra.mxu0 %v6401
        %7034 = vmatprep.subr.mxu0 0.0
        %7035 = vmatpush2.xpose.msra.mxu0 %v6400
        %7036 = vmatprep.subr.mxu0 0.0
        %7037 = vmatpush2.xpose.msra.mxu0 %v6399
        %7038 = vmatprep.subr.mxu0 0.0
        %7039 = vmatpush2.xpose.msra.mxu0 %v6398
        %7040 = vmatprep.subr.mxu0 0.0
        %7041 = vmatpush2.xpose.msra.mxu0 %v6397
        %7042 = vmatprep.mubr.f32.mxu0 0.0
        %7043 = vmatmul.mubr.f32.gmra.mxu0 %v6379
        %v7044 = vpop.f32.mrf.mxu0
        %v7045 = vadd.f32 %v6901, %v7044
        %v7046 = vpop.f32.mrf.mxu0
        %v7047 = vadd.f32 %v6905, %v7046
        %7048 = vmatprep.mubr.f32.mxu0 0.0
        %7049 = vmatmul.mubr.f32.gmra.mxu0 %v6380
        %v7050 = vpop.f32.mrf.mxu0
        %v7051 = vadd.f32 %v6901, %v7050
        %v7052 = vpop.f32.mrf.mxu0
        %v7053 = vadd.f32 %v6905, %v7052
        %7054 = vdwg.mxu0
        %7055 = vmatprep.subr.mxu0 0.0
        %7056 = vmatpush1.xpose.msra.mxu0 %v6428
        %7057 = vmatprep.subr.mxu0 0.0
        %7058 = vmatpush1.xpose.msra.mxu0 %v6427
        %7059 = vmatprep.subr.mxu0 0.0
        %7060 = vmatpush1.xpose.msra.mxu0 %v6426
        %7061 = vmatprep.subr.mxu0 0.0
        %7062 = vmatpush1.xpose.msra.mxu0 %v6425
        %7063 = vmatprep.subr.mxu0 0.0
        %7064 = vmatpush1.xpose.msra.mxu0 %v6424
        %7065 = vmatprep.subr.mxu0 0.0
        %7066 = vmatpush1.xpose.msra.mxu0 %v6423
        %7067 = vmatprep.subr.mxu0 0.0
        %7068 = vmatpush1.xpose.msra.mxu0 %v6422
        %7069 = vmatprep.subr.mxu0 0.0
        %7070 = vmatpush1.xpose.msra.mxu0 %v6421
        %7071 = vmatprep.subr.mxu0 0.0
        %7072 = vmatpush1.xpose.msra.mxu0 %v6420
        %7073 = vmatprep.subr.mxu0 0.0
        %7074 = vmatpush1.xpose.msra.mxu0 %v6419
        %7075 = vmatprep.subr.mxu0 0.0
        %7076 = vmatpush1.xpose.msra.mxu0 %v6418
        %7077 = vmatprep.subr.mxu0 0.0
        %7078 = vmatpush1.xpose.msra.mxu0 %v6417
        %7079 = vmatprep.subr.mxu0 0.0
        %7080 = vmatpush1.xpose.msra.mxu0 %v6416
        %7081 = vmatprep.subr.mxu0 0.0
        %7082 = vmatpush1.xpose.msra.mxu0 %v6415
        %7083 = vmatprep.subr.mxu0 0.0
        %7084 = vmatpush1.xpose.msra.mxu0 %v6414
        %7085 = vmatprep.subr.mxu0 0.0
        %7086 = vmatpush1.xpose.msra.mxu0 %v6413
        %7087 = vmatprep.subr.mxu0 0.0
        %7088 = vmatpush2.xpose.msra.mxu0 %v6444
        %7089 = vmatprep.subr.mxu0 0.0
        %7090 = vmatpush2.xpose.msra.mxu0 %v6443
        %7091 = vmatprep.subr.mxu0 0.0
        %7092 = vmatpush2.xpose.msra.mxu0 %v6442
        %7093 = vmatprep.subr.mxu0 0.0
        %7094 = vmatpush2.xpose.msra.mxu0 %v6441
        %7095 = vmatprep.subr.mxu0 0.0
        %7096 = vmatpush2.xpose.msra.mxu0 %v6440
        %7097 = vmatprep.subr.mxu0 0.0
        %7098 = vmatpush2.xpose.msra.mxu0 %v6439
        %7099 = vmatprep.subr.mxu0 0.0
        %7100 = vmatpush2.xpose.msra.mxu0 %v6438
        %7101 = vmatprep.subr.mxu0 0.0
        %7102 = vmatpush2.xpose.msra.mxu0 %v6437
        %7103 = vmatprep.subr.mxu0 0.0
        %7104 = vmatpush2.xpose.msra.mxu0 %v6436
        %7105 = vmatprep.subr.mxu0 0.0
        %7106 = vmatpush2.xpose.msra.mxu0 %v6435
        %7107 = vmatprep.subr.mxu0 0.0
        %7108 = vmatpush2.xpose.msra.mxu0 %v6434
        %7109 = vmatprep.subr.mxu0 0.0
        %7110 = vmatpush2.xpose.msra.mxu0 %v6433
        %7111 = vmatprep.subr.mxu0 0.0
        %7112 = vmatpush2.xpose.msra.mxu0 %v6432
        %7113 = vmatprep.subr.mxu0 0.0
        %7114 = vmatpush2.xpose.msra.mxu0 %v6431
        %7115 = vmatprep.subr.mxu0 0.0
        %7116 = vmatpush2.xpose.msra.mxu0 %v6430
        %7117 = vmatprep.subr.mxu0 0.0
        %7118 = vmatpush2.xpose.msra.mxu0 %v6429
        %7119 = vmatprep.mubr.f32.mxu0 0.0
        %7120 = vmatmul.mubr.f32.gmra.mxu0 %v6379
        %v7121 = vpop.f32.mrf.mxu0
        %v7122 = vadd.f32 %v6909, %v7121
        %v7123 = vpop.f32.mrf.mxu0
        %v7124 = vadd.f32 %v6913, %v7123
        %7125 = vmatprep.mubr.f32.mxu0 0.0
        %7126 = vmatmul.mubr.f32.gmra.mxu0 %v6380
        %v7127 = vpop.f32.mrf.mxu0
        %v7128 = vadd.f32 %v6909, %v7127
        %v7129 = vpop.f32.mrf.mxu0
        %v7130 = vadd.f32 %v6913, %v7129
        %7131 = vdwg.mxu0
        %7132 = vmatprep.subr.mxu0 0.0
        %7133 = vmatpush1.xpose.msra.mxu0 %v6460
        %7134 = vmatprep.subr.mxu0 0.0
        %7135 = vmatpush1.xpose.msra.mxu0 %v6459
        %7136 = vmatprep.subr.mxu0 0.0
        %7137 = vmatpush1.xpose.msra.mxu0 %v6458
        %7138 = vmatprep.subr.mxu0 0.0
        %7139 = vmatpush1.xpose.msra.mxu0 %v6457
        %7140 = vmatprep.subr.mxu0 0.0
        %7141 = vmatpush1.xpose.msra.mxu0 %v6456
        %7142 = vmatprep.subr.mxu0 0.0
        %7143 = vmatpush1.xpose.msra.mxu0 %v6455
        %7144 = vmatprep.subr.mxu0 0.0
        %7145 = vmatpush1.xpose.msra.mxu0 %v6454
        %7146 = vmatprep.subr.mxu0 0.0
        %7147 = vmatpush1.xpose.msra.mxu0 %v6453
        %7148 = vmatprep.subr.mxu0 0.0
        %7149 = vmatpush1.xpose.msra.mxu0 %v6452
        %7150 = vmatprep.subr.mxu0 0.0
        %7151 = vmatpush1.xpose.msra.mxu0 %v6451
        %7152 = vmatprep.subr.mxu0 0.0
        %7153 = vmatpush1.xpose.msra.mxu0 %v6450
        %7154 = vmatprep.subr.mxu0 0.0
        %7155 = vmatpush1.xpose.msra.mxu0 %v6449
        %7156 = vmatprep.subr.mxu0 0.0
        %7157 = vmatpush1.xpose.msra.mxu0 %v6448
        %7158 = vmatprep.subr.mxu0 0.0
        %7159 = vmatpush1.xpose.msra.mxu0 %v6447
        %7160 = vmatprep.subr.mxu0 0.0
        %7161 = vmatpush1.xpose.msra.mxu0 %v6446
        %7162 = vmatprep.subr.mxu0 0.0
        %7163 = vmatpush1.xpose.msra.mxu0 %v6445
        %7164 = vmatprep.subr.mxu0 0.0
        %7165 = vmatpush2.xpose.msra.mxu0 %v6476
        %7166 = vmatprep.subr.mxu0 0.0
        %7167 = vmatpush2.xpose.msra.mxu0 %v6475
        %7168 = vmatprep.subr.mxu0 0.0
        %7169 = vmatpush2.xpose.msra.mxu0 %v6474
        %7170 = vmatprep.subr.mxu0 0.0
        %7171 = vmatpush2.xpose.msra.mxu0 %v6473
        %7172 = vmatprep.subr.mxu0 0.0
        %7173 = vmatpush2.xpose.msra.mxu0 %v6472
        %7174 = vmatprep.subr.mxu0 0.0
        %7175 = vmatpush2.xpose.msra.mxu0 %v6471
        %7176 = vmatprep.subr.mxu0 0.0
        %7177 = vmatpush2.xpose.msra.mxu0 %v6470
        %7178 = vmatprep.subr.mxu0 0.0
        %7179 = vmatpush2.xpose.msra.mxu0 %v6469
        %7180 = vmatprep.subr.mxu0 0.0
        %7181 = vmatpush2.xpose.msra.mxu0 %v6468
        %7182 = vmatprep.subr.mxu0 0.0
        %7183 = vmatpush2.xpose.msra.mxu0 %v6467
        %7184 = vmatprep.subr.mxu0 0.0
        %7185 = vmatpush2.xpose.msra.mxu0 %v6466
        %7186 = vmatprep.subr.mxu0 0.0
        %7187 = vmatpush2.xpose.msra.mxu0 %v6465
        %7188 = vmatprep.subr.mxu0 0.0
        %7189 = vmatpush2.xpose.msra.mxu0 %v6464
        %7190 = vmatprep.subr.mxu0 0.0
        %7191 = vmatpush2.xpose.msra.mxu0 %v6463
        %7192 = vmatprep.subr.mxu0 0.0
        %7193 = vmatpush2.xpose.msra.mxu0 %v6462
        %7194 = vmatprep.subr.mxu0 0.0
        %7195 = vmatpush2.xpose.msra.mxu0 %v6461
        %7196 = vmatprep.mubr.f32.mxu0 0.0
        %7197 = vmatmul.mubr.f32.gmra.mxu0 %v6379
        %v7198 = vpop.f32.mrf.mxu0
        %v7199 = vadd.f32 %v6917, %v7198
        %v7200 = vpop.f32.mrf.mxu0
        %v7201 = vadd.f32 %v6921, %v7200
        %7202 = vmatprep.mubr.f32.mxu0 0.0
        %7203 = vmatmul.mubr.f32.gmra.mxu0 %v6380
        %v7204 = vpop.f32.mrf.mxu0
        %v7205 = vadd.f32 %v6917, %v7204
        %v7206 = vpop.f32.mrf.mxu0
        %v7207 = vadd.f32 %v6921, %v7206
        %7208 = vdwg.mxu0
        %7209 = vmatprep.subr.mxu0 0.0
        %7210 = vmatpush1.xpose.msra.mxu0 %v6492
        %7211 = vmatprep.subr.mxu0 0.0
        %7212 = vmatpush1.xpose.msra.mxu0 %v6491
        %7213 = vmatprep.subr.mxu0 0.0
        %7214 = vmatpush1.xpose.msra.mxu0 %v6490
        %7215 = vmatprep.subr.mxu0 0.0
        %7216 = vmatpush1.xpose.msra.mxu0 %v6489
        %7217 = vmatprep.subr.mxu0 0.0
        %7218 = vmatpush1.xpose.msra.mxu0 %v6488
        %7219 = vmatprep.subr.mxu0 0.0
        %7220 = vmatpush1.xpose.msra.mxu0 %v6487
        %7221 = vmatprep.subr.mxu0 0.0
        %7222 = vmatpush1.xpose.msra.mxu0 %v6486
        %7223 = vmatprep.subr.mxu0 0.0
        %7224 = vmatpush1.xpose.msra.mxu0 %v6485
        %7225 = vmatprep.subr.mxu0 0.0
        %7226 = vmatpush1.xpose.msra.mxu0 %v6484
        %7227 = vmatprep.subr.mxu0 0.0
        %7228 = vmatpush1.xpose.msra.mxu0 %v6483
        %7229 = vmatprep.subr.mxu0 0.0
        %7230 = vmatpush1.xpose.msra.mxu0 %v6482
        %7231 = vmatprep.subr.mxu0 0.0
        %7232 = vmatpush1.xpose.msra.mxu0 %v6481
        %7233 = vmatprep.subr.mxu0 0.0
        %7234 = vmatpush1.xpose.msra.mxu0 %v6480
        %7235 = vmatprep.subr.mxu0 0.0
        %7236 = vmatpush1.xpose.msra.mxu0 %v6479
        %7237 = vmatprep.subr.mxu0 0.0
        %7238 = vmatpush1.xpose.msra.mxu0 %v6478
        %7239 = vmatprep.subr.mxu0 0.0
        %7240 = vmatpush1.xpose.msra.mxu0 %v6477
        %7241 = vmatprep.subr.mxu0 0.0
        %7242 = vmatpush2.xpose.msra.mxu0 %v6508
        %7243 = vmatprep.subr.mxu0 0.0
        %7244 = vmatpush2.xpose.msra.mxu0 %v6507
        %7245 = vmatprep.subr.mxu0 0.0
        %7246 = vmatpush2.xpose.msra.mxu0 %v6506
        %7247 = vmatprep.subr.mxu0 0.0
        %7248 = vmatpush2.xpose.msra.mxu0 %v6505
        %7249 = vmatprep.subr.mxu0 0.0
        %7250 = vmatpush2.xpose.msra.mxu0 %v6504
        %7251 = vmatprep.subr.mxu0 0.0
        %7252 = vmatpush2.xpose.msra.mxu0 %v6503
        %7253 = vmatprep.subr.mxu0 0.0
        %7254 = vmatpush2.xpose.msra.mxu0 %v6502
        %7255 = vmatprep.subr.mxu0 0.0
        %7256 = vmatpush2.xpose.msra.mxu0 %v6501
        %7257 = vmatprep.subr.mxu0 0.0
        %7258 = vmatpush2.xpose.msra.mxu0 %v6500
        %7259 = vmatprep.subr.mxu0 0.0
        %7260 = vmatpush2.xpose.msra.mxu0 %v6499
        %7261 = vmatprep.subr.mxu0 0.0
        %7262 = vmatpush2.xpose.msra.mxu0 %v6498
        %7263 = vmatprep.subr.mxu0 0.0
        %7264 = vmatpush2.xpose.msra.mxu0 %v6497
        %7265 = vmatprep.subr.mxu0 0.0
        %7266 = vmatpush2.xpose.msra.mxu0 %v6496
        %7267 = vmatprep.subr.mxu0 0.0
        %7268 = vmatpush2.xpose.msra.mxu0 %v6495
        %7269 = vmatprep.subr.mxu0 0.0
        %7270 = vmatpush2.xpose.msra.mxu0 %v6494
        %7271 = vmatprep.subr.mxu0 0.0
        %7272 = vmatpush2.xpose.msra.mxu0 %v6493
        %7273 = vmatprep.mubr.f32.mxu0 0.0
        %7274 = vmatmul.mubr.f32.gmra.mxu0 %v6379
        %v7275 = vpop.f32.mrf.mxu0
        %v7276 = vadd.f32 %v6925, %v7275
        %v7277 = vpop.f32.mrf.mxu0
        %v7278 = vadd.f32 %v6929, %v7277
        %7279 = vmatprep.mubr.f32.mxu0 0.0
        %7280 = vmatmul.mubr.f32.gmra.mxu0 %v6380
        %v7281 = vpop.f32.mrf.mxu0
        %v7282 = vadd.f32 %v6925, %v7281
        %v7283 = vpop.f32.mrf.mxu0
        %v7284 = vadd.f32 %v6929, %v7283
        %7285 = vdwg.mxu0
        %7286 = vmatprep.subr.mxu0 0.0
        %7287 = vmatpush1.xpose.msra.mxu0 %v6524
        %7288 = vmatprep.subr.mxu0 0.0
        %7289 = vmatpush1.xpose.msra.mxu0 %v6523
        %7290 = vmatprep.subr.mxu0 0.0
        %7291 = vmatpush1.xpose.msra.mxu0 %v6522
        %7292 = vmatprep.subr.mxu0 0.0
        %7293 = vmatpush1.xpose.msra.mxu0 %v6521
        %7294 = vmatprep.subr.mxu0 0.0
        %7295 = vmatpush1.xpose.msra.mxu0 %v6520
        %7296 = vmatprep.subr.mxu0 0.0
        %7297 = vmatpush1.xpose.msra.mxu0 %v6519
        %7298 = vmatprep.subr.mxu0 0.0
        %7299 = vmatpush1.xpose.msra.mxu0 %v6518
        %7300 = vmatprep.subr.mxu0 0.0
        %7301 = vmatpush1.xpose.msra.mxu0 %v6517
        %7302 = vmatprep.subr.mxu0 0.0
        %7303 = vmatpush1.xpose.msra.mxu0 %v6516
        %7304 = vmatprep.subr.mxu0 0.0
        %7305 = vmatpush1.xpose.msra.mxu0 %v6515
        %7306 = vmatprep.subr.mxu0 0.0
        %7307 = vmatpush1.xpose.msra.mxu0 %v6514
        %7308 = vmatprep.subr.mxu0 0.0
        %7309 = vmatpush1.xpose.msra.mxu0 %v6513
        %7310 = vmatprep.subr.mxu0 0.0
        %7311 = vmatpush1.xpose.msra.mxu0 %v6512
        %7312 = vmatprep.subr.mxu0 0.0
        %7313 = vmatpush1.xpose.msra.mxu0 %v6511
        %7314 = vmatprep.subr.mxu0 0.0
        %7315 = vmatpush1.xpose.msra.mxu0 %v6510
        %7316 = vmatprep.subr.mxu0 0.0
        %7317 = vmatpush1.xpose.msra.mxu0 %v6509
        %7318 = vmatprep.subr.mxu0 0.0
        %7319 = vmatpush2.xpose.msra.mxu0 %v6540
        %7320 = vmatprep.subr.mxu0 0.0
        %7321 = vmatpush2.xpose.msra.mxu0 %v6539
        %7322 = vmatprep.subr.mxu0 0.0
        %7323 = vmatpush2.xpose.msra.mxu0 %v6538
        %7324 = vmatprep.subr.mxu0 0.0
        %7325 = vmatpush2.xpose.msra.mxu0 %v6537
        %7326 = vmatprep.subr.mxu0 0.0
        %7327 = vmatpush2.xpose.msra.mxu0 %v6536
        %7328 = vmatprep.subr.mxu0 0.0
        %7329 = vmatpush2.xpose.msra.mxu0 %v6535
        %7330 = vmatprep.subr.mxu0 0.0
        %7331 = vmatpush2.xpose.msra.mxu0 %v6534
        %7332 = vmatprep.subr.mxu0 0.0
        %7333 = vmatpush2.xpose.msra.mxu0 %v6533
        %7334 = vmatprep.subr.mxu0 0.0
        %7335 = vmatpush2.xpose.msra.mxu0 %v6532
        %7336 = vmatprep.subr.mxu0 0.0
        %7337 = vmatpush2.xpose.msra.mxu0 %v6531
        %7338 = vmatprep.subr.mxu0 0.0
        %7339 = vmatpush2.xpose.msra.mxu0 %v6530
        %7340 = vmatprep.subr.mxu0 0.0
        %7341 = vmatpush2.xpose.msra.mxu0 %v6529
        %7342 = vmatprep.subr.mxu0 0.0
        %7343 = vmatpush2.xpose.msra.mxu0 %v6528
        %7344 = vmatprep.subr.mxu0 0.0
        %7345 = vmatpush2.xpose.msra.mxu0 %v6527
        %7346 = vmatprep.subr.mxu0 0.0
        %7347 = vmatpush2.xpose.msra.mxu0 %v6526
        %7348 = vmatprep.subr.mxu0 0.0
        %7349 = vmatpush2.xpose.msra.mxu0 %v6525
        %7350 = vmatprep.mubr.f32.mxu0 0.0
        %7351 = vmatmul.mubr.f32.gmra.mxu0 %v6379
        %v7352 = vpop.f32.mrf.mxu0
        %v7353 = vadd.f32 %v6933, %v7352
        %v7354 = vpop.f32.mrf.mxu0
        %v7355 = vadd.f32 %v6937, %v7354
        %7356 = vmatprep.mubr.f32.mxu0 0.0
        %7357 = vmatmul.mubr.f32.gmra.mxu0 %v6380
        %v7358 = vpop.f32.mrf.mxu0
        %v7359 = vadd.f32 %v6933, %v7358
        %v7360 = vpop.f32.mrf.mxu0
        %v7361 = vadd.f32 %v6937, %v7360
        %7362 = vdwg.mxu0
        %7363 = vmatprep.subr.mxu0 0.0
        %7364 = vmatpush1.xpose.msra.mxu0 %v6556
        %7365 = vmatprep.subr.mxu0 0.0
        %7366 = vmatpush1.xpose.msra.mxu0 %v6555
        %7367 = vmatprep.subr.mxu0 0.0
        %7368 = vmatpush1.xpose.msra.mxu0 %v6554
        %7369 = vmatprep.subr.mxu0 0.0
        %7370 = vmatpush1.xpose.msra.mxu0 %v6553
        %7371 = vmatprep.subr.mxu0 0.0
        %7372 = vmatpush1.xpose.msra.mxu0 %v6552
        %7373 = vmatprep.subr.mxu0 0.0
        %7374 = vmatpush1.xpose.msra.mxu0 %v6551
        %7375 = vmatprep.subr.mxu0 0.0
        %7376 = vmatpush1.xpose.msra.mxu0 %v6550
        %7377 = vmatprep.subr.mxu0 0.0
        %7378 = vmatpush1.xpose.msra.mxu0 %v6549
        %7379 = vmatprep.subr.mxu0 0.0
        %7380 = vmatpush1.xpose.msra.mxu0 %v6548
        %7381 = vmatprep.subr.mxu0 0.0
        %7382 = vmatpush1.xpose.msra.mxu0 %v6547
        %7383 = vmatprep.subr.mxu0 0.0
        %7384 = vmatpush1.xpose.msra.mxu0 %v6546
        %7385 = vmatprep.subr.mxu0 0.0
        %7386 = vmatpush1.xpose.msra.mxu0 %v6545
        %7387 = vmatprep.subr.mxu0 0.0
        %7388 = vmatpush1.xpose.msra.mxu0 %v6544
        %7389 = vmatprep.subr.mxu0 0.0
        %7390 = vmatpush1.xpose.msra.mxu0 %v6543
        %7391 = vmatprep.subr.mxu0 0.0
        %7392 = vmatpush1.xpose.msra.mxu0 %v6542
        %7393 = vmatprep.subr.mxu0 0.0
        %7394 = vmatpush1.xpose.msra.mxu0 %v6541
        %7395 = vmatprep.subr.mxu0 0.0
        %7396 = vmatpush2.xpose.msra.mxu0 %v6572
        %7397 = vmatprep.subr.mxu0 0.0
        %7398 = vmatpush2.xpose.msra.mxu0 %v6571
        %7399 = vmatprep.subr.mxu0 0.0
        %7400 = vmatpush2.xpose.msra.mxu0 %v6570
        %7401 = vmatprep.subr.mxu0 0.0
        %7402 = vmatpush2.xpose.msra.mxu0 %v6569
        %7403 = vmatprep.subr.mxu0 0.0
        %7404 = vmatpush2.xpose.msra.mxu0 %v6568
        %7405 = vmatprep.subr.mxu0 0.0
        %7406 = vmatpush2.xpose.msra.mxu0 %v6567
        %7407 = vmatprep.subr.mxu0 0.0
        %7408 = vmatpush2.xpose.msra.mxu0 %v6566
        %7409 = vmatprep.subr.mxu0 0.0
        %7410 = vmatpush2.xpose.msra.mxu0 %v6565
        %7411 = vmatprep.subr.mxu0 0.0
        %7412 = vmatpush2.xpose.msra.mxu0 %v6564
        %7413 = vmatprep.subr.mxu0 0.0
        %7414 = vmatpush2.xpose.msra.mxu0 %v6563
        %7415 = vmatprep.subr.mxu0 0.0
        %7416 = vmatpush2.xpose.msra.mxu0 %v6562
        %7417 = vmatprep.subr.mxu0 0.0
        %7418 = vmatpush2.xpose.msra.mxu0 %v6561
        %7419 = vmatprep.subr.mxu0 0.0
        %7420 = vmatpush2.xpose.msra.mxu0 %v6560
        %7421 = vmatprep.subr.mxu0 0.0
        %7422 = vmatpush2.xpose.msra.mxu0 %v6559
        %7423 = vmatprep.subr.mxu0 0.0
        %7424 = vmatpush2.xpose.msra.mxu0 %v6558
        %7425 = vmatprep.subr.mxu0 0.0
        %7426 = vmatpush2.xpose.msra.mxu0 %v6557
        %7427 = vmatprep.mubr.f32.mxu0 0.0
        %7428 = vmatmul.mubr.f32.gmra.mxu0 %v6379
        %v7429 = vpop.f32.mrf.mxu0
        %v7430 = vadd.f32 %v6941, %v7429
        %v7431 = vpop.f32.mrf.mxu0
        %v7432 = vadd.f32 %v6945, %v7431
        %7433 = vmatprep.mubr.f32.mxu0 0.0
        %7434 = vmatmul.mubr.f32.gmra.mxu0 %v6380
        %v7435 = vpop.f32.mrf.mxu0
        %v7436 = vadd.f32 %v6941, %v7435
        %v7437 = vpop.f32.mrf.mxu0
        %v7438 = vadd.f32 %v6945, %v7437
        %7439 = vdwg.mxu0
        %7440 = vmatprep.subr.mxu0 0.0
        %7441 = vmatpush1.xpose.msra.mxu0 %v6588
        %7442 = vmatprep.subr.mxu0 0.0
        %7443 = vmatpush1.xpose.msra.mxu0 %v6587
        %7444 = vmatprep.subr.mxu0 0.0
        %7445 = vmatpush1.xpose.msra.mxu0 %v6586
        %7446 = vmatprep.subr.mxu0 0.0
        %7447 = vmatpush1.xpose.msra.mxu0 %v6585
        %7448 = vmatprep.subr.mxu0 0.0
        %7449 = vmatpush1.xpose.msra.mxu0 %v6584
        %7450 = vmatprep.subr.mxu0 0.0
        %7451 = vmatpush1.xpose.msra.mxu0 %v6583
        %7452 = vmatprep.subr.mxu0 0.0
        %7453 = vmatpush1.xpose.msra.mxu0 %v6582
        %7454 = vmatprep.subr.mxu0 0.0
        %7455 = vmatpush1.xpose.msra.mxu0 %v6581
        %7456 = vmatprep.subr.mxu0 0.0
        %7457 = vmatpush1.xpose.msra.mxu0 %v6580
        %7458 = vmatprep.subr.mxu0 0.0
        %7459 = vmatpush1.xpose.msra.mxu0 %v6579
        %7460 = vmatprep.subr.mxu0 0.0
        %7461 = vmatpush1.xpose.msra.mxu0 %v6578
        %7462 = vmatprep.subr.mxu0 0.0
        %7463 = vmatpush1.xpose.msra.mxu0 %v6577
        %7464 = vmatprep.subr.mxu0 0.0
        %7465 = vmatpush1.xpose.msra.mxu0 %v6576
        %7466 = vmatprep.subr.mxu0 0.0
        %7467 = vmatpush1.xpose.msra.mxu0 %v6575
        %7468 = vmatprep.subr.mxu0 0.0
        %7469 = vmatpush1.xpose.msra.mxu0 %v6574
        %7470 = vmatprep.subr.mxu0 0.0
        %7471 = vmatpush1.xpose.msra.mxu0 %v6573
        %7472 = vmatprep.subr.mxu0 0.0
        %7473 = vmatpush2.xpose.msra.mxu0 %v6604
        %7474 = vmatprep.subr.mxu0 0.0
        %7475 = vmatpush2.xpose.msra.mxu0 %v6603
        %7476 = vmatprep.subr.mxu0 0.0
        %7477 = vmatpush2.xpose.msra.mxu0 %v6602
        %7478 = vmatprep.subr.mxu0 0.0
        %7479 = vmatpush2.xpose.msra.mxu0 %v6601
        %7480 = vmatprep.subr.mxu0 0.0
        %7481 = vmatpush2.xpose.msra.mxu0 %v6600
        %7482 = vmatprep.subr.mxu0 0.0
        %7483 = vmatpush2.xpose.msra.mxu0 %v6599
        %7484 = vmatprep.subr.mxu0 0.0
        %7485 = vmatpush2.xpose.msra.mxu0 %v6598
        %7486 = vmatprep.subr.mxu0 0.0
        %7487 = vmatpush2.xpose.msra.mxu0 %v6597
        %7488 = vmatprep.subr.mxu0 0.0
        %7489 = vmatpush2.xpose.msra.mxu0 %v6596
        %7490 = vmatprep.subr.mxu0 0.0
        %7491 = vmatpush2.xpose.msra.mxu0 %v6595
        %7492 = vmatprep.subr.mxu0 0.0
        %7493 = vmatpush2.xpose.msra.mxu0 %v6594
        %7494 = vmatprep.subr.mxu0 0.0
        %7495 = vmatpush2.xpose.msra.mxu0 %v6593
        %7496 = vmatprep.subr.mxu0 0.0
        %7497 = vmatpush2.xpose.msra.mxu0 %v6592
        %7498 = vmatprep.subr.mxu0 0.0
        %7499 = vmatpush2.xpose.msra.mxu0 %v6591
        %7500 = vmatprep.subr.mxu0 0.0
        %7501 = vmatpush2.xpose.msra.mxu0 %v6590
        %7502 = vmatprep.subr.mxu0 0.0
        %7503 = vmatpush2.xpose.msra.mxu0 %v6589
        %7504 = vmatprep.mubr.f32.mxu0 0.0
        %7505 = vmatmul.mubr.f32.gmra.mxu0 %v6379
        %v7506 = vpop.f32.mrf.mxu0
        %v7507 = vadd.f32 %v6949, %v7506
        %v7508 = vpop.f32.mrf.mxu0
        %v7509 = vadd.f32 %v6953, %v7508
        %7510 = vmatprep.mubr.f32.mxu0 0.0
        %7511 = vmatmul.mubr.f32.gmra.mxu0 %v6380
        %v7512 = vpop.f32.mrf.mxu0
        %v7513 = vadd.f32 %v6949, %v7512
        %v7514 = vpop.f32.mrf.mxu0
        %v7515 = vadd.f32 %v6953, %v7514
        %7516 = vdwg.mxu0
        %7517 = vmatprep.subr.mxu0 0.0
        %7518 = vmatpush1.xpose.msra.mxu0 %v6620
        %7519 = vmatprep.subr.mxu0 0.0
        %7520 = vmatpush1.xpose.msra.mxu0 %v6619
        %7521 = vmatprep.subr.mxu0 0.0
        %7522 = vmatpush1.xpose.msra.mxu0 %v6618
        %7523 = vmatprep.subr.mxu0 0.0
        %7524 = vmatpush1.xpose.msra.mxu0 %v6617
        %7525 = vmatprep.subr.mxu0 0.0
        %7526 = vmatpush1.xpose.msra.mxu0 %v6616
        %7527 = vmatprep.subr.mxu0 0.0
        %7528 = vmatpush1.xpose.msra.mxu0 %v6615
        %7529 = vmatprep.subr.mxu0 0.0
        %7530 = vmatpush1.xpose.msra.mxu0 %v6614
        %7531 = vmatprep.subr.mxu0 0.0
        %7532 = vmatpush1.xpose.msra.mxu0 %v6613
        %7533 = vmatprep.subr.mxu0 0.0
        %7534 = vmatpush1.xpose.msra.mxu0 %v6612
        %7535 = vmatprep.subr.mxu0 0.0
        %7536 = vmatpush1.xpose.msra.mxu0 %v6611
        %7537 = vmatprep.subr.mxu0 0.0
        %7538 = vmatpush1.xpose.msra.mxu0 %v6610
        %7539 = vmatprep.subr.mxu0 0.0
        %7540 = vmatpush1.xpose.msra.mxu0 %v6609
        %7541 = vmatprep.subr.mxu0 0.0
        %7542 = vmatpush1.xpose.msra.mxu0 %v6608
        %7543 = vmatprep.subr.mxu0 0.0
        %7544 = vmatpush1.xpose.msra.mxu0 %v6607
        %7545 = vmatprep.subr.mxu0 0.0
        %7546 = vmatpush1.xpose.msra.mxu0 %v6606
        %7547 = vmatprep.subr.mxu0 0.0
        %7548 = vmatpush1.xpose.msra.mxu0 %v6605
        %7549 = vmatprep.subr.mxu0 0.0
        %7550 = vmatpush2.xpose.msra.mxu0 %v6636
        %7551 = vmatprep.subr.mxu0 0.0
        %7552 = vmatpush2.xpose.msra.mxu0 %v6635
        %7553 = vmatprep.subr.mxu0 0.0
        %7554 = vmatpush2.xpose.msra.mxu0 %v6634
        %7555 = vmatprep.subr.mxu0 0.0
        %7556 = vmatpush2.xpose.msra.mxu0 %v6633
        %7557 = vmatprep.subr.mxu0 0.0
        %7558 = vmatpush2.xpose.msra.mxu0 %v6632
        %7559 = vmatprep.subr.mxu0 0.0
        %7560 = vmatpush2.xpose.msra.mxu0 %v6631
        %7561 = vmatprep.subr.mxu0 0.0
        %7562 = vmatpush2.xpose.msra.mxu0 %v6630
        %7563 = vmatprep.subr.mxu0 0.0
        %7564 = vmatpush2.xpose.msra.mxu0 %v6629
        %7565 = vmatprep.subr.mxu0 0.0
        %7566 = vmatpush2.xpose.msra.mxu0 %v6628
        %7567 = vmatprep.subr.mxu0 0.0
        %7568 = vmatpush2.xpose.msra.mxu0 %v6627
        %7569 = vmatprep.subr.mxu0 0.0
        %7570 = vmatpush2.xpose.msra.mxu0 %v6626
        %7571 = vmatprep.subr.mxu0 0.0
        %7572 = vmatpush2.xpose.msra.mxu0 %v6625
        %7573 = vmatprep.subr.mxu0 0.0
        %7574 = vmatpush2.xpose.msra.mxu0 %v6624
        %7575 = vmatprep.subr.mxu0 0.0
        %7576 = vmatpush2.xpose.msra.mxu0 %v6623
        %7577 = vmatprep.subr.mxu0 0.0
        %7578 = vmatpush2.xpose.msra.mxu0 %v6622
        %7579 = vmatprep.subr.mxu0 0.0
        %7580 = vmatpush2.xpose.msra.mxu0 %v6621
        %7581 = vmatprep.mubr.f32.mxu0 0.0
        %7582 = vmatmul.mubr.f32.gmra.mxu0 %v6379
        %v7583 = vpop.f32.mrf.mxu0
        %v7584 = vadd.f32 %v6957, %v7583
        %v7585 = vpop.f32.mrf.mxu0
        %v7586 = vadd.f32 %v6961, %v7585
        %7587 = vmatprep.mubr.f32.mxu0 0.0
        %7588 = vmatmul.mubr.f32.gmra.mxu0 %v6380
        %v7589 = vpop.f32.mrf.mxu0
        %v7590 = vadd.f32 %v6957, %v7589
        %v7591 = vpop.f32.mrf.mxu0
        %v7592 = vadd.f32 %v6961, %v7591
        %7593 = vdwg.mxu0
        %v7594 = vmax.f32 %v7045, 0.0
        %v7595 = vmax.f32 %v7047, 0.0
        %v7596 = vmax.f32 %v7122, 0.0
        %v7597 = vmax.f32 %v7124, 0.0
        %v7598 = vmax.f32 %v7199, 0.0
        %v7599 = vmax.f32 %v7201, 0.0
        %v7600 = vmax.f32 %v7276, 0.0
        %v7601 = vmax.f32 %v7278, 0.0
        %v7602 = vmax.f32 %v7353, 0.0
        %v7603 = vmax.f32 %v7355, 0.0
        %v7604 = vmax.f32 %v7430, 0.0
        %v7605 = vmax.f32 %v7432, 0.0
        %v7606 = vmax.f32 %v7507, 0.0
        %v7607 = vmax.f32 %v7509, 0.0
        %v7608 = vmax.f32 %v7584, 0.0
        %v7609 = vmax.f32 %v7586, 0.0
        %v7610 = vmax.f32 %v7051, 0.0
        %v7611 = vmax.f32 %v7053, 0.0
        %v7612 = vmax.f32 %v7128, 0.0
        %v7613 = vmax.f32 %v7130, 0.0
        %v7614 = vmax.f32 %v7205, 0.0
        %v7615 = vmax.f32 %v7207, 0.0
        %v7616 = vmax.f32 %v7282, 0.0
        %v7617 = vmax.f32 %v7284, 0.0
        %v7618 = vmax.f32 %v7359, 0.0
        %v7619 = vmax.f32 %v7361, 0.0
        %v7620 = vmax.f32 %v7436, 0.0
        %v7621 = vmax.f32 %v7438, 0.0
        %v7622 = vmax.f32 %v7513, 0.0
        %v7623 = vmax.f32 %v7515, 0.0
        %v7624 = vmax.f32 %v7590, 0.0
        %v7625 = vmax.f32 %v7592, 0.0
        %v7627 = vlaneseq
        %v7628 = vshrl.u32 %v7627, 7
        %v7629 = vsub.s32 0, %v7628
        %v7630 = vrot.slane %v6895, %v7629
        %7632 = vmatprep.subr.mxu0 %v6880
        %7633 = vmatpush1.xpose.msra.mxu0 %v6879
        %7634 = vmatprep.subr.mxu0 %v6864
        %7635 = vmatpush1.xpose.msra.mxu0 %v6863
        %7636 = vmatprep.subr.mxu0 %v6848
        %7637 = vmatpush1.xpose.msra.mxu0 %v6847
        %7638 = vmatprep.subr.mxu0 %v6832
        %7639 = vmatpush1.xpose.msra.mxu0 %v6831
        %7640 = vmatprep.subr.mxu0 %v6816
        %7641 = vmatpush1.xpose.msra.mxu0 %v6815
        %7642 = vmatprep.subr.mxu0 %v6800
        %7643 = vmatpush1.xpose.msra.mxu0 %v6799
        %7644 = vmatprep.subr.mxu0 %v6784
        %7645 = vmatpush1.xpose.msra.mxu0 %v6783
        %7646 = vmatprep.subr.mxu0 %v6768
        %7647 = vmatpush1.xpose.msra.mxu0 %v6767
        %7648 = vmatprep.subr.mxu0 %v6752
        %7649 = vmatpush1.xpose.msra.mxu0 %v6751
        %7650 = vmatprep.subr.mxu0 %v6736
        %7651 = vmatpush1.xpose.msra.mxu0 %v6735
        %7652 = vmatprep.subr.mxu0 %v6720
        %7653 = vmatpush1.xpose.msra.mxu0 %v6719
        %7654 = vmatprep.subr.mxu0 %v6704
        %7655 = vmatpush1.xpose.msra.mxu0 %v6703
        %7656 = vmatprep.subr.mxu0 %v6688
        %7657 = vmatpush1.xpose.msra.mxu0 %v6687
        %7658 = vmatprep.subr.mxu0 %v6672
        %7659 = vmatpush1.xpose.msra.mxu0 %v6671
        %7660 = vmatprep.subr.mxu0 %v6656
        %7661 = vmatpush1.xpose.msra.mxu0 %v6655
        %7662 = vmatprep.subr.mxu0 %v6640
        %7663 = vmatpush1.xpose.msra.mxu0 %v6639
        %7664 = vmatprep.subr.mxu0 0.0
        %7665 = vmatpush2.xpose.msra.mxu0 0.0
        %7666 = vmatprep.subr.mxu0 0.0
        %7667 = vmatpush2.xpose.msra.mxu0 0.0
        %7668 = vmatprep.subr.mxu0 0.0
        %7669 = vmatpush2.xpose.msra.mxu0 0.0
        %7670 = vmatprep.subr.mxu0 0.0
        %7671 = vmatpush2.xpose.msra.mxu0 0.0
        %7672 = vmatprep.subr.mxu0 0.0
        %7673 = vmatpush2.xpose.msra.mxu0 0.0
        %7674 = vmatprep.subr.mxu0 0.0
        %7675 = vmatpush2.xpose.msra.mxu0 0.0
        %7676 = vmatprep.subr.mxu0 0.0
        %7677 = vmatpush2.xpose.msra.mxu0 0.0
        %7678 = vmatprep.subr.mxu0 0.0
        %7679 = vmatpush2.xpose.msra.mxu0 0.0
        %7680 = vmatprep.subr.mxu0 0.0
        %7681 = vmatpush2.xpose.msra.mxu0 0.0
        %7682 = vmatprep.subr.mxu0 0.0
        %7683 = vmatpush2.xpose.msra.mxu0 0.0
        %7684 = vmatprep.subr.mxu0 0.0
        %7685 = vmatpush2.xpose.msra.mxu0 0.0
        %7686 = vmatprep.subr.mxu0 0.0
        %7687 = vmatpush2.xpose.msra.mxu0 0.0
        %7688 = vmatprep.subr.mxu0 0.0
        %7689 = vmatpush2.xpose.msra.mxu0 0.0
        %7690 = vmatprep.subr.mxu0 0.0
        %7691 = vmatpush2.xpose.msra.mxu0 0.0
        %7692 = vmatprep.subr.mxu0 0.0
        %7693 = vmatpush2.xpose.msra.mxu0 0.0
        %7694 = vmatprep.subr.mxu0 0.0
        %7695 = vmatpush2.xpose.msra.mxu0 0.0
        %7696 = vmatprep.mubr.f32.mxu0 %v7595
        %7697 = vmatmul.mubr.f32.gmra.mxu0 %v7594
        %v7698 = vpop.f32.mrf.mxu0
        %v7699 = vadd.f32 %v7630, %v7698
        %v7700 = vpop.f32.mrf.mxu0
        %7701 = vmatprep.mubr.f32.mxu0 %v7611
        %7702 = vmatmul.mubr.f32.gmra.mxu0 %v7610
        %v7703 = vpop.f32.mrf.mxu0
        %v7704 = vadd.f32 %v7630, %v7703
        %v7705 = vpop.f32.mrf.mxu0
        %7706 = vdwg.mxu0
        %7707 = vmatprep.subr.mxu0 %v6882
        %7708 = vmatpush1.xpose.msra.mxu0 %v6881
        %7709 = vmatprep.subr.mxu0 %v6866
        %7710 = vmatpush1.xpose.msra.mxu0 %v6865
        %7711 = vmatprep.subr.mxu0 %v6850
        %7712 = vmatpush1.xpose.msra.mxu0 %v6849
        %7713 = vmatprep.subr.mxu0 %v6834
        %7714 = vmatpush1.xpose.msra.mxu0 %v6833
        %7715 = vmatprep.subr.mxu0 %v6818
        %7716 = vmatpush1.xpose.msra.mxu0 %v6817
        %7717 = vmatprep.subr.mxu0 %v6802
        %7718 = vmatpush1.xpose.msra.mxu0 %v6801
        %7719 = vmatprep.subr.mxu0 %v6786
        %7720 = vmatpush1.xpose.msra.mxu0 %v6785
        %7721 = vmatprep.subr.mxu0 %v6770
        %7722 = vmatpush1.xpose.msra.mxu0 %v6769
        %7723 = vmatprep.subr.mxu0 %v6754
        %7724 = vmatpush1.xpose.msra.mxu0 %v6753
        %7725 = vmatprep.subr.mxu0 %v6738
        %7726 = vmatpush1.xpose.msra.mxu0 %v6737
        %7727 = vmatprep.subr.mxu0 %v6722
        %7728 = vmatpush1.xpose.msra.mxu0 %v6721
        %7729 = vmatprep.subr.mxu0 %v6706
        %7730 = vmatpush1.xpose.msra.mxu0 %v6705
        %7731 = vmatprep.subr.mxu0 %v6690
        %7732 = vmatpush1.xpose.msra.mxu0 %v6689
        %7733 = vmatprep.subr.mxu0 %v6674
        %7734 = vmatpush1.xpose.msra.mxu0 %v6673
        %7735 = vmatprep.subr.mxu0 %v6658
        %7736 = vmatpush1.xpose.msra.mxu0 %v6657
        %7737 = vmatprep.subr.mxu0 %v6642
        %7738 = vmatpush1.xpose.msra.mxu0 %v6641
        %7739 = vmatprep.subr.mxu0 0.0
        %7740 = vmatpush2.xpose.msra.mxu0 0.0
        %7741 = vmatprep.subr.mxu0 0.0
        %7742 = vmatpush2.xpose.msra.mxu0 0.0
        %7743 = vmatprep.subr.mxu0 0.0
        %7744 = vmatpush2.xpose.msra.mxu0 0.0
        %7745 = vmatprep.subr.mxu0 0.0
        %7746 = vmatpush2.xpose.msra.mxu0 0.0
        %7747 = vmatprep.subr.mxu0 0.0
        %7748 = vmatpush2.xpose.msra.mxu0 0.0
        %7749 = vmatprep.subr.mxu0 0.0
        %7750 = vmatpush2.xpose.msra.mxu0 0.0
        %7751 = vmatprep.subr.mxu0 0.0
        %7752 = vmatpush2.xpose.msra.mxu0 0.0
        %7753 = vmatprep.subr.mxu0 0.0
        %7754 = vmatpush2.xpose.msra.mxu0 0.0
        %7755 = vmatprep.subr.mxu0 0.0
        %7756 = vmatpush2.xpose.msra.mxu0 0.0
        %7757 = vmatprep.subr.mxu0 0.0
        %7758 = vmatpush2.xpose.msra.mxu0 0.0
        %7759 = vmatprep.subr.mxu0 0.0
        %7760 = vmatpush2.xpose.msra.mxu0 0.0
        %7761 = vmatprep.subr.mxu0 0.0
        %7762 = vmatpush2.xpose.msra.mxu0 0.0
        %7763 = vmatprep.subr.mxu0 0.0
        %7764 = vmatpush2.xpose.msra.mxu0 0.0
        %7765 = vmatprep.subr.mxu0 0.0
        %7766 = vmatpush2.xpose.msra.mxu0 0.0
        %7767 = vmatprep.subr.mxu0 0.0
        %7768 = vmatpush2.xpose.msra.mxu0 0.0
        %7769 = vmatprep.subr.mxu0 0.0
        %7770 = vmatpush2.xpose.msra.mxu0 0.0
        %7771 = vmatprep.mubr.f32.mxu0 %v7597
        %7772 = vmatmul.mubr.f32.gmra.mxu0 %v7596
        %v7773 = vpop.f32.mrf.mxu0
        %v7774 = vadd.f32 %v7699, %v7773
        %v7775 = vpop.f32.mrf.mxu0
        %7776 = vmatprep.mubr.f32.mxu0 %v7613
        %7777 = vmatmul.mubr.f32.gmra.mxu0 %v7612
        %v7778 = vpop.f32.mrf.mxu0
        %v7779 = vadd.f32 %v7704, %v7778
        %v7780 = vpop.f32.mrf.mxu0
        %7781 = vdwg.mxu0
        %7782 = vmatprep.subr.mxu0 %v6884
        %7783 = vmatpush1.xpose.msra.mxu0 %v6883
        %7784 = vmatprep.subr.mxu0 %v6868
        %7785 = vmatpush1.xpose.msra.mxu0 %v6867
        %7786 = vmatprep.subr.mxu0 %v6852
        %7787 = vmatpush1.xpose.msra.mxu0 %v6851
        %7788 = vmatprep.subr.mxu0 %v6836
        %7789 = vmatpush1.xpose.msra.mxu0 %v6835
        %7790 = vmatprep.subr.mxu0 %v6820
        %7791 = vmatpush1.xpose.msra.mxu0 %v6819
        %7792 = vmatprep.subr.mxu0 %v6804
        %7793 = vmatpush1.xpose.msra.mxu0 %v6803
        %7794 = vmatprep.subr.mxu0 %v6788
        %7795 = vmatpush1.xpose.msra.mxu0 %v6787
        %7796 = vmatprep.subr.mxu0 %v6772
        %7797 = vmatpush1.xpose.msra.mxu0 %v6771
        %7798 = vmatprep.subr.mxu0 %v6756
        %7799 = vmatpush1.xpose.msra.mxu0 %v6755
        %7800 = vmatprep.subr.mxu0 %v6740
        %7801 = vmatpush1.xpose.msra.mxu0 %v6739
        %7802 = vmatprep.subr.mxu0 %v6724
        %7803 = vmatpush1.xpose.msra.mxu0 %v6723
        %7804 = vmatprep.subr.mxu0 %v6708
        %7805 = vmatpush1.xpose.msra.mxu0 %v6707
        %7806 = vmatprep.subr.mxu0 %v6692
        %7807 = vmatpush1.xpose.msra.mxu0 %v6691
        %7808 = vmatprep.subr.mxu0 %v6676
        %7809 = vmatpush1.xpose.msra.mxu0 %v6675
        %7810 = vmatprep.subr.mxu0 %v6660
        %7811 = vmatpush1.xpose.msra.mxu0 %v6659
        %7812 = vmatprep.subr.mxu0 %v6644
        %7813 = vmatpush1.xpose.msra.mxu0 %v6643
        %7814 = vmatprep.subr.mxu0 0.0
        %7815 = vmatpush2.xpose.msra.mxu0 0.0
        %7816 = vmatprep.subr.mxu0 0.0
        %7817 = vmatpush2.xpose.msra.mxu0 0.0
        %7818 = vmatprep.subr.mxu0 0.0
        %7819 = vmatpush2.xpose.msra.mxu0 0.0
        %7820 = vmatprep.subr.mxu0 0.0
        %7821 = vmatpush2.xpose.msra.mxu0 0.0
        %7822 = vmatprep.subr.mxu0 0.0
        %7823 = vmatpush2.xpose.msra.mxu0 0.0
        %7824 = vmatprep.subr.mxu0 0.0
        %7825 = vmatpush2.xpose.msra.mxu0 0.0
        %7826 = vmatprep.subr.mxu0 0.0
        %7827 = vmatpush2.xpose.msra.mxu0 0.0
        %7828 = vmatprep.subr.mxu0 0.0
        %7829 = vmatpush2.xpose.msra.mxu0 0.0
        %7830 = vmatprep.subr.mxu0 0.0
        %7831 = vmatpush2.xpose.msra.mxu0 0.0
        %7832 = vmatprep.subr.mxu0 0.0
        %7833 = vmatpush2.xpose.msra.mxu0 0.0
        %7834 = vmatprep.subr.mxu0 0.0
        %7835 = vmatpush2.xpose.msra.mxu0 0.0
        %7836 = vmatprep.subr.mxu0 0.0
        %7837 = vmatpush2.xpose.msra.mxu0 0.0
        %7838 = vmatprep.subr.mxu0 0.0
        %7839 = vmatpush2.xpose.msra.mxu0 0.0
        %7840 = vmatprep.subr.mxu0 0.0
        %7841 = vmatpush2.xpose.msra.mxu0 0.0
        %7842 = vmatprep.subr.mxu0 0.0
        %7843 = vmatpush2.xpose.msra.mxu0 0.0
        %7844 = vmatprep.subr.mxu0 0.0
        %7845 = vmatpush2.xpose.msra.mxu0 0.0
        %7846 = vmatprep.mubr.f32.mxu0 %v7599
        %7847 = vmatmul.mubr.f32.gmra.mxu0 %v7598
        %v7848 = vpop.f32.mrf.mxu0
        %v7849 = vadd.f32 %v7774, %v7848
        %v7850 = vpop.f32.mrf.mxu0
        %7851 = vmatprep.mubr.f32.mxu0 %v7615
        %7852 = vmatmul.mubr.f32.gmra.mxu0 %v7614
        %v7853 = vpop.f32.mrf.mxu0
        %v7854 = vadd.f32 %v7779, %v7853
        %v7855 = vpop.f32.mrf.mxu0
        %7856 = vdwg.mxu0
        %7857 = vmatprep.subr.mxu0 %v6886
        %7858 = vmatpush1.xpose.msra.mxu0 %v6885
        %7859 = vmatprep.subr.mxu0 %v6870
        %7860 = vmatpush1.xpose.msra.mxu0 %v6869
        %7861 = vmatprep.subr.mxu0 %v6854
        %7862 = vmatpush1.xpose.msra.mxu0 %v6853
        %7863 = vmatprep.subr.mxu0 %v6838
        %7864 = vmatpush1.xpose.msra.mxu0 %v6837
        %7865 = vmatprep.subr.mxu0 %v6822
        %7866 = vmatpush1.xpose.msra.mxu0 %v6821
        %7867 = vmatprep.subr.mxu0 %v6806
        %7868 = vmatpush1.xpose.msra.mxu0 %v6805
        %7869 = vmatprep.subr.mxu0 %v6790
        %7870 = vmatpush1.xpose.msra.mxu0 %v6789
        %7871 = vmatprep.subr.mxu0 %v6774
        %7872 = vmatpush1.xpose.msra.mxu0 %v6773
        %7873 = vmatprep.subr.mxu0 %v6758
        %7874 = vmatpush1.xpose.msra.mxu0 %v6757
        %7875 = vmatprep.subr.mxu0 %v6742
        %7876 = vmatpush1.xpose.msra.mxu0 %v6741
        %7877 = vmatprep.subr.mxu0 %v6726
        %7878 = vmatpush1.xpose.msra.mxu0 %v6725
        %7879 = vmatprep.subr.mxu0 %v6710
        %7880 = vmatpush1.xpose.msra.mxu0 %v6709
        %7881 = vmatprep.subr.mxu0 %v6694
        %7882 = vmatpush1.xpose.msra.mxu0 %v6693
        %7883 = vmatprep.subr.mxu0 %v6678
        %7884 = vmatpush1.xpose.msra.mxu0 %v6677
        %7885 = vmatprep.subr.mxu0 %v6662
        %7886 = vmatpush1.xpose.msra.mxu0 %v6661
        %7887 = vmatprep.subr.mxu0 %v6646
        %7888 = vmatpush1.xpose.msra.mxu0 %v6645
        %7889 = vmatprep.subr.mxu0 0.0
        %7890 = vmatpush2.xpose.msra.mxu0 0.0
        %7891 = vmatprep.subr.mxu0 0.0
        %7892 = vmatpush2.xpose.msra.mxu0 0.0
        %7893 = vmatprep.subr.mxu0 0.0
        %7894 = vmatpush2.xpose.msra.mxu0 0.0
        %7895 = vmatprep.subr.mxu0 0.0
        %7896 = vmatpush2.xpose.msra.mxu0 0.0
        %7897 = vmatprep.subr.mxu0 0.0
        %7898 = vmatpush2.xpose.msra.mxu0 0.0
        %7899 = vmatprep.subr.mxu0 0.0
        %7900 = vmatpush2.xpose.msra.mxu0 0.0
        %7901 = vmatprep.subr.mxu0 0.0
        %7902 = vmatpush2.xpose.msra.mxu0 0.0
        %7903 = vmatprep.subr.mxu0 0.0
        %7904 = vmatpush2.xpose.msra.mxu0 0.0
        %7905 = vmatprep.subr.mxu0 0.0
        %7906 = vmatpush2.xpose.msra.mxu0 0.0
        %7907 = vmatprep.subr.mxu0 0.0
        %7908 = vmatpush2.xpose.msra.mxu0 0.0
        %7909 = vmatprep.subr.mxu0 0.0
        %7910 = vmatpush2.xpose.msra.mxu0 0.0
        %7911 = vmatprep.subr.mxu0 0.0
        %7912 = vmatpush2.xpose.msra.mxu0 0.0
        %7913 = vmatprep.subr.mxu0 0.0
        %7914 = vmatpush2.xpose.msra.mxu0 0.0
        %7915 = vmatprep.subr.mxu0 0.0
        %7916 = vmatpush2.xpose.msra.mxu0 0.0
        %7917 = vmatprep.subr.mxu0 0.0
        %7918 = vmatpush2.xpose.msra.mxu0 0.0
        %7919 = vmatprep.subr.mxu0 0.0
        %7920 = vmatpush2.xpose.msra.mxu0 0.0
        %7921 = vmatprep.mubr.f32.mxu0 %v7601
        %7922 = vmatmul.mubr.f32.gmra.mxu0 %v7600
        %v7923 = vpop.f32.mrf.mxu0
        %v7924 = vadd.f32 %v7849, %v7923
        %v7925 = vpop.f32.mrf.mxu0
        %7926 = vmatprep.mubr.f32.mxu0 %v7617
        %7927 = vmatmul.mubr.f32.gmra.mxu0 %v7616
        %v7928 = vpop.f32.mrf.mxu0
        %v7929 = vadd.f32 %v7854, %v7928
        %v7930 = vpop.f32.mrf.mxu0
        %7931 = vdwg.mxu0
        %7932 = vmatprep.subr.mxu0 %v6888
        %7933 = vmatpush1.xpose.msra.mxu0 %v6887
        %7934 = vmatprep.subr.mxu0 %v6872
        %7935 = vmatpush1.xpose.msra.mxu0 %v6871
        %7936 = vmatprep.subr.mxu0 %v6856
        %7937 = vmatpush1.xpose.msra.mxu0 %v6855
        %7938 = vmatprep.subr.mxu0 %v6840
        %7939 = vmatpush1.xpose.msra.mxu0 %v6839
        %7940 = vmatprep.subr.mxu0 %v6824
        %7941 = vmatpush1.xpose.msra.mxu0 %v6823
        %7942 = vmatprep.subr.mxu0 %v6808
        %7943 = vmatpush1.xpose.msra.mxu0 %v6807
        %7944 = vmatprep.subr.mxu0 %v6792
        %7945 = vmatpush1.xpose.msra.mxu0 %v6791
        %7946 = vmatprep.subr.mxu0 %v6776
        %7947 = vmatpush1.xpose.msra.mxu0 %v6775
        %7948 = vmatprep.subr.mxu0 %v6760
        %7949 = vmatpush1.xpose.msra.mxu0 %v6759
        %7950 = vmatprep.subr.mxu0 %v6744
        %7951 = vmatpush1.xpose.msra.mxu0 %v6743
        %7952 = vmatprep.subr.mxu0 %v6728
        %7953 = vmatpush1.xpose.msra.mxu0 %v6727
        %7954 = vmatprep.subr.mxu0 %v6712
        %7955 = vmatpush1.xpose.msra.mxu0 %v6711
        %7956 = vmatprep.subr.mxu0 %v6696
        %7957 = vmatpush1.xpose.msra.mxu0 %v6695
        %7958 = vmatprep.subr.mxu0 %v6680
        %7959 = vmatpush1.xpose.msra.mxu0 %v6679
        %7960 = vmatprep.subr.mxu0 %v6664
        %7961 = vmatpush1.xpose.msra.mxu0 %v6663
        %7962 = vmatprep.subr.mxu0 %v6648
        %7963 = vmatpush1.xpose.msra.mxu0 %v6647
        %7964 = vmatprep.subr.mxu0 0.0
        %7965 = vmatpush2.xpose.msra.mxu0 0.0
        %7966 = vmatprep.subr.mxu0 0.0
        %7967 = vmatpush2.xpose.msra.mxu0 0.0
        %7968 = vmatprep.subr.mxu0 0.0
        %7969 = vmatpush2.xpose.msra.mxu0 0.0
        %7970 = vmatprep.subr.mxu0 0.0
        %7971 = vmatpush2.xpose.msra.mxu0 0.0
        %7972 = vmatprep.subr.mxu0 0.0
        %7973 = vmatpush2.xpose.msra.mxu0 0.0
        %7974 = vmatprep.subr.mxu0 0.0
        %7975 = vmatpush2.xpose.msra.mxu0 0.0
        %7976 = vmatprep.subr.mxu0 0.0
        %7977 = vmatpush2.xpose.msra.mxu0 0.0
        %7978 = vmatprep.subr.mxu0 0.0
        %7979 = vmatpush2.xpose.msra.mxu0 0.0
        %7980 = vmatprep.subr.mxu0 0.0
        %7981 = vmatpush2.xpose.msra.mxu0 0.0
        %7982 = vmatprep.subr.mxu0 0.0
        %7983 = vmatpush2.xpose.msra.mxu0 0.0
        %7984 = vmatprep.subr.mxu0 0.0
        %7985 = vmatpush2.xpose.msra.mxu0 0.0
        %7986 = vmatprep.subr.mxu0 0.0
        %7987 = vmatpush2.xpose.msra.mxu0 0.0
        %7988 = vmatprep.subr.mxu0 0.0
        %7989 = vmatpush2.xpose.msra.mxu0 0.0
        %7990 = vmatprep.subr.mxu0 0.0
        %7991 = vmatpush2.xpose.msra.mxu0 0.0
        %7992 = vmatprep.subr.mxu0 0.0
        %7993 = vmatpush2.xpose.msra.mxu0 0.0
        %7994 = vmatprep.subr.mxu0 0.0
        %7995 = vmatpush2.xpose.msra.mxu0 0.0
        %7996 = vmatprep.mubr.f32.mxu0 %v7603
        %7997 = vmatmul.mubr.f32.gmra.mxu0 %v7602
        %v7998 = vpop.f32.mrf.mxu0
        %v7999 = vadd.f32 %v7924, %v7998
        %v8000 = vpop.f32.mrf.mxu0
        %8001 = vmatprep.mubr.f32.mxu0 %v7619
        %8002 = vmatmul.mubr.f32.gmra.mxu0 %v7618
        %v8003 = vpop.f32.mrf.mxu0
        %v8004 = vadd.f32 %v7929, %v8003
        %v8005 = vpop.f32.mrf.mxu0
        %8006 = vdwg.mxu0
        %8007 = vmatprep.subr.mxu0 %v6890
        %8008 = vmatpush1.xpose.msra.mxu0 %v6889
        %8009 = vmatprep.subr.mxu0 %v6874
        %8010 = vmatpush1.xpose.msra.mxu0 %v6873
        %8011 = vmatprep.subr.mxu0 %v6858
        %8012 = vmatpush1.xpose.msra.mxu0 %v6857
        %8013 = vmatprep.subr.mxu0 %v6842
        %8014 = vmatpush1.xpose.msra.mxu0 %v6841
        %8015 = vmatprep.subr.mxu0 %v6826
        %8016 = vmatpush1.xpose.msra.mxu0 %v6825
        %8017 = vmatprep.subr.mxu0 %v6810
        %8018 = vmatpush1.xpose.msra.mxu0 %v6809
        %8019 = vmatprep.subr.mxu0 %v6794
        %8020 = vmatpush1.xpose.msra.mxu0 %v6793
        %8021 = vmatprep.subr.mxu0 %v6778
        %8022 = vmatpush1.xpose.msra.mxu0 %v6777
        %8023 = vmatprep.subr.mxu0 %v6762
        %8024 = vmatpush1.xpose.msra.mxu0 %v6761
        %8025 = vmatprep.subr.mxu0 %v6746
        %8026 = vmatpush1.xpose.msra.mxu0 %v6745
        %8027 = vmatprep.subr.mxu0 %v6730
        %8028 = vmatpush1.xpose.msra.mxu0 %v6729
        %8029 = vmatprep.subr.mxu0 %v6714
        %8030 = vmatpush1.xpose.msra.mxu0 %v6713
        %8031 = vmatprep.subr.mxu0 %v6698
        %8032 = vmatpush1.xpose.msra.mxu0 %v6697
        %8033 = vmatprep.subr.mxu0 %v6682
        %8034 = vmatpush1.xpose.msra.mxu0 %v6681
        %8035 = vmatprep.subr.mxu0 %v6666
        %8036 = vmatpush1.xpose.msra.mxu0 %v6665
        %8037 = vmatprep.subr.mxu0 %v6650
        %8038 = vmatpush1.xpose.msra.mxu0 %v6649
        %8039 = vmatprep.subr.mxu0 0.0
        %8040 = vmatpush2.xpose.msra.mxu0 0.0
        %8041 = vmatprep.subr.mxu0 0.0
        %8042 = vmatpush2.xpose.msra.mxu0 0.0
        %8043 = vmatprep.subr.mxu0 0.0
        %8044 = vmatpush2.xpose.msra.mxu0 0.0
        %8045 = vmatprep.subr.mxu0 0.0
        %8046 = vmatpush2.xpose.msra.mxu0 0.0
        %8047 = vmatprep.subr.mxu0 0.0
        %8048 = vmatpush2.xpose.msra.mxu0 0.0
        %8049 = vmatprep.subr.mxu0 0.0
        %8050 = vmatpush2.xpose.msra.mxu0 0.0
        %8051 = vmatprep.subr.mxu0 0.0
        %8052 = vmatpush2.xpose.msra.mxu0 0.0
        %8053 = vmatprep.subr.mxu0 0.0
        %8054 = vmatpush2.xpose.msra.mxu0 0.0
        %8055 = vmatprep.subr.mxu0 0.0
        %8056 = vmatpush2.xpose.msra.mxu0 0.0
        %8057 = vmatprep.subr.mxu0 0.0
        %8058 = vmatpush2.xpose.msra.mxu0 0.0
        %8059 = vmatprep.subr.mxu0 0.0
        %8060 = vmatpush2.xpose.msra.mxu0 0.0
        %8061 = vmatprep.subr.mxu0 0.0
        %8062 = vmatpush2.xpose.msra.mxu0 0.0
        %8063 = vmatprep.subr.mxu0 0.0
        %8064 = vmatpush2.xpose.msra.mxu0 0.0
        %8065 = vmatprep.subr.mxu0 0.0
        %8066 = vmatpush2.xpose.msra.mxu0 0.0
        %8067 = vmatprep.subr.mxu0 0.0
        %8068 = vmatpush2.xpose.msra.mxu0 0.0
        %8069 = vmatprep.subr.mxu0 0.0
        %8070 = vmatpush2.xpose.msra.mxu0 0.0
        %8071 = vmatprep.mubr.f32.mxu0 %v7605
        %8072 = vmatmul.mubr.f32.gmra.mxu0 %v7604
        %v8073 = vpop.f32.mrf.mxu0
        %v8074 = vadd.f32 %v7999, %v8073
        %v8075 = vpop.f32.mrf.mxu0
        %8076 = vmatprep.mubr.f32.mxu0 %v7621
        %8077 = vmatmul.mubr.f32.gmra.mxu0 %v7620
        %v8078 = vpop.f32.mrf.mxu0
        %v8079 = vadd.f32 %v8004, %v8078
        %v8080 = vpop.f32.mrf.mxu0
        %8081 = vdwg.mxu0
        %8082 = vmatprep.subr.mxu0 %v6892
        %8083 = vmatpush1.xpose.msra.mxu0 %v6891
        %8084 = vmatprep.subr.mxu0 %v6876
        %8085 = vmatpush1.xpose.msra.mxu0 %v6875
        %8086 = vmatprep.subr.mxu0 %v6860
        %8087 = vmatpush1.xpose.msra.mxu0 %v6859
        %8088 = vmatprep.subr.mxu0 %v6844
        %8089 = vmatpush1.xpose.msra.mxu0 %v6843
        %8090 = vmatprep.subr.mxu0 %v6828
        %8091 = vmatpush1.xpose.msra.mxu0 %v6827
        %8092 = vmatprep.subr.mxu0 %v6812
        %8093 = vmatpush1.xpose.msra.mxu0 %v6811
        %8094 = vmatprep.subr.mxu0 %v6796
        %8095 = vmatpush1.xpose.msra.mxu0 %v6795
        %8096 = vmatprep.subr.mxu0 %v6780
        %8097 = vmatpush1.xpose.msra.mxu0 %v6779
        %8098 = vmatprep.subr.mxu0 %v6764
        %8099 = vmatpush1.xpose.msra.mxu0 %v6763
        %8100 = vmatprep.subr.mxu0 %v6748
        %8101 = vmatpush1.xpose.msra.mxu0 %v6747
        %8102 = vmatprep.subr.mxu0 %v6732
        %8103 = vmatpush1.xpose.msra.mxu0 %v6731
        %8104 = vmatprep.subr.mxu0 %v6716
        %8105 = vmatpush1.xpose.msra.mxu0 %v6715
        %8106 = vmatprep.subr.mxu0 %v6700
        %8107 = vmatpush1.xpose.msra.mxu0 %v6699
        %8108 = vmatprep.subr.mxu0 %v6684
        %8109 = vmatpush1.xpose.msra.mxu0 %v6683
        %8110 = vmatprep.subr.mxu0 %v6668
        %8111 = vmatpush1.xpose.msra.mxu0 %v6667
        %8112 = vmatprep.subr.mxu0 %v6652
        %8113 = vmatpush1.xpose.msra.mxu0 %v6651
        %8114 = vmatprep.subr.mxu0 0.0
        %8115 = vmatpush2.xpose.msra.mxu0 0.0
        %8116 = vmatprep.subr.mxu0 0.0
        %8117 = vmatpush2.xpose.msra.mxu0 0.0
        %8118 = vmatprep.subr.mxu0 0.0
        %8119 = vmatpush2.xpose.msra.mxu0 0.0
        %8120 = vmatprep.subr.mxu0 0.0
        %8121 = vmatpush2.xpose.msra.mxu0 0.0
        %8122 = vmatprep.subr.mxu0 0.0
        %8123 = vmatpush2.xpose.msra.mxu0 0.0
        %8124 = vmatprep.subr.mxu0 0.0
        %8125 = vmatpush2.xpose.msra.mxu0 0.0
        %8126 = vmatprep.subr.mxu0 0.0
        %8127 = vmatpush2.xpose.msra.mxu0 0.0
        %8128 = vmatprep.subr.mxu0 0.0
        %8129 = vmatpush2.xpose.msra.mxu0 0.0
        %8130 = vmatprep.subr.mxu0 0.0
        %8131 = vmatpush2.xpose.msra.mxu0 0.0
        %8132 = vmatprep.subr.mxu0 0.0
        %8133 = vmatpush2.xpose.msra.mxu0 0.0
        %8134 = vmatprep.subr.mxu0 0.0
        %8135 = vmatpush2.xpose.msra.mxu0 0.0
        %8136 = vmatprep.subr.mxu0 0.0
        %8137 = vmatpush2.xpose.msra.mxu0 0.0
        %8138 = vmatprep.subr.mxu0 0.0
        %8139 = vmatpush2.xpose.msra.mxu0 0.0
        %8140 = vmatprep.subr.mxu0 0.0
        %8141 = vmatpush2.xpose.msra.mxu0 0.0
        %8142 = vmatprep.subr.mxu0 0.0
        %8143 = vmatpush2.xpose.msra.mxu0 0.0
        %8144 = vmatprep.subr.mxu0 0.0
        %8145 = vmatpush2.xpose.msra.mxu0 0.0
        %8146 = vmatprep.mubr.f32.mxu0 %v7607
        %8147 = vmatmul.mubr.f32.gmra.mxu0 %v7606
        %v8148 = vpop.f32.mrf.mxu0
        %v8149 = vadd.f32 %v8074, %v8148
        %v8150 = vpop.f32.mrf.mxu0
        %8151 = vmatprep.mubr.f32.mxu0 %v7623
        %8152 = vmatmul.mubr.f32.gmra.mxu0 %v7622
        %v8153 = vpop.f32.mrf.mxu0
        %v8154 = vadd.f32 %v8079, %v8153
        %v8155 = vpop.f32.mrf.mxu0
        %8156 = vdwg.mxu0
        %8157 = vmatprep.subr.mxu0 %v6894
        %8158 = vmatpush1.xpose.msra.mxu0 %v6893
        %8159 = vmatprep.subr.mxu0 %v6878
        %8160 = vmatpush1.xpose.msra.mxu0 %v6877
        %8161 = vmatprep.subr.mxu0 %v6862
        %8162 = vmatpush1.xpose.msra.mxu0 %v6861
        %8163 = vmatprep.subr.mxu0 %v6846
        %8164 = vmatpush1.xpose.msra.mxu0 %v6845
        %8165 = vmatprep.subr.mxu0 %v6830
        %8166 = vmatpush1.xpose.msra.mxu0 %v6829
        %8167 = vmatprep.subr.mxu0 %v6814
        %8168 = vmatpush1.xpose.msra.mxu0 %v6813
        %8169 = vmatprep.subr.mxu0 %v6798
        %8170 = vmatpush1.xpose.msra.mxu0 %v6797
        %8171 = vmatprep.subr.mxu0 %v6782
        %8172 = vmatpush1.xpose.msra.mxu0 %v6781
        %8173 = vmatprep.subr.mxu0 %v6766
        %8174 = vmatpush1.xpose.msra.mxu0 %v6765
        %8175 = vmatprep.subr.mxu0 %v6750
        %8176 = vmatpush1.xpose.msra.mxu0 %v6749
        %8177 = vmatprep.subr.mxu0 %v6734
        %8178 = vmatpush1.xpose.msra.mxu0 %v6733
        %8179 = vmatprep.subr.mxu0 %v6718
        %8180 = vmatpush1.xpose.msra.mxu0 %v6717
        %8181 = vmatprep.subr.mxu0 %v6702
        %8182 = vmatpush1.xpose.msra.mxu0 %v6701
        %8183 = vmatprep.subr.mxu0 %v6686
        %8184 = vmatpush1.xpose.msra.mxu0 %v6685
        %8185 = vmatprep.subr.mxu0 %v6670
        %8186 = vmatpush1.xpose.msra.mxu0 %v6669
        %8187 = vmatprep.subr.mxu0 %v6654
        %8188 = vmatpush1.xpose.msra.mxu0 %v6653
        %8189 = vmatprep.subr.mxu0 0.0
        %8190 = vmatpush2.xpose.msra.mxu0 0.0
        %8191 = vmatprep.subr.mxu0 0.0
        %8192 = vmatpush2.xpose.msra.mxu0 0.0
        %8193 = vmatprep.subr.mxu0 0.0
        %8194 = vmatpush2.xpose.msra.mxu0 0.0
        %8195 = vmatprep.subr.mxu0 0.0
        %8196 = vmatpush2.xpose.msra.mxu0 0.0
        %8197 = vmatprep.subr.mxu0 0.0
        %8198 = vmatpush2.xpose.msra.mxu0 0.0
        %8199 = vmatprep.subr.mxu0 0.0
        %8200 = vmatpush2.xpose.msra.mxu0 0.0
        %8201 = vmatprep.subr.mxu0 0.0
        %8202 = vmatpush2.xpose.msra.mxu0 0.0
        %8203 = vmatprep.subr.mxu0 0.0
        %8204 = vmatpush2.xpose.msra.mxu0 0.0
        %8205 = vmatprep.subr.mxu0 0.0
        %8206 = vmatpush2.xpose.msra.mxu0 0.0
        %8207 = vmatprep.subr.mxu0 0.0
        %8208 = vmatpush2.xpose.msra.mxu0 0.0
        %8209 = vmatprep.subr.mxu0 0.0
        %8210 = vmatpush2.xpose.msra.mxu0 0.0
        %8211 = vmatprep.subr.mxu0 0.0
        %8212 = vmatpush2.xpose.msra.mxu0 0.0
        %8213 = vmatprep.subr.mxu0 0.0
        %8214 = vmatpush2.xpose.msra.mxu0 0.0
        %8215 = vmatprep.subr.mxu0 0.0
        %8216 = vmatpush2.xpose.msra.mxu0 0.0
        %8217 = vmatprep.subr.mxu0 0.0
        %8218 = vmatpush2.xpose.msra.mxu0 0.0
        %8219 = vmatprep.subr.mxu0 0.0
        %8220 = vmatpush2.xpose.msra.mxu0 0.0
        %8221 = vmatprep.mubr.f32.mxu0 %v7609
        %8222 = vmatmul.mubr.f32.gmra.mxu0 %v7608
        %v8223 = vpop.f32.mrf.mxu0
        %v8224 = vadd.f32 %v8149, %v8223
        %v8225 = vpop.f32.mrf.mxu0
        %8226 = vmatprep.mubr.f32.mxu0 %v7625
        %8227 = vmatmul.mubr.f32.gmra.mxu0 %v7624
        %v8228 = vpop.f32.mrf.mxu0
        %v8229 = vadd.f32 %v8154, %v8228
        %v8230 = vpop.f32.mrf.mxu0
        %8231 = vdwg.mxu0
        %v8232 = vadd.f32 %v6379, %v8224
        %v8233 = vadd.f32 %v6380, %v8229
        %v8234 = vld [vmem:[%s43] sm:$0x1]
        %v8235 = vld [vmem:[%s45] sm:$0x1]
        %8236 = vadd.xlane.f32.xlu0 %v8232
        %v8237 = vpop.xlane.xlu0 %8236
        %v8238 = vsel %vm5078, %v8233, 0.0
        %8239 = vadd.xlane.f32.xlu0 %v8238
        %v8240 = vpop.xlane.xlu0 %8239
        %v8241 = vmul.f32 %v8237, %v2789
        %v8242 = vmul.f32 %v8240, %v2789
        %v8243 = vsub.f32 %v8232, %v8241
        %v8244 = vsub.f32 %v8233, %v8242
        %v8245 = vmul.f32 %v8243, %v8243
        %v8246 = vmul.f32 %v8244, %v8244
        %8247 = vadd.xlane.f32.xlu0 %v8245
        %v8248 = vpop.xlane.xlu0 %8247
        %v8249 = vsel %vm5078, %v8246, 0.0
        %8250 = vadd.xlane.f32.xlu0 %v8249
        %v8251 = vpop.xlane.xlu0 %8250
        %v8252 = vmul.f32 %v8248, %v2789
        %v8253 = vmul.f32 %v8251, %v2789
        %v8254 = vadd.f32 %v8252, 1e-05
        %v8255 = vadd.f32 %v8253, 1e-05
        %v8256 = vrsqrt.pop %v8254
        %v8257 = vrsqrt.pop %v8255
        %v8258 = vmul.f32 %v8243, %v8256
        %v8259 = vmul.f32 %v8244, %v8257
        %v8261 = vlaneseq
        %v8262 = vshrl.u32 %v8261, 7
        %v8263 = vsub.s32 0, %v8262
        %v8264 = vrot.slane %v8234, %v8263
        %v8266 = vmul.f32 %v8258, %v8264
        %v8267 = vmul.f32 %v8259, %v8264
        %v8269 = vlaneseq
        %v8270 = vshrl.u32 %v8269, 7
        %v8271 = vsub.s32 0, %v8270
        %v8272 = vrot.slane %v8235, %v8271
        %v8274 = vadd.f32 %v8266, %v8272
        %v8275 = vadd.f32 %v8267, %v8272
        %8276 = vst [vmem:[%s1138] sm:$0xff] %v4718
        %8277 = vst [vmem:[%s1163] sm:$0x3f] %v8274
        %8278 = vst [vmem:[%s1151 - $0x6] sm:$0xc0] %v8274
        %8279 = vst [vmem:[%s1151 + $0x2] sm:$0x3] %v8275
        %s8280 = sand.u32 %s677, 1
        %s8281 = scalar_lea.sflag [#allocation4], %s8280
        %s8282 = sand.u32 %s677, 1
        %s8283 = smul.addr %s8282, 8
        %s8284 = scalar_lea.vmem [#allocation26], %s8283
        %p8285 = scmp.lt.s32.totalorder %s87, 1
        %s8286 = scalar_select %p8285, %s87, 1
        %s8287 = smul.addr %s8286, 8
        %s8288 = scalar_lea.vmem %s57, %s8287
        %s8289 = sand.u32 %s729, 1
        %s8290 = scalar_lea.sflag [#allocation28], %s8289
        %s8291 = sand.u32 %s729, 1
        %s8292 = smul.addr %s8291, 4
        %s8293 = scalar_lea.vmem [#allocation27], %s8292
        // Predicated region
        $region189: #{tpu_custom_call.1} parent=127 // pred_check
          %p8294 = pneg %p687
        $region190: #{tpu_custom_call.1} parent=127 // pred_check_branch
          %8296 = sbr.rel (%p8294) target = $region192
        $region191: #{tpu_custom_call.1} parent=127 // pred_region
          %s8298 = ssub.s32 128, 128
          %8299 = vsyncadd %s8281, %s8298
          %s8300 = smul.addr %s87, 128
          %s8301 = scalar_lea.hbm %s55, %s8300
          %s8303 = sshll.u32 %s8284, 4
          %s8304 = int_to_ptr.vmem [resolvable:$true] %s8303
          %8306 = dma.vmem_to_hbm [thread:$0]  %s8304, 128, %s8301, %s8281
        $region192: #{tpu_custom_call.1} parent=127 // pred_fallthru
          _
        // Predicated region
        $region193: #{tpu_custom_call.1} parent=127 // pred_check
          %p8307 = pneg %p713
        $region194: #{tpu_custom_call.1} parent=127 // pred_check_branch
          %8309 = sbr.rel (%p8307) target = $region196
        $region195: #{tpu_custom_call.1} parent=127 // pred_region
          _
        $region196: #{tpu_custom_call.1} parent=127 // pred_fallthru
          _
        // Predicated region
        $region197: #{tpu_custom_call.1} parent=127 // pred_check
          %p8310 = pneg %p739
        $region198: #{tpu_custom_call.1} parent=127 // pred_check_branch
          %8312 = sbr.rel (%p8310) target = $region200
        $region199: #{tpu_custom_call.1} parent=127 // pred_region
          %s8314 = ssub.s32 64, 64
          %8315 = vsyncadd %s8290, %s8314
          %s8316 = smul.addr %s87, 64
          %s8317 = scalar_lea.hbm %s59, %s8316
          %s8319 = sshll.u32 %s8293, 4
          %s8320 = int_to_ptr.vmem [resolvable:$true] %s8319
          %8322 = dma.vmem_to_hbm [thread:$0]  %s8320, 64, %s8317, %s8290
        $region200: #{tpu_custom_call.1} parent=127 // pred_fallthru
          _
      $region128: #{tpu_custom_call.1} parent=5 // pred_fallthru
        _
      %p8323 = scmp.le.s32.totalorder 2, %s82
      // Predicated region
      $region201: #{tpu_custom_call.1} parent=5 // pred_check
        %p8324 = pneg %p8323
      $region202: #{tpu_custom_call.1} parent=5 // pred_check_branch
        %8326 = sbr.rel (%p8324) target = $region204
      $region203: #{tpu_custom_call.1} parent=5 // pred_region
        %s8327 = ssub.s32 %s82, 2
        // Predicated region
        $region205: #{tpu_custom_call.1} parent=203 // pred_check
          %p8328 = pneg %p693
        $region206: #{tpu_custom_call.1} parent=203 // pred_check_branch
          %8330 = sbr.rel (%p8328) target = $region208
        $region207: #{tpu_custom_call.1} parent=203 // pred_region
          %s8331 = sand.u32 %s678, 1
          %s8332 = scalar_lea.sflag [#allocation4], %s8331
          %s8333 = sand.u32 %s678, 1
          %s8334 = smul.addr %s8333, 8
          %s8335 = scalar_lea.vmem [#allocation26], %s8334
          %8336 = dma.done %s8332, 128
        $region208: #{tpu_custom_call.1} parent=203 // pred_fallthru
          _
        // Predicated region
        $region209: #{tpu_custom_call.1} parent=203 // pred_check
          %p8337 = pneg %p719
        $region210: #{tpu_custom_call.1} parent=203 // pred_check_branch
          %8339 = sbr.rel (%p8337) target = $region212
        $region211: #{tpu_custom_call.1} parent=203 // pred_region
          %p8340 = scmp.lt.s32.totalorder %s88, 1
          %s8341 = scalar_select %p8340, %s88, 1
          %s8342 = smul.addr %s8341, 8
          %s8343 = scalar_lea.vmem %s57, %s8342
        $region212: #{tpu_custom_call.1} parent=203 // pred_fallthru
          _
        // Predicated region
        $region213: #{tpu_custom_call.1} parent=203 // pred_check
          %p8344 = pneg %p745
        $region214: #{tpu_custom_call.1} parent=203 // pred_check_branch
          %8346 = sbr.rel (%p8344) target = $region216
        $region215: #{tpu_custom_call.1} parent=203 // pred_region
          %s8347 = sand.u32 %s730, 1
          %s8348 = scalar_lea.sflag [#allocation28], %s8347
          %s8349 = sand.u32 %s730, 1
          %s8350 = smul.addr %s8349, 4
          %s8351 = scalar_lea.vmem [#allocation27], %s8350
          %8352 = dma.done %s8348, 64
        $region216: #{tpu_custom_call.1} parent=203 // pred_fallthru
          _
      $region204: #{tpu_custom_call.1} parent=5 // pred_fallthru
        _
    $region6: #{tpu_custom_call.1} parent=1 // loop_footer
      %s86 = sadd.s32 1, %s82
    $region7: #{tpu_custom_call.1} parent=1 // loop_footer_branch
      %81 = sbr.rel target = $region3
    $region8: #{tpu_custom_call.1} parent=1 // loop_exit
      _
    %8353 = vsyncpa [#allocation3], 1
    %s8354 = scalar_lea.sflag [#allocation3], 1
    %8355 = vsyncpa %s8354, 1
    %8356 = vsyncpa [#allocation6], 1
    %8357 = vsyncpa [#allocation9], 1
    %8358 = vsyncpa [#allocation12], 1
    %8359 = vsyncpa [#allocation15], 1
    %8360 = vsyncpa [#allocation18], 1
    %8361 = vsyncpa [#allocation21], 1
    %8362 = vsyncpa [#allocation24], 1
    %8363 = vsyncpa [#allocation4], 1
    %s8364 = scalar_lea.sflag [#allocation4], 1
    %8365 = vsyncpa %s8364, 1
    %8366 = vsyncpa [#allocation28], 1
    %s8367 = scalar_lea.sflag [#allocation28], 1
    %8368 = vsyncpa %s8367, 1

</llo_original>
